<compile_context>
chip_gen: v5e
topology: v5e:2x2
jax: 0.10.0
libtpu: 0.0.40
codegen_flags: <defaults>
</compile_context>

<pallas_src>
import functools

import jax
import jax.numpy as jnp
import numpy as np
from jax.experimental import pallas as pl
from jax.experimental.pallas import tpu as pltpu

TILE_M = 512   # row tile for the conv matmuls (grid == 1 at these shapes; scales to larger inputs)
LN_EPS = 1e-6  # the module's LayerNorm uses eps=1e-6 (ConvNeXt-style)


# ----------------------------------------------------------------------------
# Pallas kernels
# ----------------------------------------------------------------------------

def _band_matmul_kernel(a_ref, w_ref, bias_ref, o_ref):
    """out = A @ W + bias.

    A: (tm, K) bf16 H-only-im2col LHS, W: (K, N) bf16 static banded conv weights,
    bias: (1, N) f32 per-channel bias tiled over the output width, out: (tm, N) f32.
    """
    o_ref[...] = (
        jnp.dot(a_ref[...], w_ref[...], preferred_element_type=jnp.float32)
        + bias_ref[...]
    )


def _conv0_ln_kernel(a_ref, w_ref, bias_ref, avg_ref, g_ref, b_ref, o_ref, oln_ref):
    """conv0 band matmul with a fused channels_first-LayerNorm epilogue.

    Output layout is (rows = B*Ho, lanes = Wo*C).  Per-pixel channel mean / variance are
    computed with a static block-diagonal averaging matrix (kron(I_Wo, 1/C)), which keeps the
    epilogue lane-dense and on the MXU instead of reshaping to (pixels, C).
    """
    acc = (
        jnp.dot(a_ref[...], w_ref[...], preferred_element_type=jnp.float32)
        + bias_ref[...]
    )
    o_ref[...] = acc                                   # features[0] (pre-LN, reused at level 0)
    avg = avg_ref[...]
    mu = jnp.dot(acc, avg, preferred_element_type=jnp.float32)
    msq = jnp.dot(acc * acc, avg, preferred_element_type=jnp.float32)
    var = jnp.maximum(msq - mu * mu, 0.0)
    oln_ref[...] = (acc - mu) * jax.lax.rsqrt(var + LN_EPS) * g_ref[...] + b_ref[...]


def _tsf_vq_kernel(z1_ref, z2_ref, c1_ref, c2_ref, emb_ref, ee_ref,
                   zq1_ref, zq2_ref, loss_ref):
    """Fused tsf (style-weighted sum over n) + vector quantization for both branches.

    Per grid step (one batch element):
      zt  = sum_n coef[n] * z[n]                     (tsf)
      d   = ||zt||^2 + ||e||^2 - 2 zt . e^T          (VQ distances)
      zq  = onehot(first_argmin(d)) @ e              (codebook gather on the MXU)
    and the three sum-of-squared-error partials (zq1 vs zt1, zq2 vs zt2, zq1 vs zt2) are
    written to lanes 0..2 of the loss row.
    """
    n = z1_ref.shape[1]
    P, C = z1_ref.shape[2], z1_ref.shape[3]
    K = emb_ref.shape[0]

    c1 = c1_ref[0]                      # (n, 1, C)
    c2 = c2_ref[0]
    zt1 = jnp.zeros((P, C), jnp.float32)
    zt2 = jnp.zeros((P, C), jnp.float32)
    for ni in range(n):                 # n == style_dim == 4, statically unrolled
        zt1 = zt1 + z1_ref[0, ni] * c1[ni]
        zt2 = zt2 + z2_ref[0, ni] * c2[ni]

    e = emb_ref[...]                    # (K, C) codebook, resident in VMEM
    ee = ee_ref[...]                    # (1, K) precomputed ||e_k||^2

    def quantize(z):
        zz = jnp.sum(z * z, axis=1, keepdims=True)                        # (P, 1)
        cross = jax.lax.dot_general(z, e, (((1,), (1,)), ((), ())),
                                    preferred_element_type=jnp.float32)   # (P, K)
        d = zz + ee - 2.0 * cross
        dmin = jnp.min(d, axis=1, keepdims=True)
        kio = jax.lax.broadcasted_iota(jnp.int32, (P, K), 1)
        first = jnp.min(jnp.where(d <= dmin, kio, K), axis=1, keepdims=True)
        onehot = (kio == first).astype(jnp.float32)                       # (P, K)
        return jnp.dot(onehot, e, preferred_element_type=jnp.float32)     # (P, C)

    zq1 = quantize(zt1)
    zq2 = quantize(zt2)
    # TODO(synk): forward-only; a straight-through estimator (z + stop_gradient(zq - z)) would
    #             be needed for correct gradients through the encoder.
    zq1_ref[0] = zq1
    zq2_ref[0] = zq2

    sse1 = jnp.sum((zq1 - zt1) ** 2)
    sse2 = jnp.sum((zq2 - zt2) ** 2)
    ssec = jnp.sum((zq1 - zt2) ** 2)
    lane = jax.lax.broadcasted_iota(jnp.int32, (1, 128), 1)
    loss_ref[0] = (sse1 * (lane == 0).astype(jnp.float32)
                   + sse2 * (lane == 1).astype(jnp.float32)
                   + ssec * (lane == 2).astype(jnp.float32))


# ----------------------------------------------------------------------------
# Pallas wrappers
# ----------------------------------------------------------------------------

def _row_tile(m):
    tm = m if m <= TILE_M else TILE_M
    assert m % tm == 0, (m, tm)
    return tm


def band_matmul(lhs, w_band, bias_row):
    """lhs: (M, K) bf16, w_band: (K, N) bf16, bias_row: (1, N) f32 -> (M, N) f32."""
    M, K = lhs.shape
    N = w_band.shape[1]
    tm = _row_tile(M)
    return pl.pallas_call(
        _band_matmul_kernel,
        out_shape=jax.ShapeDtypeStruct((M, N), jnp.float32),
        grid=(M // tm,),
        in_specs=[pl.BlockSpec((tm, K), lambda i: (i, 0)),
                  pl.BlockSpec((K, N), lambda i: (0, 0)),
                  pl.BlockSpec((1, N), lambda i: (0, 0))],
        out_specs=pl.BlockSpec((tm, N), lambda i: (i, 0)),
        compiler_params=pltpu.CompilerParams(dimension_semantics=("parallel",)),
    )(lhs, w_band, bias_row)


def conv0_with_ln(lhs, w_band, bias_row, ln_avg, ln_g_row, ln_b_row):
    """conv0 band matmul emitting (features0, LayerNorm(features0)) in one pass."""
    M, K = lhs.shape
    N = w_band.shape[1]
    tm = _row_tile(M)
    return pl.pallas_call(
        _conv0_ln_kernel,
        out_shape=(jax.ShapeDtypeStruct((M, N), jnp.float32),
                   jax.ShapeDtypeStruct((M, N), jnp.float32)),
        grid=(M // tm,),
        in_specs=[pl.BlockSpec((tm, K), lambda i: (i, 0)),
                  pl.BlockSpec((K, N), lambda i: (0, 0)),
                  pl.BlockSpec((1, N), lambda i: (0, 0)),
                  pl.BlockSpec((N, N), lambda i: (0, 0)),
                  pl.BlockSpec((1, N), lambda i: (0, 0)),
                  pl.BlockSpec((1, N), lambda i: (0, 0))],
        out_specs=[pl.BlockSpec((tm, N), lambda i: (i, 0)),
                   pl.BlockSpec((tm, N), lambda i: (i, 0))],
        compiler_params=pltpu.CompilerParams(dimension_semantics=("parallel",)),
    )(lhs, w_band, bias_row, ln_avg, ln_g_row, ln_b_row)


def tsf_vq(z1, z2, coef1, coef2, emb, ee_row):
    """z1, z2: (b, n, P, C) f32 latents; coef: (b, n); emb: (K, C); ee_row: (1, K)."""
    b, n, P, C = z1.shape
    K = emb.shape[0]
    c1 = jnp.broadcast_to(coef1[:, :, None, None], (b, n, 1, C)).astype(jnp.float32)
    c2 = jnp.broadcast_to(coef2[:, :, None, None], (b, n, 1, C)).astype(jnp.float32)
    return pl.pallas_call(
        _tsf_vq_kernel,
        out_shape=(jax.ShapeDtypeStruct((b, P, C), jnp.float32),
                   jax.ShapeDtypeStruct((b, P, C), jnp.float32),
                   jax.ShapeDtypeStruct((b, 1, 128), jnp.float32)),
        grid=(b,),
        in_specs=[pl.BlockSpec((1, n, P, C), lambda i: (i, 0, 0, 0)),
                  pl.BlockSpec((1, n, P, C), lambda i: (i, 0, 0, 0)),
                  pl.BlockSpec((1, n, 1, C), lambda i: (i, 0, 0, 0)),
                  pl.BlockSpec((1, n, 1, C), lambda i: (i, 0, 0, 0)),
                  pl.BlockSpec((K, C), lambda i: (0, 0)),
                  pl.BlockSpec((1, K), lambda i: (0, 0))],
        out_specs=[pl.BlockSpec((1, P, C), lambda i: (i, 0, 0)),
                   pl.BlockSpec((1, P, C), lambda i: (i, 0, 0)),
                   pl.BlockSpec((1, 1, 128), lambda i: (i, 0, 0))],
        compiler_params=pltpu.CompilerParams(dimension_semantics=("parallel",)),
    )(z1, z2, c1, c2, emb, ee_row)


# ----------------------------------------------------------------------------
# XLA glue (cheap, fused under jit): padding, H-only im2col, upsample+tile
# ----------------------------------------------------------------------------

def hband_lhs(xpad, kh, stride, out_h):
    """H-only im2col: (B, Hp, Wp, C) padded NHWC -> (B*out_h, kh*Wp*C) bf16 LHS.

    The kw / Cin / width expansion lives in the static band weight matrix, so this is the only
    activation expansion (<= kh x) and it is just kh strided row slices + a concat.
    """
    B, Hp, Wp, C = xpad.shape
    x2 = xpad.reshape(B, Hp, Wp * C).astype(jnp.bfloat16)
    rows = [x2[:, di:di + stride * (out_h - 1) + 1:stride, :] for di in range(kh)]
    lhs = jnp.concatenate(rows, axis=-1)
    return lhs.reshape(B * out_h, kh * Wp * C)


def pad_hw(x, p):
    return jnp.pad(x, ((0, 0), (p, p), (p, p), (0, 0)))


def upsample_tile(zq_img, n, scale):
    """nn.Upsample(nearest, scale) + torch.tile over the style dim, channels-last."""
    if scale != 1:
        zq_img = jnp.repeat(jnp.repeat(zq_img, scale, axis=1), scale, axis=2)
    b, h, w, c = zq_img.shape
    return jnp.broadcast_to(zq_img[:, None], (b, n, h, w, c)).reshape(b * n, h, w, c)


def _combine_losses(loss_arr, beta, denom):
    """loss_arr: (b, 1, 128) with lanes [sse(zq1,z1), sse(zq2,z2), sse(zq1,z2)] per batch elem.

    forward value of the VQ losses: (1+beta)*mse1 + (1+beta)*mse2 + beta*mse_cross.
    """
    s = jnp.sum(loss_arr[:, 0, :], axis=0)
    return ((1.0 + beta) * (s[0] + s[1]) + beta * s[2]) / denom


# ----------------------------------------------------------------------------
# ImageEncoder forward
# ----------------------------------------------------------------------------

def image_encoder_forward(params, x, s_all, s_subgroup, args):
    beta = args["vq_beta"]
    c0, c1 = args["conv_channels"]
    latent = args["latent_space_dim"]
    b, n, H, W = x.shape
    B = b * n
    H1, W1 = H // 2, W // 2

    # ---- down path ----
    # TODO(synk): AttnResBlock internals are not defined in the reference file; with
    #             resblock_n=[0, 0] each stack reduces to identity, so nothing is lowered for it.
    x_nhwc = x.reshape(B, H, W, 1).astype(jnp.float32)
    lhs0 = hband_lhs(pad_hw(x_nhwc, 1), kh=3, stride=1, out_h=H)
    feat0_rows, ln0_rows = conv0_with_ln(
        lhs0, params["w0_band"], params["b0_row"],
        params["ln_avg"], params["ln_g_row"], params["ln_b_row"])
    feat0 = feat0_rows.reshape(B, H, W, c0)          # free reshape (row-major)
    ln0 = ln0_rows.reshape(B, H, W, c0)

    lhs1 = hband_lhs(pad_hw(ln0, 1), kh=4, stride=2, out_h=H1)
    feat1_rows = band_matmul(lhs1, params["w1_band"], params["b1_row"])
    feat1 = feat1_rows.reshape(B, H1, W1, c1)

    # ---- style-fusion coefficients: tiny (b=2, n=4) -> plain jnp, no padded MXU call ----
    def latent_fusion(s):
        h = s @ params["fus_w1"].T + params["fus_b1"]
        return h @ params["fus_w2"].T + params["fus_b2"]

    coef_all = (latent_fusion(s_all) * s_all) * s_all                 # == s * weight_all
    coef_sub = (latent_fusion(s_subgroup) * s_subgroup) * s_subgroup  # == s * weight_sub

    emb = params["vq_emb"]
    ee_row = params["vq_ee_row"]

    # ---- level 1 (deepest): conv_latent[1] -> fused tsf+VQ (z2 shares the same conv output) --
    lhs_l1 = hband_lhs(pad_hw(feat1, 1), kh=3, stride=1, out_h=H1)
    zrows1 = band_matmul(lhs_l1, params["lat1_band"], params["lat1_row"])
    zlev1 = zrows1.reshape(b, n, H1 * W1, latent)
    zq1_l1, zq2_l1, loss_l1 = tsf_vq(zlev1, zlev1, coef_all, coef_sub, emb, ee_row)
    vq_losses = _combine_losses(loss_l1, beta, b * H1 * W1 * latent)

    # up_layers[1] = nearest-upsample x2, then tile over the style dim
    x1 = upsample_tile(zq1_l1.reshape(b, H1, W1, latent), n, 2)
    x2 = upsample_tile(zq2_l1.reshape(b, H1, W1, latent), n, 2)

    # ---- level 0: conv_latent[0] on cat([x, features[0]]); both branches batched along M ----
    lhs_l0 = jnp.concatenate(
        [hband_lhs(pad_hw(jnp.concatenate([x1, feat0], axis=-1), 1), 3, 1, H),
         hband_lhs(pad_hw(jnp.concatenate([x2, feat0], axis=-1), 1), 3, 1, H)],
        axis=0)
    zrows0 = band_matmul(lhs_l0, params["lat0_band"], params["lat0_row"])
    M0 = B * H
    z1lev0 = zrows0[:M0].reshape(b, n, H * W, latent)
    z2lev0 = zrows0[M0:].reshape(b, n, H * W, latent)
    zq1_l0, zq2_l0, loss_l0 = tsf_vq(z1lev0, z2lev0, coef_all, coef_sub, emb, ee_row)
    vq_losses = vq_losses + _combine_losses(loss_l0, beta, b * H * W * latent)

    # module contract: NCHW outputs, deepest level first
    zqs_all = [zq1_l1.reshape(b, H1, W1, latent).transpose(0, 3, 1, 2),
               zq1_l0.reshape(b, H, W, latent).transpose(0, 3, 1, 2)]
    zqs_subgroup = [zq2_l1.reshape(b, H1, W1, latent).transpose(0, 3, 1, 2),
                    zq2_l0.reshape(b, H, W, latent).transpose(0, 3, 1, 2)]
    return zqs_all, zqs_subgroup, vq_losses


# ----------------------------------------------------------------------------
# Deterministic parameter init (synthetic; band matrices prebuilt once, no checkpoints)
# ----------------------------------------------------------------------------

def conv_band(w, Wp, Wo, stride):
    """Fold a (Cout, Cin, kh, kw) conv weight into a banded (kh*Wp*Cin, Wo*Cout) matrix so the
    conv becomes a single matmul against the H-only im2col LHS (built once, at init)."""
    w = np.asarray(w, np.float32)
    Cout, Cin, kh, kw = w.shape
    band = np.zeros((kh * Wp * Cin, Wo * Cout), np.float32)
    for j in range(Wo):
        for di in range(kh):
            for dj in range(kw):
                col = stride * j + dj
                r0 = (di * Wp + col) * Cin
                band[r0:r0 + Cin, j * Cout:(j + 1) * Cout] = w[:, :, di, dj].T
    return band


def init_params(key, args, H, W):
    ce = args["conv_channels"]
    ke = args["conv_kernel"]
    latent = args["latent_space_dim"]
    sd = args["style_dim"]
    ne = args["vq_n_embed"]
    H1, W1 = H // 2, W // 2
    ks = jax.random.split(key, 11)

    # raw PyTorch-layout weights
    w0 = 0.1 * jax.random.normal(ks[0], (ce[0], 1, ke[0], ke[0]), jnp.float32)
    b0 = 0.01 * jax.random.normal(ks[1], (ce[0],), jnp.float32)
    ln_g = jnp.ones((ce[0],), jnp.float32)
    ln_b = jnp.zeros((ce[0],), jnp.float32)
    w1 = 0.1 * jax.random.normal(ks[2], (ce[1], ce[0], ke[1], ke[1]), jnp.float32)
    b1 = 0.01 * jax.random.normal(ks[3], (ce[1],), jnp.float32)
    # conv_latent[0]: in = ce[0] + latent (up_scale != 2**(L-1)); conv_latent[1]: in = ce[1]
    lat0_w = 0.1 * jax.random.normal(ks[4], (latent, ce[0] + latent, 3, 3), jnp.float32)
    lat0_b = 0.01 * jax.random.normal(ks[5], (latent,), jnp.float32)
    lat1_w = 0.1 * jax.random.normal(ks[6], (latent, ce[1], 3, 3), jnp.float32)
    lat1_b = 0.01 * jax.random.normal(ks[7], (latent,), jnp.float32)
    fus_w1 = 0.1 * jax.random.normal(ks[8], (sd * 4, sd), jnp.float32)
    fus_w2 = 0.1 * jax.random.normal(ks[9], (sd, sd * 4), jnp.float32)
    vq_emb = jax.random.uniform(ks[10], (ne, latent), jnp.float32, -1.0 / ne, 1.0 / ne)

    p = {}
    # conv0 (1->c0, k=3, s=1, pad=1) + fused LayerNorm tables
    p["w0_band"] = jnp.asarray(conv_band(w0, W + 2, W, 1), jnp.bfloat16)
    p["b0_row"] = jnp.tile(b0, (W,)).reshape(1, -1)
    p["ln_avg"] = jnp.asarray(np.kron(np.eye(W, dtype=np.float32),
                                      np.full((ce[0], ce[0]), 1.0 / ce[0], np.float32)))
    p["ln_g_row"] = jnp.tile(ln_g, (W,)).reshape(1, -1)
    p["ln_b_row"] = jnp.tile(ln_b, (W,)).reshape(1, -1)
    # conv1 (c0->c1, k=4, s=2, pad=1)
    p["w1_band"] = jnp.asarray(conv_band(w1, W + 2, W1, 2), jnp.bfloat16)
    p["b1_row"] = jnp.tile(b1, (W1,)).reshape(1, -1)
    # conv_latent
    p["lat1_band"] = jnp.asarray(conv_band(lat1_w, W1 + 2, W1, 1), jnp.bfloat16)
    p["lat1_row"] = jnp.tile(lat1_b, (W1,)).reshape(1, -1)
    p["lat0_band"] = jnp.asarray(conv_band(lat0_w, W + 2, W, 1), jnp.bfloat16)
    p["lat0_row"] = jnp.tile(lat0_b, (W,)).reshape(1, -1)
    # style fusion (plain jnp) and VQ codebook (+ precomputed squared norms)
    p["fus_w1"] = fus_w1
    p["fus_b1"] = jnp.zeros((sd * 4,), jnp.float32)
    p["fus_w2"] = fus_w2
    p["fus_b2"] = jnp.zeros((sd,), jnp.float32)
    p["vq_emb"] = vq_emb
    p["vq_ee_row"] = jnp.sum(vq_emb * vq_emb, axis=1).reshape(1, ne)
    return p


if __name__ == "__main__":
    args = dict(
        in_channels=1,
        conv_channels=[8, 16],
        conv_kernel=[3, 4],
        conv_stride=[1, 2],
        resblock_n=[0, 0],
        resblock_kernel=[3, 3],
        resblock_padding=[1, 1],
        layer_scale_init_value=1e-6,
        hyper_conv_dim=16,
        latent_space_dim=8,
        style_dim=4,
        vq_beta=0.25,
        vq_n_embed=16,
    )

    key = jax.random.PRNGKey(0)
    kx, ks1, ks2, kp = jax.random.split(key, 4)
    b, n, H, W = 2, 4, 16, 16            # n == style_dim
    x = jax.random.normal(kx, (b, n, H, W), jnp.float32)
    s_all = jax.nn.softmax(jax.random.normal(ks1, (b, n), jnp.float32), axis=-1)
    s_subgroup = jax.nn.softmax(jax.random.normal(ks2, (b, n), jnp.float32), axis=-1)

    params = init_params(kp, args, H, W)

    forward = jax.jit(functools.partial(image_encoder_forward, args=args))
    zqs_all, zqs_subgroup, vq_losses = forward(params, x, s_all, s_subgroup)
    jax.block_until_ready((zqs_all, zqs_subgroup, vq_losses))

    # sanity: level order is [deepest, shallowest]; outputs are NCHW like the PyTorch module
    assert zqs_all[0].shape == (b, args["latent_space_dim"], 8, 8)
    assert zqs_all[1].shape == (b, args["latent_space_dim"], 16, 16)
    assert zqs_subgroup[0].shape == zqs_all[0].shape
    assert zqs_subgroup[1].shape == zqs_all[1].shape
    assert vq_losses.shape == ()
    assert bool(jnp.isfinite(vq_losses))

    print("KERNEL_OK")
</pallas_src>

<mosaic_0001>
module attributes {stable_mosaic.version = 11 : i64} {
  func.func @_conv0_ln_kernel(%arg0: i32, %arg1: memref<128x54xbf16, #tpu.memory_space<vmem>>, %arg2: memref<54x128xbf16, #tpu.memory_space<vmem>>, %arg3: memref<1x128xf32, #tpu.memory_space<vmem>>, %arg4: memref<128x128xf32, #tpu.memory_space<vmem>>, %arg5: memref<1x128xf32, #tpu.memory_space<vmem>>, %arg6: memref<1x128xf32, #tpu.memory_space<vmem>>, %arg7: memref<128x128xf32, #tpu.memory_space<vmem>>, %arg8: memref<128x128xf32, #tpu.memory_space<vmem>>) attributes {dimension_semantics = [#tpu.dimension_semantics<parallel>], iteration_bounds = array<i64: 1>, scalar_prefetch = 0 : i64, scratch_operands = 0 : i64, tpu.core_type = #tpu.core_type<tc>, window_params = [{transform_indices = @transform_0, window_bounds = array<i64: 128, 54>}, {pipeline_mode = #tpu.pipeline_mode<synchronous>, transform_indices = @transform_1, window_bounds = array<i64: 54, 128>}, {pipeline_mode = #tpu.pipeline_mode<synchronous>, transform_indices = @transform_2, window_bounds = array<i64: 1, 128>}, {pipeline_mode = #tpu.pipeline_mode<synchronous>, transform_indices = @transform_3, window_bounds = array<i64: 128, 128>}, {pipeline_mode = #tpu.pipeline_mode<synchronous>, transform_indices = @transform_4, window_bounds = array<i64: 1, 128>}, {pipeline_mode = #tpu.pipeline_mode<synchronous>, transform_indices = @transform_5, window_bounds = array<i64: 1, 128>}, {transform_indices = @transform_6, window_bounds = array<i64: 128, 128>}, {transform_indices = @transform_7, window_bounds = array<i64: 128, 128>}]} {
    %c0 = arith.constant 0 : index
    %c0_0 = arith.constant 0 : index
    %0 = vector.load %arg1[%c0, %c0_0] : memref<128x54xbf16, #tpu.memory_space<vmem>>, vector<128x54xbf16>
    %c0_1 = arith.constant 0 : index
    %c0_2 = arith.constant 0 : index
    %1 = vector.load %arg2[%c0_1, %c0_2] : memref<54x128xbf16, #tpu.memory_space<vmem>>, vector<54x128xbf16>
    %cst = arith.constant dense<0.000000e+00> : vector<128x128xf32>
    %2 = tpu.matmul %0, %1, %cst {dimension_numbers = #tpu.dot_dimension_numbers<[1], [0], [0], [1], [0, 0, 1, 1], [], []>} : vector<128x54xbf16>, vector<54x128xbf16>, vector<128x128xf32> -> vector<128x128xf32>
    %c0_3 = arith.constant 0 : index
    %c0_4 = arith.constant 0 : index
    %3 = vector.load %arg3[%c0_3, %c0_4] : memref<1x128xf32, #tpu.memory_space<vmem>>, vector<1x128xf32>
    %4 = vector.broadcast %3 : vector<1x128xf32> to vector<128x128xf32>
    %5 = arith.addf %2, %4 : vector<128x128xf32>
    %c0_5 = arith.constant 0 : index
    %c0_6 = arith.constant 0 : index
    %6 = vector.load %arg7[%c0_5, %c0_6] : memref<128x128xf32, #tpu.memory_space<vmem>>, vector<128x128xf32>
    tpu.vector_store %arg7[%c0_5, %c0_6], %5 {strides = array<i32>} : memref<128x128xf32, #tpu.memory_space<vmem>>, vector<128x128xf32>,
    %c0_7 = arith.constant 0 : index
    %c0_8 = arith.constant 0 : index
    %7 = vector.load %arg4[%c0_7, %c0_8] : memref<128x128xf32, #tpu.memory_space<vmem>>, vector<128x128xf32>
    %cst_9 = arith.constant dense<0.000000e+00> : vector<128x128xf32>
    %8 = tpu.matmul %5, %7, %cst_9 {dimension_numbers = #tpu.dot_dimension_numbers<[1], [0], [0], [1], [0, 0, 1, 1], [], []>} : vector<128x128xf32>, vector<128x128xf32>, vector<128x128xf32> -> vector<128x128xf32>
    %9 = arith.mulf %5, %5 : vector<128x128xf32>
    %cst_10 = arith.constant dense<0.000000e+00> : vector<128x128xf32>
    %10 = tpu.matmul %9, %7, %cst_10 {dimension_numbers = #tpu.dot_dimension_numbers<[1], [0], [0], [1], [0, 0, 1, 1], [], []>} : vector<128x128xf32>, vector<128x128xf32>, vector<128x128xf32> -> vector<128x128xf32>
    %11 = arith.mulf %8, %8 : vector<128x128xf32>
    %12 = arith.subf %10, %11 : vector<128x128xf32>
    %cst_11 = arith.constant 0.000000e+00 : f32
    %13 = vector.broadcast %cst_11 : f32 to vector<128x128xf32>
    %14 = arith.maximumf %12, %13 : vector<128x128xf32>
    %15 = arith.subf %5, %8 : vector<128x128xf32>
    %cst_12 = arith.constant 9.99999997E-7 : f32
    %16 = vector.broadcast %cst_12 : f32 to vector<128x128xf32>
    %17 = arith.addf %14, %16 : vector<128x128xf32>
    %18 = math.rsqrt %17 : vector<128x128xf32>
    %19 = arith.mulf %15, %18 : vector<128x128xf32>
    %c0_13 = arith.constant 0 : index
    %c0_14 = arith.constant 0 : index
    %20 = vector.load %arg5[%c0_13, %c0_14] : memref<1x128xf32, #tpu.memory_space<vmem>>, vector<1x128xf32>
    %21 = vector.broadcast %20 : vector<1x128xf32> to vector<128x128xf32>
    %22 = arith.mulf %19, %21 : vector<128x128xf32>
    %c0_15 = arith.constant 0 : index
    %c0_16 = arith.constant 0 : index
    %23 = vector.load %arg6[%c0_15, %c0_16] : memref<1x128xf32, #tpu.memory_space<vmem>>, vector<1x128xf32>
    %24 = vector.broadcast %23 : vector<1x128xf32> to vector<128x128xf32>
    %25 = arith.addf %22, %24 : vector<128x128xf32>
    %c0_17 = arith.constant 0 : index
    %c0_18 = arith.constant 0 : index
    %26 = vector.load %arg8[%c0_17, %c0_18] : memref<128x128xf32, #tpu.memory_space<vmem>>, vector<128x128xf32>
    tpu.vector_store %arg8[%c0_17, %c0_18], %25 {strides = array<i32>} : memref<128x128xf32, #tpu.memory_space<vmem>>, vector<128x128xf32>,
    return
  }
  func.func @transform_0(%arg0: i32) -> (i32, i32) {
    %c0_i32 = arith.constant 0 : i32
    %c0_i32_0 = arith.constant 0 : i32
    return %arg0, %c0_i32 : i32, i32
  }
  func.func @transform_1(%arg0: i32) -> (i32, i32) {
    %c0_i32 = arith.constant 0 : i32
    %c0_i32_0 = arith.constant 0 : i32
    %c0_i32_1 = arith.constant 0 : i32
    return %c0_i32, %c0_i32_0 : i32, i32
  }
  func.func @transform_2(%arg0: i32) -> (i32, i32) {
    %c0_i32 = arith.constant 0 : i32
    %c0_i32_0 = arith.constant 0 : i32
    %c0_i32_1 = arith.constant 0 : i32
    return %c0_i32, %c0_i32_0 : i32, i32
  }
  func.func @transform_3(%arg0: i32) -> (i32, i32) {
    %c0_i32 = arith.constant 0 : i32
    %c0_i32_0 = arith.constant 0 : i32
    %c0_i32_1 = arith.constant 0 : i32
    return %c0_i32, %c0_i32_0 : i32, i32
  }
  func.func @transform_4(%arg0: i32) -> (i32, i32) {
    %c0_i32 = arith.constant 0 : i32
    %c0_i32_0 = arith.constant 0 : i32
    %c0_i32_1 = arith.constant 0 : i32
    return %c0_i32, %c0_i32_0 : i32, i32
  }
  func.func @transform_5(%arg0: i32) -> (i32, i32) {
    %c0_i32 = arith.constant 0 : i32
    %c0_i32_0 = arith.constant 0 : i32
    %c0_i32_1 = arith.constant 0 : i32
    return %c0_i32, %c0_i32_0 : i32, i32
  }
  func.func @transform_6(%arg0: i32) -> (i32, i32) {
    %c0_i32 = arith.constant 0 : i32
    %c0_i32_0 = arith.constant 0 : i32
    return %arg0, %c0_i32 : i32, i32
  }
  func.func @transform_7(%arg0: i32) -> (i32, i32) {
    %c0_i32 = arith.constant 0 : i32
    %c0_i32_0 = arith.constant 0 : i32
    return %arg0, %c0_i32 : i32, i32
  }
}

module attributes {stable_mosaic.version = 11 : i64} {
  func.func @_band_matmul_kernel(%arg0: i32, %arg1: memref<64x576xbf16, #tpu.memory_space<vmem>>, %arg2: memref<576x128xbf16, #tpu.memory_space<vmem>>, %arg3: memref<1x128xf32, #tpu.memory_space<vmem>>, %arg4: memref<64x128xf32, #tpu.memory_space<vmem>>) attributes {dimension_semantics = [#tpu.dimension_semantics<parallel>], iteration_bounds = array<i64: 1>, scalar_prefetch = 0 : i64, scratch_operands = 0 : i64, tpu.core_type = #tpu.core_type<tc>, window_params = [{transform_indices = @transform_0, window_bounds = array<i64: 64, 576>}, {pipeline_mode = #tpu.pipeline_mode<synchronous>, transform_indices = @transform_1, window_bounds = array<i64: 576, 128>}, {pipeline_mode = #tpu.pipeline_mode<synchronous>, transform_indices = @transform_2, window_bounds = array<i64: 1, 128>}, {transform_indices = @transform_3, window_bounds = array<i64: 64, 128>}]} {
    %c0 = arith.constant 0 : index
    %c0_0 = arith.constant 0 : index
    %0 = vector.load %arg1[%c0, %c0_0] : memref<64x576xbf16, #tpu.memory_space<vmem>>, vector<64x576xbf16>
    %c0_1 = arith.constant 0 : index
    %c0_2 = arith.constant 0 : index
    %1 = vector.load %arg2[%c0_1, %c0_2] : memref<576x128xbf16, #tpu.memory_space<vmem>>, vector<576x128xbf16>
    %cst = arith.constant dense<0.000000e+00> : vector<64x128xf32>
    %2 = tpu.matmul %0, %1, %cst {dimension_numbers = #tpu.dot_dimension_numbers<[1], [0], [0], [1], [0, 0, 1, 1], [], []>} : vector<64x576xbf16>, vector<576x128xbf16>, vector<64x128xf32> -> vector<64x128xf32>
    %c0_3 = arith.constant 0 : index
    %c0_4 = arith.constant 0 : index
    %3 = vector.load %arg3[%c0_3, %c0_4] : memref<1x128xf32, #tpu.memory_space<vmem>>, vector<1x128xf32>
    %4 = vector.broadcast %3 : vector<1x128xf32> to vector<64x128xf32>
    %5 = arith.addf %2, %4 : vector<64x128xf32>
    %c0_5 = arith.constant 0 : index
    %c0_6 = arith.constant 0 : index
    %6 = vector.load %arg4[%c0_5, %c0_6] : memref<64x128xf32, #tpu.memory_space<vmem>>, vector<64x128xf32>
    tpu.vector_store %arg4[%c0_5, %c0_6], %5 {strides = array<i32>} : memref<64x128xf32, #tpu.memory_space<vmem>>, vector<64x128xf32>,
    return
  }
  func.func @transform_0(%arg0: i32) -> (i32, i32) {
    %c0_i32 = arith.constant 0 : i32
    %c0_i32_0 = arith.constant 0 : i32
    return %arg0, %c0_i32 : i32, i32
  }
  func.func @transform_1(%arg0: i32) -> (i32, i32) {
    %c0_i32 = arith.constant 0 : i32
    %c0_i32_0 = arith.constant 0 : i32
    %c0_i32_1 = arith.constant 0 : i32
    return %c0_i32, %c0_i32_0 : i32, i32
  }
  func.func @transform_2(%arg0: i32) -> (i32, i32) {
    %c0_i32 = arith.constant 0 : i32
    %c0_i32_0 = arith.constant 0 : i32
    %c0_i32_1 = arith.constant 0 : i32
    return %c0_i32, %c0_i32_0 : i32, i32
  }
  func.func @transform_3(%arg0: i32) -> (i32, i32) {
    %c0_i32 = arith.constant 0 : i32
    %c0_i32_0 = arith.constant 0 : i32
    return %arg0, %c0_i32 : i32, i32
  }
}

module attributes {stable_mosaic.version = 11 : i64} {
  func.func @_band_matmul_kernel(%arg0: i32, %arg1: memref<64x480xbf16, #tpu.memory_space<vmem>>, %arg2: memref<480x64xbf16, #tpu.memory_space<vmem>>, %arg3: memref<1x64xf32, #tpu.memory_space<vmem>>, %arg4: memref<64x64xf32, #tpu.memory_space<vmem>>) attributes {dimension_semantics = [#tpu.dimension_semantics<parallel>], iteration_bounds = array<i64: 1>, scalar_prefetch = 0 : i64, scratch_operands = 0 : i64, tpu.core_type = #tpu.core_type<tc>, window_params = [{transform_indices = @transform_0, window_bounds = array<i64: 64, 480>}, {pipeline_mode = #tpu.pipeline_mode<synchronous>, transform_indices = @transform_1, window_bounds = array<i64: 480, 64>}, {pipeline_mode = #tpu.pipeline_mode<synchronous>, transform_indices = @transform_2, window_bounds = array<i64: 1, 64>}, {transform_indices = @transform_3, window_bounds = array<i64: 64, 64>}]} {
    %c0 = arith.constant 0 : index
    %c0_0 = arith.constant 0 : index
    %0 = vector.load %arg1[%c0, %c0_0] : memref<64x480xbf16, #tpu.memory_space<vmem>>, vector<64x480xbf16>
    %c0_1 = arith.constant 0 : index
    %c0_2 = arith.constant 0 : index
    %1 = vector.load %arg2[%c0_1, %c0_2] : memref<480x64xbf16, #tpu.memory_space<vmem>>, vector<480x64xbf16>
    %cst = arith.constant dense<0.000000e+00> : vector<64x64xf32>
    %2 = tpu.matmul %0, %1, %cst {dimension_numbers = #tpu.dot_dimension_numbers<[1], [0], [0], [1], [0, 0, 1, 1], [], []>} : vector<64x480xbf16>, vector<480x64xbf16>, vector<64x64xf32> -> vector<64x64xf32>
    %c0_3 = arith.constant 0 : index
    %c0_4 = arith.constant 0 : index
    %3 = vector.load %arg3[%c0_3, %c0_4] : memref<1x64xf32, #tpu.memory_space<vmem>>, vector<1x64xf32>
    %4 = vector.broadcast %3 : vector<1x64xf32> to vector<64x64xf32>
    %5 = arith.addf %2, %4 : vector<64x64xf32>
    %c0_5 = arith.constant 0 : index
    %c0_6 = arith.constant 0 : index
    %6 = vector.load %arg4[%c0_5, %c0_6] : memref<64x64xf32, #tpu.memory_space<vmem>>, vector<64x64xf32>
    tpu.vector_store %arg4[%c0_5, %c0_6], %5 {strides = array<i32>} : memref<64x64xf32, #tpu.memory_space<vmem>>, vector<64x64xf32>,
    return
  }
  func.func @transform_0(%arg0: i32) -> (i32, i32) {
    %c0_i32 = arith.constant 0 : i32
    %c0_i32_0 = arith.constant 0 : i32
    return %arg0, %c0_i32 : i32, i32
  }
  func.func @transform_1(%arg0: i32) -> (i32, i32) {
    %c0_i32 = arith.constant 0 : i32
    %c0_i32_0 = arith.constant 0 : i32
    %c0_i32_1 = arith.constant 0 : i32
    return %c0_i32, %c0_i32_0 : i32, i32
  }
  func.func @transform_2(%arg0: i32) -> (i32, i32) {
    %c0_i32 = arith.constant 0 : i32
    %c0_i32_0 = arith.constant 0 : i32
    %c0_i32_1 = arith.constant 0 : i32
    return %c0_i32, %c0_i32_0 : i32, i32
  }
  func.func @transform_3(%arg0: i32) -> (i32, i32) {
    %c0_i32 = arith.constant 0 : i32
    %c0_i32_0 = arith.constant 0 : i32
    return %arg0, %c0_i32 : i32, i32
  }
}

module attributes {stable_mosaic.version = 11 : i64} {
  func.func @_tsf_vq_kernel(%arg0: i32, %arg1: memref<1x4x64x8xf32, #tpu.memory_space<vmem>>, %arg2: memref<1x4x64x8xf32, #tpu.memory_space<vmem>>, %arg3: memref<1x4x1x8xf32, #tpu.memory_space<vmem>>, %arg4: memref<1x4x1x8xf32, #tpu.memory_space<vmem>>, %arg5: memref<16x8xf32, #tpu.memory_space<vmem>>, %arg6: memref<1x16xf32, #tpu.memory_space<vmem>>, %arg7: memref<1x64x8xf32, #tpu.memory_space<vmem>>, %arg8: memref<1x64x8xf32, #tpu.memory_space<vmem>>, %arg9: memref<1x1x128xf32, #tpu.memory_space<vmem>>) attributes {dimension_semantics = [#tpu.dimension_semantics<parallel>], iteration_bounds = array<i64: 2>, scalar_prefetch = 0 : i64, scratch_operands = 0 : i64, tpu.core_type = #tpu.core_type<tc>, window_params = [{transform_indices = @transform_0, window_bounds = array<i64: 1, 4, 64, 8>}, {transform_indices = @transform_1, window_bounds = array<i64: 1, 4, 64, 8>}, {transform_indices = @transform_2, window_bounds = array<i64: 1, 4, 1, 8>}, {transform_indices = @transform_3, window_bounds = array<i64: 1, 4, 1, 8>}, {pipeline_mode = #tpu.pipeline_mode<synchronous>, transform_indices = @transform_4, window_bounds = array<i64: 16, 8>}, {pipeline_mode = #tpu.pipeline_mode<synchronous>, transform_indices = @transform_5, window_bounds = array<i64: 1, 16>}, {transform_indices = @transform_6, window_bounds = array<i64: 1, 64, 8>}, {transform_indices = @transform_7, window_bounds = array<i64: 1, 64, 8>}, {transform_indices = @transform_8, window_bounds = array<i64: 1, 1, 128>}]} {
    %c0 = arith.constant 0 : index
    %c0_0 = arith.constant 0 : index
    %c0_1 = arith.constant 0 : index
    %c0_2 = arith.constant 0 : index
    %0 = vector.load %arg3[%c0, %c0_0, %c0_1, %c0_2] : memref<1x4x1x8xf32, #tpu.memory_space<vmem>>, vector<1x4x1x8xf32>
    %1 = vector.shape_cast %0 : vector<1x4x1x8xf32> to vector<4x1x8xf32>
    %c0_3 = arith.constant 0 : index
    %c0_4 = arith.constant 0 : index
    %c0_5 = arith.constant 0 : index
    %c0_6 = arith.constant 0 : index
    %2 = vector.load %arg4[%c0_3, %c0_4, %c0_5, %c0_6] : memref<1x4x1x8xf32, #tpu.memory_space<vmem>>, vector<1x4x1x8xf32>
    %3 = vector.shape_cast %2 : vector<1x4x1x8xf32> to vector<4x1x8xf32>
    %cst = arith.constant 0.000000e+00 : f32
    %4 = vector.broadcast %cst : f32 to vector<64x8xf32>
    %cst_7 = arith.constant 0.000000e+00 : f32
    %5 = vector.broadcast %cst_7 : f32 to vector<64x8xf32>
    %c0_8 = arith.constant 0 : index
    %c0_9 = arith.constant 0 : index
    %c0_10 = arith.constant 0 : index
    %c0_11 = arith.constant 0 : index
    %6 = vector.load %arg1[%c0_8, %c0_9, %c0_10, %c0_11] : memref<1x4x64x8xf32, #tpu.memory_space<vmem>>, vector<1x1x64x8xf32>
    %7 = vector.shape_cast %6 : vector<1x1x64x8xf32> to vector<64x8xf32>
    %8 = vector.extract_strided_slice %1 {offsets = [0, 0, 0], sizes = [1, 1, 8], strides = [1, 1, 1]} : vector<4x1x8xf32> to vector<1x1x8xf32>
    %9 = vector.shape_cast %8 : vector<1x1x8xf32> to vector<1x8xf32>
    %10 = vector.broadcast %9 : vector<1x8xf32> to vector<64x8xf32>
    %11 = arith.mulf %7, %10 : vector<64x8xf32>
    %12 = arith.addf %4, %11 : vector<64x8xf32>
    %c0_12 = arith.constant 0 : index
    %c0_13 = arith.constant 0 : index
    %c0_14 = arith.constant 0 : index
    %c0_15 = arith.constant 0 : index
    %13 = vector.load %arg2[%c0_12, %c0_13, %c0_14, %c0_15] : memref<1x4x64x8xf32, #tpu.memory_space<vmem>>, vector<1x1x64x8xf32>
    %14 = vector.shape_cast %13 : vector<1x1x64x8xf32> to vector<64x8xf32>
    %15 = vector.extract_strided_slice %3 {offsets = [0, 0, 0], sizes = [1, 1, 8], strides = [1, 1, 1]} : vector<4x1x8xf32> to vector<1x1x8xf32>
    %16 = vector.shape_cast %15 : vector<1x1x8xf32> to vector<1x8xf32>
    %17 = vector.broadcast %16 : vector<1x8xf32> to vector<64x8xf32>
    %18 = arith.mulf %14, %17 : vector<64x8xf32>
    %19 = arith.addf %5, %18 : vector<64x8xf32>
    %c0_16 = arith.constant 0 : index
    %c1 = arith.constant 1 : index
    %c0_17 = arith.constant 0 : index
    %c0_18 = arith.constant 0 : index
    %20 = vector.load %arg1[%c0_16, %c1, %c0_17, %c0_18] : memref<1x4x64x8xf32, #tpu.memory_space<vmem>>, vector<1x1x64x8xf32>
    %21 = vector.shape_cast %20 : vector<1x1x64x8xf32> to vector<64x8xf32>
    %22 = vector.extract_strided_slice %1 {offsets = [1, 0, 0], sizes = [1, 1, 8], strides = [1, 1, 1]} : vector<4x1x8xf32> to vector<1x1x8xf32>
    %23 = vector.shape_cast %22 : vector<1x1x8xf32> to vector<1x8xf32>
    %24 = vector.broadcast %23 : vector<1x8xf32> to vector<64x8xf32>
    %25 = arith.mulf %21, %24 : vector<64x8xf32>
    %26 = arith.addf %12, %25 : vector<64x8xf32>
    %c0_19 = arith.constant 0 : index
    %c1_20 = arith.constant 1 : index
    %c0_21 = arith.constant 0 : index
    %c0_22 = arith.constant 0 : index
    %27 = vector.load %arg2[%c0_19, %c1_20, %c0_21, %c0_22] : memref<1x4x64x8xf32, #tpu.memory_space<vmem>>, vector<1x1x64x8xf32>
    %28 = vector.shape_cast %27 : vector<1x1x64x8xf32> to vector<64x8xf32>
    %29 = vector.extract_strided_slice %3 {offsets = [1, 0, 0], sizes = [1, 1, 8], strides = [1, 1, 1]} : vector<4x1x8xf32> to vector<1x1x8xf32>
    %30 = vector.shape_cast %29 : vector<1x1x8xf32> to vector<1x8xf32>
    %31 = vector.broadcast %30 : vector<1x8xf32> to vector<64x8xf32>
    %32 = arith.mulf %28, %31 : vector<64x8xf32>
    %33 = arith.addf %19, %32 : vector<64x8xf32>
    %c0_23 = arith.constant 0 : index
    %c2 = arith.constant 2 : index
    %c0_24 = arith.constant 0 : index
    %c0_25 = arith.constant 0 : index
    %34 = vector.load %arg1[%c0_23, %c2, %c0_24, %c0_25] : memref<1x4x64x8xf32, #tpu.memory_space<vmem>>, vector<1x1x64x8xf32>
    %35 = vector.shape_cast %34 : vector<1x1x64x8xf32> to vector<64x8xf32>
    %36 = vector.extract_strided_slice %1 {offsets = [2, 0, 0], sizes = [1, 1, 8], strides = [1, 1, 1]} : vector<4x1x8xf32> to vector<1x1x8xf32>
    %37 = vector.shape_cast %36 : vector<1x1x8xf32> to vector<1x8xf32>
    %38 = vector.broadcast %37 : vector<1x8xf32> to vector<64x8xf32>
    %39 = arith.mulf %35, %38 : vector<64x8xf32>
    %40 = arith.addf %26, %39 : vector<64x8xf32>
    %c0_26 = arith.constant 0 : index
    %c2_27 = arith.constant 2 : index
    %c0_28 = arith.constant 0 : index
    %c0_29 = arith.constant 0 : index
    %41 = vector.load %arg2[%c0_26, %c2_27, %c0_28, %c0_29] : memref<1x4x64x8xf32, #tpu.memory_space<vmem>>, vector<1x1x64x8xf32>
    %42 = vector.shape_cast %41 : vector<1x1x64x8xf32> to vector<64x8xf32>
    %43 = vector.extract_strided_slice %3 {offsets = [2, 0, 0], sizes = [1, 1, 8], strides = [1, 1, 1]} : vector<4x1x8xf32> to vector<1x1x8xf32>
    %44 = vector.shape_cast %43 : vector<1x1x8xf32> to vector<1x8xf32>
    %45 = vector.broadcast %44 : vector<1x8xf32> to vector<64x8xf32>
    %46 = arith.mulf %42, %45 : vector<64x8xf32>
    %47 = arith.addf %33, %46 : vector<64x8xf32>
    %c0_30 = arith.constant 0 : index
    %c3 = arith.constant 3 : index
    %c0_31 = arith.constant 0 : index
    %c0_32 = arith.constant 0 : index
    %48 = vector.load %arg1[%c0_30, %c3, %c0_31, %c0_32] : memref<1x4x64x8xf32, #tpu.memory_space<vmem>>, vector<1x1x64x8xf32>
    %49 = vector.shape_cast %48 : vector<1x1x64x8xf32> to vector<64x8xf32>
    %50 = vector.extract_strided_slice %1 {offsets = [3, 0, 0], sizes = [1, 1, 8], strides = [1, 1, 1]} : vector<4x1x8xf32> to vector<1x1x8xf32>
    %51 = vector.shape_cast %50 : vector<1x1x8xf32> to vector<1x8xf32>
    %52 = vector.broadcast %51 : vector<1x8xf32> to vector<64x8xf32>
    %53 = arith.mulf %49, %52 : vector<64x8xf32>
    %54 = arith.addf %40, %53 : vector<64x8xf32>
    %c0_33 = arith.constant 0 : index
    %c3_34 = arith.constant 3 : index
    %c0_35 = arith.constant 0 : index
    %c0_36 = arith.constant 0 : index
    %55 = vector.load %arg2[%c0_33, %c3_34, %c0_35, %c0_36] : memref<1x4x64x8xf32, #tpu.memory_space<vmem>>, vector<1x1x64x8xf32>
    %56 = vector.shape_cast %55 : vector<1x1x64x8xf32> to vector<64x8xf32>
    %57 = vector.extract_strided_slice %3 {offsets = [3, 0, 0], sizes = [1, 1, 8], strides = [1, 1, 1]} : vector<4x1x8xf32> to vector<1x1x8xf32>
    %58 = vector.shape_cast %57 : vector<1x1x8xf32> to vector<1x8xf32>
    %59 = vector.broadcast %58 : vector<1x8xf32> to vector<64x8xf32>
    %60 = arith.mulf %56, %59 : vector<64x8xf32>
    %61 = arith.addf %47, %60 : vector<64x8xf32>
    %c0_37 = arith.constant 0 : index
    %c0_38 = arith.constant 0 : index
    %62 = vector.load %arg5[%c0_37, %c0_38] : memref<16x8xf32, #tpu.memory_space<vmem>>, vector<16x8xf32>
    %c0_39 = arith.constant 0 : index
    %c0_40 = arith.constant 0 : index
    %63 = vector.load %arg6[%c0_39, %c0_40] : memref<1x16xf32, #tpu.memory_space<vmem>>, vector<1x16xf32>
    %64 = arith.mulf %54, %54 : vector<64x8xf32>
    %cst_41 = arith.constant dense<0.000000e+00> : vector<64xf32>
    %65 = vector.multi_reduction <add>, %64, %cst_41 [1] : vector<64x8xf32> to vector<64xf32>
    %66 = vector.shape_cast %65 : vector<64xf32> to vector<64x1xf32>
    %cst_42 = arith.constant dense<0.000000e+00> : vector<64x16xf32>
    %67 = tpu.matmul %54, %62, %cst_42 {dimension_numbers = #tpu.dot_dimension_numbers<[1], [1], [0], [0], [0, 0, 1, 0], [], []>} : vector<64x8xf32>, vector<16x8xf32>, vector<64x16xf32> -> vector<64x16xf32>
    %68 = vector.broadcast %66 : vector<64x1xf32> to vector<64x16xf32>
    %69 = vector.broadcast %63 : vector<1x16xf32> to vector<64x16xf32>
    %70 = arith.addf %68, %69 : vector<64x16xf32>
    %cst_43 = arith.constant 2.000000e+00 : f32
    %71 = vector.broadcast %cst_43 : f32 to vector<64x16xf32>
    %72 = arith.mulf %71, %67 : vector<64x16xf32>
    %73 = arith.subf %70, %72 : vector<64x16xf32>
    %cst_44 = arith.constant dense<0x7F800000> : vector<64xf32>
    %74 = vector.multi_reduction <minimumf>, %73, %cst_44 [1] : vector<64x16xf32> to vector<64xf32>
    %75 = vector.shape_cast %74 : vector<64xf32> to vector<64x1xf32>
    %76 = tpu.iota {dimensions = array<i32: 1>} : vector<64x16xi32>
    %77 = vector.broadcast %75 : vector<64x1xf32> to vector<64x16xf32>
    %78 = arith.cmpf ole, %73, %77 : vector<64x16xf32>
    %c16_i32 = arith.constant 16 : i32
    %79 = vector.broadcast %c16_i32 : i32 to vector<64x16xi32>
    %80 = arith.select %78, %76, %79 : vector<64x16xi1>, vector<64x16xi32>
    %cst_45 = arith.constant dense<2147483647> : vector<64xi32>
    %81 = vector.multi_reduction <minsi>, %80, %cst_45 [1] : vector<64x16xi32> to vector<64xi32>
    %82 = vector.shape_cast %81 : vector<64xi32> to vector<64x1xi32>
    %83 = vector.broadcast %82 : vector<64x1xi32> to vector<64x16xi32>
    %84 = arith.cmpi eq, %76, %83 : vector<64x16xi32>
    %85 = arith.extui %84 : vector<64x16xi1> to vector<64x16xi32>
    %86 = arith.sitofp %85 : vector<64x16xi32> to vector<64x16xf32>
    %cst_46 = arith.constant dense<0.000000e+00> : vector<64x8xf32>
    %87 = tpu.matmul %86, %62, %cst_46 {dimension_numbers = #tpu.dot_dimension_numbers<[1], [0], [0], [1], [0, 0, 1, 1], [], []>} : vector<64x16xf32>, vector<16x8xf32>, vector<64x8xf32> -> vector<64x8xf32>
    %88 = arith.mulf %61, %61 : vector<64x8xf32>
    %cst_47 = arith.constant dense<0.000000e+00> : vector<64xf32>
    %89 = vector.multi_reduction <add>, %88, %cst_47 [1] : vector<64x8xf32> to vector<64xf32>
    %90 = vector.shape_cast %89 : vector<64xf32> to vector<64x1xf32>
    %cst_48 = arith.constant dense<0.000000e+00> : vector<64x16xf32>
    %91 = tpu.matmul %61, %62, %cst_48 {dimension_numbers = #tpu.dot_dimension_numbers<[1], [1], [0], [0], [0, 0, 1, 0], [], []>} : vector<64x8xf32>, vector<16x8xf32>, vector<64x16xf32> -> vector<64x16xf32>
    %92 = vector.broadcast %90 : vector<64x1xf32> to vector<64x16xf32>
    %93 = vector.broadcast %63 : vector<1x16xf32> to vector<64x16xf32>
    %94 = arith.addf %92, %93 : vector<64x16xf32>
    %cst_49 = arith.constant 2.000000e+00 : f32
    %95 = vector.broadcast %cst_49 : f32 to vector<64x16xf32>
    %96 = arith.mulf %95, %91 : vector<64x16xf32>
    %97 = arith.subf %94, %96 : vector<64x16xf32>
    %cst_50 = arith.constant dense<0x7F800000> : vector<64xf32>
    %98 = vector.multi_reduction <minimumf>, %97, %cst_50 [1] : vector<64x16xf32> to vector<64xf32>
    %99 = vector.shape_cast %98 : vector<64xf32> to vector<64x1xf32>
    %100 = tpu.iota {dimensions = array<i32: 1>} : vector<64x16xi32>
    %101 = vector.broadcast %99 : vector<64x1xf32> to vector<64x16xf32>
    %102 = arith.cmpf ole, %97, %101 : vector<64x16xf32>
    %c16_i32_51 = arith.constant 16 : i32
    %103 = vector.broadcast %c16_i32_51 : i32 to vector<64x16xi32>
    %104 = arith.select %102, %100, %103 : vector<64x16xi1>, vector<64x16xi32>
    %cst_52 = arith.constant dense<2147483647> : vector<64xi32>
    %105 = vector.multi_reduction <minsi>, %104, %cst_52 [1] : vector<64x16xi32> to vector<64xi32>
    %106 = vector.shape_cast %105 : vector<64xi32> to vector<64x1xi32>
    %107 = vector.broadcast %106 : vector<64x1xi32> to vector<64x16xi32>
    %108 = arith.cmpi eq, %100, %107 : vector<64x16xi32>
    %109 = arith.extui %108 : vector<64x16xi1> to vector<64x16xi32>
    %110 = arith.sitofp %109 : vector<64x16xi32> to vector<64x16xf32>
    %cst_53 = arith.constant dense<0.000000e+00> : vector<64x8xf32>
    %111 = tpu.matmul %110, %62, %cst_53 {dimension_numbers = #tpu.dot_dimension_numbers<[1], [0], [0], [1], [0, 0, 1, 1], [], []>} : vector<64x16xf32>, vector<16x8xf32>, vector<64x8xf32> -> vector<64x8xf32>
    %c0_54 = arith.constant 0 : index
    %c0_55 = arith.constant 0 : index
    %c0_56 = arith.constant 0 : index
    %112 = vector.load %arg7[%c0_54, %c0_55, %c0_56] : memref<1x64x8xf32, #tpu.memory_space<vmem>>, vector<1x64x8xf32>
    %113 = vector.shape_cast %112 : vector<1x64x8xf32> to vector<64x8xf32>
    %114 = vector.shape_cast %87 : vector<64x8xf32> to vector<1x64x8xf32>
    tpu.vector_store %arg7[%c0_54, %c0_55, %c0_56], %114 {strides = array<i32>} : memref<1x64x8xf32, #tpu.memory_space<vmem>>, vector<1x64x8xf32>,
    %c0_57 = arith.constant 0 : index
    %c0_58 = arith.constant 0 : index
    %c0_59 = arith.constant 0 : index
    %115 = vector.load %arg8[%c0_57, %c0_58, %c0_59] : memref<1x64x8xf32, #tpu.memory_space<vmem>>, vector<1x64x8xf32>
    %116 = vector.shape_cast %115 : vector<1x64x8xf32> to vector<64x8xf32>
    %117 = vector.shape_cast %111 : vector<64x8xf32> to vector<1x64x8xf32>
    tpu.vector_store %arg8[%c0_57, %c0_58, %c0_59], %117 {strides = array<i32>} : memref<1x64x8xf32, #tpu.memory_space<vmem>>, vector<1x64x8xf32>,
    %118 = arith.subf %87, %54 : vector<64x8xf32>
    %119 = arith.mulf %118, %118 : vector<64x8xf32>
    %120 = vector.shape_cast %119 : vector<64x8xf32> to vector<1x64x8xf32>
    %cst_60 = arith.constant dense<0.000000e+00> : vector<1xf32>
    %121 = vector.multi_reduction <add>, %120, %cst_60 [1, 2] : vector<1x64x8xf32> to vector<1xf32>
    %122 = vector.shape_cast %121 : vector<1xf32> to vector<1x1x1xf32>
    %123 = vector.extract %122[0, 0, 0] : f32 from vector<1x1x1xf32>
    %124 = arith.subf %111, %61 : vector<64x8xf32>
    %125 = arith.mulf %124, %124 : vector<64x8xf32>
    %126 = vector.shape_cast %125 : vector<64x8xf32> to vector<1x64x8xf32>
    %cst_61 = arith.constant dense<0.000000e+00> : vector<1xf32>
    %127 = vector.multi_reduction <add>, %126, %cst_61 [1, 2] : vector<1x64x8xf32> to vector<1xf32>
    %128 = vector.shape_cast %127 : vector<1xf32> to vector<1x1x1xf32>
    %129 = vector.extract %128[0, 0, 0] : f32 from vector<1x1x1xf32>
    %130 = arith.subf %87, %61 : vector<64x8xf32>
    %131 = arith.mulf %130, %130 : vector<64x8xf32>
    %132 = vector.shape_cast %131 : vector<64x8xf32> to vector<1x64x8xf32>
    %cst_62 = arith.constant dense<0.000000e+00> : vector<1xf32>
    %133 = vector.multi_reduction <add>, %132, %cst_62 [1, 2] : vector<1x64x8xf32> to vector<1xf32>
    %134 = vector.shape_cast %133 : vector<1xf32> to vector<1x1x1xf32>
    %135 = vector.extract %134[0, 0, 0] : f32 from vector<1x1x1xf32>
    %136 = tpu.iota {dimensions = array<i32: 1>} : vector<1x128xi32>
    %c0_i32 = arith.constant 0 : i32
    %137 = vector.broadcast %c0_i32 : i32 to vector<1x128xi32>
    %138 = arith.cmpi eq, %136, %137 : vector<1x128xi32>
    %139 = arith.extui %138 : vector<1x128xi1> to vector<1x128xi32>
    %140 = arith.sitofp %139 : vector<1x128xi32> to vector<1x128xf32>
    %141 = vector.broadcast %123 : f32 to vector<1x128xf32>
    %142 = arith.mulf %141, %140 : vector<1x128xf32>
    %c1_i32 = arith.constant 1 : i32
    %143 = vector.broadcast %c1_i32 : i32 to vector<1x128xi32>
    %144 = arith.cmpi eq, %136, %143 : vector<1x128xi32>
    %145 = arith.extui %144 : vector<1x128xi1> to vector<1x128xi32>
    %146 = arith.sitofp %145 : vector<1x128xi32> to vector<1x128xf32>
    %147 = vector.broadcast %129 : f32 to vector<1x128xf32>
    %148 = arith.mulf %147, %146 : vector<1x128xf32>
    %149 = arith.addf %142, %148 : vector<1x128xf32>
    %c2_i32 = arith.constant 2 : i32
    %150 = vector.broadcast %c2_i32 : i32 to vector<1x128xi32>
    %151 = arith.cmpi eq, %136, %150 : vector<1x128xi32>
    %152 = arith.extui %151 : vector<1x128xi1> to vector<1x128xi32>
    %153 = arith.sitofp %152 : vector<1x128xi32> to vector<1x128xf32>
    %154 = vector.broadcast %135 : f32 to vector<1x128xf32>
    %155 = arith.mulf %154, %153 : vector<1x128xf32>
    %156 = arith.addf %149, %155 : vector<1x128xf32>
    %c0_63 = arith.constant 0 : index
    %c0_64 = arith.constant 0 : index
    %c0_65 = arith.constant 0 : index
    %157 = vector.load %arg9[%c0_63, %c0_64, %c0_65] : memref<1x1x128xf32, #tpu.memory_space<vmem>>, vector<1x1x128xf32>
    %158 = vector.shape_cast %157 : vector<1x1x128xf32> to vector<1x128xf32>
    %159 = vector.shape_cast %156 : vector<1x128xf32> to vector<1x1x128xf32>
    tpu.vector_store %arg9[%c0_63, %c0_64, %c0_65], %159 {strides = array<i32>} : memref<1x1x128xf32, #tpu.memory_space<vmem>>, vector<1x1x128xf32>,
    return
  }
  func.func @transform_0(%arg0: i32) -> (i32, i32, i32, i32) {
    %c0_i32 = arith.constant 0 : i32
    %c0_i32_0 = arith.constant 0 : i32
    %c0_i32_1 = arith.constant 0 : i32
    %c0_i32_2 = arith.constant 0 : i32
    return %arg0, %c0_i32, %c0_i32_0, %c0_i32_1 : i32, i32, i32, i32
  }
  func.func @transform_1(%arg0: i32) -> (i32, i32, i32, i32) {
    %c0_i32 = arith.constant 0 : i32
    %c0_i32_0 = arith.constant 0 : i32
    %c0_i32_1 = arith.constant 0 : i32
    %c0_i32_2 = arith.constant 0 : i32
    return %arg0, %c0_i32, %c0_i32_0, %c0_i32_1 : i32, i32, i32, i32
  }
  func.func @transform_2(%arg0: i32) -> (i32, i32, i32, i32) {
    %c0_i32 = arith.constant 0 : i32
    %c0_i32_0 = arith.constant 0 : i32
    %c0_i32_1 = arith.constant 0 : i32
    %c0_i32_2 = arith.constant 0 : i32
    return %arg0, %c0_i32, %c0_i32_0, %c0_i32_1 : i32, i32, i32, i32
  }
  func.func @transform_3(%arg0: i32) -> (i32, i32, i32, i32) {
    %c0_i32 = arith.constant 0 : i32
    %c0_i32_0 = arith.constant 0 : i32
    %c0_i32_1 = arith.constant 0 : i32
    %c0_i32_2 = arith.constant 0 : i32
    return %arg0, %c0_i32, %c0_i32_0, %c0_i32_1 : i32, i32, i32, i32
  }
  func.func @transform_4(%arg0: i32) -> (i32, i32) {
    %c0_i32 = arith.constant 0 : i32
    %c0_i32_0 = arith.constant 0 : i32
    %c0_i32_1 = arith.constant 0 : i32
    return %c0_i32, %c0_i32_0 : i32, i32
  }
  func.func @transform_5(%arg0: i32) -> (i32, i32) {
    %c0_i32 = arith.constant 0 : i32
    %c0_i32_0 = arith.constant 0 : i32
    %c0_i32_1 = arith.constant 0 : i32
    return %c0_i32, %c0_i32_0 : i32, i32
  }
  func.func @transform_6(%arg0: i32) -> (i32, i32, i32) {
    %c0_i32 = arith.constant 0 : i32
    %c0_i32_0 = arith.constant 0 : i32
    %c0_i32_1 = arith.constant 0 : i32
    return %arg0, %c0_i32, %c0_i32_0 : i32, i32, i32
  }
  func.func @transform_7(%arg0: i32) -> (i32, i32, i32) {
    %c0_i32 = arith.constant 0 : i32
    %c0_i32_0 = arith.constant 0 : i32
    %c0_i32_1 = arith.constant 0 : i32
    return %arg0, %c0_i32, %c0_i32_0 : i32, i32, i32
  }
  func.func @transform_8(%arg0: i32) -> (i32, i32, i32) {
    %c0_i32 = arith.constant 0 : i32
    %c0_i32_0 = arith.constant 0 : i32
    %c0_i32_1 = arith.constant 0 : i32
    return %arg0, %c0_i32, %c0_i32_0 : i32, i32, i32
  }
}

module attributes {stable_mosaic.version = 11 : i64} {
  func.func @_band_matmul_kernel(%arg0: i32, %arg1: memref<256x864xbf16, #tpu.memory_space<vmem>>, %arg2: memref<864x128xbf16, #tpu.memory_space<vmem>>, %arg3: memref<1x128xf32, #tpu.memory_space<vmem>>, %arg4: memref<256x128xf32, #tpu.memory_space<vmem>>) attributes {dimension_semantics = [#tpu.dimension_semantics<parallel>], iteration_bounds = array<i64: 1>, scalar_prefetch = 0 : i64, scratch_operands = 0 : i64, tpu.core_type = #tpu.core_type<tc>, window_params = [{transform_indices = @transform_0, window_bounds = array<i64: 256, 864>}, {pipeline_mode = #tpu.pipeline_mode<synchronous>, transform_indices = @transform_1, window_bounds = array<i64: 864, 128>}, {pipeline_mode = #tpu.pipeline_mode<synchronous>, transform_indices = @transform_2, window_bounds = array<i64: 1, 128>}, {transform_indices = @transform_3, window_bounds = array<i64: 256, 128>}]} {
    %c0 = arith.constant 0 : index
    %c0_0 = arith.constant 0 : index
    %0 = vector.load %arg1[%c0, %c0_0] : memref<256x864xbf16, #tpu.memory_space<vmem>>, vector<256x864xbf16>
    %c0_1 = arith.constant 0 : index
    %c0_2 = arith.constant 0 : index
    %1 = vector.load %arg2[%c0_1, %c0_2] : memref<864x128xbf16, #tpu.memory_space<vmem>>, vector<864x128xbf16>
    %cst = arith.constant dense<0.000000e+00> : vector<256x128xf32>
    %2 = tpu.matmul %0, %1, %cst {dimension_numbers = #tpu.dot_dimension_numbers<[1], [0], [0], [1], [0, 0, 1, 1], [], []>} : vector<256x864xbf16>, vector<864x128xbf16>, vector<256x128xf32> -> vector<256x128xf32>
    %c0_3 = arith.constant 0 : index
    %c0_4 = arith.constant 0 : index
    %3 = vector.load %arg3[%c0_3, %c0_4] : memref<1x128xf32, #tpu.memory_space<vmem>>, vector<1x128xf32>
    %4 = vector.broadcast %3 : vector<1x128xf32> to vector<256x128xf32>
    %5 = arith.addf %2, %4 : vector<256x128xf32>
    %c0_5 = arith.constant 0 : index
    %c0_6 = arith.constant 0 : index
    %6 = vector.load %arg4[%c0_5, %c0_6] : memref<256x128xf32, #tpu.memory_space<vmem>>, vector<256x128xf32>
    tpu.vector_store %arg4[%c0_5, %c0_6], %5 {strides = array<i32>} : memref<256x128xf32, #tpu.memory_space<vmem>>, vector<256x128xf32>,
    return
  }
  func.func @transform_0(%arg0: i32) -> (i32, i32) {
    %c0_i32 = arith.constant 0 : i32
    %c0_i32_0 = arith.constant 0 : i32
    return %arg0, %c0_i32 : i32, i32
  }
  func.func @transform_1(%arg0: i32) -> (i32, i32) {
    %c0_i32 = arith.constant 0 : i32
    %c0_i32_0 = arith.constant 0 : i32
    %c0_i32_1 = arith.constant 0 : i32
    return %c0_i32, %c0_i32_0 : i32, i32
  }
  func.func @transform_2(%arg0: i32) -> (i32, i32) {
    %c0_i32 = arith.constant 0 : i32
    %c0_i32_0 = arith.constant 0 : i32
    %c0_i32_1 = arith.constant 0 : i32
    return %c0_i32, %c0_i32_0 : i32, i32
  }
  func.func @transform_3(%arg0: i32) -> (i32, i32) {
    %c0_i32 = arith.constant 0 : i32
    %c0_i32_0 = arith.constant 0 : i32
    return %arg0, %c0_i32 : i32, i32
  }
}

module attributes {stable_mosaic.version = 11 : i64} {
  func.func @_tsf_vq_kernel(%arg0: i32, %arg1: memref<1x4x256x8xf32, #tpu.memory_space<vmem>>, %arg2: memref<1x4x256x8xf32, #tpu.memory_space<vmem>>, %arg3: memref<1x4x1x8xf32, #tpu.memory_space<vmem>>, %arg4: memref<1x4x1x8xf32, #tpu.memory_space<vmem>>, %arg5: memref<16x8xf32, #tpu.memory_space<vmem>>, %arg6: memref<1x16xf32, #tpu.memory_space<vmem>>, %arg7: memref<1x256x8xf32, #tpu.memory_space<vmem>>, %arg8: memref<1x256x8xf32, #tpu.memory_space<vmem>>, %arg9: memref<1x1x128xf32, #tpu.memory_space<vmem>>) attributes {dimension_semantics = [#tpu.dimension_semantics<parallel>], iteration_bounds = array<i64: 2>, scalar_prefetch = 0 : i64, scratch_operands = 0 : i64, tpu.core_type = #tpu.core_type<tc>, window_params = [{transform_indices = @transform_0, window_bounds = array<i64: 1, 4, 256, 8>}, {transform_indices = @transform_1, window_bounds = array<i64: 1, 4, 256, 8>}, {transform_indices = @transform_2, window_bounds = array<i64: 1, 4, 1, 8>}, {transform_indices = @transform_3, window_bounds = array<i64: 1, 4, 1, 8>}, {pipeline_mode = #tpu.pipeline_mode<synchronous>, transform_indices = @transform_4, window_bounds = array<i64: 16, 8>}, {pipeline_mode = #tpu.pipeline_mode<synchronous>, transform_indices = @transform_5, window_bounds = array<i64: 1, 16>}, {transform_indices = @transform_6, window_bounds = array<i64: 1, 256, 8>}, {transform_indices = @transform_7, window_bounds = array<i64: 1, 256, 8>}, {transform_indices = @transform_8, window_bounds = array<i64: 1, 1, 128>}]} {
    %c0 = arith.constant 0 : index
    %c0_0 = arith.constant 0 : index
    %c0_1 = arith.constant 0 : index
    %c0_2 = arith.constant 0 : index
    %0 = vector.load %arg3[%c0, %c0_0, %c0_1, %c0_2] : memref<1x4x1x8xf32, #tpu.memory_space<vmem>>, vector<1x4x1x8xf32>
    %1 = vector.shape_cast %0 : vector<1x4x1x8xf32> to vector<4x1x8xf32>
    %c0_3 = arith.constant 0 : index
    %c0_4 = arith.constant 0 : index
    %c0_5 = arith.constant 0 : index
    %c0_6 = arith.constant 0 : index
    %2 = vector.load %arg4[%c0_3, %c0_4, %c0_5, %c0_6] : memref<1x4x1x8xf32, #tpu.memory_space<vmem>>, vector<1x4x1x8xf32>
    %3 = vector.shape_cast %2 : vector<1x4x1x8xf32> to vector<4x1x8xf32>
    %cst = arith.constant 0.000000e+00 : f32
    %4 = vector.broadcast %cst : f32 to vector<256x8xf32>
    %cst_7 = arith.constant 0.000000e+00 : f32
    %5 = vector.broadcast %cst_7 : f32 to vector<256x8xf32>
    %c0_8 = arith.constant 0 : index
    %c0_9 = arith.constant 0 : index
    %c0_10 = arith.constant 0 : index
    %c0_11 = arith.constant 0 : index
    %6 = vector.load %arg1[%c0_8, %c0_9, %c0_10, %c0_11] : memref<1x4x256x8xf32, #tpu.memory_space<vmem>>, vector<1x1x256x8xf32>
    %7 = vector.shape_cast %6 : vector<1x1x256x8xf32> to vector<256x8xf32>
    %8 = vector.extract_strided_slice %1 {offsets = [0, 0, 0], sizes = [1, 1, 8], strides = [1, 1, 1]} : vector<4x1x8xf32> to vector<1x1x8xf32>
    %9 = vector.shape_cast %8 : vector<1x1x8xf32> to vector<1x8xf32>
    %10 = vector.broadcast %9 : vector<1x8xf32> to vector<256x8xf32>
    %11 = arith.mulf %7, %10 : vector<256x8xf32>
    %12 = arith.addf %4, %11 : vector<256x8xf32>
    %c0_12 = arith.constant 0 : index
    %c0_13 = arith.constant 0 : index
    %c0_14 = arith.constant 0 : index
    %c0_15 = arith.constant 0 : index
    %13 = vector.load %arg2[%c0_12, %c0_13, %c0_14, %c0_15] : memref<1x4x256x8xf32, #tpu.memory_space<vmem>>, vector<1x1x256x8xf32>
    %14 = vector.shape_cast %13 : vector<1x1x256x8xf32> to vector<256x8xf32>
    %15 = vector.extract_strided_slice %3 {offsets = [0, 0, 0], sizes = [1, 1, 8], strides = [1, 1, 1]} : vector<4x1x8xf32> to vector<1x1x8xf32>
    %16 = vector.shape_cast %15 : vector<1x1x8xf32> to vector<1x8xf32>
    %17 = vector.broadcast %16 : vector<1x8xf32> to vector<256x8xf32>
    %18 = arith.mulf %14, %17 : vector<256x8xf32>
    %19 = arith.addf %5, %18 : vector<256x8xf32>
    %c0_16 = arith.constant 0 : index
    %c1 = arith.constant 1 : index
    %c0_17 = arith.constant 0 : index
    %c0_18 = arith.constant 0 : index
    %20 = vector.load %arg1[%c0_16, %c1, %c0_17, %c0_18] : memref<1x4x256x8xf32, #tpu.memory_space<vmem>>, vector<1x1x256x8xf32>
    %21 = vector.shape_cast %20 : vector<1x1x256x8xf32> to vector<256x8xf32>
    %22 = vector.extract_strided_slice %1 {offsets = [1, 0, 0], sizes = [1, 1, 8], strides = [1, 1, 1]} : vector<4x1x8xf32> to vector<1x1x8xf32>
    %23 = vector.shape_cast %22 : vector<1x1x8xf32> to vector<1x8xf32>
    %24 = vector.broadcast %23 : vector<1x8xf32> to vector<256x8xf32>
    %25 = arith.mulf %21, %24 : vector<256x8xf32>
    %26 = arith.addf %12, %25 : vector<256x8xf32>
    %c0_19 = arith.constant 0 : index
    %c1_20 = arith.constant 1 : index
    %c0_21 = arith.constant 0 : index
    %c0_22 = arith.constant 0 : index
    %27 = vector.load %arg2[%c0_19, %c1_20, %c0_21, %c0_22] : memref<1x4x256x8xf32, #tpu.memory_space<vmem>>, vector<1x1x256x8xf32>
    %28 = vector.shape_cast %27 : vector<1x1x256x8xf32> to vector<256x8xf32>
    %29 = vector.extract_strided_slice %3 {offsets = [1, 0, 0], sizes = [1, 1, 8], strides = [1, 1, 1]} : vector<4x1x8xf32> to vector<1x1x8xf32>
    %30 = vector.shape_cast %29 : vector<1x1x8xf32> to vector<1x8xf32>
    %31 = vector.broadcast %30 : vector<1x8xf32> to vector<256x8xf32>
    %32 = arith.mulf %28, %31 : vector<256x8xf32>
    %33 = arith.addf %19, %32 : vector<256x8xf32>
    %c0_23 = arith.constant 0 : index
    %c2 = arith.constant 2 : index
    %c0_24 = arith.constant 0 : index
    %c0_25 = arith.constant 0 : index
    %34 = vector.load %arg1[%c0_23, %c2, %c0_24, %c0_25] : memref<1x4x256x8xf32, #tpu.memory_space<vmem>>, vector<1x1x256x8xf32>
    %35 = vector.shape_cast %34 : vector<1x1x256x8xf32> to vector<256x8xf32>
    %36 = vector.extract_strided_slice %1 {offsets = [2, 0, 0], sizes = [1, 1, 8], strides = [1, 1, 1]} : vector<4x1x8xf32> to vector<1x1x8xf32>
    %37 = vector.shape_cast %36 : vector<1x1x8xf32> to vector<1x8xf32>
    %38 = vector.broadcast %37 : vector<1x8xf32> to vector<256x8xf32>
    %39 = arith.mulf %35, %38 : vector<256x8xf32>
    %40 = arith.addf %26, %39 : vector<256x8xf32>
    %c0_26 = arith.constant 0 : index
    %c2_27 = arith.constant 2 : index
    %c0_28 = arith.constant 0 : index
    %c0_29 = arith.constant 0 : index
    %41 = vector.load %arg2[%c0_26, %c2_27, %c0_28, %c0_29] : memref<1x4x256x8xf32, #tpu.memory_space<vmem>>, vector<1x1x256x8xf32>
    %42 = vector.shape_cast %41 : vector<1x1x256x8xf32> to vector<256x8xf32>
    %43 = vector.extract_strided_slice %3 {offsets = [2, 0, 0], sizes = [1, 1, 8], strides = [1, 1, 1]} : vector<4x1x8xf32> to vector<1x1x8xf32>
    %44 = vector.shape_cast %43 : vector<1x1x8xf32> to vector<1x8xf32>
    %45 = vector.broadcast %44 : vector<1x8xf32> to vector<256x8xf32>
    %46 = arith.mulf %42, %45 : vector<256x8xf32>
    %47 = arith.addf %33, %46 : vector<256x8xf32>
    %c0_30 = arith.constant 0 : index
    %c3 = arith.constant 3 : index
    %c0_31 = arith.constant 0 : index
    %c0_32 = arith.constant 0 : index
    %48 = vector.load %arg1[%c0_30, %c3, %c0_31, %c0_32] : memref<1x4x256x8xf32, #tpu.memory_space<vmem>>, vector<1x1x256x8xf32>
    %49 = vector.shape_cast %48 : vector<1x1x256x8xf32> to vector<256x8xf32>
    %50 = vector.extract_strided_slice %1 {offsets = [3, 0, 0], sizes = [1, 1, 8], strides = [1, 1, 1]} : vector<4x1x8xf32> to vector<1x1x8xf32>
    %51 = vector.shape_cast %50 : vector<1x1x8xf32> to vector<1x8xf32>
    %52 = vector.broadcast %51 : vector<1x8xf32> to vector<256x8xf32>
    %53 = arith.mulf %49, %52 : vector<256x8xf32>
    %54 = arith.addf %40, %53 : vector<256x8xf32>
    %c0_33 = arith.constant 0 : index
    %c3_34 = arith.constant 3 : index
    %c0_35 = arith.constant 0 : index
    %c0_36 = arith.constant 0 : index
    %55 = vector.load %arg2[%c0_33, %c3_34, %c0_35, %c0_36] : memref<1x4x256x8xf32, #tpu.memory_space<vmem>>, vector<1x1x256x8xf32>
    %56 = vector.shape_cast %55 : vector<1x1x256x8xf32> to vector<256x8xf32>
    %57 = vector.extract_strided_slice %3 {offsets = [3, 0, 0], sizes = [1, 1, 8], strides = [1, 1, 1]} : vector<4x1x8xf32> to vector<1x1x8xf32>
    %58 = vector.shape_cast %57 : vector<1x1x8xf32> to vector<1x8xf32>
    %59 = vector.broadcast %58 : vector<1x8xf32> to vector<256x8xf32>
    %60 = arith.mulf %56, %59 : vector<256x8xf32>
    %61 = arith.addf %47, %60 : vector<256x8xf32>
    %c0_37 = arith.constant 0 : index
    %c0_38 = arith.constant 0 : index
    %62 = vector.load %arg5[%c0_37, %c0_38] : memref<16x8xf32, #tpu.memory_space<vmem>>, vector<16x8xf32>
    %c0_39 = arith.constant 0 : index
    %c0_40 = arith.constant 0 : index
    %63 = vector.load %arg6[%c0_39, %c0_40] : memref<1x16xf32, #tpu.memory_space<vmem>>, vector<1x16xf32>
    %64 = arith.mulf %54, %54 : vector<256x8xf32>
    %cst_41 = arith.constant dense<0.000000e+00> : vector<256xf32>
    %65 = vector.multi_reduction <add>, %64, %cst_41 [1] : vector<256x8xf32> to vector<256xf32>
    %66 = vector.shape_cast %65 : vector<256xf32> to vector<256x1xf32>
    %cst_42 = arith.constant dense<0.000000e+00> : vector<256x16xf32>
    %67 = tpu.matmul %54, %62, %cst_42 {dimension_numbers = #tpu.dot_dimension_numbers<[1], [1], [0], [0], [0, 0, 1, 0], [], []>} : vector<256x8xf32>, vector<16x8xf32>, vector<256x16xf32> -> vector<256x16xf32>
    %68 = vector.broadcast %66 : vector<256x1xf32> to vector<256x16xf32>
    %69 = vector.broadcast %63 : vector<1x16xf32> to vector<256x16xf32>
    %70 = arith.addf %68, %69 : vector<256x16xf32>
    %cst_43 = arith.constant 2.000000e+00 : f32
    %71 = vector.broadcast %cst_43 : f32 to vector<256x16xf32>
    %72 = arith.mulf %71, %67 : vector<256x16xf32>
    %73 = arith.subf %70, %72 : vector<256x16xf32>
    %cst_44 = arith.constant dense<0x7F800000> : vector<256xf32>
    %74 = vector.multi_reduction <minimumf>, %73, %cst_44 [1] : vector<256x16xf32> to vector<256xf32>
    %75 = vector.shape_cast %74 : vector<256xf32> to vector<256x1xf32>
    %76 = tpu.iota {dimensions = array<i32: 1>} : vector<256x16xi32>
    %77 = vector.broadcast %75 : vector<256x1xf32> to vector<256x16xf32>
    %78 = arith.cmpf ole, %73, %77 : vector<256x16xf32>
    %c16_i32 = arith.constant 16 : i32
    %79 = vector.broadcast %c16_i32 : i32 to vector<256x16xi32>
    %80 = arith.select %78, %76, %79 : vector<256x16xi1>, vector<256x16xi32>
    %cst_45 = arith.constant dense<2147483647> : vector<256xi32>
    %81 = vector.multi_reduction <minsi>, %80, %cst_45 [1] : vector<256x16xi32> to vector<256xi32>
    %82 = vector.shape_cast %81 : vector<256xi32> to vector<256x1xi32>
    %83 = vector.broadcast %82 : vector<256x1xi32> to vector<256x16xi32>
    %84 = arith.cmpi eq, %76, %83 : vector<256x16xi32>
    %85 = arith.extui %84 : vector<256x16xi1> to vector<256x16xi32>
    %86 = arith.sitofp %85 : vector<256x16xi32> to vector<256x16xf32>
    %cst_46 = arith.constant dense<0.000000e+00> : vector<256x8xf32>
    %87 = tpu.matmul %86, %62, %cst_46 {dimension_numbers = #tpu.dot_dimension_numbers<[1], [0], [0], [1], [0, 0, 1, 1], [], []>} : vector<256x16xf32>, vector<16x8xf32>, vector<256x8xf32> -> vector<256x8xf32>
    %88 = arith.mulf %61, %61 : vector<256x8xf32>
    %cst_47 = arith.constant dense<0.000000e+00> : vector<256xf32>
    %89 = vector.multi_reduction <add>, %88, %cst_47 [1] : vector<256x8xf32> to vector<256xf32>
    %90 = vector.shape_cast %89 : vector<256xf32> to vector<256x1xf32>
    %cst_48 = arith.constant dense<0.000000e+00> : vector<256x16xf32>
    %91 = tpu.matmul %61, %62, %cst_48 {dimension_numbers = #tpu.dot_dimension_numbers<[1], [1], [0], [0], [0, 0, 1, 0], [], []>} : vector<256x8xf32>, vector<16x8xf32>, vector<256x16xf32> -> vector<256x16xf32>
    %92 = vector.broadcast %90 : vector<256x1xf32> to vector<256x16xf32>
    %93 = vector.broadcast %63 : vector<1x16xf32> to vector<256x16xf32>
    %94 = arith.addf %92, %93 : vector<256x16xf32>
    %cst_49 = arith.constant 2.000000e+00 : f32
    %95 = vector.broadcast %cst_49 : f32 to vector<256x16xf32>
    %96 = arith.mulf %95, %91 : vector<256x16xf32>
    %97 = arith.subf %94, %96 : vector<256x16xf32>
    %cst_50 = arith.constant dense<0x7F800000> : vector<256xf32>
    %98 = vector.multi_reduction <minimumf>, %97, %cst_50 [1] : vector<256x16xf32> to vector<256xf32>
    %99 = vector.shape_cast %98 : vector<256xf32> to vector<256x1xf32>
    %100 = tpu.iota {dimensions = array<i32: 1>} : vector<256x16xi32>
    %101 = vector.broadcast %99 : vector<256x1xf32> to vector<256x16xf32>
    %102 = arith.cmpf ole, %97, %101 : vector<256x16xf32>
    %c16_i32_51 = arith.constant 16 : i32
    %103 = vector.broadcast %c16_i32_51 : i32 to vector<256x16xi32>
    %104 = arith.select %102, %100, %103 : vector<256x16xi1>, vector<256x16xi32>
    %cst_52 = arith.constant dense<2147483647> : vector<256xi32>
    %105 = vector.multi_reduction <minsi>, %104, %cst_52 [1] : vector<256x16xi32> to vector<256xi32>
    %106 = vector.shape_cast %105 : vector<256xi32> to vector<256x1xi32>
    %107 = vector.broadcast %106 : vector<256x1xi32> to vector<256x16xi32>
    %108 = arith.cmpi eq, %100, %107 : vector<256x16xi32>
    %109 = arith.extui %108 : vector<256x16xi1> to vector<256x16xi32>
    %110 = arith.sitofp %109 : vector<256x16xi32> to vector<256x16xf32>
    %cst_53 = arith.constant dense<0.000000e+00> : vector<256x8xf32>
    %111 = tpu.matmul %110, %62, %cst_53 {dimension_numbers = #tpu.dot_dimension_numbers<[1], [0], [0], [1], [0, 0, 1, 1], [], []>} : vector<256x16xf32>, vector<16x8xf32>, vector<256x8xf32> -> vector<256x8xf32>
    %c0_54 = arith.constant 0 : index
    %c0_55 = arith.constant 0 : index
    %c0_56 = arith.constant 0 : index
    %112 = vector.load %arg7[%c0_54, %c0_55, %c0_56] : memref<1x256x8xf32, #tpu.memory_space<vmem>>, vector<1x256x8xf32>
    %113 = vector.shape_cast %112 : vector<1x256x8xf32> to vector<256x8xf32>
    %114 = vector.shape_cast %87 : vector<256x8xf32> to vector<1x256x8xf32>
    tpu.vector_store %arg7[%c0_54, %c0_55, %c0_56], %114 {strides = array<i32>} : memref<1x256x8xf32, #tpu.memory_space<vmem>>, vector<1x256x8xf32>,
    %c0_57 = arith.constant 0 : index
    %c0_58 = arith.constant 0 : index
    %c0_59 = arith.constant 0 : index
    %115 = vector.load %arg8[%c0_57, %c0_58, %c0_59] : memref<1x256x8xf32, #tpu.memory_space<vmem>>, vector<1x256x8xf32>
    %116 = vector.shape_cast %115 : vector<1x256x8xf32> to vector<256x8xf32>
    %117 = vector.shape_cast %111 : vector<256x8xf32> to vector<1x256x8xf32>
    tpu.vector_store %arg8[%c0_57, %c0_58, %c0_59], %117 {strides = array<i32>} : memref<1x256x8xf32, #tpu.memory_space<vmem>>, vector<1x256x8xf32>,
    %118 = arith.subf %87, %54 : vector<256x8xf32>
    %119 = arith.mulf %118, %118 : vector<256x8xf32>
    %120 = vector.shape_cast %119 : vector<256x8xf32> to vector<1x256x8xf32>
    %cst_60 = arith.constant dense<0.000000e+00> : vector<1xf32>
    %121 = vector.multi_reduction <add>, %120, %cst_60 [1, 2] : vector<1x256x8xf32> to vector<1xf32>
    %122 = vector.shape_cast %121 : vector<1xf32> to vector<1x1x1xf32>
    %123 = vector.extract %122[0, 0, 0] : f32 from vector<1x1x1xf32>
    %124 = arith.subf %111, %61 : vector<256x8xf32>
    %125 = arith.mulf %124, %124 : vector<256x8xf32>
    %126 = vector.shape_cast %125 : vector<256x8xf32> to vector<1x256x8xf32>
    %cst_61 = arith.constant dense<0.000000e+00> : vector<1xf32>
    %127 = vector.multi_reduction <add>, %126, %cst_61 [1, 2] : vector<1x256x8xf32> to vector<1xf32>
    %128 = vector.shape_cast %127 : vector<1xf32> to vector<1x1x1xf32>
    %129 = vector.extract %128[0, 0, 0] : f32 from vector<1x1x1xf32>
    %130 = arith.subf %87, %61 : vector<256x8xf32>
    %131 = arith.mulf %130, %130 : vector<256x8xf32>
    %132 = vector.shape_cast %131 : vector<256x8xf32> to vector<1x256x8xf32>
    %cst_62 = arith.constant dense<0.000000e+00> : vector<1xf32>
    %133 = vector.multi_reduction <add>, %132, %cst_62 [1, 2] : vector<1x256x8xf32> to vector<1xf32>
    %134 = vector.shape_cast %133 : vector<1xf32> to vector<1x1x1xf32>
    %135 = vector.extract %134[0, 0, 0] : f32 from vector<1x1x1xf32>
    %136 = tpu.iota {dimensions = array<i32: 1>} : vector<1x128xi32>
    %c0_i32 = arith.constant 0 : i32
    %137 = vector.broadcast %c0_i32 : i32 to vector<1x128xi32>
    %138 = arith.cmpi eq, %136, %137 : vector<1x128xi32>
    %139 = arith.extui %138 : vector<1x128xi1> to vector<1x128xi32>
    %140 = arith.sitofp %139 : vector<1x128xi32> to vector<1x128xf32>
    %141 = vector.broadcast %123 : f32 to vector<1x128xf32>
    %142 = arith.mulf %141, %140 : vector<1x128xf32>
    %c1_i32 = arith.constant 1 : i32
    %143 = vector.broadcast %c1_i32 : i32 to vector<1x128xi32>
    %144 = arith.cmpi eq, %136, %143 : vector<1x128xi32>
    %145 = arith.extui %144 : vector<1x128xi1> to vector<1x128xi32>
    %146 = arith.sitofp %145 : vector<1x128xi32> to vector<1x128xf32>
    %147 = vector.broadcast %129 : f32 to vector<1x128xf32>
    %148 = arith.mulf %147, %146 : vector<1x128xf32>
    %149 = arith.addf %142, %148 : vector<1x128xf32>
    %c2_i32 = arith.constant 2 : i32
    %150 = vector.broadcast %c2_i32 : i32 to vector<1x128xi32>
    %151 = arith.cmpi eq, %136, %150 : vector<1x128xi32>
    %152 = arith.extui %151 : vector<1x128xi1> to vector<1x128xi32>
    %153 = arith.sitofp %152 : vector<1x128xi32> to vector<1x128xf32>
    %154 = vector.broadcast %135 : f32 to vector<1x128xf32>
    %155 = arith.mulf %154, %153 : vector<1x128xf32>
    %156 = arith.addf %149, %155 : vector<1x128xf32>
    %c0_63 = arith.constant 0 : index
    %c0_64 = arith.constant 0 : index
    %c0_65 = arith.constant 0 : index
    %157 = vector.load %arg9[%c0_63, %c0_64, %c0_65] : memref<1x1x128xf32, #tpu.memory_space<vmem>>, vector<1x1x128xf32>
    %158 = vector.shape_cast %157 : vector<1x1x128xf32> to vector<1x128xf32>
    %159 = vector.shape_cast %156 : vector<1x128xf32> to vector<1x1x128xf32>
    tpu.vector_store %arg9[%c0_63, %c0_64, %c0_65], %159 {strides = array<i32>} : memref<1x1x128xf32, #tpu.memory_space<vmem>>, vector<1x1x128xf32>,
    return
  }
  func.func @transform_0(%arg0: i32) -> (i32, i32, i32, i32) {
    %c0_i32 = arith.constant 0 : i32
    %c0_i32_0 = arith.constant 0 : i32
    %c0_i32_1 = arith.constant 0 : i32
    %c0_i32_2 = arith.constant 0 : i32
    return %arg0, %c0_i32, %c0_i32_0, %c0_i32_1 : i32, i32, i32, i32
  }
  func.func @transform_1(%arg0: i32) -> (i32, i32, i32, i32) {
    %c0_i32 = arith.constant 0 : i32
    %c0_i32_0 = arith.constant 0 : i32
    %c0_i32_1 = arith.constant 0 : i32
    %c0_i32_2 = arith.constant 0 : i32
    return %arg0, %c0_i32, %c0_i32_0, %c0_i32_1 : i32, i32, i32, i32
  }
  func.func @transform_2(%arg0: i32) -> (i32, i32, i32, i32) {
    %c0_i32 = arith.constant 0 : i32
    %c0_i32_0 = arith.constant 0 : i32
    %c0_i32_1 = arith.constant 0 : i32
    %c0_i32_2 = arith.constant 0 : i32
    return %arg0, %c0_i32, %c0_i32_0, %c0_i32_1 : i32, i32, i32, i32
  }
  func.func @transform_3(%arg0: i32) -> (i32, i32, i32, i32) {
    %c0_i32 = arith.constant 0 : i32
    %c0_i32_0 = arith.constant 0 : i32
    %c0_i32_1 = arith.constant 0 : i32
    %c0_i32_2 = arith.constant 0 : i32
    return %arg0, %c0_i32, %c0_i32_0, %c0_i32_1 : i32, i32, i32, i32
  }
  func.func @transform_4(%arg0: i32) -> (i32, i32) {
    %c0_i32 = arith.constant 0 : i32
    %c0_i32_0 = arith.constant 0 : i32
    %c0_i32_1 = arith.constant 0 : i32
    return %c0_i32, %c0_i32_0 : i32, i32
  }
  func.func @transform_5(%arg0: i32) -> (i32, i32) {
    %c0_i32 = arith.constant 0 : i32
    %c0_i32_0 = arith.constant 0 : i32
    %c0_i32_1 = arith.constant 0 : i32
    return %c0_i32, %c0_i32_0 : i32, i32
  }
  func.func @transform_6(%arg0: i32) -> (i32, i32, i32) {
    %c0_i32 = arith.constant 0 : i32
    %c0_i32_0 = arith.constant 0 : i32
    %c0_i32_1 = arith.constant 0 : i32
    return %arg0, %c0_i32, %c0_i32_0 : i32, i32, i32
  }
  func.func @transform_7(%arg0: i32) -> (i32, i32, i32) {
    %c0_i32 = arith.constant 0 : i32
    %c0_i32_0 = arith.constant 0 : i32
    %c0_i32_1 = arith.constant 0 : i32
    return %arg0, %c0_i32, %c0_i32_0 : i32, i32, i32
  }
  func.func @transform_8(%arg0: i32) -> (i32, i32, i32) {
    %c0_i32 = arith.constant 0 : i32
    %c0_i32_0 = arith.constant 0 : i32
    %c0_i32_1 = arith.constant 0 : i32
    return %arg0, %c0_i32, %c0_i32_0 : i32, i32, i32
  }
}

</mosaic_0001>

<llo_original>
// kernel: image_encoder_forward.6
$region0: #{image_encoder_forward.6}
  #allocation0 [shape = 'u32[]', space=smem, size = 0x4, offset = 0x4, fixed_abs, tag = 'smem constant byte address 0x4 - core index']
  #allocation1 [shape = 'u32[72,128]{1,0:T(1,128)}', space=vmem, size = 0x9000, scoped, tag = 'internal scratch']
  %s0 = inlined_call_operand.vmem [shape: bf16[128,54], index: 0, kind: input, shape index: {}]
  %s1 = inlined_call_operand.vmem [shape: bf16[54,128], index: 1, kind: input, shape index: {}]
  %s2 = inlined_call_operand.vmem [shape: f32[1,128], index: 2, kind: input, shape index: {}]
  %s3 = inlined_call_operand.vmem [shape: f32[128,128], index: 3, kind: input, shape index: {}]
  %s4 = inlined_call_operand.vmem [shape: f32[1,128], index: 4, kind: input, shape index: {}]
  %s5 = inlined_call_operand.vmem [shape: f32[1,128], index: 5, kind: input, shape index: {}]
  %s6 = inlined_call_operand.vmem [shape: f32[128,128], index: 6, kind: output, shape index: {0}]
  %s7 = inlined_call_operand.vmem [shape: f32[128,128], index: 7, kind: output, shape index: {1}]
  %8 = xla_tuple %s6, %s7
  %s9 = sld [smem:[#allocation0]]
  $region42: #{image_encoder_forward.6} parent=0
    _
  %s11 = ssub.s32 1, %s9
  %s12 = scalar_select 0, %s11, %s9
  // Predicated region
  $region2: #{image_encoder_forward.6} parent=0 // pred_check
    _
  $region3: #{image_encoder_forward.6} parent=0 // pred_check_branch
    %14 = sbr.rel (0) target = $region5
  $region4: #{image_encoder_forward.6} parent=0 // pred_region
    _
  $region5: #{image_encoder_forward.6} parent=0 // pred_fallthru
    _
  // Predicated region
  $region6: #{image_encoder_forward.6} parent=0 // pred_check
    _
  $region7: #{image_encoder_forward.6} parent=0 // pred_check_branch
    %16 = sbr.rel (0) target = $region9
  $region8: #{image_encoder_forward.6} parent=0 // pred_region
    _
  $region9: #{image_encoder_forward.6} parent=0 // pred_fallthru
    _
  // Predicated region
  $region10: #{image_encoder_forward.6} parent=0 // pred_check
    _
  $region11: #{image_encoder_forward.6} parent=0 // pred_check_branch
    %18 = sbr.rel (0) target = $region13
  $region12: #{image_encoder_forward.6} parent=0 // pred_region
    _
  $region13: #{image_encoder_forward.6} parent=0 // pred_fallthru
    _
  // Predicated region
  $region14: #{image_encoder_forward.6} parent=0 // pred_check
    _
  $region15: #{image_encoder_forward.6} parent=0 // pred_check_branch
    %20 = sbr.rel (0) target = $region17
  $region16: #{image_encoder_forward.6} parent=0 // pred_region
    _
  $region17: #{image_encoder_forward.6} parent=0 // pred_fallthru
    _
  // Predicated region
  $region18: #{image_encoder_forward.6} parent=0 // pred_check
    _
  $region19: #{image_encoder_forward.6} parent=0 // pred_check_branch
    %22 = sbr.rel (0) target = $region21
  $region20: #{image_encoder_forward.6} parent=0 // pred_region
    _
  $region21: #{image_encoder_forward.6} parent=0 // pred_fallthru
    _
  // Predicated region
  $region22: #{image_encoder_forward.6} parent=0 // pred_check
    _
  $region23: #{image_encoder_forward.6} parent=0 // pred_check_branch
    %24 = sbr.rel (0) target = $region25
  $region24: #{image_encoder_forward.6} parent=0 // pred_region
    _
  $region25: #{image_encoder_forward.6} parent=0 // pred_fallthru
    _
  %v26 = vld [vmem:[%s0] sm:$0xf]
  %v27 = vld [vmem:[%s0 + $0x4] sm:$0xf]
  %v28 = vld [vmem:[%s0 + $0x8] sm:$0xf]
  %v29 = vld [vmem:[%s0 + $0xc] sm:$0xf]
  %v30 = vld [vmem:[%s0 + $0x10] sm:$0xf]
  %v31 = vld [vmem:[%s0 + $0x14] sm:$0xf]
  %v32 = vld [vmem:[%s0 + $0x18] sm:$0xf]
  %v33 = vld [vmem:[%s0 + $0x1c] sm:$0xf]
  %v34 = vld [vmem:[%s0 + $0x20] sm:$0xf]
  %v35 = vld [vmem:[%s0 + $0x24] sm:$0xf]
  %v36 = vld [vmem:[%s0 + $0x28] sm:$0xf]
  %v37 = vld [vmem:[%s0 + $0x2c] sm:$0xf]
  %v38 = vld [vmem:[%s0 + $0x30] sm:$0xf]
  %v39 = vld [vmem:[%s0 + $0x34] sm:$0xf]
  %v40 = vld [vmem:[%s0 + $0x38] sm:$0xf]
  %v41 = vld [vmem:[%s0 + $0x3c] sm:$0xf]
  %v42 = vld [vmem:[%s1] sm:$0xf]
  %v43 = vld [vmem:[%s1 + $0x4] sm:$0xf]
  %v44 = vld [vmem:[%s1 + $0x8] sm:$0xf]
  %v45 = vld [vmem:[%s1 + $0xc] sm:$0xf]
  %v46 = vld [vmem:[%s1 + $0x10] sm:$0xf]
  %v47 = vld [vmem:[%s1 + $0x14] sm:$0xf]
  %v48 = vld [vmem:[%s1 + $0x18] sm:$0x7]
  %v49 = vld [vmem:[%s2] sm:$0x1]
  %v51 = vperm.slane %v49, 0
  %v69 = vunpack.c.l.b16 %v26
  %v70 = vunpack.c.l.b16 %v27
  %v71 = vunpack.c.l.b16 %v28
  %v72 = vunpack.c.l.b16 %v29
  %v73 = vunpack.c.l.b16 %v30
  %v74 = vunpack.c.l.b16 %v31
  %v75 = vunpack.c.l.b16 %v32
  %v76 = vunpack.c.l.b16 %v33
  %v77 = vunpack.c.l.b16 %v34
  %v78 = vunpack.c.l.b16 %v35
  %v79 = vunpack.c.l.b16 %v36
  %v80 = vunpack.c.l.b16 %v37
  %v81 = vunpack.c.l.b16 %v38
  %v82 = vunpack.c.l.b16 %v39
  %v83 = vunpack.c.l.b16 %v40
  %v84 = vunpack.c.l.b16 %v41
  %v85 = vpack.c.b16 %v70, %v69
  %v86 = vpack.c.b16 %v72, %v71
  %v87 = vpack.c.b16 %v74, %v73
  %v88 = vpack.c.b16 %v76, %v75
  %v89 = vpack.c.b16 %v78, %v77
  %v90 = vpack.c.b16 %v80, %v79
  %v91 = vpack.c.b16 %v82, %v81
  %v92 = vpack.c.b16 %v84, %v83
  %v100 = vunpack.c.l.b16 %v42
  %v101 = vunpack.c.l.b16 %v43
  %v102 = vunpack.c.l.b16 %v44
  %v103 = vunpack.c.l.b16 %v45
  %v104 = vunpack.c.l.b16 %v46
  %v105 = vunpack.c.l.b16 %v47
  %v106 = vunpack.c.l.b16 %v48
  %v107 = vpack.c.b16 %v101, %v100
  %v108 = vpack.c.b16 %v103, %v102
  %v109 = vpack.c.b16 %v105, %v104
  %v110 = vpack.c.b16 %v106, %v106
  %vm114 = vcmask 441344
  %v116 = vsel %vm114, %v85, 0
  %v119 = vsel %vm114, %v86, 0
  %v122 = vsel %vm114, %v87, 0
  %v125 = vsel %vm114, %v88, 0
  %v128 = vsel %vm114, %v89, 0
  %v131 = vsel %vm114, %v90, 0
  %v134 = vsel %vm114, %v91, 0
  %v137 = vsel %vm114, %v92, 0
  %vm139 = vcmask 1042432
  %v141 = vsel %vm139, %v110, 0
  %143 = vmatpush.bf16.msra.mxu0 0
  %144 = vmatpush.bf16.msra.mxu0 0
  %145 = vmatpush.bf16.msra.mxu0 0
  %146 = vmatpush.bf16.msra.mxu0 0
  %147 = vmatpush.bf16.msra.mxu0 %v141
  %148 = vmatpush.bf16.msra.mxu0 %v109
  %149 = vmatpush.bf16.msra.mxu0 %v108
  %150 = vmatpush.bf16.msra.mxu0 %v107
  %151 = vmatmul.bf16.gmra.mxu0 %v116
  %v152 = vpop.f32.mrf.mxu0
  %v153 = vadd.f32 %v51, %v152
  %v154 = vpop.f32.mrf.mxu0
  %v155 = vadd.f32 %v51, %v154
  %156 = vmatmul.bf16.gmra.mxu0 %v119
  %v157 = vpop.f32.mrf.mxu0
  %v158 = vadd.f32 %v51, %v157
  %v159 = vpop.f32.mrf.mxu0
  %v160 = vadd.f32 %v51, %v159
  %161 = vmatmul.bf16.gmra.mxu0 %v122
  %v162 = vpop.f32.mrf.mxu0
  %v163 = vadd.f32 %v51, %v162
  %v164 = vpop.f32.mrf.mxu0
  %v165 = vadd.f32 %v51, %v164
  %166 = vmatmul.bf16.gmra.mxu0 %v125
  %v167 = vpop.f32.mrf.mxu0
  %v168 = vadd.f32 %v51, %v167
  %v169 = vpop.f32.mrf.mxu0
  %v170 = vadd.f32 %v51, %v169
  %171 = vmatmul.bf16.gmra.mxu0 %v128
  %v172 = vpop.f32.mrf.mxu0
  %v173 = vadd.f32 %v51, %v172
  %v174 = vpop.f32.mrf.mxu0
  %v175 = vadd.f32 %v51, %v174
  %176 = vmatmul.bf16.gmra.mxu0 %v131
  %v177 = vpop.f32.mrf.mxu0
  %v178 = vadd.f32 %v51, %v177
  %v179 = vpop.f32.mrf.mxu0
  %v180 = vadd.f32 %v51, %v179
  %181 = vmatmul.bf16.gmra.mxu0 %v134
  %v182 = vpop.f32.mrf.mxu0
  %v183 = vadd.f32 %v51, %v182
  %v184 = vpop.f32.mrf.mxu0
  %v185 = vadd.f32 %v51, %v184
  %186 = vmatmul.bf16.gmra.mxu0 %v137
  %v187 = vpop.f32.mrf.mxu0
  %v188 = vadd.f32 %v51, %v187
  %v189 = vpop.f32.mrf.mxu0
  %v190 = vadd.f32 %v51, %v189
  %191 = vdwg.mxu0
  %192 = vst [vmem:[%s6] sm:$0xff] %v153
  %193 = vst [vmem:[%s6 + $0x8] sm:$0xff] %v155
  %194 = vst [vmem:[%s6 + $0x10] sm:$0xff] %v158
  %195 = vst [vmem:[%s6 + $0x18] sm:$0xff] %v160
  %196 = vst [vmem:[%s6 + $0x20] sm:$0xff] %v163
  %197 = vst [vmem:[%s6 + $0x28] sm:$0xff] %v165
  %198 = vst [vmem:[%s6 + $0x30] sm:$0xff] %v168
  %199 = vst [vmem:[%s6 + $0x38] sm:$0xff] %v170
  %200 = vst [vmem:[%s6 + $0x40] sm:$0xff] %v173
  %201 = vst [vmem:[%s6 + $0x48] sm:$0xff] %v175
  %202 = vst [vmem:[%s6 + $0x50] sm:$0xff] %v178
  %203 = vst [vmem:[%s6 + $0x58] sm:$0xff] %v180
  %204 = vst [vmem:[%s6 + $0x60] sm:$0xff] %v183
  %205 = vst [vmem:[%s6 + $0x68] sm:$0xff] %v185
  %206 = vst [vmem:[%s6 + $0x70] sm:$0xff] %v188
  %207 = vst [vmem:[%s6 + $0x78] sm:$0xff] %v190
  %v208 = vld [vmem:[%s3] sm:$0xff]
  %v209 = vld [vmem:[%s3 + $0x8] sm:$0xff]
  %v210 = vld [vmem:[%s3 + $0x10] sm:$0xff]
  %v211 = vld [vmem:[%s3 + $0x18] sm:$0xff]
  %v212 = vld [vmem:[%s3 + $0x20] sm:$0xff]
  %v213 = vld [vmem:[%s3 + $0x28] sm:$0xff]
  %v214 = vld [vmem:[%s3 + $0x30] sm:$0xff]
  %v215 = vld [vmem:[%s3 + $0x38] sm:$0xff]
  %v216 = vld [vmem:[%s3 + $0x40] sm:$0xff]
  %v217 = vld [vmem:[%s3 + $0x48] sm:$0xff]
  %v218 = vld [vmem:[%s3 + $0x50] sm:$0xff]
  %v219 = vld [vmem:[%s3 + $0x58] sm:$0xff]
  %v220 = vld [vmem:[%s3 + $0x60] sm:$0xff]
  %v221 = vld [vmem:[%s3 + $0x68] sm:$0xff]
  %v222 = vld [vmem:[%s3 + $0x70] sm:$0xff]
  %v223 = vld [vmem:[%s3 + $0x78] sm:$0xff]
  %224 = vmatpush.msra.mxu0 %v223
  %225 = vmatpush.msra.mxu0 %v222
  %226 = vmatpush.msra.mxu0 %v221
  %227 = vmatpush.msra.mxu0 %v220
  %228 = vmatpush.msra.mxu0 %v219
  %229 = vmatpush.msra.mxu0 %v218
  %230 = vmatpush.msra.mxu0 %v217
  %231 = vmatpush.msra.mxu0 %v216
  %232 = vmatpush.msra.mxu0 %v215
  %233 = vmatpush.msra.mxu0 %v214
  %234 = vmatpush.msra.mxu0 %v213
  %235 = vmatpush.msra.mxu0 %v212
  %236 = vmatpush.msra.mxu0 %v211
  %237 = vmatpush.msra.mxu0 %v210
  %238 = vmatpush.msra.mxu0 %v209
  %239 = vmatpush.msra.mxu0 %v208
  %240 = vmatmul.f32.gmra.mxu0 %v153
  %v241 = vpop.f32.mrf.mxu0
  %v242 = vadd.f32 0.0, %v241
  %243 = vmatmul.f32.gmra.mxu0 %v155
  %v244 = vpop.f32.mrf.mxu0
  %v245 = vadd.f32 0.0, %v244
  %246 = vmatmul.f32.gmra.mxu0 %v158
  %v247 = vpop.f32.mrf.mxu0
  %v248 = vadd.f32 0.0, %v247
  %249 = vmatmul.f32.gmra.mxu0 %v160
  %v250 = vpop.f32.mrf.mxu0
  %v251 = vadd.f32 0.0, %v250
  %252 = vmatmul.f32.gmra.mxu0 %v163
  %v253 = vpop.f32.mrf.mxu0
  %v254 = vadd.f32 0.0, %v253
  %255 = vmatmul.f32.gmra.mxu0 %v165
  %v256 = vpop.f32.mrf.mxu0
  %v257 = vadd.f32 0.0, %v256
  %258 = vmatmul.f32.gmra.mxu0 %v168
  %v259 = vpop.f32.mrf.mxu0
  %v260 = vadd.f32 0.0, %v259
  %261 = vmatmul.f32.gmra.mxu0 %v170
  %v262 = vpop.f32.mrf.mxu0
  %v263 = vadd.f32 0.0, %v262
  %264 = vmatmul.f32.gmra.mxu0 %v173
  %v265 = vpop.f32.mrf.mxu0
  %v266 = vadd.f32 0.0, %v265
  %267 = vmatmul.f32.gmra.mxu0 %v175
  %v268 = vpop.f32.mrf.mxu0
  %v269 = vadd.f32 0.0, %v268
  %270 = vmatmul.f32.gmra.mxu0 %v178
  %v271 = vpop.f32.mrf.mxu0
  %v272 = vadd.f32 0.0, %v271
  %273 = vmatmul.f32.gmra.mxu0 %v180
  %v274 = vpop.f32.mrf.mxu0
  %v275 = vadd.f32 0.0, %v274
  %276 = vmatmul.f32.gmra.mxu0 %v183
  %v277 = vpop.f32.mrf.mxu0
  %v278 = vadd.f32 0.0, %v277
  %279 = vmatmul.f32.gmra.mxu0 %v185
  %v280 = vpop.f32.mrf.mxu0
  %v281 = vadd.f32 0.0, %v280
  %282 = vmatmul.f32.gmra.mxu0 %v188
  %v283 = vpop.f32.mrf.mxu0
  %v284 = vadd.f32 0.0, %v283
  %285 = vmatmul.f32.gmra.mxu0 %v190
  %v286 = vpop.f32.mrf.mxu0
  %v287 = vadd.f32 0.0, %v286
  %288 = vdwg.mxu0
  %v289 = vmul.f32 %v153, %v153
  %v290 = vmul.f32 %v155, %v155
  %v291 = vmul.f32 %v158, %v158
  %v292 = vmul.f32 %v160, %v160
  %v293 = vmul.f32 %v163, %v163
  %v294 = vmul.f32 %v165, %v165
  %v295 = vmul.f32 %v168, %v168
  %v296 = vmul.f32 %v170, %v170
  %v297 = vmul.f32 %v173, %v173
  %v298 = vmul.f32 %v175, %v175
  %v299 = vmul.f32 %v178, %v178
  %v300 = vmul.f32 %v180, %v180
  %v301 = vmul.f32 %v183, %v183
  %v302 = vmul.f32 %v185, %v185
  %v303 = vmul.f32 %v188, %v188
  %v304 = vmul.f32 %v190, %v190
  %305 = vmatpush.msra.mxu0 %v223
  %306 = vmatpush.msra.mxu0 %v222
  %307 = vmatpush.msra.mxu0 %v221
  %308 = vmatpush.msra.mxu0 %v220
  %309 = vmatpush.msra.mxu0 %v219
  %310 = vmatpush.msra.mxu0 %v218
  %311 = vmatpush.msra.mxu0 %v217
  %312 = vmatpush.msra.mxu0 %v216
  %313 = vmatpush.msra.mxu0 %v215
  %314 = vmatpush.msra.mxu0 %v214
  %315 = vmatpush.msra.mxu0 %v213
  %316 = vmatpush.msra.mxu0 %v212
  %317 = vmatpush.msra.mxu0 %v211
  %318 = vmatpush.msra.mxu0 %v210
  %319 = vmatpush.msra.mxu0 %v209
  %320 = vmatpush.msra.mxu0 %v208
  %321 = vmatmul.f32.gmra.mxu0 %v289
  %v322 = vpop.f32.mrf.mxu0
  %v323 = vadd.f32 0.0, %v322
  %324 = vmatmul.f32.gmra.mxu0 %v290
  %v325 = vpop.f32.mrf.mxu0
  %v326 = vadd.f32 0.0, %v325
  %327 = vmatmul.f32.gmra.mxu0 %v291
  %v328 = vpop.f32.mrf.mxu0
  %v329 = vadd.f32 0.0, %v328
  %330 = vmatmul.f32.gmra.mxu0 %v292
  %v331 = vpop.f32.mrf.mxu0
  %v332 = vadd.f32 0.0, %v331
  %333 = vmatmul.f32.gmra.mxu0 %v293
  %v334 = vpop.f32.mrf.mxu0
  %v335 = vadd.f32 0.0, %v334
  %336 = vmatmul.f32.gmra.mxu0 %v294
  %v337 = vpop.f32.mrf.mxu0
  %v338 = vadd.f32 0.0, %v337
  %339 = vmatmul.f32.gmra.mxu0 %v295
  %v340 = vpop.f32.mrf.mxu0
  %v341 = vadd.f32 0.0, %v340
  %342 = vmatmul.f32.gmra.mxu0 %v296
  %v343 = vpop.f32.mrf.mxu0
  %v344 = vadd.f32 0.0, %v343
  %345 = vmatmul.f32.gmra.mxu0 %v297
  %v346 = vpop.f32.mrf.mxu0
  %v347 = vadd.f32 0.0, %v346
  %348 = vmatmul.f32.gmra.mxu0 %v298
  %v349 = vpop.f32.mrf.mxu0
  %v350 = vadd.f32 0.0, %v349
  %351 = vmatmul.f32.gmra.mxu0 %v299
  %v352 = vpop.f32.mrf.mxu0
  %v353 = vadd.f32 0.0, %v352
  %354 = vmatmul.f32.gmra.mxu0 %v300
  %v355 = vpop.f32.mrf.mxu0
  %v356 = vadd.f32 0.0, %v355
  %357 = vmatmul.f32.gmra.mxu0 %v301
  %v358 = vpop.f32.mrf.mxu0
  %v359 = vadd.f32 0.0, %v358
  %360 = vmatmul.f32.gmra.mxu0 %v302
  %v361 = vpop.f32.mrf.mxu0
  %v362 = vadd.f32 0.0, %v361
  %363 = vmatmul.f32.gmra.mxu0 %v303
  %v364 = vpop.f32.mrf.mxu0
  %v365 = vadd.f32 0.0, %v364
  %366 = vmatmul.f32.gmra.mxu0 %v304
  %v367 = vpop.f32.mrf.mxu0
  %v368 = vadd.f32 0.0, %v367
  %369 = vdwg.mxu0
  %v370 = vmul.f32 %v242, %v242
  %v371 = vmul.f32 %v245, %v245
  %v372 = vmul.f32 %v248, %v248
  %v373 = vmul.f32 %v251, %v251
  %v374 = vmul.f32 %v254, %v254
  %v375 = vmul.f32 %v257, %v257
  %v376 = vmul.f32 %v260, %v260
  %v377 = vmul.f32 %v263, %v263
  %v378 = vmul.f32 %v266, %v266
  %v379 = vmul.f32 %v269, %v269
  %v380 = vmul.f32 %v272, %v272
  %v381 = vmul.f32 %v275, %v275
  %v382 = vmul.f32 %v278, %v278
  %v383 = vmul.f32 %v281, %v281
  %v384 = vmul.f32 %v284, %v284
  %v385 = vmul.f32 %v287, %v287
  %v386 = vsub.f32 %v323, %v370
  %v387 = vsub.f32 %v326, %v371
  %v388 = vsub.f32 %v329, %v372
  %v389 = vsub.f32 %v332, %v373
  %v390 = vsub.f32 %v335, %v374
  %v391 = vsub.f32 %v338, %v375
  %v392 = vsub.f32 %v341, %v376
  %v393 = vsub.f32 %v344, %v377
  %v394 = vsub.f32 %v347, %v378
  %v395 = vsub.f32 %v350, %v379
  %v396 = vsub.f32 %v353, %v380
  %v397 = vsub.f32 %v356, %v381
  %v398 = vsub.f32 %v359, %v382
  %v399 = vsub.f32 %v362, %v383
  %v400 = vsub.f32 %v365, %v384
  %v401 = vsub.f32 %v368, %v385
  %v402 = vmax.f32 %v386, 0.0
  %v403 = vmax.f32 %v387, 0.0
  %v404 = vmax.f32 %v388, 0.0
  %v405 = vmax.f32 %v389, 0.0
  %v406 = vmax.f32 %v390, 0.0
  %v407 = vmax.f32 %v391, 0.0
  %v408 = vmax.f32 %v392, 0.0
  %v409 = vmax.f32 %v393, 0.0
  %v410 = vmax.f32 %v394, 0.0
  %v411 = vmax.f32 %v395, 0.0
  %v412 = vmax.f32 %v396, 0.0
  %v413 = vmax.f32 %v397, 0.0
  %v414 = vmax.f32 %v398, 0.0
  %v415 = vmax.f32 %v399, 0.0
  %v416 = vmax.f32 %v400, 0.0
  %v417 = vmax.f32 %v401, 0.0
  %v418 = vsub.f32 %v153, %v242
  %v419 = vsub.f32 %v155, %v245
  %v420 = vsub.f32 %v158, %v248
  %v421 = vsub.f32 %v160, %v251
  %v422 = vsub.f32 %v163, %v254
  %v423 = vsub.f32 %v165, %v257
  %v424 = vsub.f32 %v168, %v260
  %v425 = vsub.f32 %v170, %v263
  %v426 = vsub.f32 %v173, %v266
  %v427 = vsub.f32 %v175, %v269
  %v428 = vsub.f32 %v178, %v272
  %v429 = vsub.f32 %v180, %v275
  %v430 = vsub.f32 %v183, %v278
  %v431 = vsub.f32 %v185, %v281
  %v432 = vsub.f32 %v188, %v284
  %v433 = vsub.f32 %v190, %v287
  %v434 = vadd.f32 %v402, 1e-06
  %v435 = vadd.f32 %v403, 1e-06
  %v436 = vadd.f32 %v404, 1e-06
  %v437 = vadd.f32 %v405, 1e-06
  %v438 = vadd.f32 %v406, 1e-06
  %v439 = vadd.f32 %v407, 1e-06
  %v440 = vadd.f32 %v408, 1e-06
  %v441 = vadd.f32 %v409, 1e-06
  %v442 = vadd.f32 %v410, 1e-06
  %v443 = vadd.f32 %v411, 1e-06
  %v444 = vadd.f32 %v412, 1e-06
  %v445 = vadd.f32 %v413, 1e-06
  %v446 = vadd.f32 %v414, 1e-06
  %v447 = vadd.f32 %v415, 1e-06
  %v448 = vadd.f32 %v416, 1e-06
  %v449 = vadd.f32 %v417, 1e-06
  %v450 = vrsqrt.pop %v434
  %v451 = vmul.f32 %v450, %v434
  %v452 = vmul.f32 %v451, %v450
  %v453 = vmul.f32 0.5, %v452
  %v454 = vsub.f32 1.5, %v453
  %v455 = vmul.f32 %v450, %v454
  %vm456 = vweird.f32 %v434
  %vm457 = vweird.f32 %v450
  %vm458 = vmor %vm456, %vm457
  %v459 = vsel %vm458, %v450, %v455
  %v460 = vrsqrt.pop %v435
  %v461 = vmul.f32 %v460, %v435
  %v462 = vmul.f32 %v461, %v460
  %v463 = vmul.f32 0.5, %v462
  %v464 = vsub.f32 1.5, %v463
  %v465 = vmul.f32 %v460, %v464
  %vm466 = vweird.f32 %v435
  %vm467 = vweird.f32 %v460
  %vm468 = vmor %vm466, %vm467
  %v469 = vsel %vm468, %v460, %v465
  %v470 = vrsqrt.pop %v436
  %v471 = vmul.f32 %v470, %v436
  %v472 = vmul.f32 %v471, %v470
  %v473 = vmul.f32 0.5, %v472
  %v474 = vsub.f32 1.5, %v473
  %v475 = vmul.f32 %v470, %v474
  %vm476 = vweird.f32 %v436
  %vm477 = vweird.f32 %v470
  %vm478 = vmor %vm476, %vm477
  %v479 = vsel %vm478, %v470, %v475
  %v480 = vrsqrt.pop %v437
  %v481 = vmul.f32 %v480, %v437
  %v482 = vmul.f32 %v481, %v480
  %v483 = vmul.f32 0.5, %v482
  %v484 = vsub.f32 1.5, %v483
  %v485 = vmul.f32 %v480, %v484
  %vm486 = vweird.f32 %v437
  %vm487 = vweird.f32 %v480
  %vm488 = vmor %vm486, %vm487
  %v489 = vsel %vm488, %v480, %v485
  %v490 = vrsqrt.pop %v438
  %v491 = vmul.f32 %v490, %v438
  %v492 = vmul.f32 %v491, %v490
  %v493 = vmul.f32 0.5, %v492
  %v494 = vsub.f32 1.5, %v493
  %v495 = vmul.f32 %v490, %v494
  %vm496 = vweird.f32 %v438
  %vm497 = vweird.f32 %v490
  %vm498 = vmor %vm496, %vm497
  %v499 = vsel %vm498, %v490, %v495
  %v500 = vrsqrt.pop %v439
  %v501 = vmul.f32 %v500, %v439
  %v502 = vmul.f32 %v501, %v500
  %v503 = vmul.f32 0.5, %v502
  %v504 = vsub.f32 1.5, %v503
  %v505 = vmul.f32 %v500, %v504
  %vm506 = vweird.f32 %v439
  %vm507 = vweird.f32 %v500
  %vm508 = vmor %vm506, %vm507
  %v509 = vsel %vm508, %v500, %v505
  %v510 = vrsqrt.pop %v440
  %v511 = vmul.f32 %v510, %v440
  %v512 = vmul.f32 %v511, %v510
  %v513 = vmul.f32 0.5, %v512
  %v514 = vsub.f32 1.5, %v513
  %v515 = vmul.f32 %v510, %v514
  %vm516 = vweird.f32 %v440
  %vm517 = vweird.f32 %v510
  %vm518 = vmor %vm516, %vm517
  %v519 = vsel %vm518, %v510, %v515
  %v520 = vrsqrt.pop %v441
  %v521 = vmul.f32 %v520, %v441
  %v522 = vmul.f32 %v521, %v520
  %v523 = vmul.f32 0.5, %v522
  %v524 = vsub.f32 1.5, %v523
  %v525 = vmul.f32 %v520, %v524
  %vm526 = vweird.f32 %v441
  %vm527 = vweird.f32 %v520
  %vm528 = vmor %vm526, %vm527
  %v529 = vsel %vm528, %v520, %v525
  %v530 = vrsqrt.pop %v442
  %v531 = vmul.f32 %v530, %v442
  %v532 = vmul.f32 %v531, %v530
  %v533 = vmul.f32 0.5, %v532
  %v534 = vsub.f32 1.5, %v533
  %v535 = vmul.f32 %v530, %v534
  %vm536 = vweird.f32 %v442
  %vm537 = vweird.f32 %v530
  %vm538 = vmor %vm536, %vm537
  %v539 = vsel %vm538, %v530, %v535
  %v540 = vrsqrt.pop %v443
  %v541 = vmul.f32 %v540, %v443
  %v542 = vmul.f32 %v541, %v540
  %v543 = vmul.f32 0.5, %v542
  %v544 = vsub.f32 1.5, %v543
  %v545 = vmul.f32 %v540, %v544
  %vm546 = vweird.f32 %v443
  %vm547 = vweird.f32 %v540
  %vm548 = vmor %vm546, %vm547
  %v549 = vsel %vm548, %v540, %v545
  %v550 = vrsqrt.pop %v444
  %v551 = vmul.f32 %v550, %v444
  %v552 = vmul.f32 %v551, %v550
  %v553 = vmul.f32 0.5, %v552
  %v554 = vsub.f32 1.5, %v553
  %v555 = vmul.f32 %v550, %v554
  %vm556 = vweird.f32 %v444
  %vm557 = vweird.f32 %v550
  %vm558 = vmor %vm556, %vm557
  %v559 = vsel %vm558, %v550, %v555
  %v560 = vrsqrt.pop %v445
  %v561 = vmul.f32 %v560, %v445
  %v562 = vmul.f32 %v561, %v560
  %v563 = vmul.f32 0.5, %v562
  %v564 = vsub.f32 1.5, %v563
  %v565 = vmul.f32 %v560, %v564
  %vm566 = vweird.f32 %v445
  %vm567 = vweird.f32 %v560
  %vm568 = vmor %vm566, %vm567
  %v569 = vsel %vm568, %v560, %v565
  %v570 = vrsqrt.pop %v446
  %v571 = vmul.f32 %v570, %v446
  %v572 = vmul.f32 %v571, %v570
  %v573 = vmul.f32 0.5, %v572
  %v574 = vsub.f32 1.5, %v573
  %v575 = vmul.f32 %v570, %v574
  %vm576 = vweird.f32 %v446
  %vm577 = vweird.f32 %v570
  %vm578 = vmor %vm576, %vm577
  %v579 = vsel %vm578, %v570, %v575
  %v580 = vrsqrt.pop %v447
  %v581 = vmul.f32 %v580, %v447
  %v582 = vmul.f32 %v581, %v580
  %v583 = vmul.f32 0.5, %v582
  %v584 = vsub.f32 1.5, %v583
  %v585 = vmul.f32 %v580, %v584
  %vm586 = vweird.f32 %v447
  %vm587 = vweird.f32 %v580
  %vm588 = vmor %vm586, %vm587
  %v589 = vsel %vm588, %v580, %v585
  %v590 = vrsqrt.pop %v448
  %v591 = vmul.f32 %v590, %v448
  %v592 = vmul.f32 %v591, %v590
  %v593 = vmul.f32 0.5, %v592
  %v594 = vsub.f32 1.5, %v593
  %v595 = vmul.f32 %v590, %v594
  %vm596 = vweird.f32 %v448
  %vm597 = vweird.f32 %v590
  %vm598 = vmor %vm596, %vm597
  %v599 = vsel %vm598, %v590, %v595
  %v600 = vrsqrt.pop %v449
  %v601 = vmul.f32 %v600, %v449
  %v602 = vmul.f32 %v601, %v600
  %v603 = vmul.f32 0.5, %v602
  %v604 = vsub.f32 1.5, %v603
  %v605 = vmul.f32 %v600, %v604
  %vm606 = vweird.f32 %v449
  %vm607 = vweird.f32 %v600
  %vm608 = vmor %vm606, %vm607
  %v609 = vsel %vm608, %v600, %v605
  %v610 = vmul.f32 %v418, %v459
  %v611 = vmul.f32 %v419, %v469
  %v612 = vmul.f32 %v420, %v479
  %v613 = vmul.f32 %v421, %v489
  %v614 = vmul.f32 %v422, %v499
  %v615 = vmul.f32 %v423, %v509
  %v616 = vmul.f32 %v424, %v519
  %v617 = vmul.f32 %v425, %v529
  %v618 = vmul.f32 %v426, %v539
  %v619 = vmul.f32 %v427, %v549
  %v620 = vmul.f32 %v428, %v559
  %v621 = vmul.f32 %v429, %v569
  %v622 = vmul.f32 %v430, %v579
  %v623 = vmul.f32 %v431, %v589
  %v624 = vmul.f32 %v432, %v599
  %v625 = vmul.f32 %v433, %v609
  %v626 = vld [vmem:[%s4] sm:$0x1]
  %v628 = vperm.slane %v626, 0
  %v630 = vmul.f32 %v610, %v628
  %v631 = vmul.f32 %v611, %v628
  %v632 = vmul.f32 %v612, %v628
  %v633 = vmul.f32 %v613, %v628
  %v634 = vmul.f32 %v614, %v628
  %v635 = vmul.f32 %v615, %v628
  %v636 = vmul.f32 %v616, %v628
  %v637 = vmul.f32 %v617, %v628
  %v638 = vmul.f32 %v618, %v628
  %v639 = vmul.f32 %v619, %v628
  %v640 = vmul.f32 %v620, %v628
  %v641 = vmul.f32 %v621, %v628
  %v642 = vmul.f32 %v622, %v628
  %v643 = vmul.f32 %v623, %v628
  %v644 = vmul.f32 %v624, %v628
  %v645 = vmul.f32 %v625, %v628
  %v646 = vld [vmem:[%s5] sm:$0x1]
  %v648 = vperm.slane %v646, 0
  %v650 = vadd.f32 %v630, %v648
  %v651 = vadd.f32 %v631, %v648
  %v652 = vadd.f32 %v632, %v648
  %v653 = vadd.f32 %v633, %v648
  %v654 = vadd.f32 %v634, %v648
  %v655 = vadd.f32 %v635, %v648
  %v656 = vadd.f32 %v636, %v648
  %v657 = vadd.f32 %v637, %v648
  %v658 = vadd.f32 %v638, %v648
  %v659 = vadd.f32 %v639, %v648
  %v660 = vadd.f32 %v640, %v648
  %v661 = vadd.f32 %v641, %v648
  %v662 = vadd.f32 %v642, %v648
  %v663 = vadd.f32 %v643, %v648
  %v664 = vadd.f32 %v644, %v648
  %v665 = vadd.f32 %v645, %v648
  %666 = vst [vmem:[%s7] sm:$0xff] %v650
  %667 = vst [vmem:[%s7 + $0x8] sm:$0xff] %v651
  %668 = vst [vmem:[%s7 + $0x10] sm:$0xff] %v652
  %669 = vst [vmem:[%s7 + $0x18] sm:$0xff] %v653
  %670 = vst [vmem:[%s7 + $0x20] sm:$0xff] %v654
  %671 = vst [vmem:[%s7 + $0x28] sm:$0xff] %v655
  %672 = vst [vmem:[%s7 + $0x30] sm:$0xff] %v656
  %673 = vst [vmem:[%s7 + $0x38] sm:$0xff] %v657
  %674 = vst [vmem:[%s7 + $0x40] sm:$0xff] %v658
  %675 = vst [vmem:[%s7 + $0x48] sm:$0xff] %v659
  %676 = vst [vmem:[%s7 + $0x50] sm:$0xff] %v660
  %677 = vst [vmem:[%s7 + $0x58] sm:$0xff] %v661
  %678 = vst [vmem:[%s7 + $0x60] sm:$0xff] %v662
  %679 = vst [vmem:[%s7 + $0x68] sm:$0xff] %v663
  %680 = vst [vmem:[%s7 + $0x70] sm:$0xff] %v664
  %681 = vst [vmem:[%s7 + $0x78] sm:$0xff] %v665
  // Predicated region
  $region26: #{image_encoder_forward.6} parent=0 // pred_check
    _
  $region27: #{image_encoder_forward.6} parent=0 // pred_check_branch
    %683 = sbr.rel (0) target = $region29
  $region28: #{image_encoder_forward.6} parent=0 // pred_region
    _
  $region29: #{image_encoder_forward.6} parent=0 // pred_fallthru
    _
  // Predicated region
  $region30: #{image_encoder_forward.6} parent=0 // pred_check
    _
  $region31: #{image_encoder_forward.6} parent=0 // pred_check_branch
    %685 = sbr.rel (0) target = $region33
  $region32: #{image_encoder_forward.6} parent=0 // pred_region
    _
  $region33: #{image_encoder_forward.6} parent=0 // pred_fallthru
    _
  // Predicated region
  $region34: #{image_encoder_forward.6} parent=0 // pred_check
    _
  $region35: #{image_encoder_forward.6} parent=0 // pred_check_branch
    %687 = sbr.rel (0) target = $region37
  $region36: #{image_encoder_forward.6} parent=0 // pred_region
    _
  $region37: #{image_encoder_forward.6} parent=0 // pred_fallthru
    _
  // Predicated region
  $region38: #{image_encoder_forward.6} parent=0 // pred_check
    _
  $region39: #{image_encoder_forward.6} parent=0 // pred_check_branch
    %689 = sbr.rel (0) target = $region41
  $region40: #{image_encoder_forward.6} parent=0 // pred_region
    _
  $region41: #{image_encoder_forward.6} parent=0 // pred_fallthru
    _

// kernel: image_encoder_forward.7
$region0: #{image_encoder_forward.7}
  #allocation0 [shape = 'u32[]', space=smem, size = 0x4, offset = 0x4, fixed_abs, tag = 'smem constant byte address 0x4 - core index']
  #allocation1 [shape = 'u32[72,128]{1,0:T(1,128)}', space=vmem, size = 0x9000, scoped, tag = 'internal scratch']
  %s0 = inlined_call_operand.vmem [shape: bf16[64,576], index: 0, kind: input, shape index: {}]
  %s1 = inlined_call_operand.vmem [shape: bf16[576,128], index: 1, kind: input, shape index: {}]
  %s2 = inlined_call_operand.vmem [shape: f32[1,128], index: 2, kind: input, shape index: {}]
  %s3 = inlined_call_operand.vmem [shape: f32[64,128], index: 3, kind: output, shape index: {}]
  %s4 = sld [smem:[#allocation0]]
  $region22: #{image_encoder_forward.7} parent=0
    _
  %s6 = ssub.s32 1, %s4
  %s7 = scalar_select 0, %s6, %s4
  // Predicated region
  $region2: #{image_encoder_forward.7} parent=0 // pred_check
    _
  $region3: #{image_encoder_forward.7} parent=0 // pred_check_branch
    %9 = sbr.rel (0) target = $region5
  $region4: #{image_encoder_forward.7} parent=0 // pred_region
    _
  $region5: #{image_encoder_forward.7} parent=0 // pred_fallthru
    _
  // Predicated region
  $region6: #{image_encoder_forward.7} parent=0 // pred_check
    _
  $region7: #{image_encoder_forward.7} parent=0 // pred_check_branch
    %11 = sbr.rel (0) target = $region9
  $region8: #{image_encoder_forward.7} parent=0 // pred_region
    _
  $region9: #{image_encoder_forward.7} parent=0 // pred_fallthru
    _
  // Predicated region
  $region10: #{image_encoder_forward.7} parent=0 // pred_check
    _
  $region11: #{image_encoder_forward.7} parent=0 // pred_check_branch
    %13 = sbr.rel (0) target = $region13
  $region12: #{image_encoder_forward.7} parent=0 // pred_region
    _
  $region13: #{image_encoder_forward.7} parent=0 // pred_fallthru
    _
  %v15 = vld [vmem:[%s0] sm:$0xff]
  %v16 = vld [vmem:[%s0 + $0x8] sm:$0xff]
  %v17 = vld [vmem:[%s0 + $0x10] sm:$0xf]
  %v18 = vld [vmem:[%s0 + $0x14] sm:$0xff]
  %v19 = vld [vmem:[%s0 + $0x1c] sm:$0xff]
  %v20 = vld [vmem:[%s0 + $0x24] sm:$0xf]
  %v21 = vld [vmem:[%s0 + $0x28] sm:$0xff]
  %v22 = vld [vmem:[%s0 + $0x30] sm:$0xff]
  %v23 = vld [vmem:[%s0 + $0x38] sm:$0xf]
  %v24 = vld [vmem:[%s0 + $0x3c] sm:$0xff]
  %v25 = vld [vmem:[%s0 + $0x44] sm:$0xff]
  %v26 = vld [vmem:[%s0 + $0x4c] sm:$0xf]
  %v27 = vld [vmem:[%s0 + $0x50] sm:$0xff]
  %v28 = vld [vmem:[%s0 + $0x58] sm:$0xff]
  %v29 = vld [vmem:[%s0 + $0x60] sm:$0xf]
  %v30 = vld [vmem:[%s0 + $0x64] sm:$0xff]
  %v31 = vld [vmem:[%s0 + $0x6c] sm:$0xff]
  %v32 = vld [vmem:[%s0 + $0x74] sm:$0xf]
  %v33 = vld [vmem:[%s0 + $0x78] sm:$0xff]
  %v34 = vld [vmem:[%s0 + $0x80] sm:$0xff]
  %v35 = vld [vmem:[%s0 + $0x88] sm:$0xf]
  %v36 = vld [vmem:[%s0 + $0x8c] sm:$0xff]
  %v37 = vld [vmem:[%s0 + $0x94] sm:$0xff]
  %v38 = vld [vmem:[%s0 + $0x9c] sm:$0xf]
  %v39 = vld [vmem:[%s1] sm:$0xf]
  %v40 = vld [vmem:[%s1 + $0x4] sm:$0xf]
  %v41 = vld [vmem:[%s1 + $0x8] sm:$0xf]
  %v42 = vld [vmem:[%s1 + $0xc] sm:$0xf]
  %v43 = vld [vmem:[%s1 + $0x10] sm:$0xf]
  %v44 = vld [vmem:[%s1 + $0x14] sm:$0xf]
  %v45 = vld [vmem:[%s1 + $0x18] sm:$0xf]
  %v46 = vld [vmem:[%s1 + $0x1c] sm:$0xf]
  %v47 = vld [vmem:[%s1 + $0x20] sm:$0xf]
  %v48 = vld [vmem:[%s1 + $0x24] sm:$0xf]
  %v49 = vld [vmem:[%s1 + $0x28] sm:$0xf]
  %v50 = vld [vmem:[%s1 + $0x2c] sm:$0xf]
  %v51 = vld [vmem:[%s1 + $0x30] sm:$0xf]
  %v52 = vld [vmem:[%s1 + $0x34] sm:$0xf]
  %v53 = vld [vmem:[%s1 + $0x38] sm:$0xf]
  %v54 = vld [vmem:[%s1 + $0x3c] sm:$0xf]
  %v55 = vld [vmem:[%s1 + $0x40] sm:$0xf]
  %v56 = vld [vmem:[%s1 + $0x44] sm:$0xf]
  %v57 = vld [vmem:[%s1 + $0x48] sm:$0xf]
  %v58 = vld [vmem:[%s1 + $0x4c] sm:$0xf]
  %v59 = vld [vmem:[%s1 + $0x50] sm:$0xf]
  %v60 = vld [vmem:[%s1 + $0x54] sm:$0xf]
  %v61 = vld [vmem:[%s1 + $0x58] sm:$0xf]
  %v62 = vld [vmem:[%s1 + $0x5c] sm:$0xf]
  %v63 = vld [vmem:[%s1 + $0x60] sm:$0xf]
  %v64 = vld [vmem:[%s1 + $0x64] sm:$0xf]
  %v65 = vld [vmem:[%s1 + $0x68] sm:$0xf]
  %v66 = vld [vmem:[%s1 + $0x6c] sm:$0xf]
  %v67 = vld [vmem:[%s1 + $0x70] sm:$0xf]
  %v68 = vld [vmem:[%s1 + $0x74] sm:$0xf]
  %v69 = vld [vmem:[%s1 + $0x78] sm:$0xf]
  %v70 = vld [vmem:[%s1 + $0x7c] sm:$0xf]
  %v71 = vld [vmem:[%s1 + $0x80] sm:$0xf]
  %v72 = vld [vmem:[%s1 + $0x84] sm:$0xf]
  %v73 = vld [vmem:[%s1 + $0x88] sm:$0xf]
  %v74 = vld [vmem:[%s1 + $0x8c] sm:$0xf]
  %v75 = vld [vmem:[%s1 + $0x90] sm:$0xf]
  %v76 = vld [vmem:[%s1 + $0x94] sm:$0xf]
  %v77 = vld [vmem:[%s1 + $0x98] sm:$0xf]
  %v78 = vld [vmem:[%s1 + $0x9c] sm:$0xf]
  %v79 = vld [vmem:[%s1 + $0xa0] sm:$0xf]
  %v80 = vld [vmem:[%s1 + $0xa4] sm:$0xf]
  %v81 = vld [vmem:[%s1 + $0xa8] sm:$0xf]
  %v82 = vld [vmem:[%s1 + $0xac] sm:$0xf]
  %v83 = vld [vmem:[%s1 + $0xb0] sm:$0xf]
  %v84 = vld [vmem:[%s1 + $0xb4] sm:$0xf]
  %v85 = vld [vmem:[%s1 + $0xb8] sm:$0xf]
  %v86 = vld [vmem:[%s1 + $0xbc] sm:$0xf]
  %v87 = vld [vmem:[%s1 + $0xc0] sm:$0xf]
  %v88 = vld [vmem:[%s1 + $0xc4] sm:$0xf]
  %v89 = vld [vmem:[%s1 + $0xc8] sm:$0xf]
  %v90 = vld [vmem:[%s1 + $0xcc] sm:$0xf]
  %v91 = vld [vmem:[%s1 + $0xd0] sm:$0xf]
  %v92 = vld [vmem:[%s1 + $0xd4] sm:$0xf]
  %v93 = vld [vmem:[%s1 + $0xd8] sm:$0xf]
  %v94 = vld [vmem:[%s1 + $0xdc] sm:$0xf]
  %v95 = vld [vmem:[%s1 + $0xe0] sm:$0xf]
  %v96 = vld [vmem:[%s1 + $0xe4] sm:$0xf]
  %v97 = vld [vmem:[%s1 + $0xe8] sm:$0xf]
  %v98 = vld [vmem:[%s1 + $0xec] sm:$0xf]
  %v99 = vld [vmem:[%s1 + $0xf0] sm:$0xf]
  %v100 = vld [vmem:[%s1 + $0xf4] sm:$0xf]
  %v101 = vld [vmem:[%s1 + $0xf8] sm:$0xf]
  %v102 = vld [vmem:[%s1 + $0xfc] sm:$0xf]
  %v103 = vld [vmem:[%s1 + $0x100] sm:$0xf]
  %v104 = vld [vmem:[%s1 + $0x104] sm:$0xf]
  %v105 = vld [vmem:[%s1 + $0x108] sm:$0xf]
  %v106 = vld [vmem:[%s1 + $0x10c] sm:$0xf]
  %v107 = vld [vmem:[%s1 + $0x110] sm:$0xf]
  %v108 = vld [vmem:[%s1 + $0x114] sm:$0xf]
  %v109 = vld [vmem:[%s1 + $0x118] sm:$0xf]
  %v110 = vld [vmem:[%s1 + $0x11c] sm:$0xf]
  %v111 = vld [vmem:[%s2] sm:$0x1]
  %v113 = vperm.slane %v111, 0
  %v139 = vunpack.c.l.b16 %v15
  %v140 = vunpack.c.h.b16 %v15
  %v141 = vunpack.c.l.b16 %v16
  %v142 = vunpack.c.h.b16 %v16
  %v143 = vunpack.c.l.b16 %v17
  %v144 = vunpack.c.l.b16 %v18
  %v145 = vunpack.c.h.b16 %v18
  %v146 = vunpack.c.l.b16 %v19
  %v147 = vunpack.c.h.b16 %v19
  %v148 = vunpack.c.l.b16 %v20
  %v149 = vunpack.c.l.b16 %v21
  %v150 = vunpack.c.h.b16 %v21
  %v151 = vunpack.c.l.b16 %v22
  %v152 = vunpack.c.h.b16 %v22
  %v153 = vunpack.c.l.b16 %v23
  %v154 = vunpack.c.l.b16 %v24
  %v155 = vunpack.c.h.b16 %v24
  %v156 = vunpack.c.l.b16 %v25
  %v157 = vunpack.c.h.b16 %v25
  %v158 = vunpack.c.l.b16 %v26
  %v159 = vunpack.c.l.b16 %v27
  %v160 = vunpack.c.h.b16 %v27
  %v161 = vunpack.c.l.b16 %v28
  %v162 = vunpack.c.h.b16 %v28
  %v163 = vunpack.c.l.b16 %v29
  %v164 = vunpack.c.l.b16 %v30
  %v165 = vunpack.c.h.b16 %v30
  %v166 = vunpack.c.l.b16 %v31
  %v167 = vunpack.c.h.b16 %v31
  %v168 = vunpack.c.l.b16 %v32
  %v169 = vunpack.c.l.b16 %v33
  %v170 = vunpack.c.h.b16 %v33
  %v171 = vunpack.c.l.b16 %v34
  %v172 = vunpack.c.h.b16 %v34
  %v173 = vunpack.c.l.b16 %v35
  %v174 = vunpack.c.l.b16 %v36
  %v175 = vunpack.c.h.b16 %v36
  %v176 = vunpack.c.l.b16 %v37
  %v177 = vunpack.c.h.b16 %v37
  %v178 = vunpack.c.l.b16 %v38
  %v179 = vpack.c.b16 %v144, %v139
  %v180 = vpack.c.b16 %v145, %v140
  %v181 = vpack.c.b16 %v146, %v141
  %v182 = vpack.c.b16 %v147, %v142
  %v183 = vpack.c.b16 %v148, %v143
  %v184 = vpack.c.b16 %v154, %v149
  %v185 = vpack.c.b16 %v155, %v150
  %v186 = vpack.c.b16 %v156, %v151
  %v187 = vpack.c.b16 %v157, %v152
  %v188 = vpack.c.b16 %v158, %v153
  %v189 = vpack.c.b16 %v164, %v159
  %v190 = vpack.c.b16 %v165, %v160
  %v191 = vpack.c.b16 %v166, %v161
  %v192 = vpack.c.b16 %v167, %v162
  %v193 = vpack.c.b16 %v168, %v163
  %v194 = vpack.c.b16 %v174, %v169
  %v195 = vpack.c.b16 %v175, %v170
  %v196 = vpack.c.b16 %v176, %v171
  %v197 = vpack.c.b16 %v177, %v172
  %v198 = vpack.c.b16 %v178, %v173
  %v287 = vunpack.c.l.b16 %v39
  %v288 = vunpack.c.l.b16 %v40
  %v289 = vunpack.c.l.b16 %v41
  %v290 = vunpack.c.l.b16 %v42
  %v291 = vunpack.c.l.b16 %v43
  %v292 = vunpack.c.l.b16 %v44
  %v293 = vunpack.c.l.b16 %v45
  %v294 = vunpack.c.l.b16 %v46
  %v295 = vunpack.c.l.b16 %v47
  %v296 = vunpack.c.l.b16 %v48
  %v297 = vunpack.c.l.b16 %v49
  %v298 = vunpack.c.l.b16 %v50
  %v299 = vunpack.c.l.b16 %v51
  %v300 = vunpack.c.l.b16 %v52
  %v301 = vunpack.c.l.b16 %v53
  %v302 = vunpack.c.l.b16 %v54
  %v303 = vunpack.c.l.b16 %v55
  %v304 = vunpack.c.l.b16 %v56
  %v305 = vunpack.c.l.b16 %v57
  %v306 = vunpack.c.l.b16 %v58
  %v307 = vunpack.c.l.b16 %v59
  %v308 = vunpack.c.l.b16 %v60
  %v309 = vunpack.c.l.b16 %v61
  %v310 = vunpack.c.l.b16 %v62
  %v311 = vunpack.c.l.b16 %v63
  %v312 = vunpack.c.l.b16 %v64
  %v313 = vunpack.c.l.b16 %v65
  %v314 = vunpack.c.l.b16 %v66
  %v315 = vunpack.c.l.b16 %v67
  %v316 = vunpack.c.l.b16 %v68
  %v317 = vunpack.c.l.b16 %v69
  %v318 = vunpack.c.l.b16 %v70
  %v319 = vunpack.c.l.b16 %v71
  %v320 = vunpack.c.l.b16 %v72
  %v321 = vunpack.c.l.b16 %v73
  %v322 = vunpack.c.l.b16 %v74
  %v323 = vunpack.c.l.b16 %v75
  %v324 = vunpack.c.l.b16 %v76
  %v325 = vunpack.c.l.b16 %v77
  %v326 = vunpack.c.l.b16 %v78
  %v327 = vunpack.c.l.b16 %v79
  %v328 = vunpack.c.l.b16 %v80
  %v329 = vunpack.c.l.b16 %v81
  %v330 = vunpack.c.l.b16 %v82
  %v331 = vunpack.c.l.b16 %v83
  %v332 = vunpack.c.l.b16 %v84
  %v333 = vunpack.c.l.b16 %v85
  %v334 = vunpack.c.l.b16 %v86
  %v335 = vunpack.c.l.b16 %v87
  %v336 = vunpack.c.l.b16 %v88
  %v337 = vunpack.c.l.b16 %v89
  %v338 = vunpack.c.l.b16 %v90
  %v339 = vunpack.c.l.b16 %v91
  %v340 = vunpack.c.l.b16 %v92
  %v341 = vunpack.c.l.b16 %v93
  %v342 = vunpack.c.l.b16 %v94
  %v343 = vunpack.c.l.b16 %v95
  %v344 = vunpack.c.l.b16 %v96
  %v345 = vunpack.c.l.b16 %v97
  %v346 = vunpack.c.l.b16 %v98
  %v347 = vunpack.c.l.b16 %v99
  %v348 = vunpack.c.l.b16 %v100
  %v349 = vunpack.c.l.b16 %v101
  %v350 = vunpack.c.l.b16 %v102
  %v351 = vunpack.c.l.b16 %v103
  %v352 = vunpack.c.l.b16 %v104
  %v353 = vunpack.c.l.b16 %v105
  %v354 = vunpack.c.l.b16 %v106
  %v355 = vunpack.c.l.b16 %v107
  %v356 = vunpack.c.l.b16 %v108
  %v357 = vunpack.c.l.b16 %v109
  %v358 = vunpack.c.l.b16 %v110
  %v359 = vpack.c.b16 %v288, %v287
  %v360 = vpack.c.b16 %v290, %v289
  %v361 = vpack.c.b16 %v292, %v291
  %v362 = vpack.c.b16 %v294, %v293
  %v363 = vpack.c.b16 %v296, %v295
  %v364 = vpack.c.b16 %v298, %v297
  %v365 = vpack.c.b16 %v300, %v299
  %v366 = vpack.c.b16 %v302, %v301
  %v367 = vpack.c.b16 %v304, %v303
  %v368 = vpack.c.b16 %v306, %v305
  %v369 = vpack.c.b16 %v308, %v307
  %v370 = vpack.c.b16 %v310, %v309
  %v371 = vpack.c.b16 %v312, %v311
  %v372 = vpack.c.b16 %v314, %v313
  %v373 = vpack.c.b16 %v316, %v315
  %v374 = vpack.c.b16 %v318, %v317
  %v375 = vpack.c.b16 %v320, %v319
  %v376 = vpack.c.b16 %v322, %v321
  %v377 = vpack.c.b16 %v324, %v323
  %v378 = vpack.c.b16 %v326, %v325
  %v379 = vpack.c.b16 %v328, %v327
  %v380 = vpack.c.b16 %v330, %v329
  %v381 = vpack.c.b16 %v332, %v331
  %v382 = vpack.c.b16 %v334, %v333
  %v383 = vpack.c.b16 %v336, %v335
  %v384 = vpack.c.b16 %v338, %v337
  %v385 = vpack.c.b16 %v340, %v339
  %v386 = vpack.c.b16 %v342, %v341
  %v387 = vpack.c.b16 %v344, %v343
  %v388 = vpack.c.b16 %v346, %v345
  %v389 = vpack.c.b16 %v348, %v347
  %v390 = vpack.c.b16 %v350, %v349
  %v391 = vpack.c.b16 %v352, %v351
  %v392 = vpack.c.b16 %v354, %v353
  %v393 = vpack.c.b16 %v356, %v355
  %v394 = vpack.c.b16 %v358, %v357
  %vm431 = vcmask 523264
  %v433 = vsel %vm431, %v183, 0
  %v436 = vsel %vm431, %v188, 0
  %v439 = vsel %vm431, %v193, 0
  %v442 = vsel %vm431, %v198, 0
  %444 = vmatpush.bf16.msra.mxu0 %v366
  %445 = vmatpush.bf16.msra.mxu0 %v365
  %446 = vmatpush.bf16.msra.mxu0 %v364
  %447 = vmatpush.bf16.msra.mxu0 %v363
  %448 = vmatpush.bf16.msra.mxu0 %v362
  %449 = vmatpush.bf16.msra.mxu0 %v361
  %450 = vmatpush.bf16.msra.mxu0 %v360
  %451 = vmatpush.bf16.msra.mxu0 %v359
  %452 = vmatmul.bf16.gmra.mxu0 %v179
  %v453 = vpop.f32.mrf.mxu0
  %v454 = vadd.f32 %v113, %v453
  %v455 = vpop.f32.mrf.mxu0
  %v456 = vadd.f32 %v113, %v455
  %457 = vmatmul.bf16.gmra.mxu0 %v184
  %v458 = vpop.f32.mrf.mxu0
  %v459 = vadd.f32 %v113, %v458
  %v460 = vpop.f32.mrf.mxu0
  %v461 = vadd.f32 %v113, %v460
  %462 = vmatmul.bf16.gmra.mxu0 %v189
  %v463 = vpop.f32.mrf.mxu0
  %v464 = vadd.f32 %v113, %v463
  %v465 = vpop.f32.mrf.mxu0
  %v466 = vadd.f32 %v113, %v465
  %467 = vmatmul.bf16.gmra.mxu0 %v194
  %v468 = vpop.f32.mrf.mxu0
  %v469 = vadd.f32 %v113, %v468
  %v470 = vpop.f32.mrf.mxu0
  %v471 = vadd.f32 %v113, %v470
  %472 = vdwg.mxu0
  %473 = vmatpush.bf16.msra.mxu0 %v374
  %474 = vmatpush.bf16.msra.mxu0 %v373
  %475 = vmatpush.bf16.msra.mxu0 %v372
  %476 = vmatpush.bf16.msra.mxu0 %v371
  %477 = vmatpush.bf16.msra.mxu0 %v370
  %478 = vmatpush.bf16.msra.mxu0 %v369
  %479 = vmatpush.bf16.msra.mxu0 %v368
  %480 = vmatpush.bf16.msra.mxu0 %v367
  %481 = vmatmul.bf16.gmra.mxu0 %v180
  %v482 = vpop.f32.mrf.mxu0
  %v483 = vadd.f32 %v454, %v482
  %v484 = vpop.f32.mrf.mxu0
  %v485 = vadd.f32 %v456, %v484
  %486 = vmatmul.bf16.gmra.mxu0 %v185
  %v487 = vpop.f32.mrf.mxu0
  %v488 = vadd.f32 %v459, %v487
  %v489 = vpop.f32.mrf.mxu0
  %v490 = vadd.f32 %v461, %v489
  %491 = vmatmul.bf16.gmra.mxu0 %v190
  %v492 = vpop.f32.mrf.mxu0
  %v493 = vadd.f32 %v464, %v492
  %v494 = vpop.f32.mrf.mxu0
  %v495 = vadd.f32 %v466, %v494
  %496 = vmatmul.bf16.gmra.mxu0 %v195
  %v497 = vpop.f32.mrf.mxu0
  %v498 = vadd.f32 %v469, %v497
  %v499 = vpop.f32.mrf.mxu0
  %v500 = vadd.f32 %v471, %v499
  %501 = vdwg.mxu0
  %502 = vmatpush.bf16.msra.mxu0 %v382
  %503 = vmatpush.bf16.msra.mxu0 %v381
  %504 = vmatpush.bf16.msra.mxu0 %v380
  %505 = vmatpush.bf16.msra.mxu0 %v379
  %506 = vmatpush.bf16.msra.mxu0 %v378
  %507 = vmatpush.bf16.msra.mxu0 %v377
  %508 = vmatpush.bf16.msra.mxu0 %v376
  %509 = vmatpush.bf16.msra.mxu0 %v375
  %510 = vmatmul.bf16.gmra.mxu0 %v181
  %v511 = vpop.f32.mrf.mxu0
  %v512 = vadd.f32 %v483, %v511
  %v513 = vpop.f32.mrf.mxu0
  %v514 = vadd.f32 %v485, %v513
  %515 = vmatmul.bf16.gmra.mxu0 %v186
  %v516 = vpop.f32.mrf.mxu0
  %v517 = vadd.f32 %v488, %v516
  %v518 = vpop.f32.mrf.mxu0
  %v519 = vadd.f32 %v490, %v518
  %520 = vmatmul.bf16.gmra.mxu0 %v191
  %v521 = vpop.f32.mrf.mxu0
  %v522 = vadd.f32 %v493, %v521
  %v523 = vpop.f32.mrf.mxu0
  %v524 = vadd.f32 %v495, %v523
  %525 = vmatmul.bf16.gmra.mxu0 %v196
  %v526 = vpop.f32.mrf.mxu0
  %v527 = vadd.f32 %v498, %v526
  %v528 = vpop.f32.mrf.mxu0
  %v529 = vadd.f32 %v500, %v528
  %530 = vdwg.mxu0
  %531 = vmatpush.bf16.msra.mxu0 %v390
  %532 = vmatpush.bf16.msra.mxu0 %v389
  %533 = vmatpush.bf16.msra.mxu0 %v388
  %534 = vmatpush.bf16.msra.mxu0 %v387
  %535 = vmatpush.bf16.msra.mxu0 %v386
  %536 = vmatpush.bf16.msra.mxu0 %v385
  %537 = vmatpush.bf16.msra.mxu0 %v384
  %538 = vmatpush.bf16.msra.mxu0 %v383
  %539 = vmatmul.bf16.gmra.mxu0 %v182
  %v540 = vpop.f32.mrf.mxu0
  %v541 = vadd.f32 %v512, %v540
  %v542 = vpop.f32.mrf.mxu0
  %v543 = vadd.f32 %v514, %v542
  %544 = vmatmul.bf16.gmra.mxu0 %v187
  %v545 = vpop.f32.mrf.mxu0
  %v546 = vadd.f32 %v517, %v545
  %v547 = vpop.f32.mrf.mxu0
  %v548 = vadd.f32 %v519, %v547
  %549 = vmatmul.bf16.gmra.mxu0 %v192
  %v550 = vpop.f32.mrf.mxu0
  %v551 = vadd.f32 %v522, %v550
  %v552 = vpop.f32.mrf.mxu0
  %v553 = vadd.f32 %v524, %v552
  %554 = vmatmul.bf16.gmra.mxu0 %v197
  %v555 = vpop.f32.mrf.mxu0
  %v556 = vadd.f32 %v527, %v555
  %v557 = vpop.f32.mrf.mxu0
  %v558 = vadd.f32 %v529, %v557
  %559 = vdwg.mxu0
  %560 = vmatpush.bf16.msra.mxu0 0
  %561 = vmatpush.bf16.msra.mxu0 0
  %562 = vmatpush.bf16.msra.mxu0 0
  %563 = vmatpush.bf16.msra.mxu0 0
  %564 = vmatpush.bf16.msra.mxu0 %v394
  %565 = vmatpush.bf16.msra.mxu0 %v393
  %566 = vmatpush.bf16.msra.mxu0 %v392
  %567 = vmatpush.bf16.msra.mxu0 %v391
  %568 = vmatmul.bf16.gmra.mxu0 %v433
  %v569 = vpop.f32.mrf.mxu0
  %v570 = vadd.f32 %v541, %v569
  %v571 = vpop.f32.mrf.mxu0
  %v572 = vadd.f32 %v543, %v571
  %573 = vmatmul.bf16.gmra.mxu0 %v436
  %v574 = vpop.f32.mrf.mxu0
  %v575 = vadd.f32 %v546, %v574
  %v576 = vpop.f32.mrf.mxu0
  %v577 = vadd.f32 %v548, %v576
  %578 = vmatmul.bf16.gmra.mxu0 %v439
  %v579 = vpop.f32.mrf.mxu0
  %v580 = vadd.f32 %v551, %v579
  %v581 = vpop.f32.mrf.mxu0
  %v582 = vadd.f32 %v553, %v581
  %583 = vmatmul.bf16.gmra.mxu0 %v442
  %v584 = vpop.f32.mrf.mxu0
  %v585 = vadd.f32 %v556, %v584
  %v586 = vpop.f32.mrf.mxu0
  %v587 = vadd.f32 %v558, %v586
  %588 = vdwg.mxu0
  %589 = vst [vmem:[%s3] sm:$0xff] %v570
  %590 = vst [vmem:[%s3 + $0x8] sm:$0xff] %v572
  %591 = vst [vmem:[%s3 + $0x10] sm:$0xff] %v575
  %592 = vst [vmem:[%s3 + $0x18] sm:$0xff] %v577
  %593 = vst [vmem:[%s3 + $0x20] sm:$0xff] %v580
  %594 = vst [vmem:[%s3 + $0x28] sm:$0xff] %v582
  %595 = vst [vmem:[%s3 + $0x30] sm:$0xff] %v585
  %596 = vst [vmem:[%s3 + $0x38] sm:$0xff] %v587
  // Predicated region
  $region14: #{image_encoder_forward.7} parent=0 // pred_check
    _
  $region15: #{image_encoder_forward.7} parent=0 // pred_check_branch
    %598 = sbr.rel (0) target = $region17
  $region16: #{image_encoder_forward.7} parent=0 // pred_region
    _
  $region17: #{image_encoder_forward.7} parent=0 // pred_fallthru
    _
  // Predicated region
  $region18: #{image_encoder_forward.7} parent=0 // pred_check
    _
  $region19: #{image_encoder_forward.7} parent=0 // pred_check_branch
    %600 = sbr.rel (0) target = $region21
  $region20: #{image_encoder_forward.7} parent=0 // pred_region
    _
  $region21: #{image_encoder_forward.7} parent=0 // pred_fallthru
    _

// kernel: image_encoder_forward.8
$region0: #{image_encoder_forward.8}
  #allocation0 [shape = 'u32[]', space=smem, size = 0x4, offset = 0x4, fixed_abs, tag = 'smem constant byte address 0x4 - core index']
  #allocation1 [shape = 'u32[72,128]{1,0:T(1,128)}', space=vmem, size = 0x9000, scoped, tag = 'internal scratch']
  %s0 = inlined_call_operand.vmem [shape: bf16[64,480], index: 0, kind: input, shape index: {}]
  %s1 = inlined_call_operand.vmem [shape: bf16[480,64], index: 1, kind: input, shape index: {}]
  %s2 = inlined_call_operand.vmem [shape: f32[1,64], index: 2, kind: input, shape index: {}]
  %s3 = inlined_call_operand.vmem [shape: f32[64,64], index: 3, kind: output, shape index: {}]
  %s4 = sld [smem:[#allocation0]]
  $region22: #{image_encoder_forward.8} parent=0
    _
  %s6 = ssub.s32 1, %s4
  %s7 = scalar_select 0, %s6, %s4
  // Predicated region
  $region2: #{image_encoder_forward.8} parent=0 // pred_check
    _
  $region3: #{image_encoder_forward.8} parent=0 // pred_check_branch
    %9 = sbr.rel (0) target = $region5
  $region4: #{image_encoder_forward.8} parent=0 // pred_region
    _
  $region5: #{image_encoder_forward.8} parent=0 // pred_fallthru
    _
  // Predicated region
  $region6: #{image_encoder_forward.8} parent=0 // pred_check
    _
  $region7: #{image_encoder_forward.8} parent=0 // pred_check_branch
    %11 = sbr.rel (0) target = $region9
  $region8: #{image_encoder_forward.8} parent=0 // pred_region
    _
  $region9: #{image_encoder_forward.8} parent=0 // pred_fallthru
    _
  // Predicated region
  $region10: #{image_encoder_forward.8} parent=0 // pred_check
    _
  $region11: #{image_encoder_forward.8} parent=0 // pred_check_branch
    %13 = sbr.rel (0) target = $region13
  $region12: #{image_encoder_forward.8} parent=0 // pred_region
    _
  $region13: #{image_encoder_forward.8} parent=0 // pred_fallthru
    _
  %v15 = vld [vmem:[%s0] sm:$0xff]
  %v16 = vld [vmem:[%s0 + $0x8] sm:$0xff]
  %v17 = vld [vmem:[%s0 + $0x10] sm:$0xff]
  %v18 = vld [vmem:[%s0 + $0x18] sm:$0xff]
  %v19 = vld [vmem:[%s0 + $0x20] sm:$0xff]
  %v20 = vld [vmem:[%s0 + $0x28] sm:$0xff]
  %v21 = vld [vmem:[%s0 + $0x30] sm:$0xff]
  %v22 = vld [vmem:[%s0 + $0x38] sm:$0xff]
  %v23 = vld [vmem:[%s0 + $0x40] sm:$0xff]
  %v24 = vld [vmem:[%s0 + $0x48] sm:$0xff]
  %v25 = vld [vmem:[%s0 + $0x50] sm:$0xff]
  %v26 = vld [vmem:[%s0 + $0x58] sm:$0xff]
  %v27 = vld [vmem:[%s0 + $0x60] sm:$0xff]
  %v28 = vld [vmem:[%s0 + $0x68] sm:$0xff]
  %v29 = vld [vmem:[%s0 + $0x70] sm:$0xff]
  %v30 = vld [vmem:[%s0 + $0x78] sm:$0xff]
  %v31 = vld [vmem:[%s1] sm:$0xf]
  %v32 = vld [vmem:[%s1 + $0x4] sm:$0xf]
  %v33 = vld [vmem:[%s1 + $0x8] sm:$0xf]
  %v34 = vld [vmem:[%s1 + $0xc] sm:$0xf]
  %v35 = vld [vmem:[%s1 + $0x10] sm:$0xf]
  %v36 = vld [vmem:[%s1 + $0x14] sm:$0xf]
  %v37 = vld [vmem:[%s1 + $0x18] sm:$0xf]
  %v38 = vld [vmem:[%s1 + $0x1c] sm:$0xf]
  %v39 = vld [vmem:[%s1 + $0x20] sm:$0xf]
  %v40 = vld [vmem:[%s1 + $0x24] sm:$0xf]
  %v41 = vld [vmem:[%s1 + $0x28] sm:$0xf]
  %v42 = vld [vmem:[%s1 + $0x2c] sm:$0xf]
  %v43 = vld [vmem:[%s1 + $0x30] sm:$0xf]
  %v44 = vld [vmem:[%s1 + $0x34] sm:$0xf]
  %v45 = vld [vmem:[%s1 + $0x38] sm:$0xf]
  %v46 = vld [vmem:[%s1 + $0x3c] sm:$0xf]
  %v47 = vld [vmem:[%s1 + $0x40] sm:$0xf]
  %v48 = vld [vmem:[%s1 + $0x44] sm:$0xf]
  %v49 = vld [vmem:[%s1 + $0x48] sm:$0xf]
  %v50 = vld [vmem:[%s1 + $0x4c] sm:$0xf]
  %v51 = vld [vmem:[%s1 + $0x50] sm:$0xf]
  %v52 = vld [vmem:[%s1 + $0x54] sm:$0xf]
  %v53 = vld [vmem:[%s1 + $0x58] sm:$0xf]
  %v54 = vld [vmem:[%s1 + $0x5c] sm:$0xf]
  %v55 = vld [vmem:[%s1 + $0x60] sm:$0xf]
  %v56 = vld [vmem:[%s1 + $0x64] sm:$0xf]
  %v57 = vld [vmem:[%s1 + $0x68] sm:$0xf]
  %v58 = vld [vmem:[%s1 + $0x6c] sm:$0xf]
  %v59 = vld [vmem:[%s1 + $0x70] sm:$0xf]
  %v60 = vld [vmem:[%s1 + $0x74] sm:$0xf]
  %v61 = vld [vmem:[%s1 + $0x78] sm:$0xf]
  %v62 = vld [vmem:[%s1 + $0x7c] sm:$0xf]
  %v63 = vld [vmem:[%s1 + $0x80] sm:$0xf]
  %v64 = vld [vmem:[%s1 + $0x84] sm:$0xf]
  %v65 = vld [vmem:[%s1 + $0x88] sm:$0xf]
  %v66 = vld [vmem:[%s1 + $0x8c] sm:$0xf]
  %v67 = vld [vmem:[%s1 + $0x90] sm:$0xf]
  %v68 = vld [vmem:[%s1 + $0x94] sm:$0xf]
  %v69 = vld [vmem:[%s1 + $0x98] sm:$0xf]
  %v70 = vld [vmem:[%s1 + $0x9c] sm:$0xf]
  %v71 = vld [vmem:[%s1 + $0xa0] sm:$0xf]
  %v72 = vld [vmem:[%s1 + $0xa4] sm:$0xf]
  %v73 = vld [vmem:[%s1 + $0xa8] sm:$0xf]
  %v74 = vld [vmem:[%s1 + $0xac] sm:$0xf]
  %v75 = vld [vmem:[%s1 + $0xb0] sm:$0xf]
  %v76 = vld [vmem:[%s1 + $0xb4] sm:$0xf]
  %v77 = vld [vmem:[%s1 + $0xb8] sm:$0xf]
  %v78 = vld [vmem:[%s1 + $0xbc] sm:$0xf]
  %v79 = vld [vmem:[%s1 + $0xc0] sm:$0xf]
  %v80 = vld [vmem:[%s1 + $0xc4] sm:$0xf]
  %v81 = vld [vmem:[%s1 + $0xc8] sm:$0xf]
  %v82 = vld [vmem:[%s1 + $0xcc] sm:$0xf]
  %v83 = vld [vmem:[%s1 + $0xd0] sm:$0xf]
  %v84 = vld [vmem:[%s1 + $0xd4] sm:$0xf]
  %v85 = vld [vmem:[%s1 + $0xd8] sm:$0xf]
  %v86 = vld [vmem:[%s1 + $0xdc] sm:$0xf]
  %v87 = vld [vmem:[%s1 + $0xe0] sm:$0xf]
  %v88 = vld [vmem:[%s1 + $0xe4] sm:$0xf]
  %v89 = vld [vmem:[%s1 + $0xe8] sm:$0xf]
  %v90 = vld [vmem:[%s1 + $0xec] sm:$0xf]
  %v91 = vld [vmem:[%s2] sm:$0x1]
  %v93 = vperm.slane %v91, 0
  %v111 = vunpack.c.l.b16 %v15
  %v112 = vunpack.c.h.b16 %v15
  %v113 = vunpack.c.l.b16 %v16
  %v114 = vunpack.c.h.b16 %v16
  %v115 = vunpack.c.l.b16 %v17
  %v116 = vunpack.c.h.b16 %v17
  %v117 = vunpack.c.l.b16 %v18
  %v118 = vunpack.c.h.b16 %v18
  %v119 = vunpack.c.l.b16 %v19
  %v120 = vunpack.c.h.b16 %v19
  %v121 = vunpack.c.l.b16 %v20
  %v122 = vunpack.c.h.b16 %v20
  %v123 = vunpack.c.l.b16 %v21
  %v124 = vunpack.c.h.b16 %v21
  %v125 = vunpack.c.l.b16 %v22
  %v126 = vunpack.c.h.b16 %v22
  %v127 = vunpack.c.l.b16 %v23
  %v128 = vunpack.c.h.b16 %v23
  %v129 = vunpack.c.l.b16 %v24
  %v130 = vunpack.c.h.b16 %v24
  %v131 = vunpack.c.l.b16 %v25
  %v132 = vunpack.c.h.b16 %v25
  %v133 = vunpack.c.l.b16 %v26
  %v134 = vunpack.c.h.b16 %v26
  %v135 = vunpack.c.l.b16 %v27
  %v136 = vunpack.c.h.b16 %v27
  %v137 = vunpack.c.l.b16 %v28
  %v138 = vunpack.c.h.b16 %v28
  %v139 = vunpack.c.l.b16 %v29
  %v140 = vunpack.c.h.b16 %v29
  %v141 = vunpack.c.l.b16 %v30
  %v142 = vunpack.c.h.b16 %v30
  %v143 = vpack.c.b16 %v115, %v111
  %v144 = vpack.c.b16 %v116, %v112
  %v145 = vpack.c.b16 %v117, %v113
  %v146 = vpack.c.b16 %v118, %v114
  %v147 = vpack.c.b16 %v123, %v119
  %v148 = vpack.c.b16 %v124, %v120
  %v149 = vpack.c.b16 %v125, %v121
  %v150 = vpack.c.b16 %v126, %v122
  %v151 = vpack.c.b16 %v131, %v127
  %v152 = vpack.c.b16 %v132, %v128
  %v153 = vpack.c.b16 %v133, %v129
  %v154 = vpack.c.b16 %v134, %v130
  %v155 = vpack.c.b16 %v139, %v135
  %v156 = vpack.c.b16 %v140, %v136
  %v157 = vpack.c.b16 %v141, %v137
  %v158 = vpack.c.b16 %v142, %v138
  %v231 = vunpack.c.l.b16 %v31
  %v232 = vunpack.c.l.b16 %v32
  %v233 = vunpack.c.l.b16 %v33
  %v234 = vunpack.c.l.b16 %v34
  %v235 = vunpack.c.l.b16 %v35
  %v236 = vunpack.c.l.b16 %v36
  %v237 = vunpack.c.l.b16 %v37
  %v238 = vunpack.c.l.b16 %v38
  %v239 = vunpack.c.l.b16 %v39
  %v240 = vunpack.c.l.b16 %v40
  %v241 = vunpack.c.l.b16 %v41
  %v242 = vunpack.c.l.b16 %v42
  %v243 = vunpack.c.l.b16 %v43
  %v244 = vunpack.c.l.b16 %v44
  %v245 = vunpack.c.l.b16 %v45
  %v246 = vunpack.c.l.b16 %v46
  %v247 = vunpack.c.l.b16 %v47
  %v248 = vunpack.c.l.b16 %v48
  %v249 = vunpack.c.l.b16 %v49
  %v250 = vunpack.c.l.b16 %v50
  %v251 = vunpack.c.l.b16 %v51
  %v252 = vunpack.c.l.b16 %v52
  %v253 = vunpack.c.l.b16 %v53
  %v254 = vunpack.c.l.b16 %v54
  %v255 = vunpack.c.l.b16 %v55
  %v256 = vunpack.c.l.b16 %v56
  %v257 = vunpack.c.l.b16 %v57
  %v258 = vunpack.c.l.b16 %v58
  %v259 = vunpack.c.l.b16 %v59
  %v260 = vunpack.c.l.b16 %v60
  %v261 = vunpack.c.l.b16 %v61
  %v262 = vunpack.c.l.b16 %v62
  %v263 = vunpack.c.l.b16 %v63
  %v264 = vunpack.c.l.b16 %v64
  %v265 = vunpack.c.l.b16 %v65
  %v266 = vunpack.c.l.b16 %v66
  %v267 = vunpack.c.l.b16 %v67
  %v268 = vunpack.c.l.b16 %v68
  %v269 = vunpack.c.l.b16 %v69
  %v270 = vunpack.c.l.b16 %v70
  %v271 = vunpack.c.l.b16 %v71
  %v272 = vunpack.c.l.b16 %v72
  %v273 = vunpack.c.l.b16 %v73
  %v274 = vunpack.c.l.b16 %v74
  %v275 = vunpack.c.l.b16 %v75
  %v276 = vunpack.c.l.b16 %v76
  %v277 = vunpack.c.l.b16 %v77
  %v278 = vunpack.c.l.b16 %v78
  %v279 = vunpack.c.l.b16 %v79
  %v280 = vunpack.c.l.b16 %v80
  %v281 = vunpack.c.l.b16 %v81
  %v282 = vunpack.c.l.b16 %v82
  %v283 = vunpack.c.l.b16 %v83
  %v284 = vunpack.c.l.b16 %v84
  %v285 = vunpack.c.l.b16 %v85
  %v286 = vunpack.c.l.b16 %v86
  %v287 = vunpack.c.l.b16 %v87
  %v288 = vunpack.c.l.b16 %v88
  %v289 = vunpack.c.l.b16 %v89
  %v290 = vunpack.c.l.b16 %v90
  %v291 = vpack.c.b16 %v232, %v231
  %v292 = vpack.c.b16 %v234, %v233
  %v293 = vpack.c.b16 %v236, %v235
  %v294 = vpack.c.b16 %v238, %v237
  %v295 = vpack.c.b16 %v240, %v239
  %v296 = vpack.c.b16 %v242, %v241
  %v297 = vpack.c.b16 %v244, %v243
  %v298 = vpack.c.b16 %v246, %v245
  %v299 = vpack.c.b16 %v248, %v247
  %v300 = vpack.c.b16 %v250, %v249
  %v301 = vpack.c.b16 %v252, %v251
  %v302 = vpack.c.b16 %v254, %v253
  %v303 = vpack.c.b16 %v256, %v255
  %v304 = vpack.c.b16 %v258, %v257
  %v305 = vpack.c.b16 %v260, %v259
  %v306 = vpack.c.b16 %v262, %v261
  %v307 = vpack.c.b16 %v264, %v263
  %v308 = vpack.c.b16 %v266, %v265
  %v309 = vpack.c.b16 %v268, %v267
  %v310 = vpack.c.b16 %v270, %v269
  %v311 = vpack.c.b16 %v272, %v271
  %v312 = vpack.c.b16 %v274, %v273
  %v313 = vpack.c.b16 %v276, %v275
  %v314 = vpack.c.b16 %v278, %v277
  %v315 = vpack.c.b16 %v280, %v279
  %v316 = vpack.c.b16 %v282, %v281
  %v317 = vpack.c.b16 %v284, %v283
  %v318 = vpack.c.b16 %v286, %v285
  %v319 = vpack.c.b16 %v288, %v287
  %v320 = vpack.c.b16 %v290, %v289
  %vm351 = vcmask 785408
  %v353 = vsel %vm351, %v146, 0
  %v356 = vsel %vm351, %v150, 0
  %v359 = vsel %vm351, %v154, 0
  %v362 = vsel %vm351, %v158, 0
  %364 = vmatpush.bf16.msra.mxu0 %v298
  %365 = vmatpush.bf16.msra.mxu0 %v297
  %366 = vmatpush.bf16.msra.mxu0 %v296
  %367 = vmatpush.bf16.msra.mxu0 %v295
  %368 = vmatpush.bf16.msra.mxu0 %v294
  %369 = vmatpush.bf16.msra.mxu0 %v293
  %370 = vmatpush.bf16.msra.mxu0 %v292
  %371 = vmatpush.bf16.msra.mxu0 %v291
  %372 = vmatmul.bf16.gmra.mxu0 %v143
  %v373 = vpop.f32.mrf.mxu0
  %v374 = vadd.f32 %v93, %v373
  %v375 = vpop.f32.mrf.mxu0
  %v376 = vadd.f32 %v93, %v375
  %377 = vmatmul.bf16.gmra.mxu0 %v147
  %v378 = vpop.f32.mrf.mxu0
  %v379 = vadd.f32 %v93, %v378
  %v380 = vpop.f32.mrf.mxu0
  %v381 = vadd.f32 %v93, %v380
  %382 = vmatmul.bf16.gmra.mxu0 %v151
  %v383 = vpop.f32.mrf.mxu0
  %v384 = vadd.f32 %v93, %v383
  %v385 = vpop.f32.mrf.mxu0
  %v386 = vadd.f32 %v93, %v385
  %387 = vmatmul.bf16.gmra.mxu0 %v155
  %v388 = vpop.f32.mrf.mxu0
  %v389 = vadd.f32 %v93, %v388
  %v390 = vpop.f32.mrf.mxu0
  %v391 = vadd.f32 %v93, %v390
  %392 = vdwg.mxu0
  %393 = vmatpush.bf16.msra.mxu0 %v306
  %394 = vmatpush.bf16.msra.mxu0 %v305
  %395 = vmatpush.bf16.msra.mxu0 %v304
  %396 = vmatpush.bf16.msra.mxu0 %v303
  %397 = vmatpush.bf16.msra.mxu0 %v302
  %398 = vmatpush.bf16.msra.mxu0 %v301
  %399 = vmatpush.bf16.msra.mxu0 %v300
  %400 = vmatpush.bf16.msra.mxu0 %v299
  %401 = vmatmul.bf16.gmra.mxu0 %v144
  %v402 = vpop.f32.mrf.mxu0
  %v403 = vadd.f32 %v374, %v402
  %v404 = vpop.f32.mrf.mxu0
  %v405 = vadd.f32 %v376, %v404
  %406 = vmatmul.bf16.gmra.mxu0 %v148
  %v407 = vpop.f32.mrf.mxu0
  %v408 = vadd.f32 %v379, %v407
  %v409 = vpop.f32.mrf.mxu0
  %v410 = vadd.f32 %v381, %v409
  %411 = vmatmul.bf16.gmra.mxu0 %v152
  %v412 = vpop.f32.mrf.mxu0
  %v413 = vadd.f32 %v384, %v412
  %v414 = vpop.f32.mrf.mxu0
  %v415 = vadd.f32 %v386, %v414
  %416 = vmatmul.bf16.gmra.mxu0 %v156
  %v417 = vpop.f32.mrf.mxu0
  %v418 = vadd.f32 %v389, %v417
  %v419 = vpop.f32.mrf.mxu0
  %v420 = vadd.f32 %v391, %v419
  %421 = vdwg.mxu0
  %422 = vmatpush.bf16.msra.mxu0 %v314
  %423 = vmatpush.bf16.msra.mxu0 %v313
  %424 = vmatpush.bf16.msra.mxu0 %v312
  %425 = vmatpush.bf16.msra.mxu0 %v311
  %426 = vmatpush.bf16.msra.mxu0 %v310
  %427 = vmatpush.bf16.msra.mxu0 %v309
  %428 = vmatpush.bf16.msra.mxu0 %v308
  %429 = vmatpush.bf16.msra.mxu0 %v307
  %430 = vmatmul.bf16.gmra.mxu0 %v145
  %v431 = vpop.f32.mrf.mxu0
  %v432 = vadd.f32 %v403, %v431
  %v433 = vpop.f32.mrf.mxu0
  %v434 = vadd.f32 %v405, %v433
  %435 = vmatmul.bf16.gmra.mxu0 %v149
  %v436 = vpop.f32.mrf.mxu0
  %v437 = vadd.f32 %v408, %v436
  %v438 = vpop.f32.mrf.mxu0
  %v439 = vadd.f32 %v410, %v438
  %440 = vmatmul.bf16.gmra.mxu0 %v153
  %v441 = vpop.f32.mrf.mxu0
  %v442 = vadd.f32 %v413, %v441
  %v443 = vpop.f32.mrf.mxu0
  %v444 = vadd.f32 %v415, %v443
  %445 = vmatmul.bf16.gmra.mxu0 %v157
  %v446 = vpop.f32.mrf.mxu0
  %v447 = vadd.f32 %v418, %v446
  %v448 = vpop.f32.mrf.mxu0
  %v449 = vadd.f32 %v420, %v448
  %450 = vdwg.mxu0
  %451 = vmatpush.bf16.msra.mxu0 0
  %452 = vmatpush.bf16.msra.mxu0 0
  %453 = vmatpush.bf16.msra.mxu0 %v320
  %454 = vmatpush.bf16.msra.mxu0 %v319
  %455 = vmatpush.bf16.msra.mxu0 %v318
  %456 = vmatpush.bf16.msra.mxu0 %v317
  %457 = vmatpush.bf16.msra.mxu0 %v316
  %458 = vmatpush.bf16.msra.mxu0 %v315
  %459 = vmatmul.bf16.gmra.mxu0 %v353
  %v460 = vpop.f32.mrf.mxu0
  %v461 = vadd.f32 %v432, %v460
  %v462 = vpop.f32.mrf.mxu0
  %v463 = vadd.f32 %v434, %v462
  %464 = vmatmul.bf16.gmra.mxu0 %v356
  %v465 = vpop.f32.mrf.mxu0
  %v466 = vadd.f32 %v437, %v465
  %v467 = vpop.f32.mrf.mxu0
  %v468 = vadd.f32 %v439, %v467
  %469 = vmatmul.bf16.gmra.mxu0 %v359
  %v470 = vpop.f32.mrf.mxu0
  %v471 = vadd.f32 %v442, %v470
  %v472 = vpop.f32.mrf.mxu0
  %v473 = vadd.f32 %v444, %v472
  %474 = vmatmul.bf16.gmra.mxu0 %v362
  %v475 = vpop.f32.mrf.mxu0
  %v476 = vadd.f32 %v447, %v475
  %v477 = vpop.f32.mrf.mxu0
  %v478 = vadd.f32 %v449, %v477
  %479 = vdwg.mxu0
  %vm480 = vcmask 523264
  %481 = vst.msk [vmem:[%s3] sm:$0xff] %vm480, %v461
  %482 = vst.msk [vmem:[%s3 + $0x8] sm:$0xff] %vm480, %v463
  %483 = vst.msk [vmem:[%s3 + $0x10] sm:$0xff] %vm480, %v466
  %484 = vst.msk [vmem:[%s3 + $0x18] sm:$0xff] %vm480, %v468
  %485 = vst.msk [vmem:[%s3 + $0x20] sm:$0xff] %vm480, %v471
  %486 = vst.msk [vmem:[%s3 + $0x28] sm:$0xff] %vm480, %v473
  %487 = vst.msk [vmem:[%s3 + $0x30] sm:$0xff] %vm480, %v476
  %488 = vst.msk [vmem:[%s3 + $0x38] sm:$0xff] %vm480, %v478
  // Predicated region
  $region14: #{image_encoder_forward.8} parent=0 // pred_check
    _
  $region15: #{image_encoder_forward.8} parent=0 // pred_check_branch
    %490 = sbr.rel (0) target = $region17
  $region16: #{image_encoder_forward.8} parent=0 // pred_region
    _
  $region17: #{image_encoder_forward.8} parent=0 // pred_fallthru
    _
  // Predicated region
  $region18: #{image_encoder_forward.8} parent=0 // pred_check
    _
  $region19: #{image_encoder_forward.8} parent=0 // pred_check_branch
    %492 = sbr.rel (0) target = $region21
  $region20: #{image_encoder_forward.8} parent=0 // pred_region
    _
  $region21: #{image_encoder_forward.8} parent=0 // pred_fallthru
    _

// kernel: image_encoder_forward.9
$region0: #{image_encoder_forward.9}
  #allocation0 [shape = 'u32[]', space=smem, size = 0x4, offset = 0x4, fixed_abs, tag = 'smem constant byte address 0x4 - core index']
  #allocation1 [shape = 'u32[72,128]{1,0:T(1,128)}', space=vmem, size = 0x9000, scoped, tag = 'internal scratch']
  %s0 = inlined_call_operand.vmem [shape: f32[2,4,64,8], index: 0, kind: input, shape index: {}, may-alias: {0,1}]
  %s1 = inlined_call_operand.vmem [shape: f32[2,4,64,8], index: 1, kind: input, shape index: {}, may-alias: {0,1}]
  %s2 = inlined_call_operand.vmem [shape: f32[2,4,1,8], index: 2, kind: input, shape index: {}]
  %s3 = inlined_call_operand.vmem [shape: f32[2,4,1,8], index: 3, kind: input, shape index: {}]
  %s4 = inlined_call_operand.vmem [shape: f32[16,8], index: 4, kind: input, shape index: {}]
  %s5 = inlined_call_operand.vmem [shape: f32[1,16], index: 5, kind: input, shape index: {}]
  %s6 = inlined_call_operand.vmem [shape: f32[2,64,8], index: 6, kind: output, shape index: {0}]
  %s7 = inlined_call_operand.vmem [shape: f32[2,64,8], index: 7, kind: output, shape index: {1}]
  %s8 = inlined_call_operand.vmem [shape: f32[2,1,128], index: 8, kind: output, shape index: {2}]
  %9 = xla_tuple %s6, %s7, %s8
  %s10 = sld [smem:[#allocation0]]
  $region73: #{image_encoder_forward.9} parent=0
    _
  %s12 = ssub.s32 1, %s10
  %s13 = scalar_select 0, %s12, %s10
  loop: start=0, step=1, limit=4
  $region2: #{image_encoder_forward.9} parent=0 // loop_pre_header
    _
  $region3: #{image_encoder_forward.9} parent=0 // loop_header
    %s15 = sphi 0, %s19
    %p16 = scmp.ge.s32.totalorder %s15, 4
    %s25 = sphi 0, %s27
    %s28 = sphi 0, %s25
    %s29 = sphi 0, %s28
    %s45 = sphi 0, %s29
    %s51 = sphi 0, %s53
    %s54 = sphi 0, %s51
    %s55 = sphi 0, %s54
    %s71 = sphi 0, %s55
    %s77 = sphi 0, %s79
    %s80 = sphi 0, %s77
    %s81 = sphi 0, %s80
    %s97 = sphi 0, %s81
    %s103 = sphi 0, %s105
    %s106 = sphi 0, %s103
    %s107 = sphi 0, %s106
    %s123 = sphi 0, %s107
    %s127 = sphi 0, %s127
    %s129 = sphi 0, %s127
    %s130 = sphi 0, %s129
    %s144 = sphi 0, %s130
    %s148 = sphi 0, %s148
    %s150 = sphi 0, %s148
    %s151 = sphi 0, %s150
    %s165 = sphi 0, %s151
    %s171 = sphi 0, %s173
    %s174 = sphi 0, %s171
    %s175 = sphi 0, %s174
    %s191 = sphi 0, %s175
    %s197 = sphi 0, %s199
    %s200 = sphi 0, %s197
    %s201 = sphi 0, %s200
    %s217 = sphi 0, %s201
    %s223 = sphi 0, %s225
    %s226 = sphi 0, %s223
    %s227 = sphi 0, %s226
    %s243 = sphi 0, %s227
  $region4: #{image_encoder_forward.9} parent=0 // loop_header_branch
    %18 = sbr.rel (%p16) target = $region8
  $region5: #{image_encoder_forward.9} parent=0 // loop_body
    %s20 = ssub.s32 %s15, 1
    %s21 = ssub.s32 %s15, 2
    %s22 = sadd.s32 %s15, 1
    %s23 = ssub.s32 %s15, %s22
    %p24 = scmp.eq.s32.totalorder %s23, 0
    %s26 = sadd.s32 %s25, 1
    %s27 = scalar_select %p24, %s25, %s26
    %p30 = pneg %p24
    %p31 = scmp.eq.s32.totalorder %s15, 1
    %p32 = por %p30, %p31
    %p33 = scmp.ne.s32.totalorder %s25, %s28
    %p34 = scmp.eq.s32.totalorder %s15, 0
    %p35 = por %p33, %p34
    %p36 = scmp.ne.s32.totalorder %s25, %s28
    %p37 = scmp.eq.s32.totalorder %s20, 1
    %p38 = por %p36, %p37
    %p39 = scmp.ne.s32.totalorder %s28, %s29
    %p40 = scmp.eq.s32.totalorder %s20, 0
    %p41 = por %p39, %p40
    %p42 = scmp.ne.s32.totalorder %s28, %s29
    %p43 = scmp.eq.s32.totalorder %s21, 1
    %p44 = por %p42, %p43
    %p46 = scmp.ne.s32.totalorder %s29, %s45
    %p47 = scmp.eq.s32.totalorder %s21, 0
    %p48 = por %p46, %p47
    %s49 = ssub.s32 %s15, %s22
    %p50 = scmp.eq.s32.totalorder %s49, 0
    %s52 = sadd.s32 %s51, 1
    %s53 = scalar_select %p50, %s51, %s52
    %p56 = pneg %p50
    %p57 = scmp.eq.s32.totalorder %s15, 1
    %p58 = por %p56, %p57
    %p59 = scmp.ne.s32.totalorder %s51, %s54
    %p60 = scmp.eq.s32.totalorder %s15, 0
    %p61 = por %p59, %p60
    %p62 = scmp.ne.s32.totalorder %s51, %s54
    %p63 = scmp.eq.s32.totalorder %s20, 1
    %p64 = por %p62, %p63
    %p65 = scmp.ne.s32.totalorder %s54, %s55
    %p66 = scmp.eq.s32.totalorder %s20, 0
    %p67 = por %p65, %p66
    %p68 = scmp.ne.s32.totalorder %s54, %s55
    %p69 = scmp.eq.s32.totalorder %s21, 1
    %p70 = por %p68, %p69
    %p72 = scmp.ne.s32.totalorder %s55, %s71
    %p73 = scmp.eq.s32.totalorder %s21, 0
    %p74 = por %p72, %p73
    %s75 = ssub.s32 %s15, %s22
    %p76 = scmp.eq.s32.totalorder %s75, 0
    %s78 = sadd.s32 %s77, 1
    %s79 = scalar_select %p76, %s77, %s78
    %p82 = pneg %p76
    %p83 = scmp.eq.s32.totalorder %s15, 1
    %p84 = por %p82, %p83
    %p85 = scmp.ne.s32.totalorder %s77, %s80
    %p86 = scmp.eq.s32.totalorder %s15, 0
    %p87 = por %p85, %p86
    %p88 = scmp.ne.s32.totalorder %s77, %s80
    %p89 = scmp.eq.s32.totalorder %s20, 1
    %p90 = por %p88, %p89
    %p91 = scmp.ne.s32.totalorder %s80, %s81
    %p92 = scmp.eq.s32.totalorder %s20, 0
    %p93 = por %p91, %p92
    %p94 = scmp.ne.s32.totalorder %s80, %s81
    %p95 = scmp.eq.s32.totalorder %s21, 1
    %p96 = por %p94, %p95
    %p98 = scmp.ne.s32.totalorder %s81, %s97
    %p99 = scmp.eq.s32.totalorder %s21, 0
    %p100 = por %p98, %p99
    %s101 = ssub.s32 %s15, %s22
    %p102 = scmp.eq.s32.totalorder %s101, 0
    %s104 = sadd.s32 %s103, 1
    %s105 = scalar_select %p102, %s103, %s104
    %p108 = pneg %p102
    %p109 = scmp.eq.s32.totalorder %s15, 1
    %p110 = por %p108, %p109
    %p111 = scmp.ne.s32.totalorder %s103, %s106
    %p112 = scmp.eq.s32.totalorder %s15, 0
    %p113 = por %p111, %p112
    %p114 = scmp.ne.s32.totalorder %s103, %s106
    %p115 = scmp.eq.s32.totalorder %s20, 1
    %p116 = por %p114, %p115
    %p117 = scmp.ne.s32.totalorder %s106, %s107
    %p118 = scmp.eq.s32.totalorder %s20, 0
    %p119 = por %p117, %p118
    %p120 = scmp.ne.s32.totalorder %s106, %s107
    %p121 = scmp.eq.s32.totalorder %s21, 1
    %p122 = por %p120, %p121
    %p124 = scmp.ne.s32.totalorder %s107, %s123
    %p125 = scmp.eq.s32.totalorder %s21, 0
    %p126 = por %p124, %p125
    %s128 = sadd.s32 %s127, 1
    %p131 = scmp.eq.s32.totalorder %s15, 1
    %p132 = scmp.ne.s32.totalorder %s127, %s129
    %p133 = scmp.eq.s32.totalorder %s15, 0
    %p134 = por %p132, %p133
    %p135 = scmp.ne.s32.totalorder %s127, %s129
    %p136 = scmp.eq.s32.totalorder %s20, 1
    %p137 = por %p135, %p136
    %p138 = scmp.ne.s32.totalorder %s129, %s130
    %p139 = scmp.eq.s32.totalorder %s20, 0
    %p140 = por %p138, %p139
    %p141 = scmp.ne.s32.totalorder %s129, %s130
    %p142 = scmp.eq.s32.totalorder %s21, 1
    %p143 = por %p141, %p142
    %p145 = scmp.ne.s32.totalorder %s130, %s144
    %p146 = scmp.eq.s32.totalorder %s21, 0
    %p147 = por %p145, %p146
    %s149 = sadd.s32 %s148, 1
    %p152 = scmp.eq.s32.totalorder %s15, 1
    %p153 = scmp.ne.s32.totalorder %s148, %s150
    %p154 = scmp.eq.s32.totalorder %s15, 0
    %p155 = por %p153, %p154
    %p156 = scmp.ne.s32.totalorder %s148, %s150
    %p157 = scmp.eq.s32.totalorder %s20, 1
    %p158 = por %p156, %p157
    %p159 = scmp.ne.s32.totalorder %s150, %s151
    %p160 = scmp.eq.s32.totalorder %s20, 0
    %p161 = por %p159, %p160
    %p162 = scmp.ne.s32.totalorder %s150, %s151
    %p163 = scmp.eq.s32.totalorder %s21, 1
    %p164 = por %p162, %p163
    %p166 = scmp.ne.s32.totalorder %s151, %s165
    %p167 = scmp.eq.s32.totalorder %s21, 0
    %p168 = por %p166, %p167
    %s169 = ssub.s32 %s15, %s22
    %p170 = scmp.eq.s32.totalorder %s169, 0
    %s172 = sadd.s32 %s171, 1
    %s173 = scalar_select %p170, %s171, %s172
    %p176 = pneg %p170
    %p177 = scmp.eq.s32.totalorder %s15, 1
    %p178 = por %p176, %p177
    %p179 = scmp.ne.s32.totalorder %s171, %s174
    %p180 = scmp.eq.s32.totalorder %s15, 0
    %p181 = por %p179, %p180
    %p182 = scmp.ne.s32.totalorder %s171, %s174
    %p183 = scmp.eq.s32.totalorder %s20, 1
    %p184 = por %p182, %p183
    %p185 = scmp.ne.s32.totalorder %s174, %s175
    %p186 = scmp.eq.s32.totalorder %s20, 0
    %p187 = por %p185, %p186
    %p188 = scmp.ne.s32.totalorder %s174, %s175
    %p189 = scmp.eq.s32.totalorder %s21, 1
    %p190 = por %p188, %p189
    %p192 = scmp.ne.s32.totalorder %s175, %s191
    %p193 = scmp.eq.s32.totalorder %s21, 0
    %p194 = por %p192, %p193
    %s195 = ssub.s32 %s15, %s22
    %p196 = scmp.eq.s32.totalorder %s195, 0
    %s198 = sadd.s32 %s197, 1
    %s199 = scalar_select %p196, %s197, %s198
    %p202 = pneg %p196
    %p203 = scmp.eq.s32.totalorder %s15, 1
    %p204 = por %p202, %p203
    %p205 = scmp.ne.s32.totalorder %s197, %s200
    %p206 = scmp.eq.s32.totalorder %s15, 0
    %p207 = por %p205, %p206
    %p208 = scmp.ne.s32.totalorder %s197, %s200
    %p209 = scmp.eq.s32.totalorder %s20, 1
    %p210 = por %p208, %p209
    %p211 = scmp.ne.s32.totalorder %s200, %s201
    %p212 = scmp.eq.s32.totalorder %s20, 0
    %p213 = por %p211, %p212
    %p214 = scmp.ne.s32.totalorder %s200, %s201
    %p215 = scmp.eq.s32.totalorder %s21, 1
    %p216 = por %p214, %p215
    %p218 = scmp.ne.s32.totalorder %s201, %s217
    %p219 = scmp.eq.s32.totalorder %s21, 0
    %p220 = por %p218, %p219
    %s221 = ssub.s32 %s15, %s22
    %p222 = scmp.eq.s32.totalorder %s221, 0
    %s224 = sadd.s32 %s223, 1
    %s225 = scalar_select %p222, %s223, %s224
    %p228 = pneg %p222
    %p229 = scmp.eq.s32.totalorder %s15, 1
    %p230 = por %p228, %p229
    %p231 = scmp.ne.s32.totalorder %s223, %s226
    %p232 = scmp.eq.s32.totalorder %s15, 0
    %p233 = por %p231, %p232
    %p234 = scmp.ne.s32.totalorder %s223, %s226
    %p235 = scmp.eq.s32.totalorder %s20, 1
    %p236 = por %p234, %p235
    %p237 = scmp.ne.s32.totalorder %s226, %s227
    %p238 = scmp.eq.s32.totalorder %s20, 0
    %p239 = por %p237, %p238
    %p240 = scmp.ne.s32.totalorder %s226, %s227
    %p241 = scmp.eq.s32.totalorder %s21, 1
    %p242 = por %p240, %p241
    %p244 = scmp.ne.s32.totalorder %s227, %s243
    %p245 = scmp.eq.s32.totalorder %s21, 0
    %p246 = por %p244, %p245
    %p247 = scmp.le.s32.totalorder 1, %s15
    %p248 = scmp.lt.s32.totalorder %s15, 3
    %p249 = pnand %p247, %p248
    %p250 = pneg %p249
    // Predicated region
    $region9: #{image_encoder_forward.9} parent=5 // pred_check
      _
    $region10: #{image_encoder_forward.9} parent=5 // pred_check_branch
      %252 = sbr.rel (%p249) target = $region12
    $region11: #{image_encoder_forward.9} parent=5 // pred_region
      %s253 = ssub.s32 %s15, 1
      // Predicated region
      $region13: #{image_encoder_forward.9} parent=11 // pred_check
        %p254 = pneg %p140
      $region14: #{image_encoder_forward.9} parent=11 // pred_check_branch
        %256 = sbr.rel (%p254) target = $region16
      $region15: #{image_encoder_forward.9} parent=11 // pred_region
        _
      $region16: #{image_encoder_forward.9} parent=11 // pred_fallthru
        _
      // Predicated region
      $region17: #{image_encoder_forward.9} parent=11 // pred_check
        %p257 = pneg %p161
      $region18: #{image_encoder_forward.9} parent=11 // pred_check_branch
        %259 = sbr.rel (%p257) target = $region20
      $region19: #{image_encoder_forward.9} parent=11 // pred_region
        _
      $region20: #{image_encoder_forward.9} parent=11 // pred_fallthru
        _
    $region12: #{image_encoder_forward.9} parent=5 // pred_fallthru
      _
    %p260 = scmp.lt.s32.totalorder %s15, 2
    // Predicated region
    $region21: #{image_encoder_forward.9} parent=5 // pred_check
      %p261 = pneg %p260
    $region22: #{image_encoder_forward.9} parent=5 // pred_check_branch
      %263 = sbr.rel (%p261) target = $region24
    $region23: #{image_encoder_forward.9} parent=5 // pred_region
      // Predicated region
      $region25: #{image_encoder_forward.9} parent=23 // pred_check
        %p264 = pneg %p35
      $region26: #{image_encoder_forward.9} parent=23 // pred_check_branch
        %266 = sbr.rel (%p264) target = $region28
      $region27: #{image_encoder_forward.9} parent=23 // pred_region
        %p267 = scmp.lt.s32.totalorder %s15, 1
        %s268 = scalar_select %p267, %s15, 1
        %s269 = smul.addr %s268, 32
        %s270 = smul.addr %s269, 8
        %s271 = scalar_lea.vmem %s0, %s270
      $region28: #{image_encoder_forward.9} parent=23 // pred_fallthru
        _
      // Predicated region
      $region29: #{image_encoder_forward.9} parent=23 // pred_check
        %p272 = pneg %p61
      $region30: #{image_encoder_forward.9} parent=23 // pred_check_branch
        %274 = sbr.rel (%p272) target = $region32
      $region31: #{image_encoder_forward.9} parent=23 // pred_region
        %p275 = scmp.lt.s32.totalorder %s15, 1
        %s276 = scalar_select %p275, %s15, 1
        %s277 = smul.addr %s276, 32
        %s278 = smul.addr %s277, 8
        %s279 = scalar_lea.vmem %s1, %s278
      $region32: #{image_encoder_forward.9} parent=23 // pred_fallthru
        _
      // Predicated region
      $region33: #{image_encoder_forward.9} parent=23 // pred_check
        %p280 = pneg %p87
      $region34: #{image_encoder_forward.9} parent=23 // pred_check_branch
        %282 = sbr.rel (%p280) target = $region36
      $region35: #{image_encoder_forward.9} parent=23 // pred_region
        %p283 = scmp.lt.s32.totalorder %s15, 1
        %s284 = scalar_select %p283, %s15, 1
        %s285 = smul.addr %s284, 4
        %s286 = scalar_lea.vmem %s2, %s285
      $region36: #{image_encoder_forward.9} parent=23 // pred_fallthru
        _
      // Predicated region
      $region37: #{image_encoder_forward.9} parent=23 // pred_check
        %p287 = pneg %p113
      $region38: #{image_encoder_forward.9} parent=23 // pred_check_branch
        %289 = sbr.rel (%p287) target = $region40
      $region39: #{image_encoder_forward.9} parent=23 // pred_region
        %p290 = scmp.lt.s32.totalorder %s15, 1
        %s291 = scalar_select %p290, %s15, 1
        %s292 = smul.addr %s291, 4
        %s293 = scalar_lea.vmem %s3, %s292
      $region40: #{image_encoder_forward.9} parent=23 // pred_fallthru
        _
    $region24: #{image_encoder_forward.9} parent=5 // pred_fallthru
      _
    %p294 = scmp.le.s32.totalorder 1, %s15
    %p295 = scmp.lt.s32.totalorder %s15, 3
    %p296 = pnand %p294, %p295
    %p297 = pneg %p296
    // Predicated region
    $region41: #{image_encoder_forward.9} parent=5 // pred_check
      _
    $region42: #{image_encoder_forward.9} parent=5 // pred_check_branch
      %299 = sbr.rel (%p296) target = $region44
    $region43: #{image_encoder_forward.9} parent=5 // pred_region
      %s300 = ssub.s32 %s15, 1
      %p301 = scmp.lt.s32.totalorder %s20, 1
      %s302 = scalar_select %p301, %s20, 1
      %s303 = smul.addr %s302, 32
      %s304 = smul.addr %s303, 8
      %s305 = scalar_lea.vmem %s0, %s304
      %p306 = pneg %p41
      %p307 = pneg %p38
      %p308 = scmp.lt.s32.totalorder %s20, 1
      %s309 = scalar_select %p308, %s20, 1
      %s310 = smul.addr %s309, 32
      %s311 = smul.addr %s310, 8
      %s312 = scalar_lea.vmem %s1, %s311
      %p313 = pneg %p67
      %p314 = pneg %p64
      %p315 = scmp.lt.s32.totalorder %s20, 1
      %s316 = scalar_select %p315, %s20, 1
      %s317 = smul.addr %s316, 4
      %s318 = scalar_lea.vmem %s2, %s317
      %p319 = pneg %p93
      %p320 = pneg %p90
      %p321 = scmp.lt.s32.totalorder %s20, 1
      %s322 = scalar_select %p321, %s20, 1
      %s323 = smul.addr %s322, 4
      %s324 = scalar_lea.vmem %s3, %s323
      %p325 = pneg %p119
      %p326 = pneg %p116
      %p327 = pneg %p140
      %p328 = pneg %p137
      %p329 = pneg %p161
      %p330 = pneg %p158
      %p331 = pneg %p187
      %p332 = pneg %p184
      %p333 = scmp.lt.s32.totalorder %s20, 1
      %s334 = scalar_select %p333, %s20, 1
      %s335 = smul.addr %s334, 8
      %s336 = smul.addr %s335, 8
      %s337 = scalar_lea.vmem %s6, %s336
      %p338 = pneg %p213
      %p339 = pneg %p210
      %p340 = scmp.lt.s32.totalorder %s20, 1
      %s341 = scalar_select %p340, %s20, 1
      %s342 = smul.addr %s341, 8
      %s343 = smul.addr %s342, 8
      %s344 = scalar_lea.vmem %s7, %s343
      %p345 = pneg %p239
      %p346 = pneg %p236
      %p347 = scmp.lt.s32.totalorder %s20, 1
      %s348 = scalar_select %p347, %s20, 1
      %s349 = scalar_lea.vmem %s8, %s348
      %p350 = scmp.lt.s32.totalorder %s20, 1
      %s351 = scalar_select %p350, %s20, 1
      %s352 = smul.addr %s351, 32
      %s353 = smul.addr %s352, 8
      %s354 = scalar_lea.vmem %s0, %s353
      %p355 = scmp.lt.s32.totalorder %s20, 1
      %s356 = scalar_select %p355, %s20, 1
      %s357 = smul.addr %s356, 32
      %s358 = smul.addr %s357, 8
      %s359 = scalar_lea.vmem %s1, %s358
      %p360 = scmp.lt.s32.totalorder %s20, 1
      %s361 = scalar_select %p360, %s20, 1
      %s362 = smul.addr %s361, 4
      %s363 = scalar_lea.vmem %s2, %s362
      %p364 = scmp.lt.s32.totalorder %s20, 1
      %s365 = scalar_select %p364, %s20, 1
      %s366 = smul.addr %s365, 4
      %s367 = scalar_lea.vmem %s3, %s366
      %p368 = scmp.lt.s32.totalorder %s20, 1
      %s369 = scalar_select %p368, %s20, 1
      %s370 = smul.addr %s369, 8
      %s371 = smul.addr %s370, 8
      %s372 = scalar_lea.vmem %s6, %s371
      %p373 = scmp.lt.s32.totalorder %s20, 1
      %s374 = scalar_select %p373, %s20, 1
      %s375 = smul.addr %s374, 8
      %s376 = smul.addr %s375, 8
      %s377 = scalar_lea.vmem %s7, %s376
      %p378 = scmp.lt.s32.totalorder %s20, 1
      %s379 = scalar_select %p378, %s20, 1
      %s380 = scalar_lea.vmem %s8, %s379
      %v381 = vld [vmem:[%s363] sm:$0x1]
      %v382 = vld [vmem:[%s363 + $0x1] sm:$0x1]
      %v383 = vld [vmem:[%s363 + $0x2] sm:$0x1]
      %v384 = vld [vmem:[%s363 + $0x3] sm:$0x1]
      %v385 = vld [vmem:[%s367] sm:$0x1]
      %v386 = vld [vmem:[%s367 + $0x1] sm:$0x1]
      %v387 = vld [vmem:[%s367 + $0x2] sm:$0x1]
      %v388 = vld [vmem:[%s367 + $0x3] sm:$0x1]
      %v389 = vld [vmem:[%s354] sm:$0xff]
      %v390 = vld [vmem:[%s354 + $0x8] sm:$0xff]
      %v391 = vld [vmem:[%s354 + $0x10] sm:$0xff]
      %v392 = vld [vmem:[%s354 + $0x18] sm:$0xff]
      %v393 = vld [vmem:[%s354 + $0x20] sm:$0xff]
      %v394 = vld [vmem:[%s354 + $0x28] sm:$0xff]
      %v395 = vld [vmem:[%s354 + $0x30] sm:$0xff]
      %v396 = vld [vmem:[%s354 + $0x38] sm:$0xff]
      %v398 = vperm.slane %v381, 0
      %v400 = vmul.f32 %v389, %v398
      %v401 = vmul.f32 %v390, %v398
      %v402 = vmul.f32 %v391, %v398
      %v403 = vmul.f32 %v392, %v398
      %v404 = vmul.f32 %v393, %v398
      %v405 = vmul.f32 %v394, %v398
      %v406 = vmul.f32 %v395, %v398
      %v407 = vmul.f32 %v396, %v398
      %v408 = vadd.f32 %v400, 0.0
      %v409 = vadd.f32 %v401, 0.0
      %v410 = vadd.f32 %v402, 0.0
      %v411 = vadd.f32 %v403, 0.0
      %v412 = vadd.f32 %v404, 0.0
      %v413 = vadd.f32 %v405, 0.0
      %v414 = vadd.f32 %v406, 0.0
      %v415 = vadd.f32 %v407, 0.0
      %v416 = vld [vmem:[%s359] sm:$0xff]
      %v417 = vld [vmem:[%s359 + $0x8] sm:$0xff]
      %v418 = vld [vmem:[%s359 + $0x10] sm:$0xff]
      %v419 = vld [vmem:[%s359 + $0x18] sm:$0xff]
      %v420 = vld [vmem:[%s359 + $0x20] sm:$0xff]
      %v421 = vld [vmem:[%s359 + $0x28] sm:$0xff]
      %v422 = vld [vmem:[%s359 + $0x30] sm:$0xff]
      %v423 = vld [vmem:[%s359 + $0x38] sm:$0xff]
      %v425 = vperm.slane %v385, 0
      %v427 = vmul.f32 %v416, %v425
      %v428 = vmul.f32 %v417, %v425
      %v429 = vmul.f32 %v418, %v425
      %v430 = vmul.f32 %v419, %v425
      %v431 = vmul.f32 %v420, %v425
      %v432 = vmul.f32 %v421, %v425
      %v433 = vmul.f32 %v422, %v425
      %v434 = vmul.f32 %v423, %v425
      %v435 = vadd.f32 %v427, 0.0
      %v436 = vadd.f32 %v428, 0.0
      %v437 = vadd.f32 %v429, 0.0
      %v438 = vadd.f32 %v430, 0.0
      %v439 = vadd.f32 %v431, 0.0
      %v440 = vadd.f32 %v432, 0.0
      %v441 = vadd.f32 %v433, 0.0
      %v442 = vadd.f32 %v434, 0.0
      %s443 = scalar_lea.vmem %s354, 64
      %v444 = vld [vmem:[%s443] sm:$0xff]
      %v445 = vld [vmem:[%s443 + $0x8] sm:$0xff]
      %v446 = vld [vmem:[%s443 + $0x10] sm:$0xff]
      %v447 = vld [vmem:[%s443 + $0x18] sm:$0xff]
      %v448 = vld [vmem:[%s443 + $0x20] sm:$0xff]
      %v449 = vld [vmem:[%s443 + $0x28] sm:$0xff]
      %v450 = vld [vmem:[%s443 + $0x30] sm:$0xff]
      %v451 = vld [vmem:[%s443 + $0x38] sm:$0xff]
      %v453 = vperm.slane %v382, 0
      %v455 = vmul.f32 %v444, %v453
      %v456 = vmul.f32 %v445, %v453
      %v457 = vmul.f32 %v446, %v453
      %v458 = vmul.f32 %v447, %v453
      %v459 = vmul.f32 %v448, %v453
      %v460 = vmul.f32 %v449, %v453
      %v461 = vmul.f32 %v450, %v453
      %v462 = vmul.f32 %v451, %v453
      %v463 = vadd.f32 %v408, %v455
      %v464 = vadd.f32 %v409, %v456
      %v465 = vadd.f32 %v410, %v457
      %v466 = vadd.f32 %v411, %v458
      %v467 = vadd.f32 %v412, %v459
      %v468 = vadd.f32 %v413, %v460
      %v469 = vadd.f32 %v414, %v461
      %v470 = vadd.f32 %v415, %v462
      %s471 = scalar_lea.vmem %s359, 64
      %v472 = vld [vmem:[%s471] sm:$0xff]
      %v473 = vld [vmem:[%s471 + $0x8] sm:$0xff]
      %v474 = vld [vmem:[%s471 + $0x10] sm:$0xff]
      %v475 = vld [vmem:[%s471 + $0x18] sm:$0xff]
      %v476 = vld [vmem:[%s471 + $0x20] sm:$0xff]
      %v477 = vld [vmem:[%s471 + $0x28] sm:$0xff]
      %v478 = vld [vmem:[%s471 + $0x30] sm:$0xff]
      %v479 = vld [vmem:[%s471 + $0x38] sm:$0xff]
      %v481 = vperm.slane %v386, 0
      %v483 = vmul.f32 %v472, %v481
      %v484 = vmul.f32 %v473, %v481
      %v485 = vmul.f32 %v474, %v481
      %v486 = vmul.f32 %v475, %v481
      %v487 = vmul.f32 %v476, %v481
      %v488 = vmul.f32 %v477, %v481
      %v489 = vmul.f32 %v478, %v481
      %v490 = vmul.f32 %v479, %v481
      %v491 = vadd.f32 %v435, %v483
      %v492 = vadd.f32 %v436, %v484
      %v493 = vadd.f32 %v437, %v485
      %v494 = vadd.f32 %v438, %v486
      %v495 = vadd.f32 %v439, %v487
      %v496 = vadd.f32 %v440, %v488
      %v497 = vadd.f32 %v441, %v489
      %v498 = vadd.f32 %v442, %v490
      %s499 = scalar_lea.vmem %s354, 128
      %v500 = vld [vmem:[%s499] sm:$0xff]
      %v501 = vld [vmem:[%s499 + $0x8] sm:$0xff]
      %v502 = vld [vmem:[%s499 + $0x10] sm:$0xff]
      %v503 = vld [vmem:[%s499 + $0x18] sm:$0xff]
      %v504 = vld [vmem:[%s499 + $0x20] sm:$0xff]
      %v505 = vld [vmem:[%s499 + $0x28] sm:$0xff]
      %v506 = vld [vmem:[%s499 + $0x30] sm:$0xff]
      %v507 = vld [vmem:[%s499 + $0x38] sm:$0xff]
      %v509 = vperm.slane %v383, 0
      %v511 = vmul.f32 %v500, %v509
      %v512 = vmul.f32 %v501, %v509
      %v513 = vmul.f32 %v502, %v509
      %v514 = vmul.f32 %v503, %v509
      %v515 = vmul.f32 %v504, %v509
      %v516 = vmul.f32 %v505, %v509
      %v517 = vmul.f32 %v506, %v509
      %v518 = vmul.f32 %v507, %v509
      %v519 = vadd.f32 %v463, %v511
      %v520 = vadd.f32 %v464, %v512
      %v521 = vadd.f32 %v465, %v513
      %v522 = vadd.f32 %v466, %v514
      %v523 = vadd.f32 %v467, %v515
      %v524 = vadd.f32 %v468, %v516
      %v525 = vadd.f32 %v469, %v517
      %v526 = vadd.f32 %v470, %v518
      %s527 = scalar_lea.vmem %s359, 128
      %v528 = vld [vmem:[%s527] sm:$0xff]
      %v529 = vld [vmem:[%s527 + $0x8] sm:$0xff]
      %v530 = vld [vmem:[%s527 + $0x10] sm:$0xff]
      %v531 = vld [vmem:[%s527 + $0x18] sm:$0xff]
      %v532 = vld [vmem:[%s527 + $0x20] sm:$0xff]
      %v533 = vld [vmem:[%s527 + $0x28] sm:$0xff]
      %v534 = vld [vmem:[%s527 + $0x30] sm:$0xff]
      %v535 = vld [vmem:[%s527 + $0x38] sm:$0xff]
      %v537 = vperm.slane %v387, 0
      %v539 = vmul.f32 %v528, %v537
      %v540 = vmul.f32 %v529, %v537
      %v541 = vmul.f32 %v530, %v537
      %v542 = vmul.f32 %v531, %v537
      %v543 = vmul.f32 %v532, %v537
      %v544 = vmul.f32 %v533, %v537
      %v545 = vmul.f32 %v534, %v537
      %v546 = vmul.f32 %v535, %v537
      %v547 = vadd.f32 %v491, %v539
      %v548 = vadd.f32 %v492, %v540
      %v549 = vadd.f32 %v493, %v541
      %v550 = vadd.f32 %v494, %v542
      %v551 = vadd.f32 %v495, %v543
      %v552 = vadd.f32 %v496, %v544
      %v553 = vadd.f32 %v497, %v545
      %v554 = vadd.f32 %v498, %v546
      %s555 = scalar_lea.vmem %s354, 192
      %v556 = vld [vmem:[%s555] sm:$0xff]
      %v557 = vld [vmem:[%s555 + $0x8] sm:$0xff]
      %v558 = vld [vmem:[%s555 + $0x10] sm:$0xff]
      %v559 = vld [vmem:[%s555 + $0x18] sm:$0xff]
      %v560 = vld [vmem:[%s555 + $0x20] sm:$0xff]
      %v561 = vld [vmem:[%s555 + $0x28] sm:$0xff]
      %v562 = vld [vmem:[%s555 + $0x30] sm:$0xff]
      %v563 = vld [vmem:[%s555 + $0x38] sm:$0xff]
      %v565 = vperm.slane %v384, 0
      %v567 = vmul.f32 %v556, %v565
      %v568 = vmul.f32 %v557, %v565
      %v569 = vmul.f32 %v558, %v565
      %v570 = vmul.f32 %v559, %v565
      %v571 = vmul.f32 %v560, %v565
      %v572 = vmul.f32 %v561, %v565
      %v573 = vmul.f32 %v562, %v565
      %v574 = vmul.f32 %v563, %v565
      %v575 = vadd.f32 %v519, %v567
      %v576 = vadd.f32 %v520, %v568
      %v577 = vadd.f32 %v521, %v569
      %v578 = vadd.f32 %v522, %v570
      %v579 = vadd.f32 %v523, %v571
      %v580 = vadd.f32 %v524, %v572
      %v581 = vadd.f32 %v525, %v573
      %v582 = vadd.f32 %v526, %v574
      %s583 = scalar_lea.vmem %s359, 192
      %v584 = vld [vmem:[%s583] sm:$0xff]
      %v585 = vld [vmem:[%s583 + $0x8] sm:$0xff]
      %v586 = vld [vmem:[%s583 + $0x10] sm:$0xff]
      %v587 = vld [vmem:[%s583 + $0x18] sm:$0xff]
      %v588 = vld [vmem:[%s583 + $0x20] sm:$0xff]
      %v589 = vld [vmem:[%s583 + $0x28] sm:$0xff]
      %v590 = vld [vmem:[%s583 + $0x30] sm:$0xff]
      %v591 = vld [vmem:[%s583 + $0x38] sm:$0xff]
      %v593 = vperm.slane %v388, 0
      %v595 = vmul.f32 %v584, %v593
      %v596 = vmul.f32 %v585, %v593
      %v597 = vmul.f32 %v586, %v593
      %v598 = vmul.f32 %v587, %v593
      %v599 = vmul.f32 %v588, %v593
      %v600 = vmul.f32 %v589, %v593
      %v601 = vmul.f32 %v590, %v593
      %v602 = vmul.f32 %v591, %v593
      %v603 = vadd.f32 %v547, %v595
      %v604 = vadd.f32 %v548, %v596
      %v605 = vadd.f32 %v549, %v597
      %v606 = vadd.f32 %v550, %v598
      %v607 = vadd.f32 %v551, %v599
      %v608 = vadd.f32 %v552, %v600
      %v609 = vadd.f32 %v553, %v601
      %v610 = vadd.f32 %v554, %v602
      %v611 = vld [vmem:[%s4] sm:$0xff]
      %v612 = vld [vmem:[%s4 + $0x8] sm:$0xff]
      %v613 = vld [vmem:[%s5] sm:$0x1]
      %v614 = vmul.f32 %v575, %v575
      %v615 = vmul.f32 %v576, %v576
      %v616 = vmul.f32 %v577, %v577
      %v617 = vmul.f32 %v578, %v578
      %v618 = vmul.f32 %v579, %v579
      %v619 = vmul.f32 %v580, %v580
      %v620 = vmul.f32 %v581, %v581
      %v621 = vmul.f32 %v582, %v582
      %vm622 = vcmask 64512
      %v623 = vsel %vm622, %v614, 0.0
      %624 = vadd.xlane.f32.xlu0 %v623
      %v625 = vpop.xlane.xlu0 %624
      %v626 = vsel %vm622, %v615, 0.0
      %627 = vadd.xlane.f32.xlu0 %v626
      %v628 = vpop.xlane.xlu0 %627
      %v629 = vsel %vm622, %v616, 0.0
      %630 = vadd.xlane.f32.xlu0 %v629
      %v631 = vpop.xlane.xlu0 %630
      %v632 = vsel %vm622, %v617, 0.0
      %633 = vadd.xlane.f32.xlu0 %v632
      %v634 = vpop.xlane.xlu0 %633
      %v635 = vsel %vm622, %v618, 0.0
      %636 = vadd.xlane.f32.xlu0 %v635
      %v637 = vpop.xlane.xlu0 %636
      %v638 = vsel %vm622, %v619, 0.0
      %639 = vadd.xlane.f32.xlu0 %v638
      %v640 = vpop.xlane.xlu0 %639
      %v641 = vsel %vm622, %v620, 0.0
      %642 = vadd.xlane.f32.xlu0 %v641
      %v643 = vpop.xlane.xlu0 %642
      %v644 = vsel %vm622, %v621, 0.0
      %645 = vadd.xlane.f32.xlu0 %v644
      %v646 = vpop.xlane.xlu0 %645
      %v648 = vsel %vm622, %v575, 0
      %v651 = vsel %vm622, %v576, 0
      %v654 = vsel %vm622, %v577, 0
      %v657 = vsel %vm622, %v578, 0
      %v660 = vsel %vm622, %v579, 0
      %v663 = vsel %vm622, %v580, 0
      %v666 = vsel %vm622, %v581, 0
      %v669 = vsel %vm622, %v582, 0
      %v672 = vsel %vm622, %v611, 0
      %v675 = vsel %vm622, %v612, 0
      %677 = vmatpush.xpose.msra.mxu0 0.0
      %678 = vmatpush.xpose.msra.mxu0 0.0
      %679 = vmatpush.xpose.msra.mxu0 0.0
      %680 = vmatpush.xpose.msra.mxu0 0.0
      %681 = vmatpush.xpose.msra.mxu0 0.0
      %682 = vmatpush.xpose.msra.mxu0 0.0
      %683 = vmatpush.xpose.msra.mxu0 0.0
      %684 = vmatpush.xpose.msra.mxu0 0.0
      %685 = vmatpush.xpose.msra.mxu0 0.0
      %686 = vmatpush.xpose.msra.mxu0 0.0
      %687 = vmatpush.xpose.msra.mxu0 0.0
      %688 = vmatpush.xpose.msra.mxu0 0.0
      %689 = vmatpush.xpose.msra.mxu0 0.0
      %690 = vmatpush.xpose.msra.mxu0 0.0
      %691 = vmatpush.xpose.msra.mxu0 %v675
      %692 = vmatpush.xpose.msra.mxu0 %v672
      %693 = vmatmul.f32.gmra.mxu0 %v648
      %v694 = vpop.f32.mrf.mxu0
      %v695 = vadd.f32 0.0, %v694
      %696 = vmatmul.f32.gmra.mxu0 %v651
      %v697 = vpop.f32.mrf.mxu0
      %v698 = vadd.f32 0.0, %v697
      %699 = vmatmul.f32.gmra.mxu0 %v654
      %v700 = vpop.f32.mrf.mxu0
      %v701 = vadd.f32 0.0, %v700
      %702 = vmatmul.f32.gmra.mxu0 %v657
      %v703 = vpop.f32.mrf.mxu0
      %v704 = vadd.f32 0.0, %v703
      %705 = vmatmul.f32.gmra.mxu0 %v660
      %v706 = vpop.f32.mrf.mxu0
      %v707 = vadd.f32 0.0, %v706
      %708 = vmatmul.f32.gmra.mxu0 %v663
      %v709 = vpop.f32.mrf.mxu0
      %v710 = vadd.f32 0.0, %v709
      %711 = vmatmul.f32.gmra.mxu0 %v666
      %v712 = vpop.f32.mrf.mxu0
      %v713 = vadd.f32 0.0, %v712
      %714 = vmatmul.f32.gmra.mxu0 %v669
      %v715 = vpop.f32.mrf.mxu0
      %v716 = vadd.f32 0.0, %v715
      %717 = vdwg.mxu0
      %v719 = vperm.slane %v613, 0
      %v721 = vadd.f32 %v625, %v719
      %v722 = vadd.f32 %v628, %v719
      %v723 = vadd.f32 %v631, %v719
      %v724 = vadd.f32 %v634, %v719
      %v725 = vadd.f32 %v637, %v719
      %v726 = vadd.f32 %v640, %v719
      %v727 = vadd.f32 %v643, %v719
      %v728 = vadd.f32 %v646, %v719
      %v729 = vmul.f32 %v695, 2.0
      %v730 = vmul.f32 %v698, 2.0
      %v731 = vmul.f32 %v701, 2.0
      %v732 = vmul.f32 %v704, 2.0
      %v733 = vmul.f32 %v707, 2.0
      %v734 = vmul.f32 %v710, 2.0
      %v735 = vmul.f32 %v713, 2.0
      %v736 = vmul.f32 %v716, 2.0
      %v737 = vsub.f32 %v721, %v729
      %v738 = vsub.f32 %v722, %v730
      %v739 = vsub.f32 %v723, %v731
      %v740 = vsub.f32 %v724, %v732
      %v741 = vsub.f32 %v725, %v733
      %v742 = vsub.f32 %v726, %v734
      %v743 = vsub.f32 %v727, %v735
      %v744 = vsub.f32 %v728, %v736
      %vm745 = vcmask 130048
      %v746 = vsel %vm745, %v737, inf
      %747 = vmin.xlane.f32.xlu0 %v746
      %v748 = vpop.xlane.xlu0 %747
      %v749 = vsel %vm745, %v738, inf
      %750 = vmin.xlane.f32.xlu0 %v749
      %v751 = vpop.xlane.xlu0 %750
      %v752 = vsel %vm745, %v739, inf
      %753 = vmin.xlane.f32.xlu0 %v752
      %v754 = vpop.xlane.xlu0 %753
      %v755 = vsel %vm745, %v740, inf
      %756 = vmin.xlane.f32.xlu0 %v755
      %v757 = vpop.xlane.xlu0 %756
      %v758 = vsel %vm745, %v741, inf
      %759 = vmin.xlane.f32.xlu0 %v758
      %v760 = vpop.xlane.xlu0 %759
      %v761 = vsel %vm745, %v742, inf
      %762 = vmin.xlane.f32.xlu0 %v761
      %v763 = vpop.xlane.xlu0 %762
      %v764 = vsel %vm745, %v743, inf
      %765 = vmin.xlane.f32.xlu0 %v764
      %v766 = vpop.xlane.xlu0 %765
      %v767 = vsel %vm745, %v744, inf
      %768 = vmin.xlane.f32.xlu0 %v767
      %v769 = vpop.xlane.xlu0 %768
      %v770 = vlaneseq
      %v771 = vand.u32 %v770, 127
      %vm772 = vcmp.le.f32.partialorder %v737, %v748
      %vm773 = vcmp.le.f32.partialorder %v738, %v751
      %vm774 = vcmp.le.f32.partialorder %v739, %v754
      %vm775 = vcmp.le.f32.partialorder %v740, %v757
      %vm776 = vcmp.le.f32.partialorder %v741, %v760
      %vm777 = vcmp.le.f32.partialorder %v742, %v763
      %vm778 = vcmp.le.f32.partialorder %v743, %v766
      %vm779 = vcmp.le.f32.partialorder %v744, %v769
      %v780 = vsel %vm772, %v771, 16
      %v781 = vsel %vm773, %v771, 16
      %v782 = vsel %vm774, %v771, 16
      %v783 = vsel %vm775, %v771, 16
      %v784 = vsel %vm776, %v771, 16
      %v785 = vsel %vm777, %v771, 16
      %v786 = vsel %vm778, %v771, 16
      %v787 = vsel %vm779, %v771, 16
      %v788 = vsel %vm745, %v780, 2147483647
      %v789 = vand.u32 %v788, 65535
      %v790 = vshra.s32 %v788, 16
      %v791 = vcvt.s32.f32 %v789
      %v792 = vcvt.s32.f32 %v790
      %793 = vmin.xlane.f32.xlu0 %v792
      %v794 = vpop.xlane.xlu0 %793
      %vm795 = vcmp.eq.f32.partialorder %v792, %v794
      %v796 = vsel %vm795, %v791, inf
      %797 = vmin.xlane.f32.xlu0 %v796
      %v798 = vpop.xlane.xlu0 %797
      %v799 = vcvt.f32.s32 %v798
      %v800 = vcvt.f32.s32 %v794
      %v801 = vshll.u32 %v800, 16
      %v802 = vadd.s32 %v801, %v799
      %v803 = vsel %vm745, %v781, 2147483647
      %v804 = vand.u32 %v803, 65535
      %v805 = vshra.s32 %v803, 16
      %v806 = vcvt.s32.f32 %v804
      %v807 = vcvt.s32.f32 %v805
      %808 = vmin.xlane.f32.xlu0 %v807
      %v809 = vpop.xlane.xlu0 %808
      %vm810 = vcmp.eq.f32.partialorder %v807, %v809
      %v811 = vsel %vm810, %v806, inf
      %812 = vmin.xlane.f32.xlu0 %v811
      %v813 = vpop.xlane.xlu0 %812
      %v814 = vcvt.f32.s32 %v813
      %v815 = vcvt.f32.s32 %v809
      %v816 = vshll.u32 %v815, 16
      %v817 = vadd.s32 %v816, %v814
      %v818 = vsel %vm745, %v782, 2147483647
      %v819 = vand.u32 %v818, 65535
      %v820 = vshra.s32 %v818, 16
      %v821 = vcvt.s32.f32 %v819
      %v822 = vcvt.s32.f32 %v820
      %823 = vmin.xlane.f32.xlu0 %v822
      %v824 = vpop.xlane.xlu0 %823
      %vm825 = vcmp.eq.f32.partialorder %v822, %v824
      %v826 = vsel %vm825, %v821, inf
      %827 = vmin.xlane.f32.xlu0 %v826
      %v828 = vpop.xlane.xlu0 %827
      %v829 = vcvt.f32.s32 %v828
      %v830 = vcvt.f32.s32 %v824
      %v831 = vshll.u32 %v830, 16
      %v832 = vadd.s32 %v831, %v829
      %v833 = vsel %vm745, %v783, 2147483647
      %v834 = vand.u32 %v833, 65535
      %v835 = vshra.s32 %v833, 16
      %v836 = vcvt.s32.f32 %v834
      %v837 = vcvt.s32.f32 %v835
      %838 = vmin.xlane.f32.xlu0 %v837
      %v839 = vpop.xlane.xlu0 %838
      %vm840 = vcmp.eq.f32.partialorder %v837, %v839
      %v841 = vsel %vm840, %v836, inf
      %842 = vmin.xlane.f32.xlu0 %v841
      %v843 = vpop.xlane.xlu0 %842
      %v844 = vcvt.f32.s32 %v843
      %v845 = vcvt.f32.s32 %v839
      %v846 = vshll.u32 %v845, 16
      %v847 = vadd.s32 %v846, %v844
      %v848 = vsel %vm745, %v784, 2147483647
      %v849 = vand.u32 %v848, 65535
      %v850 = vshra.s32 %v848, 16
      %v851 = vcvt.s32.f32 %v849
      %v852 = vcvt.s32.f32 %v850
      %853 = vmin.xlane.f32.xlu0 %v852
      %v854 = vpop.xlane.xlu0 %853
      %vm855 = vcmp.eq.f32.partialorder %v852, %v854
      %v856 = vsel %vm855, %v851, inf
      %857 = vmin.xlane.f32.xlu0 %v856
      %v858 = vpop.xlane.xlu0 %857
      %v859 = vcvt.f32.s32 %v858
      %v860 = vcvt.f32.s32 %v854
      %v861 = vshll.u32 %v860, 16
      %v862 = vadd.s32 %v861, %v859
      %v863 = vsel %vm745, %v785, 2147483647
      %v864 = vand.u32 %v863, 65535
      %v865 = vshra.s32 %v863, 16
      %v866 = vcvt.s32.f32 %v864
      %v867 = vcvt.s32.f32 %v865
      %868 = vmin.xlane.f32.xlu0 %v867
      %v869 = vpop.xlane.xlu0 %868
      %vm870 = vcmp.eq.f32.partialorder %v867, %v869
      %v871 = vsel %vm870, %v866, inf
      %872 = vmin.xlane.f32.xlu0 %v871
      %v873 = vpop.xlane.xlu0 %872
      %v874 = vcvt.f32.s32 %v873
      %v875 = vcvt.f32.s32 %v869
      %v876 = vshll.u32 %v875, 16
      %v877 = vadd.s32 %v876, %v874
      %v878 = vsel %vm745, %v786, 2147483647
      %v879 = vand.u32 %v878, 65535
      %v880 = vshra.s32 %v878, 16
      %v881 = vcvt.s32.f32 %v879
      %v882 = vcvt.s32.f32 %v880
      %883 = vmin.xlane.f32.xlu0 %v882
      %v884 = vpop.xlane.xlu0 %883
      %vm885 = vcmp.eq.f32.partialorder %v882, %v884
      %v886 = vsel %vm885, %v881, inf
      %887 = vmin.xlane.f32.xlu0 %v886
      %v888 = vpop.xlane.xlu0 %887
      %v889 = vcvt.f32.s32 %v888
      %v890 = vcvt.f32.s32 %v884
      %v891 = vshll.u32 %v890, 16
      %v892 = vadd.s32 %v891, %v889
      %v893 = vsel %vm745, %v787, 2147483647
      %v894 = vand.u32 %v893, 65535
      %v895 = vshra.s32 %v893, 16
      %v896 = vcvt.s32.f32 %v894
      %v897 = vcvt.s32.f32 %v895
      %898 = vmin.xlane.f32.xlu0 %v897
      %v899 = vpop.xlane.xlu0 %898
      %vm900 = vcmp.eq.f32.partialorder %v897, %v899
      %v901 = vsel %vm900, %v896, inf
      %902 = vmin.xlane.f32.xlu0 %v901
      %v903 = vpop.xlane.xlu0 %902
      %v904 = vcvt.f32.s32 %v903
      %v905 = vcvt.f32.s32 %v899
      %v906 = vshll.u32 %v905, 16
      %v907 = vadd.s32 %v906, %v904
      %vm908 = vcmp.eq.s32.totalorder %v771, %v802
      %vm909 = vcmp.eq.s32.totalorder %v771, %v817
      %vm910 = vcmp.eq.s32.totalorder %v771, %v832
      %vm911 = vcmp.eq.s32.totalorder %v771, %v847
      %vm912 = vcmp.eq.s32.totalorder %v771, %v862
      %vm913 = vcmp.eq.s32.totalorder %v771, %v877
      %vm914 = vcmp.eq.s32.totalorder %v771, %v892
      %vm915 = vcmp.eq.s32.totalorder %v771, %v907
      %v916 = vsel %vm908, 1, 0
      %v917 = vsel %vm909, 1, 0
      %v918 = vsel %vm910, 1, 0
      %v919 = vsel %vm911, 1, 0
      %v920 = vsel %vm912, 1, 0
      %v921 = vsel %vm913, 1, 0
      %v922 = vsel %vm914, 1, 0
      %v923 = vsel %vm915, 1, 0
      %v924 = vcvt.s32.f32 %v916
      %v925 = vcvt.s32.f32 %v917
      %v926 = vcvt.s32.f32 %v918
      %v927 = vcvt.s32.f32 %v919
      %v928 = vcvt.s32.f32 %v920
      %v929 = vcvt.s32.f32 %v921
      %v930 = vcvt.s32.f32 %v922
      %v931 = vcvt.s32.f32 %v923
      %v933 = vsel %vm745, %v924, 0
      %v936 = vsel %vm745, %v925, 0
      %v939 = vsel %vm745, %v926, 0
      %v942 = vsel %vm745, %v927, 0
      %v945 = vsel %vm745, %v928, 0
      %v948 = vsel %vm745, %v929, 0
      %v951 = vsel %vm745, %v930, 0
      %v954 = vsel %vm745, %v931, 0
      %956 = vmatpush.msra.mxu0 0.0
      %957 = vmatpush.msra.mxu0 0.0
      %958 = vmatpush.msra.mxu0 0.0
      %959 = vmatpush.msra.mxu0 0.0
      %960 = vmatpush.msra.mxu0 0.0
      %961 = vmatpush.msra.mxu0 0.0
      %962 = vmatpush.msra.mxu0 0.0
      %963 = vmatpush.msra.mxu0 0.0
      %964 = vmatpush.msra.mxu0 0.0
      %965 = vmatpush.msra.mxu0 0.0
      %966 = vmatpush.msra.mxu0 0.0
      %967 = vmatpush.msra.mxu0 0.0
      %968 = vmatpush.msra.mxu0 0.0
      %969 = vmatpush.msra.mxu0 0.0
      %970 = vmatpush.msra.mxu0 %v612
      %971 = vmatpush.msra.mxu0 %v611
      %972 = vmatmul.f32.gmra.mxu0 %v933
      %v973 = vpop.f32.mrf.mxu0
      %v974 = vadd.f32 0.0, %v973
      %975 = vmatmul.f32.gmra.mxu0 %v936
      %v976 = vpop.f32.mrf.mxu0
      %v977 = vadd.f32 0.0, %v976
      %978 = vmatmul.f32.gmra.mxu0 %v939
      %v979 = vpop.f32.mrf.mxu0
      %v980 = vadd.f32 0.0, %v979
      %981 = vmatmul.f32.gmra.mxu0 %v942
      %v982 = vpop.f32.mrf.mxu0
      %v983 = vadd.f32 0.0, %v982
      %984 = vmatmul.f32.gmra.mxu0 %v945
      %v985 = vpop.f32.mrf.mxu0
      %v986 = vadd.f32 0.0, %v985
      %987 = vmatmul.f32.gmra.mxu0 %v948
      %v988 = vpop.f32.mrf.mxu0
      %v989 = vadd.f32 0.0, %v988
      %990 = vmatmul.f32.gmra.mxu0 %v951
      %v991 = vpop.f32.mrf.mxu0
      %v992 = vadd.f32 0.0, %v991
      %993 = vmatmul.f32.gmra.mxu0 %v954
      %v994 = vpop.f32.mrf.mxu0
      %v995 = vadd.f32 0.0, %v994
      %996 = vdwg.mxu0
      %v997 = vmul.f32 %v603, %v603
      %v998 = vmul.f32 %v604, %v604
      %v999 = vmul.f32 %v605, %v605
      %v1000 = vmul.f32 %v606, %v606
      %v1001 = vmul.f32 %v607, %v607
      %v1002 = vmul.f32 %v608, %v608
      %v1003 = vmul.f32 %v609, %v609
      %v1004 = vmul.f32 %v610, %v610
      %v1005 = vsel %vm622, %v997, 0.0
      %1006 = vadd.xlane.f32.xlu0 %v1005
      %v1007 = vpop.xlane.xlu0 %1006
      %v1008 = vsel %vm622, %v998, 0.0
      %1009 = vadd.xlane.f32.xlu0 %v1008
      %v1010 = vpop.xlane.xlu0 %1009
      %v1011 = vsel %vm622, %v999, 0.0
      %1012 = vadd.xlane.f32.xlu0 %v1011
      %v1013 = vpop.xlane.xlu0 %1012
      %v1014 = vsel %vm622, %v1000, 0.0
      %1015 = vadd.xlane.f32.xlu0 %v1014
      %v1016 = vpop.xlane.xlu0 %1015
      %v1017 = vsel %vm622, %v1001, 0.0
      %1018 = vadd.xlane.f32.xlu0 %v1017
      %v1019 = vpop.xlane.xlu0 %1018
      %v1020 = vsel %vm622, %v1002, 0.0
      %1021 = vadd.xlane.f32.xlu0 %v1020
      %v1022 = vpop.xlane.xlu0 %1021
      %v1023 = vsel %vm622, %v1003, 0.0
      %1024 = vadd.xlane.f32.xlu0 %v1023
      %v1025 = vpop.xlane.xlu0 %1024
      %v1026 = vsel %vm622, %v1004, 0.0
      %1027 = vadd.xlane.f32.xlu0 %v1026
      %v1028 = vpop.xlane.xlu0 %1027
      %v1030 = vsel %vm622, %v603, 0
      %v1033 = vsel %vm622, %v604, 0
      %v1036 = vsel %vm622, %v605, 0
      %v1039 = vsel %vm622, %v606, 0
      %v1042 = vsel %vm622, %v607, 0
      %v1045 = vsel %vm622, %v608, 0
      %v1048 = vsel %vm622, %v609, 0
      %v1051 = vsel %vm622, %v610, 0
      %1053 = vmatpush.xpose.msra.mxu0 0.0
      %1054 = vmatpush.xpose.msra.mxu0 0.0
      %1055 = vmatpush.xpose.msra.mxu0 0.0
      %1056 = vmatpush.xpose.msra.mxu0 0.0
      %1057 = vmatpush.xpose.msra.mxu0 0.0
      %1058 = vmatpush.xpose.msra.mxu0 0.0
      %1059 = vmatpush.xpose.msra.mxu0 0.0
      %1060 = vmatpush.xpose.msra.mxu0 0.0
      %1061 = vmatpush.xpose.msra.mxu0 0.0
      %1062 = vmatpush.xpose.msra.mxu0 0.0
      %1063 = vmatpush.xpose.msra.mxu0 0.0
      %1064 = vmatpush.xpose.msra.mxu0 0.0
      %1065 = vmatpush.xpose.msra.mxu0 0.0
      %1066 = vmatpush.xpose.msra.mxu0 0.0
      %1067 = vmatpush.xpose.msra.mxu0 %v675
      %1068 = vmatpush.xpose.msra.mxu0 %v672
      %1069 = vmatmul.f32.gmra.mxu0 %v1030
      %v1070 = vpop.f32.mrf.mxu0
      %v1071 = vadd.f32 0.0, %v1070
      %1072 = vmatmul.f32.gmra.mxu0 %v1033
      %v1073 = vpop.f32.mrf.mxu0
      %v1074 = vadd.f32 0.0, %v1073
      %1075 = vmatmul.f32.gmra.mxu0 %v1036
      %v1076 = vpop.f32.mrf.mxu0
      %v1077 = vadd.f32 0.0, %v1076
      %1078 = vmatmul.f32.gmra.mxu0 %v1039
      %v1079 = vpop.f32.mrf.mxu0
      %v1080 = vadd.f32 0.0, %v1079
      %1081 = vmatmul.f32.gmra.mxu0 %v1042
      %v1082 = vpop.f32.mrf.mxu0
      %v1083 = vadd.f32 0.0, %v1082
      %1084 = vmatmul.f32.gmra.mxu0 %v1045
      %v1085 = vpop.f32.mrf.mxu0
      %v1086 = vadd.f32 0.0, %v1085
      %1087 = vmatmul.f32.gmra.mxu0 %v1048
      %v1088 = vpop.f32.mrf.mxu0
      %v1089 = vadd.f32 0.0, %v1088
      %1090 = vmatmul.f32.gmra.mxu0 %v1051
      %v1091 = vpop.f32.mrf.mxu0
      %v1092 = vadd.f32 0.0, %v1091
      %1093 = vdwg.mxu0
      %v1094 = vadd.f32 %v1007, %v719
      %v1095 = vadd.f32 %v1010, %v719
      %v1096 = vadd.f32 %v1013, %v719
      %v1097 = vadd.f32 %v1016, %v719
      %v1098 = vadd.f32 %v1019, %v719
      %v1099 = vadd.f32 %v1022, %v719
      %v1100 = vadd.f32 %v1025, %v719
      %v1101 = vadd.f32 %v1028, %v719
      %v1102 = vmul.f32 %v1071, 2.0
      %v1103 = vmul.f32 %v1074, 2.0
      %v1104 = vmul.f32 %v1077, 2.0
      %v1105 = vmul.f32 %v1080, 2.0
      %v1106 = vmul.f32 %v1083, 2.0
      %v1107 = vmul.f32 %v1086, 2.0
      %v1108 = vmul.f32 %v1089, 2.0
      %v1109 = vmul.f32 %v1092, 2.0
      %v1110 = vsub.f32 %v1094, %v1102
      %v1111 = vsub.f32 %v1095, %v1103
      %v1112 = vsub.f32 %v1096, %v1104
      %v1113 = vsub.f32 %v1097, %v1105
      %v1114 = vsub.f32 %v1098, %v1106
      %v1115 = vsub.f32 %v1099, %v1107
      %v1116 = vsub.f32 %v1100, %v1108
      %v1117 = vsub.f32 %v1101, %v1109
      %v1118 = vsel %vm745, %v1110, inf
      %1119 = vmin.xlane.f32.xlu0 %v1118
      %v1120 = vpop.xlane.xlu0 %1119
      %v1121 = vsel %vm745, %v1111, inf
      %1122 = vmin.xlane.f32.xlu0 %v1121
      %v1123 = vpop.xlane.xlu0 %1122
      %v1124 = vsel %vm745, %v1112, inf
      %1125 = vmin.xlane.f32.xlu0 %v1124
      %v1126 = vpop.xlane.xlu0 %1125
      %v1127 = vsel %vm745, %v1113, inf
      %1128 = vmin.xlane.f32.xlu0 %v1127
      %v1129 = vpop.xlane.xlu0 %1128
      %v1130 = vsel %vm745, %v1114, inf
      %1131 = vmin.xlane.f32.xlu0 %v1130
      %v1132 = vpop.xlane.xlu0 %1131
      %v1133 = vsel %vm745, %v1115, inf
      %1134 = vmin.xlane.f32.xlu0 %v1133
      %v1135 = vpop.xlane.xlu0 %1134
      %v1136 = vsel %vm745, %v1116, inf
      %1137 = vmin.xlane.f32.xlu0 %v1136
      %v1138 = vpop.xlane.xlu0 %1137
      %v1139 = vsel %vm745, %v1117, inf
      %1140 = vmin.xlane.f32.xlu0 %v1139
      %v1141 = vpop.xlane.xlu0 %1140
      %vm1142 = vcmp.le.f32.partialorder %v1110, %v1120
      %vm1143 = vcmp.le.f32.partialorder %v1111, %v1123
      %vm1144 = vcmp.le.f32.partialorder %v1112, %v1126
      %vm1145 = vcmp.le.f32.partialorder %v1113, %v1129
      %vm1146 = vcmp.le.f32.partialorder %v1114, %v1132
      %vm1147 = vcmp.le.f32.partialorder %v1115, %v1135
      %vm1148 = vcmp.le.f32.partialorder %v1116, %v1138
      %vm1149 = vcmp.le.f32.partialorder %v1117, %v1141
      %v1150 = vsel %vm1142, %v771, 16
      %v1151 = vsel %vm1143, %v771, 16
      %v1152 = vsel %vm1144, %v771, 16
      %v1153 = vsel %vm1145, %v771, 16
      %v1154 = vsel %vm1146, %v771, 16
      %v1155 = vsel %vm1147, %v771, 16
      %v1156 = vsel %vm1148, %v771, 16
      %v1157 = vsel %vm1149, %v771, 16
      %v1158 = vsel %vm745, %v1150, 2147483647
      %v1159 = vand.u32 %v1158, 65535
      %v1160 = vshra.s32 %v1158, 16
      %v1161 = vcvt.s32.f32 %v1159
      %v1162 = vcvt.s32.f32 %v1160
      %1163 = vmin.xlane.f32.xlu0 %v1162
      %v1164 = vpop.xlane.xlu0 %1163
      %vm1165 = vcmp.eq.f32.partialorder %v1162, %v1164
      %v1166 = vsel %vm1165, %v1161, inf
      %1167 = vmin.xlane.f32.xlu0 %v1166
      %v1168 = vpop.xlane.xlu0 %1167
      %v1169 = vcvt.f32.s32 %v1168
      %v1170 = vcvt.f32.s32 %v1164
      %v1171 = vshll.u32 %v1170, 16
      %v1172 = vadd.s32 %v1171, %v1169
      %v1173 = vsel %vm745, %v1151, 2147483647
      %v1174 = vand.u32 %v1173, 65535
      %v1175 = vshra.s32 %v1173, 16
      %v1176 = vcvt.s32.f32 %v1174
      %v1177 = vcvt.s32.f32 %v1175
      %1178 = vmin.xlane.f32.xlu0 %v1177
      %v1179 = vpop.xlane.xlu0 %1178
      %vm1180 = vcmp.eq.f32.partialorder %v1177, %v1179
      %v1181 = vsel %vm1180, %v1176, inf
      %1182 = vmin.xlane.f32.xlu0 %v1181
      %v1183 = vpop.xlane.xlu0 %1182
      %v1184 = vcvt.f32.s32 %v1183
      %v1185 = vcvt.f32.s32 %v1179
      %v1186 = vshll.u32 %v1185, 16
      %v1187 = vadd.s32 %v1186, %v1184
      %v1188 = vsel %vm745, %v1152, 2147483647
      %v1189 = vand.u32 %v1188, 65535
      %v1190 = vshra.s32 %v1188, 16
      %v1191 = vcvt.s32.f32 %v1189
      %v1192 = vcvt.s32.f32 %v1190
      %1193 = vmin.xlane.f32.xlu0 %v1192
      %v1194 = vpop.xlane.xlu0 %1193
      %vm1195 = vcmp.eq.f32.partialorder %v1192, %v1194
      %v1196 = vsel %vm1195, %v1191, inf
      %1197 = vmin.xlane.f32.xlu0 %v1196
      %v1198 = vpop.xlane.xlu0 %1197
      %v1199 = vcvt.f32.s32 %v1198
      %v1200 = vcvt.f32.s32 %v1194
      %v1201 = vshll.u32 %v1200, 16
      %v1202 = vadd.s32 %v1201, %v1199
      %v1203 = vsel %vm745, %v1153, 2147483647
      %v1204 = vand.u32 %v1203, 65535
      %v1205 = vshra.s32 %v1203, 16
      %v1206 = vcvt.s32.f32 %v1204
      %v1207 = vcvt.s32.f32 %v1205
      %1208 = vmin.xlane.f32.xlu0 %v1207
      %v1209 = vpop.xlane.xlu0 %1208
      %vm1210 = vcmp.eq.f32.partialorder %v1207, %v1209
      %v1211 = vsel %vm1210, %v1206, inf
      %1212 = vmin.xlane.f32.xlu0 %v1211
      %v1213 = vpop.xlane.xlu0 %1212
      %v1214 = vcvt.f32.s32 %v1213
      %v1215 = vcvt.f32.s32 %v1209
      %v1216 = vshll.u32 %v1215, 16
      %v1217 = vadd.s32 %v1216, %v1214
      %v1218 = vsel %vm745, %v1154, 2147483647
      %v1219 = vand.u32 %v1218, 65535
      %v1220 = vshra.s32 %v1218, 16
      %v1221 = vcvt.s32.f32 %v1219
      %v1222 = vcvt.s32.f32 %v1220
      %1223 = vmin.xlane.f32.xlu0 %v1222
      %v1224 = vpop.xlane.xlu0 %1223
      %vm1225 = vcmp.eq.f32.partialorder %v1222, %v1224
      %v1226 = vsel %vm1225, %v1221, inf
      %1227 = vmin.xlane.f32.xlu0 %v1226
      %v1228 = vpop.xlane.xlu0 %1227
      %v1229 = vcvt.f32.s32 %v1228
      %v1230 = vcvt.f32.s32 %v1224
      %v1231 = vshll.u32 %v1230, 16
      %v1232 = vadd.s32 %v1231, %v1229
      %v1233 = vsel %vm745, %v1155, 2147483647
      %v1234 = vand.u32 %v1233, 65535
      %v1235 = vshra.s32 %v1233, 16
      %v1236 = vcvt.s32.f32 %v1234
      %v1237 = vcvt.s32.f32 %v1235
      %1238 = vmin.xlane.f32.xlu0 %v1237
      %v1239 = vpop.xlane.xlu0 %1238
      %vm1240 = vcmp.eq.f32.partialorder %v1237, %v1239
      %v1241 = vsel %vm1240, %v1236, inf
      %1242 = vmin.xlane.f32.xlu0 %v1241
      %v1243 = vpop.xlane.xlu0 %1242
      %v1244 = vcvt.f32.s32 %v1243
      %v1245 = vcvt.f32.s32 %v1239
      %v1246 = vshll.u32 %v1245, 16
      %v1247 = vadd.s32 %v1246, %v1244
      %v1248 = vsel %vm745, %v1156, 2147483647
      %v1249 = vand.u32 %v1248, 65535
      %v1250 = vshra.s32 %v1248, 16
      %v1251 = vcvt.s32.f32 %v1249
      %v1252 = vcvt.s32.f32 %v1250
      %1253 = vmin.xlane.f32.xlu0 %v1252
      %v1254 = vpop.xlane.xlu0 %1253
      %vm1255 = vcmp.eq.f32.partialorder %v1252, %v1254
      %v1256 = vsel %vm1255, %v1251, inf
      %1257 = vmin.xlane.f32.xlu0 %v1256
      %v1258 = vpop.xlane.xlu0 %1257
      %v1259 = vcvt.f32.s32 %v1258
      %v1260 = vcvt.f32.s32 %v1254
      %v1261 = vshll.u32 %v1260, 16
      %v1262 = vadd.s32 %v1261, %v1259
      %v1263 = vsel %vm745, %v1157, 2147483647
      %v1264 = vand.u32 %v1263, 65535
      %v1265 = vshra.s32 %v1263, 16
      %v1266 = vcvt.s32.f32 %v1264
      %v1267 = vcvt.s32.f32 %v1265
      %1268 = vmin.xlane.f32.xlu0 %v1267
      %v1269 = vpop.xlane.xlu0 %1268
      %vm1270 = vcmp.eq.f32.partialorder %v1267, %v1269
      %v1271 = vsel %vm1270, %v1266, inf
      %1272 = vmin.xlane.f32.xlu0 %v1271
      %v1273 = vpop.xlane.xlu0 %1272
      %v1274 = vcvt.f32.s32 %v1273
      %v1275 = vcvt.f32.s32 %v1269
      %v1276 = vshll.u32 %v1275, 16
      %v1277 = vadd.s32 %v1276, %v1274
      %vm1278 = vcmp.eq.s32.totalorder %v771, %v1172
      %vm1279 = vcmp.eq.s32.totalorder %v771, %v1187
      %vm1280 = vcmp.eq.s32.totalorder %v771, %v1202
      %vm1281 = vcmp.eq.s32.totalorder %v771, %v1217
      %vm1282 = vcmp.eq.s32.totalorder %v771, %v1232
      %vm1283 = vcmp.eq.s32.totalorder %v771, %v1247
      %vm1284 = vcmp.eq.s32.totalorder %v771, %v1262
      %vm1285 = vcmp.eq.s32.totalorder %v771, %v1277
      %v1286 = vsel %vm1278, 1, 0
      %v1287 = vsel %vm1279, 1, 0
      %v1288 = vsel %vm1280, 1, 0
      %v1289 = vsel %vm1281, 1, 0
      %v1290 = vsel %vm1282, 1, 0
      %v1291 = vsel %vm1283, 1, 0
      %v1292 = vsel %vm1284, 1, 0
      %v1293 = vsel %vm1285, 1, 0
      %v1294 = vcvt.s32.f32 %v1286
      %v1295 = vcvt.s32.f32 %v1287
      %v1296 = vcvt.s32.f32 %v1288
      %v1297 = vcvt.s32.f32 %v1289
      %v1298 = vcvt.s32.f32 %v1290
      %v1299 = vcvt.s32.f32 %v1291
      %v1300 = vcvt.s32.f32 %v1292
      %v1301 = vcvt.s32.f32 %v1293
      %v1303 = vsel %vm745, %v1294, 0
      %v1306 = vsel %vm745, %v1295, 0
      %v1309 = vsel %vm745, %v1296, 0
      %v1312 = vsel %vm745, %v1297, 0
      %v1315 = vsel %vm745, %v1298, 0
      %v1318 = vsel %vm745, %v1299, 0
      %v1321 = vsel %vm745, %v1300, 0
      %v1324 = vsel %vm745, %v1301, 0
      %1326 = vmatpush.msra.mxu0 0.0
      %1327 = vmatpush.msra.mxu0 0.0
      %1328 = vmatpush.msra.mxu0 0.0
      %1329 = vmatpush.msra.mxu0 0.0
      %1330 = vmatpush.msra.mxu0 0.0
      %1331 = vmatpush.msra.mxu0 0.0
      %1332 = vmatpush.msra.mxu0 0.0
      %1333 = vmatpush.msra.mxu0 0.0
      %1334 = vmatpush.msra.mxu0 0.0
      %1335 = vmatpush.msra.mxu0 0.0
      %1336 = vmatpush.msra.mxu0 0.0
      %1337 = vmatpush.msra.mxu0 0.0
      %1338 = vmatpush.msra.mxu0 0.0
      %1339 = vmatpush.msra.mxu0 0.0
      %1340 = vmatpush.msra.mxu0 %v612
      %1341 = vmatpush.msra.mxu0 %v611
      %1342 = vmatmul.f32.gmra.mxu0 %v1303
      %v1343 = vpop.f32.mrf.mxu0
      %v1344 = vadd.f32 0.0, %v1343
      %1345 = vmatmul.f32.gmra.mxu0 %v1306
      %v1346 = vpop.f32.mrf.mxu0
      %v1347 = vadd.f32 0.0, %v1346
      %1348 = vmatmul.f32.gmra.mxu0 %v1309
      %v1349 = vpop.f32.mrf.mxu0
      %v1350 = vadd.f32 0.0, %v1349
      %1351 = vmatmul.f32.gmra.mxu0 %v1312
      %v1352 = vpop.f32.mrf.mxu0
      %v1353 = vadd.f32 0.0, %v1352
      %1354 = vmatmul.f32.gmra.mxu0 %v1315
      %v1355 = vpop.f32.mrf.mxu0
      %v1356 = vadd.f32 0.0, %v1355
      %1357 = vmatmul.f32.gmra.mxu0 %v1318
      %v1358 = vpop.f32.mrf.mxu0
      %v1359 = vadd.f32 0.0, %v1358
      %1360 = vmatmul.f32.gmra.mxu0 %v1321
      %v1361 = vpop.f32.mrf.mxu0
      %v1362 = vadd.f32 0.0, %v1361
      %1363 = vmatmul.f32.gmra.mxu0 %v1324
      %v1364 = vpop.f32.mrf.mxu0
      %v1365 = vadd.f32 0.0, %v1364
      %1366 = vdwg.mxu0
      %1367 = vst.msk [vmem:[%s372] sm:$0xff] %vm622, %v974
      %1368 = vst.msk [vmem:[%s372 + $0x8] sm:$0xff] %vm622, %v977
      %1369 = vst.msk [vmem:[%s372 + $0x10] sm:$0xff] %vm622, %v980
      %1370 = vst.msk [vmem:[%s372 + $0x18] sm:$0xff] %vm622, %v983
      %1371 = vst.msk [vmem:[%s372 + $0x20] sm:$0xff] %vm622, %v986
      %1372 = vst.msk [vmem:[%s372 + $0x28] sm:$0xff] %vm622, %v989
      %1373 = vst.msk [vmem:[%s372 + $0x30] sm:$0xff] %vm622, %v992
      %1374 = vst.msk [vmem:[%s372 + $0x38] sm:$0xff] %vm622, %v995
      %1375 = vst.msk [vmem:[%s377] sm:$0xff] %vm622, %v1344
      %1376 = vst.msk [vmem:[%s377 + $0x8] sm:$0xff] %vm622, %v1347
      %1377 = vst.msk [vmem:[%s377 + $0x10] sm:$0xff] %vm622, %v1350
      %1378 = vst.msk [vmem:[%s377 + $0x18] sm:$0xff] %vm622, %v1353
      %1379 = vst.msk [vmem:[%s377 + $0x20] sm:$0xff] %vm622, %v1356
      %1380 = vst.msk [vmem:[%s377 + $0x28] sm:$0xff] %vm622, %v1359
      %1381 = vst.msk [vmem:[%s377 + $0x30] sm:$0xff] %vm622, %v1362
      %1382 = vst.msk [vmem:[%s377 + $0x38] sm:$0xff] %vm622, %v1365
      %v1383 = vsub.f32 %v974, %v575
      %v1384 = vsub.f32 %v977, %v576
      %v1385 = vsub.f32 %v980, %v577
      %v1386 = vsub.f32 %v983, %v578
      %v1387 = vsub.f32 %v986, %v579
      %v1388 = vsub.f32 %v989, %v580
      %v1389 = vsub.f32 %v992, %v581
      %v1390 = vsub.f32 %v995, %v582
      %v1391 = vmul.f32 %v1383, %v1383
      %v1392 = vmul.f32 %v1384, %v1384
      %v1393 = vmul.f32 %v1385, %v1385
      %v1394 = vmul.f32 %v1386, %v1386
      %v1395 = vmul.f32 %v1387, %v1387
      %v1396 = vmul.f32 %v1388, %v1388
      %v1397 = vmul.f32 %v1389, %v1389
      %v1398 = vmul.f32 %v1390, %v1390
      %v1399 = vsel %vm622, %v1391, 0.0
      %v1400 = vsel %vm622, %v1392, 0.0
      %v1401 = vadd.f32 %v1399, %v1400
      %v1402 = vsel %vm622, %v1393, 0.0
      %v1403 = vadd.f32 %v1401, %v1402
      %v1404 = vsel %vm622, %v1394, 0.0
      %v1405 = vadd.f32 %v1403, %v1404
      %v1406 = vsel %vm622, %v1395, 0.0
      %v1407 = vadd.f32 %v1405, %v1406
      %v1408 = vsel %vm622, %v1396, 0.0
      %v1409 = vadd.f32 %v1407, %v1408
      %v1410 = vsel %vm622, %v1397, 0.0
      %v1411 = vadd.f32 %v1409, %v1410
      %v1412 = vsel %vm622, %v1398, 0.0
      %v1413 = vadd.f32 %v1411, %v1412
      %1414 = vadd.xlane.f32.xlu0 %v1413
      %v1415 = vpop.xlane.xlu0 %1414
      %v1416 = vrot.slane %v1415, 4
      %v1417 = vadd.f32 %v1415, %v1416
      %v1418 = vrot.slane %v1417, 2
      %v1419 = vadd.f32 %v1417, %v1418
      %v1420 = vrot.slane %v1419, 1
      %v1421 = vadd.f32 %v1419, %v1420
      %s1422 = vtos %v1421
      %v1423 = vsub.f32 %v1344, %v603
      %v1424 = vsub.f32 %v1347, %v604
      %v1425 = vsub.f32 %v1350, %v605
      %v1426 = vsub.f32 %v1353, %v606
      %v1427 = vsub.f32 %v1356, %v607
      %v1428 = vsub.f32 %v1359, %v608
      %v1429 = vsub.f32 %v1362, %v609
      %v1430 = vsub.f32 %v1365, %v610
      %v1431 = vmul.f32 %v1423, %v1423
      %v1432 = vmul.f32 %v1424, %v1424
      %v1433 = vmul.f32 %v1425, %v1425
      %v1434 = vmul.f32 %v1426, %v1426
      %v1435 = vmul.f32 %v1427, %v1427
      %v1436 = vmul.f32 %v1428, %v1428
      %v1437 = vmul.f32 %v1429, %v1429
      %v1438 = vmul.f32 %v1430, %v1430
      %v1439 = vsel %vm622, %v1431, 0.0
      %v1440 = vsel %vm622, %v1432, 0.0
      %v1441 = vadd.f32 %v1439, %v1440
      %v1442 = vsel %vm622, %v1433, 0.0
      %v1443 = vadd.f32 %v1441, %v1442
      %v1444 = vsel %vm622, %v1434, 0.0
      %v1445 = vadd.f32 %v1443, %v1444
      %v1446 = vsel %vm622, %v1435, 0.0
      %v1447 = vadd.f32 %v1445, %v1446
      %v1448 = vsel %vm622, %v1436, 0.0
      %v1449 = vadd.f32 %v1447, %v1448
      %v1450 = vsel %vm622, %v1437, 0.0
      %v1451 = vadd.f32 %v1449, %v1450
      %v1452 = vsel %vm622, %v1438, 0.0
      %v1453 = vadd.f32 %v1451, %v1452
      %1454 = vadd.xlane.f32.xlu0 %v1453
      %v1455 = vpop.xlane.xlu0 %1454
      %v1456 = vrot.slane %v1455, 4
      %v1457 = vadd.f32 %v1455, %v1456
      %v1458 = vrot.slane %v1457, 2
      %v1459 = vadd.f32 %v1457, %v1458
      %v1460 = vrot.slane %v1459, 1
      %v1461 = vadd.f32 %v1459, %v1460
      %s1462 = vtos %v1461
      %v1463 = vsub.f32 %v974, %v603
      %v1464 = vsub.f32 %v977, %v604
      %v1465 = vsub.f32 %v980, %v605
      %v1466 = vsub.f32 %v983, %v606
      %v1467 = vsub.f32 %v986, %v607
      %v1468 = vsub.f32 %v989, %v608
      %v1469 = vsub.f32 %v992, %v609
      %v1470 = vsub.f32 %v995, %v610
      %v1471 = vmul.f32 %v1463, %v1463
      %v1472 = vmul.f32 %v1464, %v1464
      %v1473 = vmul.f32 %v1465, %v1465
      %v1474 = vmul.f32 %v1466, %v1466
      %v1475 = vmul.f32 %v1467, %v1467
      %v1476 = vmul.f32 %v1468, %v1468
      %v1477 = vmul.f32 %v1469, %v1469
      %v1478 = vmul.f32 %v1470, %v1470
      %v1479 = vsel %vm622, %v1471, 0.0
      %v1480 = vsel %vm622, %v1472, 0.0
      %v1481 = vadd.f32 %v1479, %v1480
      %v1482 = vsel %vm622, %v1473, 0.0
      %v1483 = vadd.f32 %v1481, %v1482
      %v1484 = vsel %vm622, %v1474, 0.0
      %v1485 = vadd.f32 %v1483, %v1484
      %v1486 = vsel %vm622, %v1475, 0.0
      %v1487 = vadd.f32 %v1485, %v1486
      %v1488 = vsel %vm622, %v1476, 0.0
      %v1489 = vadd.f32 %v1487, %v1488
      %v1490 = vsel %vm622, %v1477, 0.0
      %v1491 = vadd.f32 %v1489, %v1490
      %v1492 = vsel %vm622, %v1478, 0.0
      %v1493 = vadd.f32 %v1491, %v1492
      %1494 = vadd.xlane.f32.xlu0 %v1493
      %v1495 = vpop.xlane.xlu0 %1494
      %v1496 = vrot.slane %v1495, 4
      %v1497 = vadd.f32 %v1495, %v1496
      %v1498 = vrot.slane %v1497, 2
      %v1499 = vadd.f32 %v1497, %v1498
      %v1500 = vrot.slane %v1499, 1
      %v1501 = vadd.f32 %v1499, %v1500
      %s1502 = vtos %v1501
      %vm1503 = vcmp.eq.s32.totalorder %v771, 0
      %v1504 = vsel %vm1503, 1, 0
      %v1505 = vcvt.s32.f32 %v1504
      %v1506 = vstv %s1422
      %v1507 = vmul.f32 %v1506, %v1505
      %vm1508 = vcmp.eq.s32.totalorder %v771, 1
      %v1509 = vsel %vm1508, 1, 0
      %v1510 = vcvt.s32.f32 %v1509
      %v1511 = vstv %s1462
      %v1512 = vmul.f32 %v1511, %v1510
      %v1513 = vadd.f32 %v1507, %v1512
      %vm1514 = vcmp.eq.s32.totalorder %v771, 2
      %v1515 = vsel %vm1514, 1, 0
      %v1516 = vcvt.s32.f32 %v1515
      %v1517 = vstv %s1502
      %v1518 = vmul.f32 %v1517, %v1516
      %v1519 = vadd.f32 %v1513, %v1518
      %1520 = vst [vmem:[%s380] sm:$0x1] %v1519
      %p1521 = scmp.lt.s32.totalorder %s20, 1
      %s1522 = scalar_select %p1521, %s20, 1
      %s1523 = smul.addr %s1522, 8
      %s1524 = smul.addr %s1523, 8
      %s1525 = scalar_lea.vmem %s6, %s1524
      %p1526 = scmp.lt.s32.totalorder %s20, 1
      %s1527 = scalar_select %p1526, %s20, 1
      %s1528 = smul.addr %s1527, 8
      %s1529 = smul.addr %s1528, 8
      %s1530 = scalar_lea.vmem %s7, %s1529
      %p1531 = scmp.lt.s32.totalorder %s20, 1
      %s1532 = scalar_select %p1531, %s20, 1
      %s1533 = scalar_lea.vmem %s8, %s1532
      // Predicated region
      $region45: #{image_encoder_forward.9} parent=43 // pred_check
        %p1534 = pneg %p184
      $region46: #{image_encoder_forward.9} parent=43 // pred_check_branch
        %1536 = sbr.rel (%p1534) target = $region48
      $region47: #{image_encoder_forward.9} parent=43 // pred_region
        _
      $region48: #{image_encoder_forward.9} parent=43 // pred_fallthru
        _
      // Predicated region
      $region49: #{image_encoder_forward.9} parent=43 // pred_check
        %p1537 = pneg %p210
      $region50: #{image_encoder_forward.9} parent=43 // pred_check_branch
        %1539 = sbr.rel (%p1537) target = $region52
      $region51: #{image_encoder_forward.9} parent=43 // pred_region
        _
      $region52: #{image_encoder_forward.9} parent=43 // pred_fallthru
        _
      // Predicated region
      $region53: #{image_encoder_forward.9} parent=43 // pred_check
        %p1540 = pneg %p236
      $region54: #{image_encoder_forward.9} parent=43 // pred_check_branch
        %1542 = sbr.rel (%p1540) target = $region56
      $region55: #{image_encoder_forward.9} parent=43 // pred_region
        _
      $region56: #{image_encoder_forward.9} parent=43 // pred_fallthru
        _
    $region44: #{image_encoder_forward.9} parent=5 // pred_fallthru
      _
    %p1543 = scmp.le.s32.totalorder 2, %s15
    // Predicated region
    $region57: #{image_encoder_forward.9} parent=5 // pred_check
      %p1544 = pneg %p1543
    $region58: #{image_encoder_forward.9} parent=5 // pred_check_branch
      %1546 = sbr.rel (%p1544) target = $region60
    $region59: #{image_encoder_forward.9} parent=5 // pred_region
      %s1547 = ssub.s32 %s15, 2
      // Predicated region
      $region61: #{image_encoder_forward.9} parent=59 // pred_check
        %p1548 = pneg %p190
      $region62: #{image_encoder_forward.9} parent=59 // pred_check_branch
        %1550 = sbr.rel (%p1548) target = $region64
      $region63: #{image_encoder_forward.9} parent=59 // pred_region
        %p1551 = scmp.lt.s32.totalorder %s21, 1
        %s1552 = scalar_select %p1551, %s21, 1
        %s1553 = smul.addr %s1552, 8
        %s1554 = smul.addr %s1553, 8
        %s1555 = scalar_lea.vmem %s6, %s1554
      $region64: #{image_encoder_forward.9} parent=59 // pred_fallthru
        _
      // Predicated region
      $region65: #{image_encoder_forward.9} parent=59 // pred_check
        %p1556 = pneg %p216
      $region66: #{image_encoder_forward.9} parent=59 // pred_check_branch
        %1558 = sbr.rel (%p1556) target = $region68
      $region67: #{image_encoder_forward.9} parent=59 // pred_region
        %p1559 = scmp.lt.s32.totalorder %s21, 1
        %s1560 = scalar_select %p1559, %s21, 1
        %s1561 = smul.addr %s1560, 8
        %s1562 = smul.addr %s1561, 8
        %s1563 = scalar_lea.vmem %s7, %s1562
      $region68: #{image_encoder_forward.9} parent=59 // pred_fallthru
        _
      // Predicated region
      $region69: #{image_encoder_forward.9} parent=59 // pred_check
        %p1564 = pneg %p242
      $region70: #{image_encoder_forward.9} parent=59 // pred_check_branch
        %1566 = sbr.rel (%p1564) target = $region72
      $region71: #{image_encoder_forward.9} parent=59 // pred_region
        %p1567 = scmp.lt.s32.totalorder %s21, 1
        %s1568 = scalar_select %p1567, %s21, 1
        %s1569 = scalar_lea.vmem %s8, %s1568
      $region72: #{image_encoder_forward.9} parent=59 // pred_fallthru
        _
    $region60: #{image_encoder_forward.9} parent=5 // pred_fallthru
      _
  $region6: #{image_encoder_forward.9} parent=0 // loop_footer
    %s19 = sadd.s32 1, %s15
  $region7: #{image_encoder_forward.9} parent=0 // loop_footer_branch
    %14 = sbr.rel target = $region3
  $region8: #{image_encoder_forward.9} parent=0 // loop_exit
    _

// kernel: image_encoder_forward.10
$region0: #{image_encoder_forward.10}
  #allocation0 [shape = 'u32[]', space=smem, size = 0x4, offset = 0x4, fixed_abs, tag = 'smem constant byte address 0x4 - core index']
  #allocation1 [shape = 'u32[72,128]{1,0:T(1,128)}', space=vmem, size = 0x9000, scoped, tag = 'internal scratch']
  %s0 = inlined_call_operand.vmem [shape: bf16[256,864], index: 0, kind: input, shape index: {}]
  %s1 = inlined_call_operand.vmem [shape: bf16[864,128], index: 1, kind: input, shape index: {}]
  %s2 = inlined_call_operand.vmem [shape: f32[1,128], index: 2, kind: input, shape index: {}]
  %s3 = inlined_call_operand.vmem [shape: f32[256,128], index: 3, kind: output, shape index: {}]
  %s4 = sld [smem:[#allocation0]]
  $region22: #{image_encoder_forward.10} parent=0
    _
  %s6 = ssub.s32 1, %s4
  %s7 = scalar_select 0, %s6, %s4
  // Predicated region
  $region2: #{image_encoder_forward.10} parent=0 // pred_check
    _
  $region3: #{image_encoder_forward.10} parent=0 // pred_check_branch
    %9 = sbr.rel (0) target = $region5
  $region4: #{image_encoder_forward.10} parent=0 // pred_region
    _
  $region5: #{image_encoder_forward.10} parent=0 // pred_fallthru
    _
  // Predicated region
  $region6: #{image_encoder_forward.10} parent=0 // pred_check
    _
  $region7: #{image_encoder_forward.10} parent=0 // pred_check_branch
    %11 = sbr.rel (0) target = $region9
  $region8: #{image_encoder_forward.10} parent=0 // pred_region
    _
  $region9: #{image_encoder_forward.10} parent=0 // pred_fallthru
    _
  // Predicated region
  $region10: #{image_encoder_forward.10} parent=0 // pred_check
    _
  $region11: #{image_encoder_forward.10} parent=0 // pred_check_branch
    %13 = sbr.rel (0) target = $region13
  $region12: #{image_encoder_forward.10} parent=0 // pred_region
    _
  $region13: #{image_encoder_forward.10} parent=0 // pred_fallthru
    _
  %v15 = vld [vmem:[%s0] sm:$0xff]
  %v16 = vld [vmem:[%s0 + $0x8] sm:$0xff]
  %v17 = vld [vmem:[%s0 + $0x10] sm:$0xff]
  %v18 = vld [vmem:[%s0 + $0x18] sm:$0xf]
  %v19 = vld [vmem:[%s0 + $0x1c] sm:$0xff]
  %v20 = vld [vmem:[%s0 + $0x24] sm:$0xff]
  %v21 = vld [vmem:[%s0 + $0x2c] sm:$0xff]
  %v22 = vld [vmem:[%s0 + $0x34] sm:$0xf]
  %v23 = vld [vmem:[%s0 + $0x38] sm:$0xff]
  %v24 = vld [vmem:[%s0 + $0x40] sm:$0xff]
  %v25 = vld [vmem:[%s0 + $0x48] sm:$0xff]
  %v26 = vld [vmem:[%s0 + $0x50] sm:$0xf]
  %v27 = vld [vmem:[%s0 + $0x54] sm:$0xff]
  %v28 = vld [vmem:[%s0 + $0x5c] sm:$0xff]
  %v29 = vld [vmem:[%s0 + $0x64] sm:$0xff]
  %v30 = vld [vmem:[%s0 + $0x6c] sm:$0xf]
  %v31 = vld [vmem:[%s0 + $0x70] sm:$0xff]
  %v32 = vld [vmem:[%s0 + $0x78] sm:$0xff]
  %v33 = vld [vmem:[%s0 + $0x80] sm:$0xff]
  %v34 = vld [vmem:[%s0 + $0x88] sm:$0xf]
  %v35 = vld [vmem:[%s0 + $0x8c] sm:$0xff]
  %v36 = vld [vmem:[%s0 + $0x94] sm:$0xff]
  %v37 = vld [vmem:[%s0 + $0x9c] sm:$0xff]
  %v38 = vld [vmem:[%s0 + $0xa4] sm:$0xf]
  %v39 = vld [vmem:[%s0 + $0xa8] sm:$0xff]
  %v40 = vld [vmem:[%s0 + $0xb0] sm:$0xff]
  %v41 = vld [vmem:[%s0 + $0xb8] sm:$0xff]
  %v42 = vld [vmem:[%s0 + $0xc0] sm:$0xf]
  %v43 = vld [vmem:[%s0 + $0xc4] sm:$0xff]
  %v44 = vld [vmem:[%s0 + $0xcc] sm:$0xff]
  %v45 = vld [vmem:[%s0 + $0xd4] sm:$0xff]
  %v46 = vld [vmem:[%s0 + $0xdc] sm:$0xf]
  %v47 = vld [vmem:[%s0 + $0xe0] sm:$0xff]
  %v48 = vld [vmem:[%s0 + $0xe8] sm:$0xff]
  %v49 = vld [vmem:[%s0 + $0xf0] sm:$0xff]
  %v50 = vld [vmem:[%s0 + $0xf8] sm:$0xf]
  %v51 = vld [vmem:[%s0 + $0xfc] sm:$0xff]
  %v52 = vld [vmem:[%s0 + $0x104] sm:$0xff]
  %v53 = vld [vmem:[%s0 + $0x10c] sm:$0xff]
  %v54 = vld [vmem:[%s0 + $0x114] sm:$0xf]
  %v55 = vld [vmem:[%s0 + $0x118] sm:$0xff]
  %v56 = vld [vmem:[%s0 + $0x120] sm:$0xff]
  %v57 = vld [vmem:[%s0 + $0x128] sm:$0xff]
  %v58 = vld [vmem:[%s0 + $0x130] sm:$0xf]
  %v59 = vld [vmem:[%s0 + $0x134] sm:$0xff]
  %v60 = vld [vmem:[%s0 + $0x13c] sm:$0xff]
  %v61 = vld [vmem:[%s0 + $0x144] sm:$0xff]
  %v62 = vld [vmem:[%s0 + $0x14c] sm:$0xf]
  %v63 = vld [vmem:[%s0 + $0x150] sm:$0xff]
  %v64 = vld [vmem:[%s0 + $0x158] sm:$0xff]
  %v65 = vld [vmem:[%s0 + $0x160] sm:$0xff]
  %v66 = vld [vmem:[%s0 + $0x168] sm:$0xf]
  %v67 = vld [vmem:[%s0 + $0x16c] sm:$0xff]
  %v68 = vld [vmem:[%s0 + $0x174] sm:$0xff]
  %v69 = vld [vmem:[%s0 + $0x17c] sm:$0xff]
  %v70 = vld [vmem:[%s0 + $0x184] sm:$0xf]
  %v71 = vld [vmem:[%s0 + $0x188] sm:$0xff]
  %v72 = vld [vmem:[%s0 + $0x190] sm:$0xff]
  %v73 = vld [vmem:[%s0 + $0x198] sm:$0xff]
  %v74 = vld [vmem:[%s0 + $0x1a0] sm:$0xf]
  %v75 = vld [vmem:[%s0 + $0x1a4] sm:$0xff]
  %v76 = vld [vmem:[%s0 + $0x1ac] sm:$0xff]
  %v77 = vld [vmem:[%s0 + $0x1b4] sm:$0xff]
  %v78 = vld [vmem:[%s0 + $0x1bc] sm:$0xf]
  %v79 = vld [vmem:[%s0 + $0x1c0] sm:$0xff]
  %v80 = vld [vmem:[%s0 + $0x1c8] sm:$0xff]
  %v81 = vld [vmem:[%s0 + $0x1d0] sm:$0xff]
  %v82 = vld [vmem:[%s0 + $0x1d8] sm:$0xf]
  %v83 = vld [vmem:[%s0 + $0x1dc] sm:$0xff]
  %v84 = vld [vmem:[%s0 + $0x1e4] sm:$0xff]
  %v85 = vld [vmem:[%s0 + $0x1ec] sm:$0xff]
  %v86 = vld [vmem:[%s0 + $0x1f4] sm:$0xf]
  %v87 = vld [vmem:[%s0 + $0x1f8] sm:$0xff]
  %v88 = vld [vmem:[%s0 + $0x200] sm:$0xff]
  %v89 = vld [vmem:[%s0 + $0x208] sm:$0xff]
  %v90 = vld [vmem:[%s0 + $0x210] sm:$0xf]
  %v91 = vld [vmem:[%s0 + $0x214] sm:$0xff]
  %v92 = vld [vmem:[%s0 + $0x21c] sm:$0xff]
  %v93 = vld [vmem:[%s0 + $0x224] sm:$0xff]
  %v94 = vld [vmem:[%s0 + $0x22c] sm:$0xf]
  %v95 = vld [vmem:[%s0 + $0x230] sm:$0xff]
  %v96 = vld [vmem:[%s0 + $0x238] sm:$0xff]
  %v97 = vld [vmem:[%s0 + $0x240] sm:$0xff]
  %v98 = vld [vmem:[%s0 + $0x248] sm:$0xf]
  %v99 = vld [vmem:[%s0 + $0x24c] sm:$0xff]
  %v100 = vld [vmem:[%s0 + $0x254] sm:$0xff]
  %v101 = vld [vmem:[%s0 + $0x25c] sm:$0xff]
  %v102 = vld [vmem:[%s0 + $0x264] sm:$0xf]
  %v103 = vld [vmem:[%s0 + $0x268] sm:$0xff]
  %v104 = vld [vmem:[%s0 + $0x270] sm:$0xff]
  %v105 = vld [vmem:[%s0 + $0x278] sm:$0xff]
  %v106 = vld [vmem:[%s0 + $0x280] sm:$0xf]
  %v107 = vld [vmem:[%s0 + $0x284] sm:$0xff]
  %v108 = vld [vmem:[%s0 + $0x28c] sm:$0xff]
  %v109 = vld [vmem:[%s0 + $0x294] sm:$0xff]
  %v110 = vld [vmem:[%s0 + $0x29c] sm:$0xf]
  %v111 = vld [vmem:[%s0 + $0x2a0] sm:$0xff]
  %v112 = vld [vmem:[%s0 + $0x2a8] sm:$0xff]
  %v113 = vld [vmem:[%s0 + $0x2b0] sm:$0xff]
  %v114 = vld [vmem:[%s0 + $0x2b8] sm:$0xf]
  %v115 = vld [vmem:[%s0 + $0x2bc] sm:$0xff]
  %v116 = vld [vmem:[%s0 + $0x2c4] sm:$0xff]
  %v117 = vld [vmem:[%s0 + $0x2cc] sm:$0xff]
  %v118 = vld [vmem:[%s0 + $0x2d4] sm:$0xf]
  %v119 = vld [vmem:[%s0 + $0x2d8] sm:$0xff]
  %v120 = vld [vmem:[%s0 + $0x2e0] sm:$0xff]
  %v121 = vld [vmem:[%s0 + $0x2e8] sm:$0xff]
  %v122 = vld [vmem:[%s0 + $0x2f0] sm:$0xf]
  %v123 = vld [vmem:[%s0 + $0x2f4] sm:$0xff]
  %v124 = vld [vmem:[%s0 + $0x2fc] sm:$0xff]
  %v125 = vld [vmem:[%s0 + $0x304] sm:$0xff]
  %v126 = vld [vmem:[%s0 + $0x30c] sm:$0xf]
  %v127 = vld [vmem:[%s0 + $0x310] sm:$0xff]
  %v128 = vld [vmem:[%s0 + $0x318] sm:$0xff]
  %v129 = vld [vmem:[%s0 + $0x320] sm:$0xff]
  %v130 = vld [vmem:[%s0 + $0x328] sm:$0xf]
  %v131 = vld [vmem:[%s0 + $0x32c] sm:$0xff]
  %v132 = vld [vmem:[%s0 + $0x334] sm:$0xff]
  %v133 = vld [vmem:[%s0 + $0x33c] sm:$0xff]
  %v134 = vld [vmem:[%s0 + $0x344] sm:$0xf]
  %v135 = vld [vmem:[%s0 + $0x348] sm:$0xff]
  %v136 = vld [vmem:[%s0 + $0x350] sm:$0xff]
  %v137 = vld [vmem:[%s0 + $0x358] sm:$0xff]
  %v138 = vld [vmem:[%s0 + $0x360] sm:$0xf]
  %v139 = vld [vmem:[%s0 + $0x364] sm:$0xff]
  %v140 = vld [vmem:[%s0 + $0x36c] sm:$0xff]
  %v141 = vld [vmem:[%s0 + $0x374] sm:$0xff]
  %v142 = vld [vmem:[%s0 + $0x37c] sm:$0xf]
  %v143 = vld [vmem:[%s1] sm:$0xf]
  %v144 = vld [vmem:[%s1 + $0x4] sm:$0xf]
  %v145 = vld [vmem:[%s1 + $0x8] sm:$0xf]
  %v146 = vld [vmem:[%s1 + $0xc] sm:$0xf]
  %v147 = vld [vmem:[%s1 + $0x10] sm:$0xf]
  %v148 = vld [vmem:[%s1 + $0x14] sm:$0xf]
  %v149 = vld [vmem:[%s1 + $0x18] sm:$0xf]
  %v150 = vld [vmem:[%s1 + $0x1c] sm:$0xf]
  %v151 = vld [vmem:[%s1 + $0x20] sm:$0xf]
  %v152 = vld [vmem:[%s1 + $0x24] sm:$0xf]
  %v153 = vld [vmem:[%s1 + $0x28] sm:$0xf]
  %v154 = vld [vmem:[%s1 + $0x2c] sm:$0xf]
  %v155 = vld [vmem:[%s1 + $0x30] sm:$0xf]
  %v156 = vld [vmem:[%s1 + $0x34] sm:$0xf]
  %v157 = vld [vmem:[%s1 + $0x38] sm:$0xf]
  %v158 = vld [vmem:[%s1 + $0x3c] sm:$0xf]
  %v159 = vld [vmem:[%s1 + $0x40] sm:$0xf]
  %v160 = vld [vmem:[%s1 + $0x44] sm:$0xf]
  %v161 = vld [vmem:[%s1 + $0x48] sm:$0xf]
  %v162 = vld [vmem:[%s1 + $0x4c] sm:$0xf]
  %v163 = vld [vmem:[%s1 + $0x50] sm:$0xf]
  %v164 = vld [vmem:[%s1 + $0x54] sm:$0xf]
  %v165 = vld [vmem:[%s1 + $0x58] sm:$0xf]
  %v166 = vld [vmem:[%s1 + $0x5c] sm:$0xf]
  %v167 = vld [vmem:[%s1 + $0x60] sm:$0xf]
  %v168 = vld [vmem:[%s1 + $0x64] sm:$0xf]
  %v169 = vld [vmem:[%s1 + $0x68] sm:$0xf]
  %v170 = vld [vmem:[%s1 + $0x6c] sm:$0xf]
  %v171 = vld [vmem:[%s1 + $0x70] sm:$0xf]
  %v172 = vld [vmem:[%s1 + $0x74] sm:$0xf]
  %v173 = vld [vmem:[%s1 + $0x78] sm:$0xf]
  %v174 = vld [vmem:[%s1 + $0x7c] sm:$0xf]
  %v175 = vld [vmem:[%s1 + $0x80] sm:$0xf]
  %v176 = vld [vmem:[%s1 + $0x84] sm:$0xf]
  %v177 = vld [vmem:[%s1 + $0x88] sm:$0xf]
  %v178 = vld [vmem:[%s1 + $0x8c] sm:$0xf]
  %v179 = vld [vmem:[%s1 + $0x90] sm:$0xf]
  %v180 = vld [vmem:[%s1 + $0x94] sm:$0xf]
  %v181 = vld [vmem:[%s1 + $0x98] sm:$0xf]
  %v182 = vld [vmem:[%s1 + $0x9c] sm:$0xf]
  %v183 = vld [vmem:[%s1 + $0xa0] sm:$0xf]
  %v184 = vld [vmem:[%s1 + $0xa4] sm:$0xf]
  %v185 = vld [vmem:[%s1 + $0xa8] sm:$0xf]
  %v186 = vld [vmem:[%s1 + $0xac] sm:$0xf]
  %v187 = vld [vmem:[%s1 + $0xb0] sm:$0xf]
  %v188 = vld [vmem:[%s1 + $0xb4] sm:$0xf]
  %v189 = vld [vmem:[%s1 + $0xb8] sm:$0xf]
  %v190 = vld [vmem:[%s1 + $0xbc] sm:$0xf]
  %v191 = vld [vmem:[%s1 + $0xc0] sm:$0xf]
  %v192 = vld [vmem:[%s1 + $0xc4] sm:$0xf]
  %v193 = vld [vmem:[%s1 + $0xc8] sm:$0xf]
  %v194 = vld [vmem:[%s1 + $0xcc] sm:$0xf]
  %v195 = vld [vmem:[%s1 + $0xd0] sm:$0xf]
  %v196 = vld [vmem:[%s1 + $0xd4] sm:$0xf]
  %v197 = vld [vmem:[%s1 + $0xd8] sm:$0xf]
  %v198 = vld [vmem:[%s1 + $0xdc] sm:$0xf]
  %v199 = vld [vmem:[%s1 + $0xe0] sm:$0xf]
  %v200 = vld [vmem:[%s1 + $0xe4] sm:$0xf]
  %v201 = vld [vmem:[%s1 + $0xe8] sm:$0xf]
  %v202 = vld [vmem:[%s1 + $0xec] sm:$0xf]
  %v203 = vld [vmem:[%s1 + $0xf0] sm:$0xf]
  %v204 = vld [vmem:[%s1 + $0xf4] sm:$0xf]
  %v205 = vld [vmem:[%s1 + $0xf8] sm:$0xf]
  %v206 = vld [vmem:[%s1 + $0xfc] sm:$0xf]
  %v207 = vld [vmem:[%s1 + $0x100] sm:$0xf]
  %v208 = vld [vmem:[%s1 + $0x104] sm:$0xf]
  %v209 = vld [vmem:[%s1 + $0x108] sm:$0xf]
  %v210 = vld [vmem:[%s1 + $0x10c] sm:$0xf]
  %v211 = vld [vmem:[%s1 + $0x110] sm:$0xf]
  %v212 = vld [vmem:[%s1 + $0x114] sm:$0xf]
  %v213 = vld [vmem:[%s1 + $0x118] sm:$0xf]
  %v214 = vld [vmem:[%s1 + $0x11c] sm:$0xf]
  %v215 = vld [vmem:[%s1 + $0x120] sm:$0xf]
  %v216 = vld [vmem:[%s1 + $0x124] sm:$0xf]
  %v217 = vld [vmem:[%s1 + $0x128] sm:$0xf]
  %v218 = vld [vmem:[%s1 + $0x12c] sm:$0xf]
  %v219 = vld [vmem:[%s1 + $0x130] sm:$0xf]
  %v220 = vld [vmem:[%s1 + $0x134] sm:$0xf]
  %v221 = vld [vmem:[%s1 + $0x138] sm:$0xf]
  %v222 = vld [vmem:[%s1 + $0x13c] sm:$0xf]
  %v223 = vld [vmem:[%s1 + $0x140] sm:$0xf]
  %v224 = vld [vmem:[%s1 + $0x144] sm:$0xf]
  %v225 = vld [vmem:[%s1 + $0x148] sm:$0xf]
  %v226 = vld [vmem:[%s1 + $0x14c] sm:$0xf]
  %v227 = vld [vmem:[%s1 + $0x150] sm:$0xf]
  %v228 = vld [vmem:[%s1 + $0x154] sm:$0xf]
  %v229 = vld [vmem:[%s1 + $0x158] sm:$0xf]
  %v230 = vld [vmem:[%s1 + $0x15c] sm:$0xf]
  %v231 = vld [vmem:[%s1 + $0x160] sm:$0xf]
  %v232 = vld [vmem:[%s1 + $0x164] sm:$0xf]
  %v233 = vld [vmem:[%s1 + $0x168] sm:$0xf]
  %v234 = vld [vmem:[%s1 + $0x16c] sm:$0xf]
  %v235 = vld [vmem:[%s1 + $0x170] sm:$0xf]
  %v236 = vld [vmem:[%s1 + $0x174] sm:$0xf]
  %v237 = vld [vmem:[%s1 + $0x178] sm:$0xf]
  %v238 = vld [vmem:[%s1 + $0x17c] sm:$0xf]
  %v239 = vld [vmem:[%s1 + $0x180] sm:$0xf]
  %v240 = vld [vmem:[%s1 + $0x184] sm:$0xf]
  %v241 = vld [vmem:[%s1 + $0x188] sm:$0xf]
  %v242 = vld [vmem:[%s1 + $0x18c] sm:$0xf]
  %v243 = vld [vmem:[%s1 + $0x190] sm:$0xf]
  %v244 = vld [vmem:[%s1 + $0x194] sm:$0xf]
  %v245 = vld [vmem:[%s1 + $0x198] sm:$0xf]
  %v246 = vld [vmem:[%s1 + $0x19c] sm:$0xf]
  %v247 = vld [vmem:[%s1 + $0x1a0] sm:$0xf]
  %v248 = vld [vmem:[%s1 + $0x1a4] sm:$0xf]
  %v249 = vld [vmem:[%s1 + $0x1a8] sm:$0xf]
  %v250 = vld [vmem:[%s1 + $0x1ac] sm:$0xf]
  %v251 = vld [vmem:[%s2] sm:$0x1]
  %v253 = vperm.slane %v251, 0
  %v383 = vunpack.c.l.b16 %v15
  %v384 = vunpack.c.h.b16 %v15
  %v385 = vunpack.c.l.b16 %v16
  %v386 = vunpack.c.h.b16 %v16
  %v387 = vunpack.c.l.b16 %v17
  %v388 = vunpack.c.h.b16 %v17
  %v389 = vunpack.c.l.b16 %v18
  %v390 = vunpack.c.l.b16 %v19
  %v391 = vunpack.c.h.b16 %v19
  %v392 = vunpack.c.l.b16 %v20
  %v393 = vunpack.c.h.b16 %v20
  %v394 = vunpack.c.l.b16 %v21
  %v395 = vunpack.c.h.b16 %v21
  %v396 = vunpack.c.l.b16 %v22
  %v397 = vunpack.c.l.b16 %v23
  %v398 = vunpack.c.h.b16 %v23
  %v399 = vunpack.c.l.b16 %v24
  %v400 = vunpack.c.h.b16 %v24
  %v401 = vunpack.c.l.b16 %v25
  %v402 = vunpack.c.h.b16 %v25
  %v403 = vunpack.c.l.b16 %v26
  %v404 = vunpack.c.l.b16 %v27
  %v405 = vunpack.c.h.b16 %v27
  %v406 = vunpack.c.l.b16 %v28
  %v407 = vunpack.c.h.b16 %v28
  %v408 = vunpack.c.l.b16 %v29
  %v409 = vunpack.c.h.b16 %v29
  %v410 = vunpack.c.l.b16 %v30
  %v411 = vunpack.c.l.b16 %v31
  %v412 = vunpack.c.h.b16 %v31
  %v413 = vunpack.c.l.b16 %v32
  %v414 = vunpack.c.h.b16 %v32
  %v415 = vunpack.c.l.b16 %v33
  %v416 = vunpack.c.h.b16 %v33
  %v417 = vunpack.c.l.b16 %v34
  %v418 = vunpack.c.l.b16 %v35
  %v419 = vunpack.c.h.b16 %v35
  %v420 = vunpack.c.l.b16 %v36
  %v421 = vunpack.c.h.b16 %v36
  %v422 = vunpack.c.l.b16 %v37
  %v423 = vunpack.c.h.b16 %v37
  %v424 = vunpack.c.l.b16 %v38
  %v425 = vunpack.c.l.b16 %v39
  %v426 = vunpack.c.h.b16 %v39
  %v427 = vunpack.c.l.b16 %v40
  %v428 = vunpack.c.h.b16 %v40
  %v429 = vunpack.c.l.b16 %v41
  %v430 = vunpack.c.h.b16 %v41
  %v431 = vunpack.c.l.b16 %v42
  %v432 = vunpack.c.l.b16 %v43
  %v433 = vunpack.c.h.b16 %v43
  %v434 = vunpack.c.l.b16 %v44
  %v435 = vunpack.c.h.b16 %v44
  %v436 = vunpack.c.l.b16 %v45
  %v437 = vunpack.c.h.b16 %v45
  %v438 = vunpack.c.l.b16 %v46
  %v439 = vunpack.c.l.b16 %v47
  %v440 = vunpack.c.h.b16 %v47
  %v441 = vunpack.c.l.b16 %v48
  %v442 = vunpack.c.h.b16 %v48
  %v443 = vunpack.c.l.b16 %v49
  %v444 = vunpack.c.h.b16 %v49
  %v445 = vunpack.c.l.b16 %v50
  %v446 = vunpack.c.l.b16 %v51
  %v447 = vunpack.c.h.b16 %v51
  %v448 = vunpack.c.l.b16 %v52
  %v449 = vunpack.c.h.b16 %v52
  %v450 = vunpack.c.l.b16 %v53
  %v451 = vunpack.c.h.b16 %v53
  %v452 = vunpack.c.l.b16 %v54
  %v453 = vunpack.c.l.b16 %v55
  %v454 = vunpack.c.h.b16 %v55
  %v455 = vunpack.c.l.b16 %v56
  %v456 = vunpack.c.h.b16 %v56
  %v457 = vunpack.c.l.b16 %v57
  %v458 = vunpack.c.h.b16 %v57
  %v459 = vunpack.c.l.b16 %v58
  %v460 = vunpack.c.l.b16 %v59
  %v461 = vunpack.c.h.b16 %v59
  %v462 = vunpack.c.l.b16 %v60
  %v463 = vunpack.c.h.b16 %v60
  %v464 = vunpack.c.l.b16 %v61
  %v465 = vunpack.c.h.b16 %v61
  %v466 = vunpack.c.l.b16 %v62
  %v467 = vunpack.c.l.b16 %v63
  %v468 = vunpack.c.h.b16 %v63
  %v469 = vunpack.c.l.b16 %v64
  %v470 = vunpack.c.h.b16 %v64
  %v471 = vunpack.c.l.b16 %v65
  %v472 = vunpack.c.h.b16 %v65
  %v473 = vunpack.c.l.b16 %v66
  %v474 = vunpack.c.l.b16 %v67
  %v475 = vunpack.c.h.b16 %v67
  %v476 = vunpack.c.l.b16 %v68
  %v477 = vunpack.c.h.b16 %v68
  %v478 = vunpack.c.l.b16 %v69
  %v479 = vunpack.c.h.b16 %v69
  %v480 = vunpack.c.l.b16 %v70
  %v481 = vunpack.c.l.b16 %v71
  %v482 = vunpack.c.h.b16 %v71
  %v483 = vunpack.c.l.b16 %v72
  %v484 = vunpack.c.h.b16 %v72
  %v485 = vunpack.c.l.b16 %v73
  %v486 = vunpack.c.h.b16 %v73
  %v487 = vunpack.c.l.b16 %v74
  %v488 = vunpack.c.l.b16 %v75
  %v489 = vunpack.c.h.b16 %v75
  %v490 = vunpack.c.l.b16 %v76
  %v491 = vunpack.c.h.b16 %v76
  %v492 = vunpack.c.l.b16 %v77
  %v493 = vunpack.c.h.b16 %v77
  %v494 = vunpack.c.l.b16 %v78
  %v495 = vunpack.c.l.b16 %v79
  %v496 = vunpack.c.h.b16 %v79
  %v497 = vunpack.c.l.b16 %v80
  %v498 = vunpack.c.h.b16 %v80
  %v499 = vunpack.c.l.b16 %v81
  %v500 = vunpack.c.h.b16 %v81
  %v501 = vunpack.c.l.b16 %v82
  %v502 = vunpack.c.l.b16 %v83
  %v503 = vunpack.c.h.b16 %v83
  %v504 = vunpack.c.l.b16 %v84
  %v505 = vunpack.c.h.b16 %v84
  %v506 = vunpack.c.l.b16 %v85
  %v507 = vunpack.c.h.b16 %v85
  %v508 = vunpack.c.l.b16 %v86
  %v509 = vunpack.c.l.b16 %v87
  %v510 = vunpack.c.h.b16 %v87
  %v511 = vunpack.c.l.b16 %v88
  %v512 = vunpack.c.h.b16 %v88
  %v513 = vunpack.c.l.b16 %v89
  %v514 = vunpack.c.h.b16 %v89
  %v515 = vunpack.c.l.b16 %v90
  %v516 = vunpack.c.l.b16 %v91
  %v517 = vunpack.c.h.b16 %v91
  %v518 = vunpack.c.l.b16 %v92
  %v519 = vunpack.c.h.b16 %v92
  %v520 = vunpack.c.l.b16 %v93
  %v521 = vunpack.c.h.b16 %v93
  %v522 = vunpack.c.l.b16 %v94
  %v523 = vunpack.c.l.b16 %v95
  %v524 = vunpack.c.h.b16 %v95
  %v525 = vunpack.c.l.b16 %v96
  %v526 = vunpack.c.h.b16 %v96
  %v527 = vunpack.c.l.b16 %v97
  %v528 = vunpack.c.h.b16 %v97
  %v529 = vunpack.c.l.b16 %v98
  %v530 = vunpack.c.l.b16 %v99
  %v531 = vunpack.c.h.b16 %v99
  %v532 = vunpack.c.l.b16 %v100
  %v533 = vunpack.c.h.b16 %v100
  %v534 = vunpack.c.l.b16 %v101
  %v535 = vunpack.c.h.b16 %v101
  %v536 = vunpack.c.l.b16 %v102
  %v537 = vunpack.c.l.b16 %v103
  %v538 = vunpack.c.h.b16 %v103
  %v539 = vunpack.c.l.b16 %v104
  %v540 = vunpack.c.h.b16 %v104
  %v541 = vunpack.c.l.b16 %v105
  %v542 = vunpack.c.h.b16 %v105
  %v543 = vunpack.c.l.b16 %v106
  %v544 = vunpack.c.l.b16 %v107
  %v545 = vunpack.c.h.b16 %v107
  %v546 = vunpack.c.l.b16 %v108
  %v547 = vunpack.c.h.b16 %v108
  %v548 = vunpack.c.l.b16 %v109
  %v549 = vunpack.c.h.b16 %v109
  %v550 = vunpack.c.l.b16 %v110
  %v551 = vunpack.c.l.b16 %v111
  %v552 = vunpack.c.h.b16 %v111
  %v553 = vunpack.c.l.b16 %v112
  %v554 = vunpack.c.h.b16 %v112
  %v555 = vunpack.c.l.b16 %v113
  %v556 = vunpack.c.h.b16 %v113
  %v557 = vunpack.c.l.b16 %v114
  %v558 = vunpack.c.l.b16 %v115
  %v559 = vunpack.c.h.b16 %v115
  %v560 = vunpack.c.l.b16 %v116
  %v561 = vunpack.c.h.b16 %v116
  %v562 = vunpack.c.l.b16 %v117
  %v563 = vunpack.c.h.b16 %v117
  %v564 = vunpack.c.l.b16 %v118
  %v565 = vunpack.c.l.b16 %v119
  %v566 = vunpack.c.h.b16 %v119
  %v567 = vunpack.c.l.b16 %v120
  %v568 = vunpack.c.h.b16 %v120
  %v569 = vunpack.c.l.b16 %v121
  %v570 = vunpack.c.h.b16 %v121
  %v571 = vunpack.c.l.b16 %v122
  %v572 = vunpack.c.l.b16 %v123
  %v573 = vunpack.c.h.b16 %v123
  %v574 = vunpack.c.l.b16 %v124
  %v575 = vunpack.c.h.b16 %v124
  %v576 = vunpack.c.l.b16 %v125
  %v577 = vunpack.c.h.b16 %v125
  %v578 = vunpack.c.l.b16 %v126
  %v579 = vunpack.c.l.b16 %v127
  %v580 = vunpack.c.h.b16 %v127
  %v581 = vunpack.c.l.b16 %v128
  %v582 = vunpack.c.h.b16 %v128
  %v583 = vunpack.c.l.b16 %v129
  %v584 = vunpack.c.h.b16 %v129
  %v585 = vunpack.c.l.b16 %v130
  %v586 = vunpack.c.l.b16 %v131
  %v587 = vunpack.c.h.b16 %v131
  %v588 = vunpack.c.l.b16 %v132
  %v589 = vunpack.c.h.b16 %v132
  %v590 = vunpack.c.l.b16 %v133
  %v591 = vunpack.c.h.b16 %v133
  %v592 = vunpack.c.l.b16 %v134
  %v593 = vunpack.c.l.b16 %v135
  %v594 = vunpack.c.h.b16 %v135
  %v595 = vunpack.c.l.b16 %v136
  %v596 = vunpack.c.h.b16 %v136
  %v597 = vunpack.c.l.b16 %v137
  %v598 = vunpack.c.h.b16 %v137
  %v599 = vunpack.c.l.b16 %v138
  %v600 = vunpack.c.l.b16 %v139
  %v601 = vunpack.c.h.b16 %v139
  %v602 = vunpack.c.l.b16 %v140
  %v603 = vunpack.c.h.b16 %v140
  %v604 = vunpack.c.l.b16 %v141
  %v605 = vunpack.c.h.b16 %v141
  %v606 = vunpack.c.l.b16 %v142
  %v607 = vpack.c.b16 %v390, %v383
  %v608 = vpack.c.b16 %v391, %v384
  %v609 = vpack.c.b16 %v392, %v385
  %v610 = vpack.c.b16 %v393, %v386
  %v611 = vpack.c.b16 %v394, %v387
  %v612 = vpack.c.b16 %v395, %v388
  %v613 = vpack.c.b16 %v396, %v389
  %v614 = vpack.c.b16 %v404, %v397
  %v615 = vpack.c.b16 %v405, %v398
  %v616 = vpack.c.b16 %v406, %v399
  %v617 = vpack.c.b16 %v407, %v400
  %v618 = vpack.c.b16 %v408, %v401
  %v619 = vpack.c.b16 %v409, %v402
  %v620 = vpack.c.b16 %v410, %v403
  %v621 = vpack.c.b16 %v418, %v411
  %v622 = vpack.c.b16 %v419, %v412
  %v623 = vpack.c.b16 %v420, %v413
  %v624 = vpack.c.b16 %v421, %v414
  %v625 = vpack.c.b16 %v422, %v415
  %v626 = vpack.c.b16 %v423, %v416
  %v627 = vpack.c.b16 %v424, %v417
  %v628 = vpack.c.b16 %v432, %v425
  %v629 = vpack.c.b16 %v433, %v426
  %v630 = vpack.c.b16 %v434, %v427
  %v631 = vpack.c.b16 %v435, %v428
  %v632 = vpack.c.b16 %v436, %v429
  %v633 = vpack.c.b16 %v437, %v430
  %v634 = vpack.c.b16 %v438, %v431
  %v635 = vpack.c.b16 %v446, %v439
  %v636 = vpack.c.b16 %v447, %v440
  %v637 = vpack.c.b16 %v448, %v441
  %v638 = vpack.c.b16 %v449, %v442
  %v639 = vpack.c.b16 %v450, %v443
  %v640 = vpack.c.b16 %v451, %v444
  %v641 = vpack.c.b16 %v452, %v445
  %v642 = vpack.c.b16 %v460, %v453
  %v643 = vpack.c.b16 %v461, %v454
  %v644 = vpack.c.b16 %v462, %v455
  %v645 = vpack.c.b16 %v463, %v456
  %v646 = vpack.c.b16 %v464, %v457
  %v647 = vpack.c.b16 %v465, %v458
  %v648 = vpack.c.b16 %v466, %v459
  %v649 = vpack.c.b16 %v474, %v467
  %v650 = vpack.c.b16 %v475, %v468
  %v651 = vpack.c.b16 %v476, %v469
  %v652 = vpack.c.b16 %v477, %v470
  %v653 = vpack.c.b16 %v478, %v471
  %v654 = vpack.c.b16 %v479, %v472
  %v655 = vpack.c.b16 %v480, %v473
  %v656 = vpack.c.b16 %v488, %v481
  %v657 = vpack.c.b16 %v489, %v482
  %v658 = vpack.c.b16 %v490, %v483
  %v659 = vpack.c.b16 %v491, %v484
  %v660 = vpack.c.b16 %v492, %v485
  %v661 = vpack.c.b16 %v493, %v486
  %v662 = vpack.c.b16 %v494, %v487
  %v663 = vpack.c.b16 %v502, %v495
  %v664 = vpack.c.b16 %v503, %v496
  %v665 = vpack.c.b16 %v504, %v497
  %v666 = vpack.c.b16 %v505, %v498
  %v667 = vpack.c.b16 %v506, %v499
  %v668 = vpack.c.b16 %v507, %v500
  %v669 = vpack.c.b16 %v508, %v501
  %v670 = vpack.c.b16 %v516, %v509
  %v671 = vpack.c.b16 %v517, %v510
  %v672 = vpack.c.b16 %v518, %v511
  %v673 = vpack.c.b16 %v519, %v512
  %v674 = vpack.c.b16 %v520, %v513
  %v675 = vpack.c.b16 %v521, %v514
  %v676 = vpack.c.b16 %v522, %v515
  %v677 = vpack.c.b16 %v530, %v523
  %v678 = vpack.c.b16 %v531, %v524
  %v679 = vpack.c.b16 %v532, %v525
  %v680 = vpack.c.b16 %v533, %v526
  %v681 = vpack.c.b16 %v534, %v527
  %v682 = vpack.c.b16 %v535, %v528
  %v683 = vpack.c.b16 %v536, %v529
  %v684 = vpack.c.b16 %v544, %v537
  %v685 = vpack.c.b16 %v545, %v538
  %v686 = vpack.c.b16 %v546, %v539
  %v687 = vpack.c.b16 %v547, %v540
  %v688 = vpack.c.b16 %v548, %v541
  %v689 = vpack.c.b16 %v549, %v542
  %v690 = vpack.c.b16 %v550, %v543
  %v691 = vpack.c.b16 %v558, %v551
  %v692 = vpack.c.b16 %v559, %v552
  %v693 = vpack.c.b16 %v560, %v553
  %v694 = vpack.c.b16 %v561, %v554
  %v695 = vpack.c.b16 %v562, %v555
  %v696 = vpack.c.b16 %v563, %v556
  %v697 = vpack.c.b16 %v564, %v557
  %v698 = vpack.c.b16 %v572, %v565
  %v699 = vpack.c.b16 %v573, %v566
  %v700 = vpack.c.b16 %v574, %v567
  %v701 = vpack.c.b16 %v575, %v568
  %v702 = vpack.c.b16 %v576, %v569
  %v703 = vpack.c.b16 %v577, %v570
  %v704 = vpack.c.b16 %v578, %v571
  %v705 = vpack.c.b16 %v586, %v579
  %v706 = vpack.c.b16 %v587, %v580
  %v707 = vpack.c.b16 %v588, %v581
  %v708 = vpack.c.b16 %v589, %v582
  %v709 = vpack.c.b16 %v590, %v583
  %v710 = vpack.c.b16 %v591, %v584
  %v711 = vpack.c.b16 %v592, %v585
  %v712 = vpack.c.b16 %v600, %v593
  %v713 = vpack.c.b16 %v601, %v594
  %v714 = vpack.c.b16 %v602, %v595
  %v715 = vpack.c.b16 %v603, %v596
  %v716 = vpack.c.b16 %v604, %v597
  %v717 = vpack.c.b16 %v605, %v598
  %v718 = vpack.c.b16 %v606, %v599
  %v923 = vunpack.c.l.b16 %v143
  %v924 = vunpack.c.l.b16 %v144
  %v925 = vunpack.c.l.b16 %v145
  %v926 = vunpack.c.l.b16 %v146
  %v927 = vunpack.c.l.b16 %v147
  %v928 = vunpack.c.l.b16 %v148
  %v929 = vunpack.c.l.b16 %v149
  %v930 = vunpack.c.l.b16 %v150
  %v931 = vunpack.c.l.b16 %v151
  %v932 = vunpack.c.l.b16 %v152
  %v933 = vunpack.c.l.b16 %v153
  %v934 = vunpack.c.l.b16 %v154
  %v935 = vunpack.c.l.b16 %v155
  %v936 = vunpack.c.l.b16 %v156
  %v937 = vunpack.c.l.b16 %v157
  %v938 = vunpack.c.l.b16 %v158
  %v939 = vunpack.c.l.b16 %v159
  %v940 = vunpack.c.l.b16 %v160
  %v941 = vunpack.c.l.b16 %v161
  %v942 = vunpack.c.l.b16 %v162
  %v943 = vunpack.c.l.b16 %v163
  %v944 = vunpack.c.l.b16 %v164
  %v945 = vunpack.c.l.b16 %v165
  %v946 = vunpack.c.l.b16 %v166
  %v947 = vunpack.c.l.b16 %v167
  %v948 = vunpack.c.l.b16 %v168
  %v949 = vunpack.c.l.b16 %v169
  %v950 = vunpack.c.l.b16 %v170
  %v951 = vunpack.c.l.b16 %v171
  %v952 = vunpack.c.l.b16 %v172
  %v953 = vunpack.c.l.b16 %v173
  %v954 = vunpack.c.l.b16 %v174
  %v955 = vunpack.c.l.b16 %v175
  %v956 = vunpack.c.l.b16 %v176
  %v957 = vunpack.c.l.b16 %v177
  %v958 = vunpack.c.l.b16 %v178
  %v959 = vunpack.c.l.b16 %v179
  %v960 = vunpack.c.l.b16 %v180
  %v961 = vunpack.c.l.b16 %v181
  %v962 = vunpack.c.l.b16 %v182
  %v963 = vunpack.c.l.b16 %v183
  %v964 = vunpack.c.l.b16 %v184
  %v965 = vunpack.c.l.b16 %v185
  %v966 = vunpack.c.l.b16 %v186
  %v967 = vunpack.c.l.b16 %v187
  %v968 = vunpack.c.l.b16 %v188
  %v969 = vunpack.c.l.b16 %v189
  %v970 = vunpack.c.l.b16 %v190
  %v971 = vunpack.c.l.b16 %v191
  %v972 = vunpack.c.l.b16 %v192
  %v973 = vunpack.c.l.b16 %v193
  %v974 = vunpack.c.l.b16 %v194
  %v975 = vunpack.c.l.b16 %v195
  %v976 = vunpack.c.l.b16 %v196
  %v977 = vunpack.c.l.b16 %v197
  %v978 = vunpack.c.l.b16 %v198
  %v979 = vunpack.c.l.b16 %v199
  %v980 = vunpack.c.l.b16 %v200
  %v981 = vunpack.c.l.b16 %v201
  %v982 = vunpack.c.l.b16 %v202
  %v983 = vunpack.c.l.b16 %v203
  %v984 = vunpack.c.l.b16 %v204
  %v985 = vunpack.c.l.b16 %v205
  %v986 = vunpack.c.l.b16 %v206
  %v987 = vunpack.c.l.b16 %v207
  %v988 = vunpack.c.l.b16 %v208
  %v989 = vunpack.c.l.b16 %v209
  %v990 = vunpack.c.l.b16 %v210
  %v991 = vunpack.c.l.b16 %v211
  %v992 = vunpack.c.l.b16 %v212
  %v993 = vunpack.c.l.b16 %v213
  %v994 = vunpack.c.l.b16 %v214
  %v995 = vunpack.c.l.b16 %v215
  %v996 = vunpack.c.l.b16 %v216
  %v997 = vunpack.c.l.b16 %v217
  %v998 = vunpack.c.l.b16 %v218
  %v999 = vunpack.c.l.b16 %v219
  %v1000 = vunpack.c.l.b16 %v220
  %v1001 = vunpack.c.l.b16 %v221
  %v1002 = vunpack.c.l.b16 %v222
  %v1003 = vunpack.c.l.b16 %v223
  %v1004 = vunpack.c.l.b16 %v224
  %v1005 = vunpack.c.l.b16 %v225
  %v1006 = vunpack.c.l.b16 %v226
  %v1007 = vunpack.c.l.b16 %v227
  %v1008 = vunpack.c.l.b16 %v228
  %v1009 = vunpack.c.l.b16 %v229
  %v1010 = vunpack.c.l.b16 %v230
  %v1011 = vunpack.c.l.b16 %v231
  %v1012 = vunpack.c.l.b16 %v232
  %v1013 = vunpack.c.l.b16 %v233
  %v1014 = vunpack.c.l.b16 %v234
  %v1015 = vunpack.c.l.b16 %v235
  %v1016 = vunpack.c.l.b16 %v236
  %v1017 = vunpack.c.l.b16 %v237
  %v1018 = vunpack.c.l.b16 %v238
  %v1019 = vunpack.c.l.b16 %v239
  %v1020 = vunpack.c.l.b16 %v240
  %v1021 = vunpack.c.l.b16 %v241
  %v1022 = vunpack.c.l.b16 %v242
  %v1023 = vunpack.c.l.b16 %v243
  %v1024 = vunpack.c.l.b16 %v244
  %v1025 = vunpack.c.l.b16 %v245
  %v1026 = vunpack.c.l.b16 %v246
  %v1027 = vunpack.c.l.b16 %v247
  %v1028 = vunpack.c.l.b16 %v248
  %v1029 = vunpack.c.l.b16 %v249
  %v1030 = vunpack.c.l.b16 %v250
  %v1031 = vpack.c.b16 %v924, %v923
  %v1032 = vpack.c.b16 %v926, %v925
  %v1033 = vpack.c.b16 %v928, %v927
  %v1034 = vpack.c.b16 %v930, %v929
  %v1035 = vpack.c.b16 %v932, %v931
  %v1036 = vpack.c.b16 %v934, %v933
  %v1037 = vpack.c.b16 %v936, %v935
  %v1038 = vpack.c.b16 %v938, %v937
  %v1039 = vpack.c.b16 %v940, %v939
  %v1040 = vpack.c.b16 %v942, %v941
  %v1041 = vpack.c.b16 %v944, %v943
  %v1042 = vpack.c.b16 %v946, %v945
  %v1043 = vpack.c.b16 %v948, %v947
  %v1044 = vpack.c.b16 %v950, %v949
  %v1045 = vpack.c.b16 %v952, %v951
  %v1046 = vpack.c.b16 %v954, %v953
  %v1047 = vpack.c.b16 %v956, %v955
  %v1048 = vpack.c.b16 %v958, %v957
  %v1049 = vpack.c.b16 %v960, %v959
  %v1050 = vpack.c.b16 %v962, %v961
  %v1051 = vpack.c.b16 %v964, %v963
  %v1052 = vpack.c.b16 %v966, %v965
  %v1053 = vpack.c.b16 %v968, %v967
  %v1054 = vpack.c.b16 %v970, %v969
  %v1055 = vpack.c.b16 %v972, %v971
  %v1056 = vpack.c.b16 %v974, %v973
  %v1057 = vpack.c.b16 %v976, %v975
  %v1058 = vpack.c.b16 %v978, %v977
  %v1059 = vpack.c.b16 %v980, %v979
  %v1060 = vpack.c.b16 %v982, %v981
  %v1061 = vpack.c.b16 %v984, %v983
  %v1062 = vpack.c.b16 %v986, %v985
  %v1063 = vpack.c.b16 %v988, %v987
  %v1064 = vpack.c.b16 %v990, %v989
  %v1065 = vpack.c.b16 %v992, %v991
  %v1066 = vpack.c.b16 %v994, %v993
  %v1067 = vpack.c.b16 %v996, %v995
  %v1068 = vpack.c.b16 %v998, %v997
  %v1069 = vpack.c.b16 %v1000, %v999
  %v1070 = vpack.c.b16 %v1002, %v1001
  %v1071 = vpack.c.b16 %v1004, %v1003
  %v1072 = vpack.c.b16 %v1006, %v1005
  %v1073 = vpack.c.b16 %v1008, %v1007
  %v1074 = vpack.c.b16 %v1010, %v1009
  %v1075 = vpack.c.b16 %v1012, %v1011
  %v1076 = vpack.c.b16 %v1014, %v1013
  %v1077 = vpack.c.b16 %v1016, %v1015
  %v1078 = vpack.c.b16 %v1018, %v1017
  %v1079 = vpack.c.b16 %v1020, %v1019
  %v1080 = vpack.c.b16 %v1022, %v1021
  %v1081 = vpack.c.b16 %v1024, %v1023
  %v1082 = vpack.c.b16 %v1026, %v1025
  %v1083 = vpack.c.b16 %v1028, %v1027
  %v1084 = vpack.c.b16 %v1030, %v1029
  %vm1139 = vcmask 785408
  %v1141 = vsel %vm1139, %v613, 0
  %v1144 = vsel %vm1139, %v620, 0
  %v1147 = vsel %vm1139, %v627, 0
  %v1150 = vsel %vm1139, %v634, 0
  %v1153 = vsel %vm1139, %v641, 0
  %v1156 = vsel %vm1139, %v648, 0
  %v1159 = vsel %vm1139, %v655, 0
  %v1162 = vsel %vm1139, %v662, 0
  %v1165 = vsel %vm1139, %v669, 0
  %v1168 = vsel %vm1139, %v676, 0
  %v1171 = vsel %vm1139, %v683, 0
  %v1174 = vsel %vm1139, %v690, 0
  %v1177 = vsel %vm1139, %v697, 0
  %v1180 = vsel %vm1139, %v704, 0
  %v1183 = vsel %vm1139, %v711, 0
  %v1186 = vsel %vm1139, %v718, 0
  %1188 = vmatpush.bf16.msra.mxu0 %v1038
  %1189 = vmatpush.bf16.msra.mxu0 %v1037
  %1190 = vmatpush.bf16.msra.mxu0 %v1036
  %1191 = vmatpush.bf16.msra.mxu0 %v1035
  %1192 = vmatpush.bf16.msra.mxu0 %v1034
  %1193 = vmatpush.bf16.msra.mxu0 %v1033
  %1194 = vmatpush.bf16.msra.mxu0 %v1032
  %1195 = vmatpush.bf16.msra.mxu0 %v1031
  %1196 = vmatmul.bf16.gmra.mxu0 %v607
  %v1197 = vpop.f32.mrf.mxu0
  %v1198 = vadd.f32 %v253, %v1197
  %v1199 = vpop.f32.mrf.mxu0
  %v1200 = vadd.f32 %v253, %v1199
  %1201 = vmatmul.bf16.gmra.mxu0 %v614
  %v1202 = vpop.f32.mrf.mxu0
  %v1203 = vadd.f32 %v253, %v1202
  %v1204 = vpop.f32.mrf.mxu0
  %v1205 = vadd.f32 %v253, %v1204
  %1206 = vmatmul.bf16.gmra.mxu0 %v621
  %v1207 = vpop.f32.mrf.mxu0
  %v1208 = vadd.f32 %v253, %v1207
  %v1209 = vpop.f32.mrf.mxu0
  %v1210 = vadd.f32 %v253, %v1209
  %1211 = vmatmul.bf16.gmra.mxu0 %v628
  %v1212 = vpop.f32.mrf.mxu0
  %v1213 = vadd.f32 %v253, %v1212
  %v1214 = vpop.f32.mrf.mxu0
  %v1215 = vadd.f32 %v253, %v1214
  %1216 = vmatmul.bf16.gmra.mxu0 %v635
  %v1217 = vpop.f32.mrf.mxu0
  %v1218 = vadd.f32 %v253, %v1217
  %v1219 = vpop.f32.mrf.mxu0
  %v1220 = vadd.f32 %v253, %v1219
  %1221 = vmatmul.bf16.gmra.mxu0 %v642
  %v1222 = vpop.f32.mrf.mxu0
  %v1223 = vadd.f32 %v253, %v1222
  %v1224 = vpop.f32.mrf.mxu0
  %v1225 = vadd.f32 %v253, %v1224
  %1226 = vmatmul.bf16.gmra.mxu0 %v649
  %v1227 = vpop.f32.mrf.mxu0
  %v1228 = vadd.f32 %v253, %v1227
  %v1229 = vpop.f32.mrf.mxu0
  %v1230 = vadd.f32 %v253, %v1229
  %1231 = vmatmul.bf16.gmra.mxu0 %v656
  %v1232 = vpop.f32.mrf.mxu0
  %v1233 = vadd.f32 %v253, %v1232
  %v1234 = vpop.f32.mrf.mxu0
  %v1235 = vadd.f32 %v253, %v1234
  %1236 = vmatmul.bf16.gmra.mxu0 %v663
  %v1237 = vpop.f32.mrf.mxu0
  %v1238 = vadd.f32 %v253, %v1237
  %v1239 = vpop.f32.mrf.mxu0
  %v1240 = vadd.f32 %v253, %v1239
  %1241 = vmatmul.bf16.gmra.mxu0 %v670
  %v1242 = vpop.f32.mrf.mxu0
  %v1243 = vadd.f32 %v253, %v1242
  %v1244 = vpop.f32.mrf.mxu0
  %v1245 = vadd.f32 %v253, %v1244
  %1246 = vmatmul.bf16.gmra.mxu0 %v677
  %v1247 = vpop.f32.mrf.mxu0
  %v1248 = vadd.f32 %v253, %v1247
  %v1249 = vpop.f32.mrf.mxu0
  %v1250 = vadd.f32 %v253, %v1249
  %1251 = vmatmul.bf16.gmra.mxu0 %v684
  %v1252 = vpop.f32.mrf.mxu0
  %v1253 = vadd.f32 %v253, %v1252
  %v1254 = vpop.f32.mrf.mxu0
  %v1255 = vadd.f32 %v253, %v1254
  %1256 = vmatmul.bf16.gmra.mxu0 %v691
  %v1257 = vpop.f32.mrf.mxu0
  %v1258 = vadd.f32 %v253, %v1257
  %v1259 = vpop.f32.mrf.mxu0
  %v1260 = vadd.f32 %v253, %v1259
  %1261 = vmatmul.bf16.gmra.mxu0 %v698
  %v1262 = vpop.f32.mrf.mxu0
  %v1263 = vadd.f32 %v253, %v1262
  %v1264 = vpop.f32.mrf.mxu0
  %v1265 = vadd.f32 %v253, %v1264
  %1266 = vmatmul.bf16.gmra.mxu0 %v705
  %v1267 = vpop.f32.mrf.mxu0
  %v1268 = vadd.f32 %v253, %v1267
  %v1269 = vpop.f32.mrf.mxu0
  %v1270 = vadd.f32 %v253, %v1269
  %1271 = vmatmul.bf16.gmra.mxu0 %v712
  %v1272 = vpop.f32.mrf.mxu0
  %v1273 = vadd.f32 %v253, %v1272
  %v1274 = vpop.f32.mrf.mxu0
  %v1275 = vadd.f32 %v253, %v1274
  %1276 = vdwg.mxu0
  %1277 = vmatpush.bf16.msra.mxu0 %v1046
  %1278 = vmatpush.bf16.msra.mxu0 %v1045
  %1279 = vmatpush.bf16.msra.mxu0 %v1044
  %1280 = vmatpush.bf16.msra.mxu0 %v1043
  %1281 = vmatpush.bf16.msra.mxu0 %v1042
  %1282 = vmatpush.bf16.msra.mxu0 %v1041
  %1283 = vmatpush.bf16.msra.mxu0 %v1040
  %1284 = vmatpush.bf16.msra.mxu0 %v1039
  %1285 = vmatmul.bf16.gmra.mxu0 %v608
  %v1286 = vpop.f32.mrf.mxu0
  %v1287 = vadd.f32 %v1198, %v1286
  %v1288 = vpop.f32.mrf.mxu0
  %v1289 = vadd.f32 %v1200, %v1288
  %1290 = vmatmul.bf16.gmra.mxu0 %v615
  %v1291 = vpop.f32.mrf.mxu0
  %v1292 = vadd.f32 %v1203, %v1291
  %v1293 = vpop.f32.mrf.mxu0
  %v1294 = vadd.f32 %v1205, %v1293
  %1295 = vmatmul.bf16.gmra.mxu0 %v622
  %v1296 = vpop.f32.mrf.mxu0
  %v1297 = vadd.f32 %v1208, %v1296
  %v1298 = vpop.f32.mrf.mxu0
  %v1299 = vadd.f32 %v1210, %v1298
  %1300 = vmatmul.bf16.gmra.mxu0 %v629
  %v1301 = vpop.f32.mrf.mxu0
  %v1302 = vadd.f32 %v1213, %v1301
  %v1303 = vpop.f32.mrf.mxu0
  %v1304 = vadd.f32 %v1215, %v1303
  %1305 = vmatmul.bf16.gmra.mxu0 %v636
  %v1306 = vpop.f32.mrf.mxu0
  %v1307 = vadd.f32 %v1218, %v1306
  %v1308 = vpop.f32.mrf.mxu0
  %v1309 = vadd.f32 %v1220, %v1308
  %1310 = vmatmul.bf16.gmra.mxu0 %v643
  %v1311 = vpop.f32.mrf.mxu0
  %v1312 = vadd.f32 %v1223, %v1311
  %v1313 = vpop.f32.mrf.mxu0
  %v1314 = vadd.f32 %v1225, %v1313
  %1315 = vmatmul.bf16.gmra.mxu0 %v650
  %v1316 = vpop.f32.mrf.mxu0
  %v1317 = vadd.f32 %v1228, %v1316
  %v1318 = vpop.f32.mrf.mxu0
  %v1319 = vadd.f32 %v1230, %v1318
  %1320 = vmatmul.bf16.gmra.mxu0 %v657
  %v1321 = vpop.f32.mrf.mxu0
  %v1322 = vadd.f32 %v1233, %v1321
  %v1323 = vpop.f32.mrf.mxu0
  %v1324 = vadd.f32 %v1235, %v1323
  %1325 = vmatmul.bf16.gmra.mxu0 %v664
  %v1326 = vpop.f32.mrf.mxu0
  %v1327 = vadd.f32 %v1238, %v1326
  %v1328 = vpop.f32.mrf.mxu0
  %v1329 = vadd.f32 %v1240, %v1328
  %1330 = vmatmul.bf16.gmra.mxu0 %v671
  %v1331 = vpop.f32.mrf.mxu0
  %v1332 = vadd.f32 %v1243, %v1331
  %v1333 = vpop.f32.mrf.mxu0
  %v1334 = vadd.f32 %v1245, %v1333
  %1335 = vmatmul.bf16.gmra.mxu0 %v678
  %v1336 = vpop.f32.mrf.mxu0
  %v1337 = vadd.f32 %v1248, %v1336
  %v1338 = vpop.f32.mrf.mxu0
  %v1339 = vadd.f32 %v1250, %v1338
  %1340 = vmatmul.bf16.gmra.mxu0 %v685
  %v1341 = vpop.f32.mrf.mxu0
  %v1342 = vadd.f32 %v1253, %v1341
  %v1343 = vpop.f32.mrf.mxu0
  %v1344 = vadd.f32 %v1255, %v1343
  %1345 = vmatmul.bf16.gmra.mxu0 %v692
  %v1346 = vpop.f32.mrf.mxu0
  %v1347 = vadd.f32 %v1258, %v1346
  %v1348 = vpop.f32.mrf.mxu0
  %v1349 = vadd.f32 %v1260, %v1348
  %1350 = vmatmul.bf16.gmra.mxu0 %v699
  %v1351 = vpop.f32.mrf.mxu0
  %v1352 = vadd.f32 %v1263, %v1351
  %v1353 = vpop.f32.mrf.mxu0
  %v1354 = vadd.f32 %v1265, %v1353
  %1355 = vmatmul.bf16.gmra.mxu0 %v706
  %v1356 = vpop.f32.mrf.mxu0
  %v1357 = vadd.f32 %v1268, %v1356
  %v1358 = vpop.f32.mrf.mxu0
  %v1359 = vadd.f32 %v1270, %v1358
  %1360 = vmatmul.bf16.gmra.mxu0 %v713
  %v1361 = vpop.f32.mrf.mxu0
  %v1362 = vadd.f32 %v1273, %v1361
  %v1363 = vpop.f32.mrf.mxu0
  %v1364 = vadd.f32 %v1275, %v1363
  %1365 = vdwg.mxu0
  %1366 = vmatpush.bf16.msra.mxu0 %v1054
  %1367 = vmatpush.bf16.msra.mxu0 %v1053
  %1368 = vmatpush.bf16.msra.mxu0 %v1052
  %1369 = vmatpush.bf16.msra.mxu0 %v1051
  %1370 = vmatpush.bf16.msra.mxu0 %v1050
  %1371 = vmatpush.bf16.msra.mxu0 %v1049
  %1372 = vmatpush.bf16.msra.mxu0 %v1048
  %1373 = vmatpush.bf16.msra.mxu0 %v1047
  %1374 = vmatmul.bf16.gmra.mxu0 %v609
  %v1375 = vpop.f32.mrf.mxu0
  %v1376 = vadd.f32 %v1287, %v1375
  %v1377 = vpop.f32.mrf.mxu0
  %v1378 = vadd.f32 %v1289, %v1377
  %1379 = vmatmul.bf16.gmra.mxu0 %v616
  %v1380 = vpop.f32.mrf.mxu0
  %v1381 = vadd.f32 %v1292, %v1380
  %v1382 = vpop.f32.mrf.mxu0
  %v1383 = vadd.f32 %v1294, %v1382
  %1384 = vmatmul.bf16.gmra.mxu0 %v623
  %v1385 = vpop.f32.mrf.mxu0
  %v1386 = vadd.f32 %v1297, %v1385
  %v1387 = vpop.f32.mrf.mxu0
  %v1388 = vadd.f32 %v1299, %v1387
  %1389 = vmatmul.bf16.gmra.mxu0 %v630
  %v1390 = vpop.f32.mrf.mxu0
  %v1391 = vadd.f32 %v1302, %v1390
  %v1392 = vpop.f32.mrf.mxu0
  %v1393 = vadd.f32 %v1304, %v1392
  %1394 = vmatmul.bf16.gmra.mxu0 %v637
  %v1395 = vpop.f32.mrf.mxu0
  %v1396 = vadd.f32 %v1307, %v1395
  %v1397 = vpop.f32.mrf.mxu0
  %v1398 = vadd.f32 %v1309, %v1397
  %1399 = vmatmul.bf16.gmra.mxu0 %v644
  %v1400 = vpop.f32.mrf.mxu0
  %v1401 = vadd.f32 %v1312, %v1400
  %v1402 = vpop.f32.mrf.mxu0
  %v1403 = vadd.f32 %v1314, %v1402
  %1404 = vmatmul.bf16.gmra.mxu0 %v651
  %v1405 = vpop.f32.mrf.mxu0
  %v1406 = vadd.f32 %v1317, %v1405
  %v1407 = vpop.f32.mrf.mxu0
  %v1408 = vadd.f32 %v1319, %v1407
  %1409 = vmatmul.bf16.gmra.mxu0 %v658
  %v1410 = vpop.f32.mrf.mxu0
  %v1411 = vadd.f32 %v1322, %v1410
  %v1412 = vpop.f32.mrf.mxu0
  %v1413 = vadd.f32 %v1324, %v1412
  %1414 = vmatmul.bf16.gmra.mxu0 %v665
  %v1415 = vpop.f32.mrf.mxu0
  %v1416 = vadd.f32 %v1327, %v1415
  %v1417 = vpop.f32.mrf.mxu0
  %v1418 = vadd.f32 %v1329, %v1417
  %1419 = vmatmul.bf16.gmra.mxu0 %v672
  %v1420 = vpop.f32.mrf.mxu0
  %v1421 = vadd.f32 %v1332, %v1420
  %v1422 = vpop.f32.mrf.mxu0
  %v1423 = vadd.f32 %v1334, %v1422
  %1424 = vmatmul.bf16.gmra.mxu0 %v679
  %v1425 = vpop.f32.mrf.mxu0
  %v1426 = vadd.f32 %v1337, %v1425
  %v1427 = vpop.f32.mrf.mxu0
  %v1428 = vadd.f32 %v1339, %v1427
  %1429 = vmatmul.bf16.gmra.mxu0 %v686
  %v1430 = vpop.f32.mrf.mxu0
  %v1431 = vadd.f32 %v1342, %v1430
  %v1432 = vpop.f32.mrf.mxu0
  %v1433 = vadd.f32 %v1344, %v1432
  %1434 = vmatmul.bf16.gmra.mxu0 %v693
  %v1435 = vpop.f32.mrf.mxu0
  %v1436 = vadd.f32 %v1347, %v1435
  %v1437 = vpop.f32.mrf.mxu0
  %v1438 = vadd.f32 %v1349, %v1437
  %1439 = vmatmul.bf16.gmra.mxu0 %v700
  %v1440 = vpop.f32.mrf.mxu0
  %v1441 = vadd.f32 %v1352, %v1440
  %v1442 = vpop.f32.mrf.mxu0
  %v1443 = vadd.f32 %v1354, %v1442
  %1444 = vmatmul.bf16.gmra.mxu0 %v707
  %v1445 = vpop.f32.mrf.mxu0
  %v1446 = vadd.f32 %v1357, %v1445
  %v1447 = vpop.f32.mrf.mxu0
  %v1448 = vadd.f32 %v1359, %v1447
  %1449 = vmatmul.bf16.gmra.mxu0 %v714
  %v1450 = vpop.f32.mrf.mxu0
  %v1451 = vadd.f32 %v1362, %v1450
  %v1452 = vpop.f32.mrf.mxu0
  %v1453 = vadd.f32 %v1364, %v1452
  %1454 = vdwg.mxu0
  %1455 = vmatpush.bf16.msra.mxu0 %v1062
  %1456 = vmatpush.bf16.msra.mxu0 %v1061
  %1457 = vmatpush.bf16.msra.mxu0 %v1060
  %1458 = vmatpush.bf16.msra.mxu0 %v1059
  %1459 = vmatpush.bf16.msra.mxu0 %v1058
  %1460 = vmatpush.bf16.msra.mxu0 %v1057
  %1461 = vmatpush.bf16.msra.mxu0 %v1056
  %1462 = vmatpush.bf16.msra.mxu0 %v1055
  %1463 = vmatmul.bf16.gmra.mxu0 %v610
  %v1464 = vpop.f32.mrf.mxu0
  %v1465 = vadd.f32 %v1376, %v1464
  %v1466 = vpop.f32.mrf.mxu0
  %v1467 = vadd.f32 %v1378, %v1466
  %1468 = vmatmul.bf16.gmra.mxu0 %v617
  %v1469 = vpop.f32.mrf.mxu0
  %v1470 = vadd.f32 %v1381, %v1469
  %v1471 = vpop.f32.mrf.mxu0
  %v1472 = vadd.f32 %v1383, %v1471
  %1473 = vmatmul.bf16.gmra.mxu0 %v624
  %v1474 = vpop.f32.mrf.mxu0
  %v1475 = vadd.f32 %v1386, %v1474
  %v1476 = vpop.f32.mrf.mxu0
  %v1477 = vadd.f32 %v1388, %v1476
  %1478 = vmatmul.bf16.gmra.mxu0 %v631
  %v1479 = vpop.f32.mrf.mxu0
  %v1480 = vadd.f32 %v1391, %v1479
  %v1481 = vpop.f32.mrf.mxu0
  %v1482 = vadd.f32 %v1393, %v1481
  %1483 = vmatmul.bf16.gmra.mxu0 %v638
  %v1484 = vpop.f32.mrf.mxu0
  %v1485 = vadd.f32 %v1396, %v1484
  %v1486 = vpop.f32.mrf.mxu0
  %v1487 = vadd.f32 %v1398, %v1486
  %1488 = vmatmul.bf16.gmra.mxu0 %v645
  %v1489 = vpop.f32.mrf.mxu0
  %v1490 = vadd.f32 %v1401, %v1489
  %v1491 = vpop.f32.mrf.mxu0
  %v1492 = vadd.f32 %v1403, %v1491
  %1493 = vmatmul.bf16.gmra.mxu0 %v652
  %v1494 = vpop.f32.mrf.mxu0
  %v1495 = vadd.f32 %v1406, %v1494
  %v1496 = vpop.f32.mrf.mxu0
  %v1497 = vadd.f32 %v1408, %v1496
  %1498 = vmatmul.bf16.gmra.mxu0 %v659
  %v1499 = vpop.f32.mrf.mxu0
  %v1500 = vadd.f32 %v1411, %v1499
  %v1501 = vpop.f32.mrf.mxu0
  %v1502 = vadd.f32 %v1413, %v1501
  %1503 = vmatmul.bf16.gmra.mxu0 %v666
  %v1504 = vpop.f32.mrf.mxu0
  %v1505 = vadd.f32 %v1416, %v1504
  %v1506 = vpop.f32.mrf.mxu0
  %v1507 = vadd.f32 %v1418, %v1506
  %1508 = vmatmul.bf16.gmra.mxu0 %v673
  %v1509 = vpop.f32.mrf.mxu0
  %v1510 = vadd.f32 %v1421, %v1509
  %v1511 = vpop.f32.mrf.mxu0
  %v1512 = vadd.f32 %v1423, %v1511
  %1513 = vmatmul.bf16.gmra.mxu0 %v680
  %v1514 = vpop.f32.mrf.mxu0
  %v1515 = vadd.f32 %v1426, %v1514
  %v1516 = vpop.f32.mrf.mxu0
  %v1517 = vadd.f32 %v1428, %v1516
  %1518 = vmatmul.bf16.gmra.mxu0 %v687
  %v1519 = vpop.f32.mrf.mxu0
  %v1520 = vadd.f32 %v1431, %v1519
  %v1521 = vpop.f32.mrf.mxu0
  %v1522 = vadd.f32 %v1433, %v1521
  %1523 = vmatmul.bf16.gmra.mxu0 %v694
  %v1524 = vpop.f32.mrf.mxu0
  %v1525 = vadd.f32 %v1436, %v1524
  %v1526 = vpop.f32.mrf.mxu0
  %v1527 = vadd.f32 %v1438, %v1526
  %1528 = vmatmul.bf16.gmra.mxu0 %v701
  %v1529 = vpop.f32.mrf.mxu0
  %v1530 = vadd.f32 %v1441, %v1529
  %v1531 = vpop.f32.mrf.mxu0
  %v1532 = vadd.f32 %v1443, %v1531
  %1533 = vmatmul.bf16.gmra.mxu0 %v708
  %v1534 = vpop.f32.mrf.mxu0
  %v1535 = vadd.f32 %v1446, %v1534
  %v1536 = vpop.f32.mrf.mxu0
  %v1537 = vadd.f32 %v1448, %v1536
  %1538 = vmatmul.bf16.gmra.mxu0 %v715
  %v1539 = vpop.f32.mrf.mxu0
  %v1540 = vadd.f32 %v1451, %v1539
  %v1541 = vpop.f32.mrf.mxu0
  %v1542 = vadd.f32 %v1453, %v1541
  %1543 = vdwg.mxu0
  %1544 = vmatpush.bf16.msra.mxu0 %v1070
  %1545 = vmatpush.bf16.msra.mxu0 %v1069
  %1546 = vmatpush.bf16.msra.mxu0 %v1068
  %1547 = vmatpush.bf16.msra.mxu0 %v1067
  %1548 = vmatpush.bf16.msra.mxu0 %v1066
  %1549 = vmatpush.bf16.msra.mxu0 %v1065
  %1550 = vmatpush.bf16.msra.mxu0 %v1064
  %1551 = vmatpush.bf16.msra.mxu0 %v1063
  %1552 = vmatmul.bf16.gmra.mxu0 %v611
  %v1553 = vpop.f32.mrf.mxu0
  %v1554 = vadd.f32 %v1465, %v1553
  %v1555 = vpop.f32.mrf.mxu0
  %v1556 = vadd.f32 %v1467, %v1555
  %1557 = vmatmul.bf16.gmra.mxu0 %v618
  %v1558 = vpop.f32.mrf.mxu0
  %v1559 = vadd.f32 %v1470, %v1558
  %v1560 = vpop.f32.mrf.mxu0
  %v1561 = vadd.f32 %v1472, %v1560
  %1562 = vmatmul.bf16.gmra.mxu0 %v625
  %v1563 = vpop.f32.mrf.mxu0
  %v1564 = vadd.f32 %v1475, %v1563
  %v1565 = vpop.f32.mrf.mxu0
  %v1566 = vadd.f32 %v1477, %v1565
  %1567 = vmatmul.bf16.gmra.mxu0 %v632
  %v1568 = vpop.f32.mrf.mxu0
  %v1569 = vadd.f32 %v1480, %v1568
  %v1570 = vpop.f32.mrf.mxu0
  %v1571 = vadd.f32 %v1482, %v1570
  %1572 = vmatmul.bf16.gmra.mxu0 %v639
  %v1573 = vpop.f32.mrf.mxu0
  %v1574 = vadd.f32 %v1485, %v1573
  %v1575 = vpop.f32.mrf.mxu0
  %v1576 = vadd.f32 %v1487, %v1575
  %1577 = vmatmul.bf16.gmra.mxu0 %v646
  %v1578 = vpop.f32.mrf.mxu0
  %v1579 = vadd.f32 %v1490, %v1578
  %v1580 = vpop.f32.mrf.mxu0
  %v1581 = vadd.f32 %v1492, %v1580
  %1582 = vmatmul.bf16.gmra.mxu0 %v653
  %v1583 = vpop.f32.mrf.mxu0
  %v1584 = vadd.f32 %v1495, %v1583
  %v1585 = vpop.f32.mrf.mxu0
  %v1586 = vadd.f32 %v1497, %v1585
  %1587 = vmatmul.bf16.gmra.mxu0 %v660
  %v1588 = vpop.f32.mrf.mxu0
  %v1589 = vadd.f32 %v1500, %v1588
  %v1590 = vpop.f32.mrf.mxu0
  %v1591 = vadd.f32 %v1502, %v1590
  %1592 = vmatmul.bf16.gmra.mxu0 %v667
  %v1593 = vpop.f32.mrf.mxu0
  %v1594 = vadd.f32 %v1505, %v1593
  %v1595 = vpop.f32.mrf.mxu0
  %v1596 = vadd.f32 %v1507, %v1595
  %1597 = vmatmul.bf16.gmra.mxu0 %v674
  %v1598 = vpop.f32.mrf.mxu0
  %v1599 = vadd.f32 %v1510, %v1598
  %v1600 = vpop.f32.mrf.mxu0
  %v1601 = vadd.f32 %v1512, %v1600
  %1602 = vmatmul.bf16.gmra.mxu0 %v681
  %v1603 = vpop.f32.mrf.mxu0
  %v1604 = vadd.f32 %v1515, %v1603
  %v1605 = vpop.f32.mrf.mxu0
  %v1606 = vadd.f32 %v1517, %v1605
  %1607 = vmatmul.bf16.gmra.mxu0 %v688
  %v1608 = vpop.f32.mrf.mxu0
  %v1609 = vadd.f32 %v1520, %v1608
  %v1610 = vpop.f32.mrf.mxu0
  %v1611 = vadd.f32 %v1522, %v1610
  %1612 = vmatmul.bf16.gmra.mxu0 %v695
  %v1613 = vpop.f32.mrf.mxu0
  %v1614 = vadd.f32 %v1525, %v1613
  %v1615 = vpop.f32.mrf.mxu0
  %v1616 = vadd.f32 %v1527, %v1615
  %1617 = vmatmul.bf16.gmra.mxu0 %v702
  %v1618 = vpop.f32.mrf.mxu0
  %v1619 = vadd.f32 %v1530, %v1618
  %v1620 = vpop.f32.mrf.mxu0
  %v1621 = vadd.f32 %v1532, %v1620
  %1622 = vmatmul.bf16.gmra.mxu0 %v709
  %v1623 = vpop.f32.mrf.mxu0
  %v1624 = vadd.f32 %v1535, %v1623
  %v1625 = vpop.f32.mrf.mxu0
  %v1626 = vadd.f32 %v1537, %v1625
  %1627 = vmatmul.bf16.gmra.mxu0 %v716
  %v1628 = vpop.f32.mrf.mxu0
  %v1629 = vadd.f32 %v1540, %v1628
  %v1630 = vpop.f32.mrf.mxu0
  %v1631 = vadd.f32 %v1542, %v1630
  %1632 = vdwg.mxu0
  %1633 = vmatpush.bf16.msra.mxu0 %v1078
  %1634 = vmatpush.bf16.msra.mxu0 %v1077
  %1635 = vmatpush.bf16.msra.mxu0 %v1076
  %1636 = vmatpush.bf16.msra.mxu0 %v1075
  %1637 = vmatpush.bf16.msra.mxu0 %v1074
  %1638 = vmatpush.bf16.msra.mxu0 %v1073
  %1639 = vmatpush.bf16.msra.mxu0 %v1072
  %1640 = vmatpush.bf16.msra.mxu0 %v1071
  %1641 = vmatmul.bf16.gmra.mxu0 %v612
  %v1642 = vpop.f32.mrf.mxu0
  %v1643 = vadd.f32 %v1554, %v1642
  %v1644 = vpop.f32.mrf.mxu0
  %v1645 = vadd.f32 %v1556, %v1644
  %1646 = vmatmul.bf16.gmra.mxu0 %v619
  %v1647 = vpop.f32.mrf.mxu0
  %v1648 = vadd.f32 %v1559, %v1647
  %v1649 = vpop.f32.mrf.mxu0
  %v1650 = vadd.f32 %v1561, %v1649
  %1651 = vmatmul.bf16.gmra.mxu0 %v626
  %v1652 = vpop.f32.mrf.mxu0
  %v1653 = vadd.f32 %v1564, %v1652
  %v1654 = vpop.f32.mrf.mxu0
  %v1655 = vadd.f32 %v1566, %v1654
  %1656 = vmatmul.bf16.gmra.mxu0 %v633
  %v1657 = vpop.f32.mrf.mxu0
  %v1658 = vadd.f32 %v1569, %v1657
  %v1659 = vpop.f32.mrf.mxu0
  %v1660 = vadd.f32 %v1571, %v1659
  %1661 = vmatmul.bf16.gmra.mxu0 %v640
  %v1662 = vpop.f32.mrf.mxu0
  %v1663 = vadd.f32 %v1574, %v1662
  %v1664 = vpop.f32.mrf.mxu0
  %v1665 = vadd.f32 %v1576, %v1664
  %1666 = vmatmul.bf16.gmra.mxu0 %v647
  %v1667 = vpop.f32.mrf.mxu0
  %v1668 = vadd.f32 %v1579, %v1667
  %v1669 = vpop.f32.mrf.mxu0
  %v1670 = vadd.f32 %v1581, %v1669
  %1671 = vmatmul.bf16.gmra.mxu0 %v654
  %v1672 = vpop.f32.mrf.mxu0
  %v1673 = vadd.f32 %v1584, %v1672
  %v1674 = vpop.f32.mrf.mxu0
  %v1675 = vadd.f32 %v1586, %v1674
  %1676 = vmatmul.bf16.gmra.mxu0 %v661
  %v1677 = vpop.f32.mrf.mxu0
  %v1678 = vadd.f32 %v1589, %v1677
  %v1679 = vpop.f32.mrf.mxu0
  %v1680 = vadd.f32 %v1591, %v1679
  %1681 = vmatmul.bf16.gmra.mxu0 %v668
  %v1682 = vpop.f32.mrf.mxu0
  %v1683 = vadd.f32 %v1594, %v1682
  %v1684 = vpop.f32.mrf.mxu0
  %v1685 = vadd.f32 %v1596, %v1684
  %1686 = vmatmul.bf16.gmra.mxu0 %v675
  %v1687 = vpop.f32.mrf.mxu0
  %v1688 = vadd.f32 %v1599, %v1687
  %v1689 = vpop.f32.mrf.mxu0
  %v1690 = vadd.f32 %v1601, %v1689
  %1691 = vmatmul.bf16.gmra.mxu0 %v682
  %v1692 = vpop.f32.mrf.mxu0
  %v1693 = vadd.f32 %v1604, %v1692
  %v1694 = vpop.f32.mrf.mxu0
  %v1695 = vadd.f32 %v1606, %v1694
  %1696 = vmatmul.bf16.gmra.mxu0 %v689
  %v1697 = vpop.f32.mrf.mxu0
  %v1698 = vadd.f32 %v1609, %v1697
  %v1699 = vpop.f32.mrf.mxu0
  %v1700 = vadd.f32 %v1611, %v1699
  %1701 = vmatmul.bf16.gmra.mxu0 %v696
  %v1702 = vpop.f32.mrf.mxu0
  %v1703 = vadd.f32 %v1614, %v1702
  %v1704 = vpop.f32.mrf.mxu0
  %v1705 = vadd.f32 %v1616, %v1704
  %1706 = vmatmul.bf16.gmra.mxu0 %v703
  %v1707 = vpop.f32.mrf.mxu0
  %v1708 = vadd.f32 %v1619, %v1707
  %v1709 = vpop.f32.mrf.mxu0
  %v1710 = vadd.f32 %v1621, %v1709
  %1711 = vmatmul.bf16.gmra.mxu0 %v710
  %v1712 = vpop.f32.mrf.mxu0
  %v1713 = vadd.f32 %v1624, %v1712
  %v1714 = vpop.f32.mrf.mxu0
  %v1715 = vadd.f32 %v1626, %v1714
  %1716 = vmatmul.bf16.gmra.mxu0 %v717
  %v1717 = vpop.f32.mrf.mxu0
  %v1718 = vadd.f32 %v1629, %v1717
  %v1719 = vpop.f32.mrf.mxu0
  %v1720 = vadd.f32 %v1631, %v1719
  %1721 = vdwg.mxu0
  %1722 = vmatpush.bf16.msra.mxu0 0
  %1723 = vmatpush.bf16.msra.mxu0 0
  %1724 = vmatpush.bf16.msra.mxu0 %v1084
  %1725 = vmatpush.bf16.msra.mxu0 %v1083
  %1726 = vmatpush.bf16.msra.mxu0 %v1082
  %1727 = vmatpush.bf16.msra.mxu0 %v1081
  %1728 = vmatpush.bf16.msra.mxu0 %v1080
  %1729 = vmatpush.bf16.msra.mxu0 %v1079
  %1730 = vmatmul.bf16.gmra.mxu0 %v1141
  %v1731 = vpop.f32.mrf.mxu0
  %v1732 = vadd.f32 %v1643, %v1731
  %v1733 = vpop.f32.mrf.mxu0
  %v1734 = vadd.f32 %v1645, %v1733
  %1735 = vmatmul.bf16.gmra.mxu0 %v1144
  %v1736 = vpop.f32.mrf.mxu0
  %v1737 = vadd.f32 %v1648, %v1736
  %v1738 = vpop.f32.mrf.mxu0
  %v1739 = vadd.f32 %v1650, %v1738
  %1740 = vmatmul.bf16.gmra.mxu0 %v1147
  %v1741 = vpop.f32.mrf.mxu0
  %v1742 = vadd.f32 %v1653, %v1741
  %v1743 = vpop.f32.mrf.mxu0
  %v1744 = vadd.f32 %v1655, %v1743
  %1745 = vmatmul.bf16.gmra.mxu0 %v1150
  %v1746 = vpop.f32.mrf.mxu0
  %v1747 = vadd.f32 %v1658, %v1746
  %v1748 = vpop.f32.mrf.mxu0
  %v1749 = vadd.f32 %v1660, %v1748
  %1750 = vmatmul.bf16.gmra.mxu0 %v1153
  %v1751 = vpop.f32.mrf.mxu0
  %v1752 = vadd.f32 %v1663, %v1751
  %v1753 = vpop.f32.mrf.mxu0
  %v1754 = vadd.f32 %v1665, %v1753
  %1755 = vmatmul.bf16.gmra.mxu0 %v1156
  %v1756 = vpop.f32.mrf.mxu0
  %v1757 = vadd.f32 %v1668, %v1756
  %v1758 = vpop.f32.mrf.mxu0
  %v1759 = vadd.f32 %v1670, %v1758
  %1760 = vmatmul.bf16.gmra.mxu0 %v1159
  %v1761 = vpop.f32.mrf.mxu0
  %v1762 = vadd.f32 %v1673, %v1761
  %v1763 = vpop.f32.mrf.mxu0
  %v1764 = vadd.f32 %v1675, %v1763
  %1765 = vmatmul.bf16.gmra.mxu0 %v1162
  %v1766 = vpop.f32.mrf.mxu0
  %v1767 = vadd.f32 %v1678, %v1766
  %v1768 = vpop.f32.mrf.mxu0
  %v1769 = vadd.f32 %v1680, %v1768
  %1770 = vmatmul.bf16.gmra.mxu0 %v1165
  %v1771 = vpop.f32.mrf.mxu0
  %v1772 = vadd.f32 %v1683, %v1771
  %v1773 = vpop.f32.mrf.mxu0
  %v1774 = vadd.f32 %v1685, %v1773
  %1775 = vmatmul.bf16.gmra.mxu0 %v1168
  %v1776 = vpop.f32.mrf.mxu0
  %v1777 = vadd.f32 %v1688, %v1776
  %v1778 = vpop.f32.mrf.mxu0
  %v1779 = vadd.f32 %v1690, %v1778
  %1780 = vmatmul.bf16.gmra.mxu0 %v1171
  %v1781 = vpop.f32.mrf.mxu0
  %v1782 = vadd.f32 %v1693, %v1781
  %v1783 = vpop.f32.mrf.mxu0
  %v1784 = vadd.f32 %v1695, %v1783
  %1785 = vmatmul.bf16.gmra.mxu0 %v1174
  %v1786 = vpop.f32.mrf.mxu0
  %v1787 = vadd.f32 %v1698, %v1786
  %v1788 = vpop.f32.mrf.mxu0
  %v1789 = vadd.f32 %v1700, %v1788
  %1790 = vmatmul.bf16.gmra.mxu0 %v1177
  %v1791 = vpop.f32.mrf.mxu0
  %v1792 = vadd.f32 %v1703, %v1791
  %v1793 = vpop.f32.mrf.mxu0
  %v1794 = vadd.f32 %v1705, %v1793
  %1795 = vmatmul.bf16.gmra.mxu0 %v1180
  %v1796 = vpop.f32.mrf.mxu0
  %v1797 = vadd.f32 %v1708, %v1796
  %v1798 = vpop.f32.mrf.mxu0
  %v1799 = vadd.f32 %v1710, %v1798
  %1800 = vmatmul.bf16.gmra.mxu0 %v1183
  %v1801 = vpop.f32.mrf.mxu0
  %v1802 = vadd.f32 %v1713, %v1801
  %v1803 = vpop.f32.mrf.mxu0
  %v1804 = vadd.f32 %v1715, %v1803
  %1805 = vmatmul.bf16.gmra.mxu0 %v1186
  %v1806 = vpop.f32.mrf.mxu0
  %v1807 = vadd.f32 %v1718, %v1806
  %v1808 = vpop.f32.mrf.mxu0
  %v1809 = vadd.f32 %v1720, %v1808
  %1810 = vdwg.mxu0
  %1811 = vst [vmem:[%s3] sm:$0xff] %v1732
  %1812 = vst [vmem:[%s3 + $0x8] sm:$0xff] %v1734
  %1813 = vst [vmem:[%s3 + $0x10] sm:$0xff] %v1737
  %1814 = vst [vmem:[%s3 + $0x18] sm:$0xff] %v1739
  %1815 = vst [vmem:[%s3 + $0x20] sm:$0xff] %v1742
  %1816 = vst [vmem:[%s3 + $0x28] sm:$0xff] %v1744
  %1817 = vst [vmem:[%s3 + $0x30] sm:$0xff] %v1747
  %1818 = vst [vmem:[%s3 + $0x38] sm:$0xff] %v1749
  %1819 = vst [vmem:[%s3 + $0x40] sm:$0xff] %v1752
  %1820 = vst [vmem:[%s3 + $0x48] sm:$0xff] %v1754
  %1821 = vst [vmem:[%s3 + $0x50] sm:$0xff] %v1757
  %1822 = vst [vmem:[%s3 + $0x58] sm:$0xff] %v1759
  %1823 = vst [vmem:[%s3 + $0x60] sm:$0xff] %v1762
  %1824 = vst [vmem:[%s3 + $0x68] sm:$0xff] %v1764
  %1825 = vst [vmem:[%s3 + $0x70] sm:$0xff] %v1767
  %1826 = vst [vmem:[%s3 + $0x78] sm:$0xff] %v1769
  %1827 = vst [vmem:[%s3 + $0x80] sm:$0xff] %v1772
  %1828 = vst [vmem:[%s3 + $0x88] sm:$0xff] %v1774
  %1829 = vst [vmem:[%s3 + $0x90] sm:$0xff] %v1777
  %1830 = vst [vmem:[%s3 + $0x98] sm:$0xff] %v1779
  %1831 = vst [vmem:[%s3 + $0xa0] sm:$0xff] %v1782
  %1832 = vst [vmem:[%s3 + $0xa8] sm:$0xff] %v1784
  %1833 = vst [vmem:[%s3 + $0xb0] sm:$0xff] %v1787
  %1834 = vst [vmem:[%s3 + $0xb8] sm:$0xff] %v1789
  %1835 = vst [vmem:[%s3 + $0xc0] sm:$0xff] %v1792
  %1836 = vst [vmem:[%s3 + $0xc8] sm:$0xff] %v1794
  %1837 = vst [vmem:[%s3 + $0xd0] sm:$0xff] %v1797
  %1838 = vst [vmem:[%s3 + $0xd8] sm:$0xff] %v1799
  %1839 = vst [vmem:[%s3 + $0xe0] sm:$0xff] %v1802
  %1840 = vst [vmem:[%s3 + $0xe8] sm:$0xff] %v1804
  %1841 = vst [vmem:[%s3 + $0xf0] sm:$0xff] %v1807
  %1842 = vst [vmem:[%s3 + $0xf8] sm:$0xff] %v1809
  // Predicated region
  $region14: #{image_encoder_forward.10} parent=0 // pred_check
    _
  $region15: #{image_encoder_forward.10} parent=0 // pred_check_branch
    %1844 = sbr.rel (0) target = $region17
  $region16: #{image_encoder_forward.10} parent=0 // pred_region
    _
  $region17: #{image_encoder_forward.10} parent=0 // pred_fallthru
    _
  // Predicated region
  $region18: #{image_encoder_forward.10} parent=0 // pred_check
    _
  $region19: #{image_encoder_forward.10} parent=0 // pred_check_branch
    %1846 = sbr.rel (0) target = $region21
  $region20: #{image_encoder_forward.10} parent=0 // pred_region
    _
  $region21: #{image_encoder_forward.10} parent=0 // pred_fallthru
    _

// kernel: image_encoder_forward.11
$region0: #{image_encoder_forward.11}
  #allocation0 [shape = 'u32[]', space=smem, size = 0x4, offset = 0x4, fixed_abs, tag = 'smem constant byte address 0x4 - core index']
  #allocation1 [shape = 'u32[72,128]{1,0:T(1,128)}', space=vmem, size = 0x9000, scoped, tag = 'internal scratch']
  %s0 = inlined_call_operand.vmem [shape: f32[2,4,256,8], index: 0, kind: input, shape index: {}]
  %s1 = inlined_call_operand.vmem [shape: f32[2,4,256,8], index: 1, kind: input, shape index: {}]
  %s2 = inlined_call_operand.vmem [shape: f32[2,4,1,8], index: 2, kind: input, shape index: {}]
  %s3 = inlined_call_operand.vmem [shape: f32[2,4,1,8], index: 3, kind: input, shape index: {}]
  %s4 = inlined_call_operand.vmem [shape: f32[16,8], index: 4, kind: input, shape index: {}]
  %s5 = inlined_call_operand.vmem [shape: f32[1,16], index: 5, kind: input, shape index: {}]
  %s6 = inlined_call_operand.vmem [shape: f32[2,256,8], index: 6, kind: output, shape index: {0}]
  %s7 = inlined_call_operand.vmem [shape: f32[2,256,8], index: 7, kind: output, shape index: {1}]
  %s8 = inlined_call_operand.vmem [shape: f32[2,1,128], index: 8, kind: output, shape index: {2}]
  %9 = xla_tuple %s6, %s7, %s8
  %s10 = sld [smem:[#allocation0]]
  $region73: #{image_encoder_forward.11} parent=0
    _
  %s12 = ssub.s32 1, %s10
  %s13 = scalar_select 0, %s12, %s10
  loop: start=0, step=1, limit=4
  $region2: #{image_encoder_forward.11} parent=0 // loop_pre_header
    _
  $region3: #{image_encoder_forward.11} parent=0 // loop_header
    %s15 = sphi 0, %s19
    %p16 = scmp.ge.s32.totalorder %s15, 4
    %s25 = sphi 0, %s27
    %s28 = sphi 0, %s25
    %s29 = sphi 0, %s28
    %s45 = sphi 0, %s29
    %s51 = sphi 0, %s53
    %s54 = sphi 0, %s51
    %s55 = sphi 0, %s54
    %s71 = sphi 0, %s55
    %s77 = sphi 0, %s79
    %s80 = sphi 0, %s77
    %s81 = sphi 0, %s80
    %s97 = sphi 0, %s81
    %s103 = sphi 0, %s105
    %s106 = sphi 0, %s103
    %s107 = sphi 0, %s106
    %s123 = sphi 0, %s107
    %s127 = sphi 0, %s127
    %s129 = sphi 0, %s127
    %s130 = sphi 0, %s129
    %s144 = sphi 0, %s130
    %s148 = sphi 0, %s148
    %s150 = sphi 0, %s148
    %s151 = sphi 0, %s150
    %s165 = sphi 0, %s151
    %s171 = sphi 0, %s173
    %s174 = sphi 0, %s171
    %s175 = sphi 0, %s174
    %s191 = sphi 0, %s175
    %s197 = sphi 0, %s199
    %s200 = sphi 0, %s197
    %s201 = sphi 0, %s200
    %s217 = sphi 0, %s201
    %s223 = sphi 0, %s225
    %s226 = sphi 0, %s223
    %s227 = sphi 0, %s226
    %s243 = sphi 0, %s227
  $region4: #{image_encoder_forward.11} parent=0 // loop_header_branch
    %18 = sbr.rel (%p16) target = $region8
  $region5: #{image_encoder_forward.11} parent=0 // loop_body
    %s20 = ssub.s32 %s15, 1
    %s21 = ssub.s32 %s15, 2
    %s22 = sadd.s32 %s15, 1
    %s23 = ssub.s32 %s15, %s22
    %p24 = scmp.eq.s32.totalorder %s23, 0
    %s26 = sadd.s32 %s25, 1
    %s27 = scalar_select %p24, %s25, %s26
    %p30 = pneg %p24
    %p31 = scmp.eq.s32.totalorder %s15, 1
    %p32 = por %p30, %p31
    %p33 = scmp.ne.s32.totalorder %s25, %s28
    %p34 = scmp.eq.s32.totalorder %s15, 0
    %p35 = por %p33, %p34
    %p36 = scmp.ne.s32.totalorder %s25, %s28
    %p37 = scmp.eq.s32.totalorder %s20, 1
    %p38 = por %p36, %p37
    %p39 = scmp.ne.s32.totalorder %s28, %s29
    %p40 = scmp.eq.s32.totalorder %s20, 0
    %p41 = por %p39, %p40
    %p42 = scmp.ne.s32.totalorder %s28, %s29
    %p43 = scmp.eq.s32.totalorder %s21, 1
    %p44 = por %p42, %p43
    %p46 = scmp.ne.s32.totalorder %s29, %s45
    %p47 = scmp.eq.s32.totalorder %s21, 0
    %p48 = por %p46, %p47
    %s49 = ssub.s32 %s15, %s22
    %p50 = scmp.eq.s32.totalorder %s49, 0
    %s52 = sadd.s32 %s51, 1
    %s53 = scalar_select %p50, %s51, %s52
    %p56 = pneg %p50
    %p57 = scmp.eq.s32.totalorder %s15, 1
    %p58 = por %p56, %p57
    %p59 = scmp.ne.s32.totalorder %s51, %s54
    %p60 = scmp.eq.s32.totalorder %s15, 0
    %p61 = por %p59, %p60
    %p62 = scmp.ne.s32.totalorder %s51, %s54
    %p63 = scmp.eq.s32.totalorder %s20, 1
    %p64 = por %p62, %p63
    %p65 = scmp.ne.s32.totalorder %s54, %s55
    %p66 = scmp.eq.s32.totalorder %s20, 0
    %p67 = por %p65, %p66
    %p68 = scmp.ne.s32.totalorder %s54, %s55
    %p69 = scmp.eq.s32.totalorder %s21, 1
    %p70 = por %p68, %p69
    %p72 = scmp.ne.s32.totalorder %s55, %s71
    %p73 = scmp.eq.s32.totalorder %s21, 0
    %p74 = por %p72, %p73
    %s75 = ssub.s32 %s15, %s22
    %p76 = scmp.eq.s32.totalorder %s75, 0
    %s78 = sadd.s32 %s77, 1
    %s79 = scalar_select %p76, %s77, %s78
    %p82 = pneg %p76
    %p83 = scmp.eq.s32.totalorder %s15, 1
    %p84 = por %p82, %p83
    %p85 = scmp.ne.s32.totalorder %s77, %s80
    %p86 = scmp.eq.s32.totalorder %s15, 0
    %p87 = por %p85, %p86
    %p88 = scmp.ne.s32.totalorder %s77, %s80
    %p89 = scmp.eq.s32.totalorder %s20, 1
    %p90 = por %p88, %p89
    %p91 = scmp.ne.s32.totalorder %s80, %s81
    %p92 = scmp.eq.s32.totalorder %s20, 0
    %p93 = por %p91, %p92
    %p94 = scmp.ne.s32.totalorder %s80, %s81
    %p95 = scmp.eq.s32.totalorder %s21, 1
    %p96 = por %p94, %p95
    %p98 = scmp.ne.s32.totalorder %s81, %s97
    %p99 = scmp.eq.s32.totalorder %s21, 0
    %p100 = por %p98, %p99
    %s101 = ssub.s32 %s15, %s22
    %p102 = scmp.eq.s32.totalorder %s101, 0
    %s104 = sadd.s32 %s103, 1
    %s105 = scalar_select %p102, %s103, %s104
    %p108 = pneg %p102
    %p109 = scmp.eq.s32.totalorder %s15, 1
    %p110 = por %p108, %p109
    %p111 = scmp.ne.s32.totalorder %s103, %s106
    %p112 = scmp.eq.s32.totalorder %s15, 0
    %p113 = por %p111, %p112
    %p114 = scmp.ne.s32.totalorder %s103, %s106
    %p115 = scmp.eq.s32.totalorder %s20, 1
    %p116 = por %p114, %p115
    %p117 = scmp.ne.s32.totalorder %s106, %s107
    %p118 = scmp.eq.s32.totalorder %s20, 0
    %p119 = por %p117, %p118
    %p120 = scmp.ne.s32.totalorder %s106, %s107
    %p121 = scmp.eq.s32.totalorder %s21, 1
    %p122 = por %p120, %p121
    %p124 = scmp.ne.s32.totalorder %s107, %s123
    %p125 = scmp.eq.s32.totalorder %s21, 0
    %p126 = por %p124, %p125
    %s128 = sadd.s32 %s127, 1
    %p131 = scmp.eq.s32.totalorder %s15, 1
    %p132 = scmp.ne.s32.totalorder %s127, %s129
    %p133 = scmp.eq.s32.totalorder %s15, 0
    %p134 = por %p132, %p133
    %p135 = scmp.ne.s32.totalorder %s127, %s129
    %p136 = scmp.eq.s32.totalorder %s20, 1
    %p137 = por %p135, %p136
    %p138 = scmp.ne.s32.totalorder %s129, %s130
    %p139 = scmp.eq.s32.totalorder %s20, 0
    %p140 = por %p138, %p139
    %p141 = scmp.ne.s32.totalorder %s129, %s130
    %p142 = scmp.eq.s32.totalorder %s21, 1
    %p143 = por %p141, %p142
    %p145 = scmp.ne.s32.totalorder %s130, %s144
    %p146 = scmp.eq.s32.totalorder %s21, 0
    %p147 = por %p145, %p146
    %s149 = sadd.s32 %s148, 1
    %p152 = scmp.eq.s32.totalorder %s15, 1
    %p153 = scmp.ne.s32.totalorder %s148, %s150
    %p154 = scmp.eq.s32.totalorder %s15, 0
    %p155 = por %p153, %p154
    %p156 = scmp.ne.s32.totalorder %s148, %s150
    %p157 = scmp.eq.s32.totalorder %s20, 1
    %p158 = por %p156, %p157
    %p159 = scmp.ne.s32.totalorder %s150, %s151
    %p160 = scmp.eq.s32.totalorder %s20, 0
    %p161 = por %p159, %p160
    %p162 = scmp.ne.s32.totalorder %s150, %s151
    %p163 = scmp.eq.s32.totalorder %s21, 1
    %p164 = por %p162, %p163
    %p166 = scmp.ne.s32.totalorder %s151, %s165
    %p167 = scmp.eq.s32.totalorder %s21, 0
    %p168 = por %p166, %p167
    %s169 = ssub.s32 %s15, %s22
    %p170 = scmp.eq.s32.totalorder %s169, 0
    %s172 = sadd.s32 %s171, 1
    %s173 = scalar_select %p170, %s171, %s172
    %p176 = pneg %p170
    %p177 = scmp.eq.s32.totalorder %s15, 1
    %p178 = por %p176, %p177
    %p179 = scmp.ne.s32.totalorder %s171, %s174
    %p180 = scmp.eq.s32.totalorder %s15, 0
    %p181 = por %p179, %p180
    %p182 = scmp.ne.s32.totalorder %s171, %s174
    %p183 = scmp.eq.s32.totalorder %s20, 1
    %p184 = por %p182, %p183
    %p185 = scmp.ne.s32.totalorder %s174, %s175
    %p186 = scmp.eq.s32.totalorder %s20, 0
    %p187 = por %p185, %p186
    %p188 = scmp.ne.s32.totalorder %s174, %s175
    %p189 = scmp.eq.s32.totalorder %s21, 1
    %p190 = por %p188, %p189
    %p192 = scmp.ne.s32.totalorder %s175, %s191
    %p193 = scmp.eq.s32.totalorder %s21, 0
    %p194 = por %p192, %p193
    %s195 = ssub.s32 %s15, %s22
    %p196 = scmp.eq.s32.totalorder %s195, 0
    %s198 = sadd.s32 %s197, 1
    %s199 = scalar_select %p196, %s197, %s198
    %p202 = pneg %p196
    %p203 = scmp.eq.s32.totalorder %s15, 1
    %p204 = por %p202, %p203
    %p205 = scmp.ne.s32.totalorder %s197, %s200
    %p206 = scmp.eq.s32.totalorder %s15, 0
    %p207 = por %p205, %p206
    %p208 = scmp.ne.s32.totalorder %s197, %s200
    %p209 = scmp.eq.s32.totalorder %s20, 1
    %p210 = por %p208, %p209
    %p211 = scmp.ne.s32.totalorder %s200, %s201
    %p212 = scmp.eq.s32.totalorder %s20, 0
    %p213 = por %p211, %p212
    %p214 = scmp.ne.s32.totalorder %s200, %s201
    %p215 = scmp.eq.s32.totalorder %s21, 1
    %p216 = por %p214, %p215
    %p218 = scmp.ne.s32.totalorder %s201, %s217
    %p219 = scmp.eq.s32.totalorder %s21, 0
    %p220 = por %p218, %p219
    %s221 = ssub.s32 %s15, %s22
    %p222 = scmp.eq.s32.totalorder %s221, 0
    %s224 = sadd.s32 %s223, 1
    %s225 = scalar_select %p222, %s223, %s224
    %p228 = pneg %p222
    %p229 = scmp.eq.s32.totalorder %s15, 1
    %p230 = por %p228, %p229
    %p231 = scmp.ne.s32.totalorder %s223, %s226
    %p232 = scmp.eq.s32.totalorder %s15, 0
    %p233 = por %p231, %p232
    %p234 = scmp.ne.s32.totalorder %s223, %s226
    %p235 = scmp.eq.s32.totalorder %s20, 1
    %p236 = por %p234, %p235
    %p237 = scmp.ne.s32.totalorder %s226, %s227
    %p238 = scmp.eq.s32.totalorder %s20, 0
    %p239 = por %p237, %p238
    %p240 = scmp.ne.s32.totalorder %s226, %s227
    %p241 = scmp.eq.s32.totalorder %s21, 1
    %p242 = por %p240, %p241
    %p244 = scmp.ne.s32.totalorder %s227, %s243
    %p245 = scmp.eq.s32.totalorder %s21, 0
    %p246 = por %p244, %p245
    %p247 = scmp.le.s32.totalorder 1, %s15
    %p248 = scmp.lt.s32.totalorder %s15, 3
    %p249 = pnand %p247, %p248
    %p250 = pneg %p249
    // Predicated region
    $region9: #{image_encoder_forward.11} parent=5 // pred_check
      _
    $region10: #{image_encoder_forward.11} parent=5 // pred_check_branch
      %252 = sbr.rel (%p249) target = $region12
    $region11: #{image_encoder_forward.11} parent=5 // pred_region
      %s253 = ssub.s32 %s15, 1
      // Predicated region
      $region13: #{image_encoder_forward.11} parent=11 // pred_check
        %p254 = pneg %p140
      $region14: #{image_encoder_forward.11} parent=11 // pred_check_branch
        %256 = sbr.rel (%p254) target = $region16
      $region15: #{image_encoder_forward.11} parent=11 // pred_region
        _
      $region16: #{image_encoder_forward.11} parent=11 // pred_fallthru
        _
      // Predicated region
      $region17: #{image_encoder_forward.11} parent=11 // pred_check
        %p257 = pneg %p161
      $region18: #{image_encoder_forward.11} parent=11 // pred_check_branch
        %259 = sbr.rel (%p257) target = $region20
      $region19: #{image_encoder_forward.11} parent=11 // pred_region
        _
      $region20: #{image_encoder_forward.11} parent=11 // pred_fallthru
        _
    $region12: #{image_encoder_forward.11} parent=5 // pred_fallthru
      _
    %p260 = scmp.lt.s32.totalorder %s15, 2
    // Predicated region
    $region21: #{image_encoder_forward.11} parent=5 // pred_check
      %p261 = pneg %p260
    $region22: #{image_encoder_forward.11} parent=5 // pred_check_branch
      %263 = sbr.rel (%p261) target = $region24
    $region23: #{image_encoder_forward.11} parent=5 // pred_region
      // Predicated region
      $region25: #{image_encoder_forward.11} parent=23 // pred_check
        %p264 = pneg %p35
      $region26: #{image_encoder_forward.11} parent=23 // pred_check_branch
        %266 = sbr.rel (%p264) target = $region28
      $region27: #{image_encoder_forward.11} parent=23 // pred_region
        %p267 = scmp.lt.s32.totalorder %s15, 1
        %s268 = scalar_select %p267, %s15, 1
        %s269 = smul.addr %s268, 128
        %s270 = smul.addr %s269, 8
        %s271 = scalar_lea.vmem %s0, %s270
      $region28: #{image_encoder_forward.11} parent=23 // pred_fallthru
        _
      // Predicated region
      $region29: #{image_encoder_forward.11} parent=23 // pred_check
        %p272 = pneg %p61
      $region30: #{image_encoder_forward.11} parent=23 // pred_check_branch
        %274 = sbr.rel (%p272) target = $region32
      $region31: #{image_encoder_forward.11} parent=23 // pred_region
        %p275 = scmp.lt.s32.totalorder %s15, 1
        %s276 = scalar_select %p275, %s15, 1
        %s277 = smul.addr %s276, 128
        %s278 = smul.addr %s277, 8
        %s279 = scalar_lea.vmem %s1, %s278
      $region32: #{image_encoder_forward.11} parent=23 // pred_fallthru
        _
      // Predicated region
      $region33: #{image_encoder_forward.11} parent=23 // pred_check
        %p280 = pneg %p87
      $region34: #{image_encoder_forward.11} parent=23 // pred_check_branch
        %282 = sbr.rel (%p280) target = $region36
      $region35: #{image_encoder_forward.11} parent=23 // pred_region
        %p283 = scmp.lt.s32.totalorder %s15, 1
        %s284 = scalar_select %p283, %s15, 1
        %s285 = smul.addr %s284, 4
        %s286 = scalar_lea.vmem %s2, %s285
      $region36: #{image_encoder_forward.11} parent=23 // pred_fallthru
        _
      // Predicated region
      $region37: #{image_encoder_forward.11} parent=23 // pred_check
        %p287 = pneg %p113
      $region38: #{image_encoder_forward.11} parent=23 // pred_check_branch
        %289 = sbr.rel (%p287) target = $region40
      $region39: #{image_encoder_forward.11} parent=23 // pred_region
        %p290 = scmp.lt.s32.totalorder %s15, 1
        %s291 = scalar_select %p290, %s15, 1
        %s292 = smul.addr %s291, 4
        %s293 = scalar_lea.vmem %s3, %s292
      $region40: #{image_encoder_forward.11} parent=23 // pred_fallthru
        _
    $region24: #{image_encoder_forward.11} parent=5 // pred_fallthru
      _
    %p294 = scmp.le.s32.totalorder 1, %s15
    %p295 = scmp.lt.s32.totalorder %s15, 3
    %p296 = pnand %p294, %p295
    %p297 = pneg %p296
    // Predicated region
    $region41: #{image_encoder_forward.11} parent=5 // pred_check
      _
    $region42: #{image_encoder_forward.11} parent=5 // pred_check_branch
      %299 = sbr.rel (%p296) target = $region44
    $region43: #{image_encoder_forward.11} parent=5 // pred_region
      %s300 = ssub.s32 %s15, 1
      %p301 = scmp.lt.s32.totalorder %s20, 1
      %s302 = scalar_select %p301, %s20, 1
      %s303 = smul.addr %s302, 128
      %s304 = smul.addr %s303, 8
      %s305 = scalar_lea.vmem %s0, %s304
      %p306 = pneg %p41
      %p307 = pneg %p38
      %p308 = scmp.lt.s32.totalorder %s20, 1
      %s309 = scalar_select %p308, %s20, 1
      %s310 = smul.addr %s309, 128
      %s311 = smul.addr %s310, 8
      %s312 = scalar_lea.vmem %s1, %s311
      %p313 = pneg %p67
      %p314 = pneg %p64
      %p315 = scmp.lt.s32.totalorder %s20, 1
      %s316 = scalar_select %p315, %s20, 1
      %s317 = smul.addr %s316, 4
      %s318 = scalar_lea.vmem %s2, %s317
      %p319 = pneg %p93
      %p320 = pneg %p90
      %p321 = scmp.lt.s32.totalorder %s20, 1
      %s322 = scalar_select %p321, %s20, 1
      %s323 = smul.addr %s322, 4
      %s324 = scalar_lea.vmem %s3, %s323
      %p325 = pneg %p119
      %p326 = pneg %p116
      %p327 = pneg %p140
      %p328 = pneg %p137
      %p329 = pneg %p161
      %p330 = pneg %p158
      %p331 = pneg %p187
      %p332 = pneg %p184
      %p333 = scmp.lt.s32.totalorder %s20, 1
      %s334 = scalar_select %p333, %s20, 1
      %s335 = smul.addr %s334, 32
      %s336 = smul.addr %s335, 8
      %s337 = scalar_lea.vmem %s6, %s336
      %p338 = pneg %p213
      %p339 = pneg %p210
      %p340 = scmp.lt.s32.totalorder %s20, 1
      %s341 = scalar_select %p340, %s20, 1
      %s342 = smul.addr %s341, 32
      %s343 = smul.addr %s342, 8
      %s344 = scalar_lea.vmem %s7, %s343
      %p345 = pneg %p239
      %p346 = pneg %p236
      %p347 = scmp.lt.s32.totalorder %s20, 1
      %s348 = scalar_select %p347, %s20, 1
      %s349 = scalar_lea.vmem %s8, %s348
      %p350 = scmp.lt.s32.totalorder %s20, 1
      %s351 = scalar_select %p350, %s20, 1
      %s352 = smul.addr %s351, 128
      %s353 = smul.addr %s352, 8
      %s354 = scalar_lea.vmem %s0, %s353
      %p355 = scmp.lt.s32.totalorder %s20, 1
      %s356 = scalar_select %p355, %s20, 1
      %s357 = smul.addr %s356, 128
      %s358 = smul.addr %s357, 8
      %s359 = scalar_lea.vmem %s1, %s358
      %p360 = scmp.lt.s32.totalorder %s20, 1
      %s361 = scalar_select %p360, %s20, 1
      %s362 = smul.addr %s361, 4
      %s363 = scalar_lea.vmem %s2, %s362
      %p364 = scmp.lt.s32.totalorder %s20, 1
      %s365 = scalar_select %p364, %s20, 1
      %s366 = smul.addr %s365, 4
      %s367 = scalar_lea.vmem %s3, %s366
      %p368 = scmp.lt.s32.totalorder %s20, 1
      %s369 = scalar_select %p368, %s20, 1
      %s370 = smul.addr %s369, 32
      %s371 = smul.addr %s370, 8
      %s372 = scalar_lea.vmem %s6, %s371
      %p373 = scmp.lt.s32.totalorder %s20, 1
      %s374 = scalar_select %p373, %s20, 1
      %s375 = smul.addr %s374, 32
      %s376 = smul.addr %s375, 8
      %s377 = scalar_lea.vmem %s7, %s376
      %p378 = scmp.lt.s32.totalorder %s20, 1
      %s379 = scalar_select %p378, %s20, 1
      %s380 = scalar_lea.vmem %s8, %s379
      %v381 = vld [vmem:[%s363] sm:$0x1]
      %v382 = vld [vmem:[%s363 + $0x1] sm:$0x1]
      %v383 = vld [vmem:[%s363 + $0x2] sm:$0x1]
      %v384 = vld [vmem:[%s363 + $0x3] sm:$0x1]
      %v385 = vld [vmem:[%s367] sm:$0x1]
      %v386 = vld [vmem:[%s367 + $0x1] sm:$0x1]
      %v387 = vld [vmem:[%s367 + $0x2] sm:$0x1]
      %v388 = vld [vmem:[%s367 + $0x3] sm:$0x1]
      %v389 = vld [vmem:[%s354] sm:$0xff]
      %v390 = vld [vmem:[%s354 + $0x8] sm:$0xff]
      %v391 = vld [vmem:[%s354 + $0x10] sm:$0xff]
      %v392 = vld [vmem:[%s354 + $0x18] sm:$0xff]
      %v393 = vld [vmem:[%s354 + $0x20] sm:$0xff]
      %v394 = vld [vmem:[%s354 + $0x28] sm:$0xff]
      %v395 = vld [vmem:[%s354 + $0x30] sm:$0xff]
      %v396 = vld [vmem:[%s354 + $0x38] sm:$0xff]
      %v397 = vld [vmem:[%s354 + $0x40] sm:$0xff]
      %v398 = vld [vmem:[%s354 + $0x48] sm:$0xff]
      %v399 = vld [vmem:[%s354 + $0x50] sm:$0xff]
      %v400 = vld [vmem:[%s354 + $0x58] sm:$0xff]
      %v401 = vld [vmem:[%s354 + $0x60] sm:$0xff]
      %v402 = vld [vmem:[%s354 + $0x68] sm:$0xff]
      %v403 = vld [vmem:[%s354 + $0x70] sm:$0xff]
      %v404 = vld [vmem:[%s354 + $0x78] sm:$0xff]
      %v405 = vld [vmem:[%s354 + $0x80] sm:$0xff]
      %v406 = vld [vmem:[%s354 + $0x88] sm:$0xff]
      %v407 = vld [vmem:[%s354 + $0x90] sm:$0xff]
      %v408 = vld [vmem:[%s354 + $0x98] sm:$0xff]
      %v409 = vld [vmem:[%s354 + $0xa0] sm:$0xff]
      %v410 = vld [vmem:[%s354 + $0xa8] sm:$0xff]
      %v411 = vld [vmem:[%s354 + $0xb0] sm:$0xff]
      %v412 = vld [vmem:[%s354 + $0xb8] sm:$0xff]
      %v413 = vld [vmem:[%s354 + $0xc0] sm:$0xff]
      %v414 = vld [vmem:[%s354 + $0xc8] sm:$0xff]
      %v415 = vld [vmem:[%s354 + $0xd0] sm:$0xff]
      %v416 = vld [vmem:[%s354 + $0xd8] sm:$0xff]
      %v417 = vld [vmem:[%s354 + $0xe0] sm:$0xff]
      %v418 = vld [vmem:[%s354 + $0xe8] sm:$0xff]
      %v419 = vld [vmem:[%s354 + $0xf0] sm:$0xff]
      %v420 = vld [vmem:[%s354 + $0xf8] sm:$0xff]
      %v422 = vperm.slane %v381, 0
      %v424 = vmul.f32 %v389, %v422
      %v425 = vmul.f32 %v390, %v422
      %v426 = vmul.f32 %v391, %v422
      %v427 = vmul.f32 %v392, %v422
      %v428 = vmul.f32 %v393, %v422
      %v429 = vmul.f32 %v394, %v422
      %v430 = vmul.f32 %v395, %v422
      %v431 = vmul.f32 %v396, %v422
      %v432 = vmul.f32 %v397, %v422
      %v433 = vmul.f32 %v398, %v422
      %v434 = vmul.f32 %v399, %v422
      %v435 = vmul.f32 %v400, %v422
      %v436 = vmul.f32 %v401, %v422
      %v437 = vmul.f32 %v402, %v422
      %v438 = vmul.f32 %v403, %v422
      %v439 = vmul.f32 %v404, %v422
      %v440 = vmul.f32 %v405, %v422
      %v441 = vmul.f32 %v406, %v422
      %v442 = vmul.f32 %v407, %v422
      %v443 = vmul.f32 %v408, %v422
      %v444 = vmul.f32 %v409, %v422
      %v445 = vmul.f32 %v410, %v422
      %v446 = vmul.f32 %v411, %v422
      %v447 = vmul.f32 %v412, %v422
      %v448 = vmul.f32 %v413, %v422
      %v449 = vmul.f32 %v414, %v422
      %v450 = vmul.f32 %v415, %v422
      %v451 = vmul.f32 %v416, %v422
      %v452 = vmul.f32 %v417, %v422
      %v453 = vmul.f32 %v418, %v422
      %v454 = vmul.f32 %v419, %v422
      %v455 = vmul.f32 %v420, %v422
      %v456 = vadd.f32 %v424, 0.0
      %v457 = vadd.f32 %v425, 0.0
      %v458 = vadd.f32 %v426, 0.0
      %v459 = vadd.f32 %v427, 0.0
      %v460 = vadd.f32 %v428, 0.0
      %v461 = vadd.f32 %v429, 0.0
      %v462 = vadd.f32 %v430, 0.0
      %v463 = vadd.f32 %v431, 0.0
      %v464 = vadd.f32 %v432, 0.0
      %v465 = vadd.f32 %v433, 0.0
      %v466 = vadd.f32 %v434, 0.0
      %v467 = vadd.f32 %v435, 0.0
      %v468 = vadd.f32 %v436, 0.0
      %v469 = vadd.f32 %v437, 0.0
      %v470 = vadd.f32 %v438, 0.0
      %v471 = vadd.f32 %v439, 0.0
      %v472 = vadd.f32 %v440, 0.0
      %v473 = vadd.f32 %v441, 0.0
      %v474 = vadd.f32 %v442, 0.0
      %v475 = vadd.f32 %v443, 0.0
      %v476 = vadd.f32 %v444, 0.0
      %v477 = vadd.f32 %v445, 0.0
      %v478 = vadd.f32 %v446, 0.0
      %v479 = vadd.f32 %v447, 0.0
      %v480 = vadd.f32 %v448, 0.0
      %v481 = vadd.f32 %v449, 0.0
      %v482 = vadd.f32 %v450, 0.0
      %v483 = vadd.f32 %v451, 0.0
      %v484 = vadd.f32 %v452, 0.0
      %v485 = vadd.f32 %v453, 0.0
      %v486 = vadd.f32 %v454, 0.0
      %v487 = vadd.f32 %v455, 0.0
      %v488 = vld [vmem:[%s359] sm:$0xff]
      %v489 = vld [vmem:[%s359 + $0x8] sm:$0xff]
      %v490 = vld [vmem:[%s359 + $0x10] sm:$0xff]
      %v491 = vld [vmem:[%s359 + $0x18] sm:$0xff]
      %v492 = vld [vmem:[%s359 + $0x20] sm:$0xff]
      %v493 = vld [vmem:[%s359 + $0x28] sm:$0xff]
      %v494 = vld [vmem:[%s359 + $0x30] sm:$0xff]
      %v495 = vld [vmem:[%s359 + $0x38] sm:$0xff]
      %v496 = vld [vmem:[%s359 + $0x40] sm:$0xff]
      %v497 = vld [vmem:[%s359 + $0x48] sm:$0xff]
      %v498 = vld [vmem:[%s359 + $0x50] sm:$0xff]
      %v499 = vld [vmem:[%s359 + $0x58] sm:$0xff]
      %v500 = vld [vmem:[%s359 + $0x60] sm:$0xff]
      %v501 = vld [vmem:[%s359 + $0x68] sm:$0xff]
      %v502 = vld [vmem:[%s359 + $0x70] sm:$0xff]
      %v503 = vld [vmem:[%s359 + $0x78] sm:$0xff]
      %v504 = vld [vmem:[%s359 + $0x80] sm:$0xff]
      %v505 = vld [vmem:[%s359 + $0x88] sm:$0xff]
      %v506 = vld [vmem:[%s359 + $0x90] sm:$0xff]
      %v507 = vld [vmem:[%s359 + $0x98] sm:$0xff]
      %v508 = vld [vmem:[%s359 + $0xa0] sm:$0xff]
      %v509 = vld [vmem:[%s359 + $0xa8] sm:$0xff]
      %v510 = vld [vmem:[%s359 + $0xb0] sm:$0xff]
      %v511 = vld [vmem:[%s359 + $0xb8] sm:$0xff]
      %v512 = vld [vmem:[%s359 + $0xc0] sm:$0xff]
      %v513 = vld [vmem:[%s359 + $0xc8] sm:$0xff]
      %v514 = vld [vmem:[%s359 + $0xd0] sm:$0xff]
      %v515 = vld [vmem:[%s359 + $0xd8] sm:$0xff]
      %v516 = vld [vmem:[%s359 + $0xe0] sm:$0xff]
      %v517 = vld [vmem:[%s359 + $0xe8] sm:$0xff]
      %v518 = vld [vmem:[%s359 + $0xf0] sm:$0xff]
      %v519 = vld [vmem:[%s359 + $0xf8] sm:$0xff]
      %v521 = vperm.slane %v385, 0
      %v523 = vmul.f32 %v488, %v521
      %v524 = vmul.f32 %v489, %v521
      %v525 = vmul.f32 %v490, %v521
      %v526 = vmul.f32 %v491, %v521
      %v527 = vmul.f32 %v492, %v521
      %v528 = vmul.f32 %v493, %v521
      %v529 = vmul.f32 %v494, %v521
      %v530 = vmul.f32 %v495, %v521
      %v531 = vmul.f32 %v496, %v521
      %v532 = vmul.f32 %v497, %v521
      %v533 = vmul.f32 %v498, %v521
      %v534 = vmul.f32 %v499, %v521
      %v535 = vmul.f32 %v500, %v521
      %v536 = vmul.f32 %v501, %v521
      %v537 = vmul.f32 %v502, %v521
      %v538 = vmul.f32 %v503, %v521
      %v539 = vmul.f32 %v504, %v521
      %v540 = vmul.f32 %v505, %v521
      %v541 = vmul.f32 %v506, %v521
      %v542 = vmul.f32 %v507, %v521
      %v543 = vmul.f32 %v508, %v521
      %v544 = vmul.f32 %v509, %v521
      %v545 = vmul.f32 %v510, %v521
      %v546 = vmul.f32 %v511, %v521
      %v547 = vmul.f32 %v512, %v521
      %v548 = vmul.f32 %v513, %v521
      %v549 = vmul.f32 %v514, %v521
      %v550 = vmul.f32 %v515, %v521
      %v551 = vmul.f32 %v516, %v521
      %v552 = vmul.f32 %v517, %v521
      %v553 = vmul.f32 %v518, %v521
      %v554 = vmul.f32 %v519, %v521
      %v555 = vadd.f32 %v523, 0.0
      %v556 = vadd.f32 %v524, 0.0
      %v557 = vadd.f32 %v525, 0.0
      %v558 = vadd.f32 %v526, 0.0
      %v559 = vadd.f32 %v527, 0.0
      %v560 = vadd.f32 %v528, 0.0
      %v561 = vadd.f32 %v529, 0.0
      %v562 = vadd.f32 %v530, 0.0
      %v563 = vadd.f32 %v531, 0.0
      %v564 = vadd.f32 %v532, 0.0
      %v565 = vadd.f32 %v533, 0.0
      %v566 = vadd.f32 %v534, 0.0
      %v567 = vadd.f32 %v535, 0.0
      %v568 = vadd.f32 %v536, 0.0
      %v569 = vadd.f32 %v537, 0.0
      %v570 = vadd.f32 %v538, 0.0
      %v571 = vadd.f32 %v539, 0.0
      %v572 = vadd.f32 %v540, 0.0
      %v573 = vadd.f32 %v541, 0.0
      %v574 = vadd.f32 %v542, 0.0
      %v575 = vadd.f32 %v543, 0.0
      %v576 = vadd.f32 %v544, 0.0
      %v577 = vadd.f32 %v545, 0.0
      %v578 = vadd.f32 %v546, 0.0
      %v579 = vadd.f32 %v547, 0.0
      %v580 = vadd.f32 %v548, 0.0
      %v581 = vadd.f32 %v549, 0.0
      %v582 = vadd.f32 %v550, 0.0
      %v583 = vadd.f32 %v551, 0.0
      %v584 = vadd.f32 %v552, 0.0
      %v585 = vadd.f32 %v553, 0.0
      %v586 = vadd.f32 %v554, 0.0
      %s587 = scalar_lea.vmem %s354, 256
      %v588 = vld [vmem:[%s587] sm:$0xff]
      %v589 = vld [vmem:[%s587 + $0x8] sm:$0xff]
      %v590 = vld [vmem:[%s587 + $0x10] sm:$0xff]
      %v591 = vld [vmem:[%s587 + $0x18] sm:$0xff]
      %v592 = vld [vmem:[%s587 + $0x20] sm:$0xff]
      %v593 = vld [vmem:[%s587 + $0x28] sm:$0xff]
      %v594 = vld [vmem:[%s587 + $0x30] sm:$0xff]
      %v595 = vld [vmem:[%s587 + $0x38] sm:$0xff]
      %v596 = vld [vmem:[%s587 + $0x40] sm:$0xff]
      %v597 = vld [vmem:[%s587 + $0x48] sm:$0xff]
      %v598 = vld [vmem:[%s587 + $0x50] sm:$0xff]
      %v599 = vld [vmem:[%s587 + $0x58] sm:$0xff]
      %v600 = vld [vmem:[%s587 + $0x60] sm:$0xff]
      %v601 = vld [vmem:[%s587 + $0x68] sm:$0xff]
      %v602 = vld [vmem:[%s587 + $0x70] sm:$0xff]
      %v603 = vld [vmem:[%s587 + $0x78] sm:$0xff]
      %v604 = vld [vmem:[%s587 + $0x80] sm:$0xff]
      %v605 = vld [vmem:[%s587 + $0x88] sm:$0xff]
      %v606 = vld [vmem:[%s587 + $0x90] sm:$0xff]
      %v607 = vld [vmem:[%s587 + $0x98] sm:$0xff]
      %v608 = vld [vmem:[%s587 + $0xa0] sm:$0xff]
      %v609 = vld [vmem:[%s587 + $0xa8] sm:$0xff]
      %v610 = vld [vmem:[%s587 + $0xb0] sm:$0xff]
      %v611 = vld [vmem:[%s587 + $0xb8] sm:$0xff]
      %v612 = vld [vmem:[%s587 + $0xc0] sm:$0xff]
      %v613 = vld [vmem:[%s587 + $0xc8] sm:$0xff]
      %v614 = vld [vmem:[%s587 + $0xd0] sm:$0xff]
      %v615 = vld [vmem:[%s587 + $0xd8] sm:$0xff]
      %v616 = vld [vmem:[%s587 + $0xe0] sm:$0xff]
      %v617 = vld [vmem:[%s587 + $0xe8] sm:$0xff]
      %v618 = vld [vmem:[%s587 + $0xf0] sm:$0xff]
      %v619 = vld [vmem:[%s587 + $0xf8] sm:$0xff]
      %v621 = vperm.slane %v382, 0
      %v623 = vmul.f32 %v588, %v621
      %v624 = vmul.f32 %v589, %v621
      %v625 = vmul.f32 %v590, %v621
      %v626 = vmul.f32 %v591, %v621
      %v627 = vmul.f32 %v592, %v621
      %v628 = vmul.f32 %v593, %v621
      %v629 = vmul.f32 %v594, %v621
      %v630 = vmul.f32 %v595, %v621
      %v631 = vmul.f32 %v596, %v621
      %v632 = vmul.f32 %v597, %v621
      %v633 = vmul.f32 %v598, %v621
      %v634 = vmul.f32 %v599, %v621
      %v635 = vmul.f32 %v600, %v621
      %v636 = vmul.f32 %v601, %v621
      %v637 = vmul.f32 %v602, %v621
      %v638 = vmul.f32 %v603, %v621
      %v639 = vmul.f32 %v604, %v621
      %v640 = vmul.f32 %v605, %v621
      %v641 = vmul.f32 %v606, %v621
      %v642 = vmul.f32 %v607, %v621
      %v643 = vmul.f32 %v608, %v621
      %v644 = vmul.f32 %v609, %v621
      %v645 = vmul.f32 %v610, %v621
      %v646 = vmul.f32 %v611, %v621
      %v647 = vmul.f32 %v612, %v621
      %v648 = vmul.f32 %v613, %v621
      %v649 = vmul.f32 %v614, %v621
      %v650 = vmul.f32 %v615, %v621
      %v651 = vmul.f32 %v616, %v621
      %v652 = vmul.f32 %v617, %v621
      %v653 = vmul.f32 %v618, %v621
      %v654 = vmul.f32 %v619, %v621
      %v655 = vadd.f32 %v456, %v623
      %v656 = vadd.f32 %v457, %v624
      %v657 = vadd.f32 %v458, %v625
      %v658 = vadd.f32 %v459, %v626
      %v659 = vadd.f32 %v460, %v627
      %v660 = vadd.f32 %v461, %v628
      %v661 = vadd.f32 %v462, %v629
      %v662 = vadd.f32 %v463, %v630
      %v663 = vadd.f32 %v464, %v631
      %v664 = vadd.f32 %v465, %v632
      %v665 = vadd.f32 %v466, %v633
      %v666 = vadd.f32 %v467, %v634
      %v667 = vadd.f32 %v468, %v635
      %v668 = vadd.f32 %v469, %v636
      %v669 = vadd.f32 %v470, %v637
      %v670 = vadd.f32 %v471, %v638
      %v671 = vadd.f32 %v472, %v639
      %v672 = vadd.f32 %v473, %v640
      %v673 = vadd.f32 %v474, %v641
      %v674 = vadd.f32 %v475, %v642
      %v675 = vadd.f32 %v476, %v643
      %v676 = vadd.f32 %v477, %v644
      %v677 = vadd.f32 %v478, %v645
      %v678 = vadd.f32 %v479, %v646
      %v679 = vadd.f32 %v480, %v647
      %v680 = vadd.f32 %v481, %v648
      %v681 = vadd.f32 %v482, %v649
      %v682 = vadd.f32 %v483, %v650
      %v683 = vadd.f32 %v484, %v651
      %v684 = vadd.f32 %v485, %v652
      %v685 = vadd.f32 %v486, %v653
      %v686 = vadd.f32 %v487, %v654
      %s687 = scalar_lea.vmem %s359, 256
      %v688 = vld [vmem:[%s687] sm:$0xff]
      %v689 = vld [vmem:[%s687 + $0x8] sm:$0xff]
      %v690 = vld [vmem:[%s687 + $0x10] sm:$0xff]
      %v691 = vld [vmem:[%s687 + $0x18] sm:$0xff]
      %v692 = vld [vmem:[%s687 + $0x20] sm:$0xff]
      %v693 = vld [vmem:[%s687 + $0x28] sm:$0xff]
      %v694 = vld [vmem:[%s687 + $0x30] sm:$0xff]
      %v695 = vld [vmem:[%s687 + $0x38] sm:$0xff]
      %v696 = vld [vmem:[%s687 + $0x40] sm:$0xff]
      %v697 = vld [vmem:[%s687 + $0x48] sm:$0xff]
      %v698 = vld [vmem:[%s687 + $0x50] sm:$0xff]
      %v699 = vld [vmem:[%s687 + $0x58] sm:$0xff]
      %v700 = vld [vmem:[%s687 + $0x60] sm:$0xff]
      %v701 = vld [vmem:[%s687 + $0x68] sm:$0xff]
      %v702 = vld [vmem:[%s687 + $0x70] sm:$0xff]
      %v703 = vld [vmem:[%s687 + $0x78] sm:$0xff]
      %v704 = vld [vmem:[%s687 + $0x80] sm:$0xff]
      %v705 = vld [vmem:[%s687 + $0x88] sm:$0xff]
      %v706 = vld [vmem:[%s687 + $0x90] sm:$0xff]
      %v707 = vld [vmem:[%s687 + $0x98] sm:$0xff]
      %v708 = vld [vmem:[%s687 + $0xa0] sm:$0xff]
      %v709 = vld [vmem:[%s687 + $0xa8] sm:$0xff]
      %v710 = vld [vmem:[%s687 + $0xb0] sm:$0xff]
      %v711 = vld [vmem:[%s687 + $0xb8] sm:$0xff]
      %v712 = vld [vmem:[%s687 + $0xc0] sm:$0xff]
      %v713 = vld [vmem:[%s687 + $0xc8] sm:$0xff]
      %v714 = vld [vmem:[%s687 + $0xd0] sm:$0xff]
      %v715 = vld [vmem:[%s687 + $0xd8] sm:$0xff]
      %v716 = vld [vmem:[%s687 + $0xe0] sm:$0xff]
      %v717 = vld [vmem:[%s687 + $0xe8] sm:$0xff]
      %v718 = vld [vmem:[%s687 + $0xf0] sm:$0xff]
      %v719 = vld [vmem:[%s687 + $0xf8] sm:$0xff]
      %v721 = vperm.slane %v386, 0
      %v723 = vmul.f32 %v688, %v721
      %v724 = vmul.f32 %v689, %v721
      %v725 = vmul.f32 %v690, %v721
      %v726 = vmul.f32 %v691, %v721
      %v727 = vmul.f32 %v692, %v721
      %v728 = vmul.f32 %v693, %v721
      %v729 = vmul.f32 %v694, %v721
      %v730 = vmul.f32 %v695, %v721
      %v731 = vmul.f32 %v696, %v721
      %v732 = vmul.f32 %v697, %v721
      %v733 = vmul.f32 %v698, %v721
      %v734 = vmul.f32 %v699, %v721
      %v735 = vmul.f32 %v700, %v721
      %v736 = vmul.f32 %v701, %v721
      %v737 = vmul.f32 %v702, %v721
      %v738 = vmul.f32 %v703, %v721
      %v739 = vmul.f32 %v704, %v721
      %v740 = vmul.f32 %v705, %v721
      %v741 = vmul.f32 %v706, %v721
      %v742 = vmul.f32 %v707, %v721
      %v743 = vmul.f32 %v708, %v721
      %v744 = vmul.f32 %v709, %v721
      %v745 = vmul.f32 %v710, %v721
      %v746 = vmul.f32 %v711, %v721
      %v747 = vmul.f32 %v712, %v721
      %v748 = vmul.f32 %v713, %v721
      %v749 = vmul.f32 %v714, %v721
      %v750 = vmul.f32 %v715, %v721
      %v751 = vmul.f32 %v716, %v721
      %v752 = vmul.f32 %v717, %v721
      %v753 = vmul.f32 %v718, %v721
      %v754 = vmul.f32 %v719, %v721
      %v755 = vadd.f32 %v555, %v723
      %v756 = vadd.f32 %v556, %v724
      %v757 = vadd.f32 %v557, %v725
      %v758 = vadd.f32 %v558, %v726
      %v759 = vadd.f32 %v559, %v727
      %v760 = vadd.f32 %v560, %v728
      %v761 = vadd.f32 %v561, %v729
      %v762 = vadd.f32 %v562, %v730
      %v763 = vadd.f32 %v563, %v731
      %v764 = vadd.f32 %v564, %v732
      %v765 = vadd.f32 %v565, %v733
      %v766 = vadd.f32 %v566, %v734
      %v767 = vadd.f32 %v567, %v735
      %v768 = vadd.f32 %v568, %v736
      %v769 = vadd.f32 %v569, %v737
      %v770 = vadd.f32 %v570, %v738
      %v771 = vadd.f32 %v571, %v739
      %v772 = vadd.f32 %v572, %v740
      %v773 = vadd.f32 %v573, %v741
      %v774 = vadd.f32 %v574, %v742
      %v775 = vadd.f32 %v575, %v743
      %v776 = vadd.f32 %v576, %v744
      %v777 = vadd.f32 %v577, %v745
      %v778 = vadd.f32 %v578, %v746
      %v779 = vadd.f32 %v579, %v747
      %v780 = vadd.f32 %v580, %v748
      %v781 = vadd.f32 %v581, %v749
      %v782 = vadd.f32 %v582, %v750
      %v783 = vadd.f32 %v583, %v751
      %v784 = vadd.f32 %v584, %v752
      %v785 = vadd.f32 %v585, %v753
      %v786 = vadd.f32 %v586, %v754
      %s787 = scalar_lea.vmem %s354, 512
      %v788 = vld [vmem:[%s787] sm:$0xff]
      %v789 = vld [vmem:[%s787 + $0x8] sm:$0xff]
      %v790 = vld [vmem:[%s787 + $0x10] sm:$0xff]
      %v791 = vld [vmem:[%s787 + $0x18] sm:$0xff]
      %v792 = vld [vmem:[%s787 + $0x20] sm:$0xff]
      %v793 = vld [vmem:[%s787 + $0x28] sm:$0xff]
      %v794 = vld [vmem:[%s787 + $0x30] sm:$0xff]
      %v795 = vld [vmem:[%s787 + $0x38] sm:$0xff]
      %v796 = vld [vmem:[%s787 + $0x40] sm:$0xff]
      %v797 = vld [vmem:[%s787 + $0x48] sm:$0xff]
      %v798 = vld [vmem:[%s787 + $0x50] sm:$0xff]
      %v799 = vld [vmem:[%s787 + $0x58] sm:$0xff]
      %v800 = vld [vmem:[%s787 + $0x60] sm:$0xff]
      %v801 = vld [vmem:[%s787 + $0x68] sm:$0xff]
      %v802 = vld [vmem:[%s787 + $0x70] sm:$0xff]
      %v803 = vld [vmem:[%s787 + $0x78] sm:$0xff]
      %v804 = vld [vmem:[%s787 + $0x80] sm:$0xff]
      %v805 = vld [vmem:[%s787 + $0x88] sm:$0xff]
      %v806 = vld [vmem:[%s787 + $0x90] sm:$0xff]
      %v807 = vld [vmem:[%s787 + $0x98] sm:$0xff]
      %v808 = vld [vmem:[%s787 + $0xa0] sm:$0xff]
      %v809 = vld [vmem:[%s787 + $0xa8] sm:$0xff]
      %v810 = vld [vmem:[%s787 + $0xb0] sm:$0xff]
      %v811 = vld [vmem:[%s787 + $0xb8] sm:$0xff]
      %v812 = vld [vmem:[%s787 + $0xc0] sm:$0xff]
      %v813 = vld [vmem:[%s787 + $0xc8] sm:$0xff]
      %v814 = vld [vmem:[%s787 + $0xd0] sm:$0xff]
      %v815 = vld [vmem:[%s787 + $0xd8] sm:$0xff]
      %v816 = vld [vmem:[%s787 + $0xe0] sm:$0xff]
      %v817 = vld [vmem:[%s787 + $0xe8] sm:$0xff]
      %v818 = vld [vmem:[%s787 + $0xf0] sm:$0xff]
      %v819 = vld [vmem:[%s787 + $0xf8] sm:$0xff]
      %v821 = vperm.slane %v383, 0
      %v823 = vmul.f32 %v788, %v821
      %v824 = vmul.f32 %v789, %v821
      %v825 = vmul.f32 %v790, %v821
      %v826 = vmul.f32 %v791, %v821
      %v827 = vmul.f32 %v792, %v821
      %v828 = vmul.f32 %v793, %v821
      %v829 = vmul.f32 %v794, %v821
      %v830 = vmul.f32 %v795, %v821
      %v831 = vmul.f32 %v796, %v821
      %v832 = vmul.f32 %v797, %v821
      %v833 = vmul.f32 %v798, %v821
      %v834 = vmul.f32 %v799, %v821
      %v835 = vmul.f32 %v800, %v821
      %v836 = vmul.f32 %v801, %v821
      %v837 = vmul.f32 %v802, %v821
      %v838 = vmul.f32 %v803, %v821
      %v839 = vmul.f32 %v804, %v821
      %v840 = vmul.f32 %v805, %v821
      %v841 = vmul.f32 %v806, %v821
      %v842 = vmul.f32 %v807, %v821
      %v843 = vmul.f32 %v808, %v821
      %v844 = vmul.f32 %v809, %v821
      %v845 = vmul.f32 %v810, %v821
      %v846 = vmul.f32 %v811, %v821
      %v847 = vmul.f32 %v812, %v821
      %v848 = vmul.f32 %v813, %v821
      %v849 = vmul.f32 %v814, %v821
      %v850 = vmul.f32 %v815, %v821
      %v851 = vmul.f32 %v816, %v821
      %v852 = vmul.f32 %v817, %v821
      %v853 = vmul.f32 %v818, %v821
      %v854 = vmul.f32 %v819, %v821
      %v855 = vadd.f32 %v655, %v823
      %v856 = vadd.f32 %v656, %v824
      %v857 = vadd.f32 %v657, %v825
      %v858 = vadd.f32 %v658, %v826
      %v859 = vadd.f32 %v659, %v827
      %v860 = vadd.f32 %v660, %v828
      %v861 = vadd.f32 %v661, %v829
      %v862 = vadd.f32 %v662, %v830
      %v863 = vadd.f32 %v663, %v831
      %v864 = vadd.f32 %v664, %v832
      %v865 = vadd.f32 %v665, %v833
      %v866 = vadd.f32 %v666, %v834
      %v867 = vadd.f32 %v667, %v835
      %v868 = vadd.f32 %v668, %v836
      %v869 = vadd.f32 %v669, %v837
      %v870 = vadd.f32 %v670, %v838
      %v871 = vadd.f32 %v671, %v839
      %v872 = vadd.f32 %v672, %v840
      %v873 = vadd.f32 %v673, %v841
      %v874 = vadd.f32 %v674, %v842
      %v875 = vadd.f32 %v675, %v843
      %v876 = vadd.f32 %v676, %v844
      %v877 = vadd.f32 %v677, %v845
      %v878 = vadd.f32 %v678, %v846
      %v879 = vadd.f32 %v679, %v847
      %v880 = vadd.f32 %v680, %v848
      %v881 = vadd.f32 %v681, %v849
      %v882 = vadd.f32 %v682, %v850
      %v883 = vadd.f32 %v683, %v851
      %v884 = vadd.f32 %v684, %v852
      %v885 = vadd.f32 %v685, %v853
      %v886 = vadd.f32 %v686, %v854
      %s887 = scalar_lea.vmem %s359, 512
      %v888 = vld [vmem:[%s887] sm:$0xff]
      %v889 = vld [vmem:[%s887 + $0x8] sm:$0xff]
      %v890 = vld [vmem:[%s887 + $0x10] sm:$0xff]
      %v891 = vld [vmem:[%s887 + $0x18] sm:$0xff]
      %v892 = vld [vmem:[%s887 + $0x20] sm:$0xff]
      %v893 = vld [vmem:[%s887 + $0x28] sm:$0xff]
      %v894 = vld [vmem:[%s887 + $0x30] sm:$0xff]
      %v895 = vld [vmem:[%s887 + $0x38] sm:$0xff]
      %v896 = vld [vmem:[%s887 + $0x40] sm:$0xff]
      %v897 = vld [vmem:[%s887 + $0x48] sm:$0xff]
      %v898 = vld [vmem:[%s887 + $0x50] sm:$0xff]
      %v899 = vld [vmem:[%s887 + $0x58] sm:$0xff]
      %v900 = vld [vmem:[%s887 + $0x60] sm:$0xff]
      %v901 = vld [vmem:[%s887 + $0x68] sm:$0xff]
      %v902 = vld [vmem:[%s887 + $0x70] sm:$0xff]
      %v903 = vld [vmem:[%s887 + $0x78] sm:$0xff]
      %v904 = vld [vmem:[%s887 + $0x80] sm:$0xff]
      %v905 = vld [vmem:[%s887 + $0x88] sm:$0xff]
      %v906 = vld [vmem:[%s887 + $0x90] sm:$0xff]
      %v907 = vld [vmem:[%s887 + $0x98] sm:$0xff]
      %v908 = vld [vmem:[%s887 + $0xa0] sm:$0xff]
      %v909 = vld [vmem:[%s887 + $0xa8] sm:$0xff]
      %v910 = vld [vmem:[%s887 + $0xb0] sm:$0xff]
      %v911 = vld [vmem:[%s887 + $0xb8] sm:$0xff]
      %v912 = vld [vmem:[%s887 + $0xc0] sm:$0xff]
      %v913 = vld [vmem:[%s887 + $0xc8] sm:$0xff]
      %v914 = vld [vmem:[%s887 + $0xd0] sm:$0xff]
      %v915 = vld [vmem:[%s887 + $0xd8] sm:$0xff]
      %v916 = vld [vmem:[%s887 + $0xe0] sm:$0xff]
      %v917 = vld [vmem:[%s887 + $0xe8] sm:$0xff]
      %v918 = vld [vmem:[%s887 + $0xf0] sm:$0xff]
      %v919 = vld [vmem:[%s887 + $0xf8] sm:$0xff]
      %v921 = vperm.slane %v387, 0
      %v923 = vmul.f32 %v888, %v921
      %v924 = vmul.f32 %v889, %v921
      %v925 = vmul.f32 %v890, %v921
      %v926 = vmul.f32 %v891, %v921
      %v927 = vmul.f32 %v892, %v921
      %v928 = vmul.f32 %v893, %v921
      %v929 = vmul.f32 %v894, %v921
      %v930 = vmul.f32 %v895, %v921
      %v931 = vmul.f32 %v896, %v921
      %v932 = vmul.f32 %v897, %v921
      %v933 = vmul.f32 %v898, %v921
      %v934 = vmul.f32 %v899, %v921
      %v935 = vmul.f32 %v900, %v921
      %v936 = vmul.f32 %v901, %v921
      %v937 = vmul.f32 %v902, %v921
      %v938 = vmul.f32 %v903, %v921
      %v939 = vmul.f32 %v904, %v921
      %v940 = vmul.f32 %v905, %v921
      %v941 = vmul.f32 %v906, %v921
      %v942 = vmul.f32 %v907, %v921
      %v943 = vmul.f32 %v908, %v921
      %v944 = vmul.f32 %v909, %v921
      %v945 = vmul.f32 %v910, %v921
      %v946 = vmul.f32 %v911, %v921
      %v947 = vmul.f32 %v912, %v921
      %v948 = vmul.f32 %v913, %v921
      %v949 = vmul.f32 %v914, %v921
      %v950 = vmul.f32 %v915, %v921
      %v951 = vmul.f32 %v916, %v921
      %v952 = vmul.f32 %v917, %v921
      %v953 = vmul.f32 %v918, %v921
      %v954 = vmul.f32 %v919, %v921
      %v955 = vadd.f32 %v755, %v923
      %v956 = vadd.f32 %v756, %v924
      %v957 = vadd.f32 %v757, %v925
      %v958 = vadd.f32 %v758, %v926
      %v959 = vadd.f32 %v759, %v927
      %v960 = vadd.f32 %v760, %v928
      %v961 = vadd.f32 %v761, %v929
      %v962 = vadd.f32 %v762, %v930
      %v963 = vadd.f32 %v763, %v931
      %v964 = vadd.f32 %v764, %v932
      %v965 = vadd.f32 %v765, %v933
      %v966 = vadd.f32 %v766, %v934
      %v967 = vadd.f32 %v767, %v935
      %v968 = vadd.f32 %v768, %v936
      %v969 = vadd.f32 %v769, %v937
      %v970 = vadd.f32 %v770, %v938
      %v971 = vadd.f32 %v771, %v939
      %v972 = vadd.f32 %v772, %v940
      %v973 = vadd.f32 %v773, %v941
      %v974 = vadd.f32 %v774, %v942
      %v975 = vadd.f32 %v775, %v943
      %v976 = vadd.f32 %v776, %v944
      %v977 = vadd.f32 %v777, %v945
      %v978 = vadd.f32 %v778, %v946
      %v979 = vadd.f32 %v779, %v947
      %v980 = vadd.f32 %v780, %v948
      %v981 = vadd.f32 %v781, %v949
      %v982 = vadd.f32 %v782, %v950
      %v983 = vadd.f32 %v783, %v951
      %v984 = vadd.f32 %v784, %v952
      %v985 = vadd.f32 %v785, %v953
      %v986 = vadd.f32 %v786, %v954
      %s987 = scalar_lea.vmem %s354, 768
      %v988 = vld [vmem:[%s987] sm:$0xff]
      %v989 = vld [vmem:[%s987 + $0x8] sm:$0xff]
      %v990 = vld [vmem:[%s987 + $0x10] sm:$0xff]
      %v991 = vld [vmem:[%s987 + $0x18] sm:$0xff]
      %v992 = vld [vmem:[%s987 + $0x20] sm:$0xff]
      %v993 = vld [vmem:[%s987 + $0x28] sm:$0xff]
      %v994 = vld [vmem:[%s987 + $0x30] sm:$0xff]
      %v995 = vld [vmem:[%s987 + $0x38] sm:$0xff]
      %v996 = vld [vmem:[%s987 + $0x40] sm:$0xff]
      %v997 = vld [vmem:[%s987 + $0x48] sm:$0xff]
      %v998 = vld [vmem:[%s987 + $0x50] sm:$0xff]
      %v999 = vld [vmem:[%s987 + $0x58] sm:$0xff]
      %v1000 = vld [vmem:[%s987 + $0x60] sm:$0xff]
      %v1001 = vld [vmem:[%s987 + $0x68] sm:$0xff]
      %v1002 = vld [vmem:[%s987 + $0x70] sm:$0xff]
      %v1003 = vld [vmem:[%s987 + $0x78] sm:$0xff]
      %v1004 = vld [vmem:[%s987 + $0x80] sm:$0xff]
      %v1005 = vld [vmem:[%s987 + $0x88] sm:$0xff]
      %v1006 = vld [vmem:[%s987 + $0x90] sm:$0xff]
      %v1007 = vld [vmem:[%s987 + $0x98] sm:$0xff]
      %v1008 = vld [vmem:[%s987 + $0xa0] sm:$0xff]
      %v1009 = vld [vmem:[%s987 + $0xa8] sm:$0xff]
      %v1010 = vld [vmem:[%s987 + $0xb0] sm:$0xff]
      %v1011 = vld [vmem:[%s987 + $0xb8] sm:$0xff]
      %v1012 = vld [vmem:[%s987 + $0xc0] sm:$0xff]
      %v1013 = vld [vmem:[%s987 + $0xc8] sm:$0xff]
      %v1014 = vld [vmem:[%s987 + $0xd0] sm:$0xff]
      %v1015 = vld [vmem:[%s987 + $0xd8] sm:$0xff]
      %v1016 = vld [vmem:[%s987 + $0xe0] sm:$0xff]
      %v1017 = vld [vmem:[%s987 + $0xe8] sm:$0xff]
      %v1018 = vld [vmem:[%s987 + $0xf0] sm:$0xff]
      %v1019 = vld [vmem:[%s987 + $0xf8] sm:$0xff]
      %v1021 = vperm.slane %v384, 0
      %v1023 = vmul.f32 %v988, %v1021
      %v1024 = vmul.f32 %v989, %v1021
      %v1025 = vmul.f32 %v990, %v1021
      %v1026 = vmul.f32 %v991, %v1021
      %v1027 = vmul.f32 %v992, %v1021
      %v1028 = vmul.f32 %v993, %v1021
      %v1029 = vmul.f32 %v994, %v1021
      %v1030 = vmul.f32 %v995, %v1021
      %v1031 = vmul.f32 %v996, %v1021
      %v1032 = vmul.f32 %v997, %v1021
      %v1033 = vmul.f32 %v998, %v1021
      %v1034 = vmul.f32 %v999, %v1021
      %v1035 = vmul.f32 %v1000, %v1021
      %v1036 = vmul.f32 %v1001, %v1021
      %v1037 = vmul.f32 %v1002, %v1021
      %v1038 = vmul.f32 %v1003, %v1021
      %v1039 = vmul.f32 %v1004, %v1021
      %v1040 = vmul.f32 %v1005, %v1021
      %v1041 = vmul.f32 %v1006, %v1021
      %v1042 = vmul.f32 %v1007, %v1021
      %v1043 = vmul.f32 %v1008, %v1021
      %v1044 = vmul.f32 %v1009, %v1021
      %v1045 = vmul.f32 %v1010, %v1021
      %v1046 = vmul.f32 %v1011, %v1021
      %v1047 = vmul.f32 %v1012, %v1021
      %v1048 = vmul.f32 %v1013, %v1021
      %v1049 = vmul.f32 %v1014, %v1021
      %v1050 = vmul.f32 %v1015, %v1021
      %v1051 = vmul.f32 %v1016, %v1021
      %v1052 = vmul.f32 %v1017, %v1021
      %v1053 = vmul.f32 %v1018, %v1021
      %v1054 = vmul.f32 %v1019, %v1021
      %v1055 = vadd.f32 %v855, %v1023
      %v1056 = vadd.f32 %v856, %v1024
      %v1057 = vadd.f32 %v857, %v1025
      %v1058 = vadd.f32 %v858, %v1026
      %v1059 = vadd.f32 %v859, %v1027
      %v1060 = vadd.f32 %v860, %v1028
      %v1061 = vadd.f32 %v861, %v1029
      %v1062 = vadd.f32 %v862, %v1030
      %v1063 = vadd.f32 %v863, %v1031
      %v1064 = vadd.f32 %v864, %v1032
      %v1065 = vadd.f32 %v865, %v1033
      %v1066 = vadd.f32 %v866, %v1034
      %v1067 = vadd.f32 %v867, %v1035
      %v1068 = vadd.f32 %v868, %v1036
      %v1069 = vadd.f32 %v869, %v1037
      %v1070 = vadd.f32 %v870, %v1038
      %v1071 = vadd.f32 %v871, %v1039
      %v1072 = vadd.f32 %v872, %v1040
      %v1073 = vadd.f32 %v873, %v1041
      %v1074 = vadd.f32 %v874, %v1042
      %v1075 = vadd.f32 %v875, %v1043
      %v1076 = vadd.f32 %v876, %v1044
      %v1077 = vadd.f32 %v877, %v1045
      %v1078 = vadd.f32 %v878, %v1046
      %v1079 = vadd.f32 %v879, %v1047
      %v1080 = vadd.f32 %v880, %v1048
      %v1081 = vadd.f32 %v881, %v1049
      %v1082 = vadd.f32 %v882, %v1050
      %v1083 = vadd.f32 %v883, %v1051
      %v1084 = vadd.f32 %v884, %v1052
      %v1085 = vadd.f32 %v885, %v1053
      %v1086 = vadd.f32 %v886, %v1054
      %s1087 = scalar_lea.vmem %s359, 768
      %v1088 = vld [vmem:[%s1087] sm:$0xff]
      %v1089 = vld [vmem:[%s1087 + $0x8] sm:$0xff]
      %v1090 = vld [vmem:[%s1087 + $0x10] sm:$0xff]
      %v1091 = vld [vmem:[%s1087 + $0x18] sm:$0xff]
      %v1092 = vld [vmem:[%s1087 + $0x20] sm:$0xff]
      %v1093 = vld [vmem:[%s1087 + $0x28] sm:$0xff]
      %v1094 = vld [vmem:[%s1087 + $0x30] sm:$0xff]
      %v1095 = vld [vmem:[%s1087 + $0x38] sm:$0xff]
      %v1096 = vld [vmem:[%s1087 + $0x40] sm:$0xff]
      %v1097 = vld [vmem:[%s1087 + $0x48] sm:$0xff]
      %v1098 = vld [vmem:[%s1087 + $0x50] sm:$0xff]
      %v1099 = vld [vmem:[%s1087 + $0x58] sm:$0xff]
      %v1100 = vld [vmem:[%s1087 + $0x60] sm:$0xff]
      %v1101 = vld [vmem:[%s1087 + $0x68] sm:$0xff]
      %v1102 = vld [vmem:[%s1087 + $0x70] sm:$0xff]
      %v1103 = vld [vmem:[%s1087 + $0x78] sm:$0xff]
      %v1104 = vld [vmem:[%s1087 + $0x80] sm:$0xff]
      %v1105 = vld [vmem:[%s1087 + $0x88] sm:$0xff]
      %v1106 = vld [vmem:[%s1087 + $0x90] sm:$0xff]
      %v1107 = vld [vmem:[%s1087 + $0x98] sm:$0xff]
      %v1108 = vld [vmem:[%s1087 + $0xa0] sm:$0xff]
      %v1109 = vld [vmem:[%s1087 + $0xa8] sm:$0xff]
      %v1110 = vld [vmem:[%s1087 + $0xb0] sm:$0xff]
      %v1111 = vld [vmem:[%s1087 + $0xb8] sm:$0xff]
      %v1112 = vld [vmem:[%s1087 + $0xc0] sm:$0xff]
      %v1113 = vld [vmem:[%s1087 + $0xc8] sm:$0xff]
      %v1114 = vld [vmem:[%s1087 + $0xd0] sm:$0xff]
      %v1115 = vld [vmem:[%s1087 + $0xd8] sm:$0xff]
      %v1116 = vld [vmem:[%s1087 + $0xe0] sm:$0xff]
      %v1117 = vld [vmem:[%s1087 + $0xe8] sm:$0xff]
      %v1118 = vld [vmem:[%s1087 + $0xf0] sm:$0xff]
      %v1119 = vld [vmem:[%s1087 + $0xf8] sm:$0xff]
      %v1121 = vperm.slane %v388, 0
      %v1123 = vmul.f32 %v1088, %v1121
      %v1124 = vmul.f32 %v1089, %v1121
      %v1125 = vmul.f32 %v1090, %v1121
      %v1126 = vmul.f32 %v1091, %v1121
      %v1127 = vmul.f32 %v1092, %v1121
      %v1128 = vmul.f32 %v1093, %v1121
      %v1129 = vmul.f32 %v1094, %v1121
      %v1130 = vmul.f32 %v1095, %v1121
      %v1131 = vmul.f32 %v1096, %v1121
      %v1132 = vmul.f32 %v1097, %v1121
      %v1133 = vmul.f32 %v1098, %v1121
      %v1134 = vmul.f32 %v1099, %v1121
      %v1135 = vmul.f32 %v1100, %v1121
      %v1136 = vmul.f32 %v1101, %v1121
      %v1137 = vmul.f32 %v1102, %v1121
      %v1138 = vmul.f32 %v1103, %v1121
      %v1139 = vmul.f32 %v1104, %v1121
      %v1140 = vmul.f32 %v1105, %v1121
      %v1141 = vmul.f32 %v1106, %v1121
      %v1142 = vmul.f32 %v1107, %v1121
      %v1143 = vmul.f32 %v1108, %v1121
      %v1144 = vmul.f32 %v1109, %v1121
      %v1145 = vmul.f32 %v1110, %v1121
      %v1146 = vmul.f32 %v1111, %v1121
      %v1147 = vmul.f32 %v1112, %v1121
      %v1148 = vmul.f32 %v1113, %v1121
      %v1149 = vmul.f32 %v1114, %v1121
      %v1150 = vmul.f32 %v1115, %v1121
      %v1151 = vmul.f32 %v1116, %v1121
      %v1152 = vmul.f32 %v1117, %v1121
      %v1153 = vmul.f32 %v1118, %v1121
      %v1154 = vmul.f32 %v1119, %v1121
      %v1155 = vadd.f32 %v955, %v1123
      %v1156 = vadd.f32 %v956, %v1124
      %v1157 = vadd.f32 %v957, %v1125
      %v1158 = vadd.f32 %v958, %v1126
      %v1159 = vadd.f32 %v959, %v1127
      %v1160 = vadd.f32 %v960, %v1128
      %v1161 = vadd.f32 %v961, %v1129
      %v1162 = vadd.f32 %v962, %v1130
      %v1163 = vadd.f32 %v963, %v1131
      %v1164 = vadd.f32 %v964, %v1132
      %v1165 = vadd.f32 %v965, %v1133
      %v1166 = vadd.f32 %v966, %v1134
      %v1167 = vadd.f32 %v967, %v1135
      %v1168 = vadd.f32 %v968, %v1136
      %v1169 = vadd.f32 %v969, %v1137
      %v1170 = vadd.f32 %v970, %v1138
      %v1171 = vadd.f32 %v971, %v1139
      %v1172 = vadd.f32 %v972, %v1140
      %v1173 = vadd.f32 %v973, %v1141
      %v1174 = vadd.f32 %v974, %v1142
      %v1175 = vadd.f32 %v975, %v1143
      %v1176 = vadd.f32 %v976, %v1144
      %v1177 = vadd.f32 %v977, %v1145
      %v1178 = vadd.f32 %v978, %v1146
      %v1179 = vadd.f32 %v979, %v1147
      %v1180 = vadd.f32 %v980, %v1148
      %v1181 = vadd.f32 %v981, %v1149
      %v1182 = vadd.f32 %v982, %v1150
      %v1183 = vadd.f32 %v983, %v1151
      %v1184 = vadd.f32 %v984, %v1152
      %v1185 = vadd.f32 %v985, %v1153
      %v1186 = vadd.f32 %v986, %v1154
      %v1187 = vld [vmem:[%s4] sm:$0xff]
      %v1188 = vld [vmem:[%s4 + $0x8] sm:$0xff]
      %v1189 = vld [vmem:[%s5] sm:$0x1]
      %v1190 = vmul.f32 %v1055, %v1055
      %v1191 = vmul.f32 %v1056, %v1056
      %v1192 = vmul.f32 %v1057, %v1057
      %v1193 = vmul.f32 %v1058, %v1058
      %v1194 = vmul.f32 %v1059, %v1059
      %v1195 = vmul.f32 %v1060, %v1060
      %v1196 = vmul.f32 %v1061, %v1061
      %v1197 = vmul.f32 %v1062, %v1062
      %v1198 = vmul.f32 %v1063, %v1063
      %v1199 = vmul.f32 %v1064, %v1064
      %v1200 = vmul.f32 %v1065, %v1065
      %v1201 = vmul.f32 %v1066, %v1066
      %v1202 = vmul.f32 %v1067, %v1067
      %v1203 = vmul.f32 %v1068, %v1068
      %v1204 = vmul.f32 %v1069, %v1069
      %v1205 = vmul.f32 %v1070, %v1070
      %v1206 = vmul.f32 %v1071, %v1071
      %v1207 = vmul.f32 %v1072, %v1072
      %v1208 = vmul.f32 %v1073, %v1073
      %v1209 = vmul.f32 %v1074, %v1074
      %v1210 = vmul.f32 %v1075, %v1075
      %v1211 = vmul.f32 %v1076, %v1076
      %v1212 = vmul.f32 %v1077, %v1077
      %v1213 = vmul.f32 %v1078, %v1078
      %v1214 = vmul.f32 %v1079, %v1079
      %v1215 = vmul.f32 %v1080, %v1080
      %v1216 = vmul.f32 %v1081, %v1081
      %v1217 = vmul.f32 %v1082, %v1082
      %v1218 = vmul.f32 %v1083, %v1083
      %v1219 = vmul.f32 %v1084, %v1084
      %v1220 = vmul.f32 %v1085, %v1085
      %v1221 = vmul.f32 %v1086, %v1086
      %vm1222 = vcmask 64512
      %v1223 = vsel %vm1222, %v1190, 0.0
      %1224 = vadd.xlane.f32.xlu0 %v1223
      %v1225 = vpop.xlane.xlu0 %1224
      %v1226 = vsel %vm1222, %v1191, 0.0
      %1227 = vadd.xlane.f32.xlu0 %v1226
      %v1228 = vpop.xlane.xlu0 %1227
      %v1229 = vsel %vm1222, %v1192, 0.0
      %1230 = vadd.xlane.f32.xlu0 %v1229
      %v1231 = vpop.xlane.xlu0 %1230
      %v1232 = vsel %vm1222, %v1193, 0.0
      %1233 = vadd.xlane.f32.xlu0 %v1232
      %v1234 = vpop.xlane.xlu0 %1233
      %v1235 = vsel %vm1222, %v1194, 0.0
      %1236 = vadd.xlane.f32.xlu0 %v1235
      %v1237 = vpop.xlane.xlu0 %1236
      %v1238 = vsel %vm1222, %v1195, 0.0
      %1239 = vadd.xlane.f32.xlu0 %v1238
      %v1240 = vpop.xlane.xlu0 %1239
      %v1241 = vsel %vm1222, %v1196, 0.0
      %1242 = vadd.xlane.f32.xlu0 %v1241
      %v1243 = vpop.xlane.xlu0 %1242
      %v1244 = vsel %vm1222, %v1197, 0.0
      %1245 = vadd.xlane.f32.xlu0 %v1244
      %v1246 = vpop.xlane.xlu0 %1245
      %v1247 = vsel %vm1222, %v1198, 0.0
      %1248 = vadd.xlane.f32.xlu0 %v1247
      %v1249 = vpop.xlane.xlu0 %1248
      %v1250 = vsel %vm1222, %v1199, 0.0
      %1251 = vadd.xlane.f32.xlu0 %v1250
      %v1252 = vpop.xlane.xlu0 %1251
      %v1253 = vsel %vm1222, %v1200, 0.0
      %1254 = vadd.xlane.f32.xlu0 %v1253
      %v1255 = vpop.xlane.xlu0 %1254
      %v1256 = vsel %vm1222, %v1201, 0.0
      %1257 = vadd.xlane.f32.xlu0 %v1256
      %v1258 = vpop.xlane.xlu0 %1257
      %v1259 = vsel %vm1222, %v1202, 0.0
      %1260 = vadd.xlane.f32.xlu0 %v1259
      %v1261 = vpop.xlane.xlu0 %1260
      %v1262 = vsel %vm1222, %v1203, 0.0
      %1263 = vadd.xlane.f32.xlu0 %v1262
      %v1264 = vpop.xlane.xlu0 %1263
      %v1265 = vsel %vm1222, %v1204, 0.0
      %1266 = vadd.xlane.f32.xlu0 %v1265
      %v1267 = vpop.xlane.xlu0 %1266
      %v1268 = vsel %vm1222, %v1205, 0.0
      %1269 = vadd.xlane.f32.xlu0 %v1268
      %v1270 = vpop.xlane.xlu0 %1269
      %v1271 = vsel %vm1222, %v1206, 0.0
      %1272 = vadd.xlane.f32.xlu0 %v1271
      %v1273 = vpop.xlane.xlu0 %1272
      %v1274 = vsel %vm1222, %v1207, 0.0
      %1275 = vadd.xlane.f32.xlu0 %v1274
      %v1276 = vpop.xlane.xlu0 %1275
      %v1277 = vsel %vm1222, %v1208, 0.0
      %1278 = vadd.xlane.f32.xlu0 %v1277
      %v1279 = vpop.xlane.xlu0 %1278
      %v1280 = vsel %vm1222, %v1209, 0.0
      %1281 = vadd.xlane.f32.xlu0 %v1280
      %v1282 = vpop.xlane.xlu0 %1281
      %v1283 = vsel %vm1222, %v1210, 0.0
      %1284 = vadd.xlane.f32.xlu0 %v1283
      %v1285 = vpop.xlane.xlu0 %1284
      %v1286 = vsel %vm1222, %v1211, 0.0
      %1287 = vadd.xlane.f32.xlu0 %v1286
      %v1288 = vpop.xlane.xlu0 %1287
      %v1289 = vsel %vm1222, %v1212, 0.0
      %1290 = vadd.xlane.f32.xlu0 %v1289
      %v1291 = vpop.xlane.xlu0 %1290
      %v1292 = vsel %vm1222, %v1213, 0.0
      %1293 = vadd.xlane.f32.xlu0 %v1292
      %v1294 = vpop.xlane.xlu0 %1293
      %v1295 = vsel %vm1222, %v1214, 0.0
      %1296 = vadd.xlane.f32.xlu0 %v1295
      %v1297 = vpop.xlane.xlu0 %1296
      %v1298 = vsel %vm1222, %v1215, 0.0
      %1299 = vadd.xlane.f32.xlu0 %v1298
      %v1300 = vpop.xlane.xlu0 %1299
      %v1301 = vsel %vm1222, %v1216, 0.0
      %1302 = vadd.xlane.f32.xlu0 %v1301
      %v1303 = vpop.xlane.xlu0 %1302
      %v1304 = vsel %vm1222, %v1217, 0.0
      %1305 = vadd.xlane.f32.xlu0 %v1304
      %v1306 = vpop.xlane.xlu0 %1305
      %v1307 = vsel %vm1222, %v1218, 0.0
      %1308 = vadd.xlane.f32.xlu0 %v1307
      %v1309 = vpop.xlane.xlu0 %1308
      %v1310 = vsel %vm1222, %v1219, 0.0
      %1311 = vadd.xlane.f32.xlu0 %v1310
      %v1312 = vpop.xlane.xlu0 %1311
      %v1313 = vsel %vm1222, %v1220, 0.0
      %1314 = vadd.xlane.f32.xlu0 %v1313
      %v1315 = vpop.xlane.xlu0 %1314
      %v1316 = vsel %vm1222, %v1221, 0.0
      %1317 = vadd.xlane.f32.xlu0 %v1316
      %v1318 = vpop.xlane.xlu0 %1317
      %v1320 = vsel %vm1222, %v1055, 0
      %v1323 = vsel %vm1222, %v1056, 0
      %v1326 = vsel %vm1222, %v1057, 0
      %v1329 = vsel %vm1222, %v1058, 0
      %v1332 = vsel %vm1222, %v1059, 0
      %v1335 = vsel %vm1222, %v1060, 0
      %v1338 = vsel %vm1222, %v1061, 0
      %v1341 = vsel %vm1222, %v1062, 0
      %v1344 = vsel %vm1222, %v1063, 0
      %v1347 = vsel %vm1222, %v1064, 0
      %v1350 = vsel %vm1222, %v1065, 0
      %v1353 = vsel %vm1222, %v1066, 0
      %v1356 = vsel %vm1222, %v1067, 0
      %v1359 = vsel %vm1222, %v1068, 0
      %v1362 = vsel %vm1222, %v1069, 0
      %v1365 = vsel %vm1222, %v1070, 0
      %v1368 = vsel %vm1222, %v1071, 0
      %v1371 = vsel %vm1222, %v1072, 0
      %v1374 = vsel %vm1222, %v1073, 0
      %v1377 = vsel %vm1222, %v1074, 0
      %v1380 = vsel %vm1222, %v1075, 0
      %v1383 = vsel %vm1222, %v1076, 0
      %v1386 = vsel %vm1222, %v1077, 0
      %v1389 = vsel %vm1222, %v1078, 0
      %v1392 = vsel %vm1222, %v1079, 0
      %v1395 = vsel %vm1222, %v1080, 0
      %v1398 = vsel %vm1222, %v1081, 0
      %v1401 = vsel %vm1222, %v1082, 0
      %v1404 = vsel %vm1222, %v1083, 0
      %v1407 = vsel %vm1222, %v1084, 0
      %v1410 = vsel %vm1222, %v1085, 0
      %v1413 = vsel %vm1222, %v1086, 0
      %v1416 = vsel %vm1222, %v1187, 0
      %v1419 = vsel %vm1222, %v1188, 0
      %1421 = vmatpush.xpose.msra.mxu0 0.0
      %1422 = vmatpush.xpose.msra.mxu0 0.0
      %1423 = vmatpush.xpose.msra.mxu0 0.0
      %1424 = vmatpush.xpose.msra.mxu0 0.0
      %1425 = vmatpush.xpose.msra.mxu0 0.0
      %1426 = vmatpush.xpose.msra.mxu0 0.0
      %1427 = vmatpush.xpose.msra.mxu0 0.0
      %1428 = vmatpush.xpose.msra.mxu0 0.0
      %1429 = vmatpush.xpose.msra.mxu0 0.0
      %1430 = vmatpush.xpose.msra.mxu0 0.0
      %1431 = vmatpush.xpose.msra.mxu0 0.0
      %1432 = vmatpush.xpose.msra.mxu0 0.0
      %1433 = vmatpush.xpose.msra.mxu0 0.0
      %1434 = vmatpush.xpose.msra.mxu0 0.0
      %1435 = vmatpush.xpose.msra.mxu0 %v1419
      %1436 = vmatpush.xpose.msra.mxu0 %v1416
      %1437 = vmatmul.f32.gmra.mxu0 %v1320
      %v1438 = vpop.f32.mrf.mxu0
      %v1439 = vadd.f32 0.0, %v1438
      %1440 = vmatmul.f32.gmra.mxu0 %v1323
      %v1441 = vpop.f32.mrf.mxu0
      %v1442 = vadd.f32 0.0, %v1441
      %1443 = vmatmul.f32.gmra.mxu0 %v1326
      %v1444 = vpop.f32.mrf.mxu0
      %v1445 = vadd.f32 0.0, %v1444
      %1446 = vmatmul.f32.gmra.mxu0 %v1329
      %v1447 = vpop.f32.mrf.mxu0
      %v1448 = vadd.f32 0.0, %v1447
      %1449 = vmatmul.f32.gmra.mxu0 %v1332
      %v1450 = vpop.f32.mrf.mxu0
      %v1451 = vadd.f32 0.0, %v1450
      %1452 = vmatmul.f32.gmra.mxu0 %v1335
      %v1453 = vpop.f32.mrf.mxu0
      %v1454 = vadd.f32 0.0, %v1453
      %1455 = vmatmul.f32.gmra.mxu0 %v1338
      %v1456 = vpop.f32.mrf.mxu0
      %v1457 = vadd.f32 0.0, %v1456
      %1458 = vmatmul.f32.gmra.mxu0 %v1341
      %v1459 = vpop.f32.mrf.mxu0
      %v1460 = vadd.f32 0.0, %v1459
      %1461 = vmatmul.f32.gmra.mxu0 %v1344
      %v1462 = vpop.f32.mrf.mxu0
      %v1463 = vadd.f32 0.0, %v1462
      %1464 = vmatmul.f32.gmra.mxu0 %v1347
      %v1465 = vpop.f32.mrf.mxu0
      %v1466 = vadd.f32 0.0, %v1465
      %1467 = vmatmul.f32.gmra.mxu0 %v1350
      %v1468 = vpop.f32.mrf.mxu0
      %v1469 = vadd.f32 0.0, %v1468
      %1470 = vmatmul.f32.gmra.mxu0 %v1353
      %v1471 = vpop.f32.mrf.mxu0
      %v1472 = vadd.f32 0.0, %v1471
      %1473 = vmatmul.f32.gmra.mxu0 %v1356
      %v1474 = vpop.f32.mrf.mxu0
      %v1475 = vadd.f32 0.0, %v1474
      %1476 = vmatmul.f32.gmra.mxu0 %v1359
      %v1477 = vpop.f32.mrf.mxu0
      %v1478 = vadd.f32 0.0, %v1477
      %1479 = vmatmul.f32.gmra.mxu0 %v1362
      %v1480 = vpop.f32.mrf.mxu0
      %v1481 = vadd.f32 0.0, %v1480
      %1482 = vmatmul.f32.gmra.mxu0 %v1365
      %v1483 = vpop.f32.mrf.mxu0
      %v1484 = vadd.f32 0.0, %v1483
      %1485 = vmatmul.f32.gmra.mxu0 %v1368
      %v1486 = vpop.f32.mrf.mxu0
      %v1487 = vadd.f32 0.0, %v1486
      %1488 = vmatmul.f32.gmra.mxu0 %v1371
      %v1489 = vpop.f32.mrf.mxu0
      %v1490 = vadd.f32 0.0, %v1489
      %1491 = vmatmul.f32.gmra.mxu0 %v1374
      %v1492 = vpop.f32.mrf.mxu0
      %v1493 = vadd.f32 0.0, %v1492
      %1494 = vmatmul.f32.gmra.mxu0 %v1377
      %v1495 = vpop.f32.mrf.mxu0
      %v1496 = vadd.f32 0.0, %v1495
      %1497 = vmatmul.f32.gmra.mxu0 %v1380
      %v1498 = vpop.f32.mrf.mxu0
      %v1499 = vadd.f32 0.0, %v1498
      %1500 = vmatmul.f32.gmra.mxu0 %v1383
      %v1501 = vpop.f32.mrf.mxu0
      %v1502 = vadd.f32 0.0, %v1501
      %1503 = vmatmul.f32.gmra.mxu0 %v1386
      %v1504 = vpop.f32.mrf.mxu0
      %v1505 = vadd.f32 0.0, %v1504
      %1506 = vmatmul.f32.gmra.mxu0 %v1389
      %v1507 = vpop.f32.mrf.mxu0
      %v1508 = vadd.f32 0.0, %v1507
      %1509 = vmatmul.f32.gmra.mxu0 %v1392
      %v1510 = vpop.f32.mrf.mxu0
      %v1511 = vadd.f32 0.0, %v1510
      %1512 = vmatmul.f32.gmra.mxu0 %v1395
      %v1513 = vpop.f32.mrf.mxu0
      %v1514 = vadd.f32 0.0, %v1513
      %1515 = vmatmul.f32.gmra.mxu0 %v1398
      %v1516 = vpop.f32.mrf.mxu0
      %v1517 = vadd.f32 0.0, %v1516
      %1518 = vmatmul.f32.gmra.mxu0 %v1401
      %v1519 = vpop.f32.mrf.mxu0
      %v1520 = vadd.f32 0.0, %v1519
      %1521 = vmatmul.f32.gmra.mxu0 %v1404
      %v1522 = vpop.f32.mrf.mxu0
      %v1523 = vadd.f32 0.0, %v1522
      %1524 = vmatmul.f32.gmra.mxu0 %v1407
      %v1525 = vpop.f32.mrf.mxu0
      %v1526 = vadd.f32 0.0, %v1525
      %1527 = vmatmul.f32.gmra.mxu0 %v1410
      %v1528 = vpop.f32.mrf.mxu0
      %v1529 = vadd.f32 0.0, %v1528
      %1530 = vmatmul.f32.gmra.mxu0 %v1413
      %v1531 = vpop.f32.mrf.mxu0
      %v1532 = vadd.f32 0.0, %v1531
      %1533 = vdwg.mxu0
      %v1535 = vperm.slane %v1189, 0
      %v1537 = vadd.f32 %v1225, %v1535
      %v1538 = vadd.f32 %v1228, %v1535
      %v1539 = vadd.f32 %v1231, %v1535
      %v1540 = vadd.f32 %v1234, %v1535
      %v1541 = vadd.f32 %v1237, %v1535
      %v1542 = vadd.f32 %v1240, %v1535
      %v1543 = vadd.f32 %v1243, %v1535
      %v1544 = vadd.f32 %v1246, %v1535
      %v1545 = vadd.f32 %v1249, %v1535
      %v1546 = vadd.f32 %v1252, %v1535
      %v1547 = vadd.f32 %v1255, %v1535
      %v1548 = vadd.f32 %v1258, %v1535
      %v1549 = vadd.f32 %v1261, %v1535
      %v1550 = vadd.f32 %v1264, %v1535
      %v1551 = vadd.f32 %v1267, %v1535
      %v1552 = vadd.f32 %v1270, %v1535
      %v1553 = vadd.f32 %v1273, %v1535
      %v1554 = vadd.f32 %v1276, %v1535
      %v1555 = vadd.f32 %v1279, %v1535
      %v1556 = vadd.f32 %v1282, %v1535
      %v1557 = vadd.f32 %v1285, %v1535
      %v1558 = vadd.f32 %v1288, %v1535
      %v1559 = vadd.f32 %v1291, %v1535
      %v1560 = vadd.f32 %v1294, %v1535
      %v1561 = vadd.f32 %v1297, %v1535
      %v1562 = vadd.f32 %v1300, %v1535
      %v1563 = vadd.f32 %v1303, %v1535
      %v1564 = vadd.f32 %v1306, %v1535
      %v1565 = vadd.f32 %v1309, %v1535
      %v1566 = vadd.f32 %v1312, %v1535
      %v1567 = vadd.f32 %v1315, %v1535
      %v1568 = vadd.f32 %v1318, %v1535
      %v1569 = vmul.f32 %v1439, 2.0
      %v1570 = vmul.f32 %v1442, 2.0
      %v1571 = vmul.f32 %v1445, 2.0
      %v1572 = vmul.f32 %v1448, 2.0
      %v1573 = vmul.f32 %v1451, 2.0
      %v1574 = vmul.f32 %v1454, 2.0
      %v1575 = vmul.f32 %v1457, 2.0
      %v1576 = vmul.f32 %v1460, 2.0
      %v1577 = vmul.f32 %v1463, 2.0
      %v1578 = vmul.f32 %v1466, 2.0
      %v1579 = vmul.f32 %v1469, 2.0
      %v1580 = vmul.f32 %v1472, 2.0
      %v1581 = vmul.f32 %v1475, 2.0
      %v1582 = vmul.f32 %v1478, 2.0
      %v1583 = vmul.f32 %v1481, 2.0
      %v1584 = vmul.f32 %v1484, 2.0
      %v1585 = vmul.f32 %v1487, 2.0
      %v1586 = vmul.f32 %v1490, 2.0
      %v1587 = vmul.f32 %v1493, 2.0
      %v1588 = vmul.f32 %v1496, 2.0
      %v1589 = vmul.f32 %v1499, 2.0
      %v1590 = vmul.f32 %v1502, 2.0
      %v1591 = vmul.f32 %v1505, 2.0
      %v1592 = vmul.f32 %v1508, 2.0
      %v1593 = vmul.f32 %v1511, 2.0
      %v1594 = vmul.f32 %v1514, 2.0
      %v1595 = vmul.f32 %v1517, 2.0
      %v1596 = vmul.f32 %v1520, 2.0
      %v1597 = vmul.f32 %v1523, 2.0
      %v1598 = vmul.f32 %v1526, 2.0
      %v1599 = vmul.f32 %v1529, 2.0
      %v1600 = vmul.f32 %v1532, 2.0
      %v1601 = vsub.f32 %v1537, %v1569
      %v1602 = vsub.f32 %v1538, %v1570
      %v1603 = vsub.f32 %v1539, %v1571
      %v1604 = vsub.f32 %v1540, %v1572
      %v1605 = vsub.f32 %v1541, %v1573
      %v1606 = vsub.f32 %v1542, %v1574
      %v1607 = vsub.f32 %v1543, %v1575
      %v1608 = vsub.f32 %v1544, %v1576
      %v1609 = vsub.f32 %v1545, %v1577
      %v1610 = vsub.f32 %v1546, %v1578
      %v1611 = vsub.f32 %v1547, %v1579
      %v1612 = vsub.f32 %v1548, %v1580
      %v1613 = vsub.f32 %v1549, %v1581
      %v1614 = vsub.f32 %v1550, %v1582
      %v1615 = vsub.f32 %v1551, %v1583
      %v1616 = vsub.f32 %v1552, %v1584
      %v1617 = vsub.f32 %v1553, %v1585
      %v1618 = vsub.f32 %v1554, %v1586
      %v1619 = vsub.f32 %v1555, %v1587
      %v1620 = vsub.f32 %v1556, %v1588
      %v1621 = vsub.f32 %v1557, %v1589
      %v1622 = vsub.f32 %v1558, %v1590
      %v1623 = vsub.f32 %v1559, %v1591
      %v1624 = vsub.f32 %v1560, %v1592
      %v1625 = vsub.f32 %v1561, %v1593
      %v1626 = vsub.f32 %v1562, %v1594
      %v1627 = vsub.f32 %v1563, %v1595
      %v1628 = vsub.f32 %v1564, %v1596
      %v1629 = vsub.f32 %v1565, %v1597
      %v1630 = vsub.f32 %v1566, %v1598
      %v1631 = vsub.f32 %v1567, %v1599
      %v1632 = vsub.f32 %v1568, %v1600
      %vm1633 = vcmask 130048
      %v1634 = vsel %vm1633, %v1601, inf
      %1635 = vmin.xlane.f32.xlu0 %v1634
      %v1636 = vpop.xlane.xlu0 %1635
      %v1637 = vsel %vm1633, %v1602, inf
      %1638 = vmin.xlane.f32.xlu0 %v1637
      %v1639 = vpop.xlane.xlu0 %1638
      %v1640 = vsel %vm1633, %v1603, inf
      %1641 = vmin.xlane.f32.xlu0 %v1640
      %v1642 = vpop.xlane.xlu0 %1641
      %v1643 = vsel %vm1633, %v1604, inf
      %1644 = vmin.xlane.f32.xlu0 %v1643
      %v1645 = vpop.xlane.xlu0 %1644
      %v1646 = vsel %vm1633, %v1605, inf
      %1647 = vmin.xlane.f32.xlu0 %v1646
      %v1648 = vpop.xlane.xlu0 %1647
      %v1649 = vsel %vm1633, %v1606, inf
      %1650 = vmin.xlane.f32.xlu0 %v1649
      %v1651 = vpop.xlane.xlu0 %1650
      %v1652 = vsel %vm1633, %v1607, inf
      %1653 = vmin.xlane.f32.xlu0 %v1652
      %v1654 = vpop.xlane.xlu0 %1653
      %v1655 = vsel %vm1633, %v1608, inf
      %1656 = vmin.xlane.f32.xlu0 %v1655
      %v1657 = vpop.xlane.xlu0 %1656
      %v1658 = vsel %vm1633, %v1609, inf
      %1659 = vmin.xlane.f32.xlu0 %v1658
      %v1660 = vpop.xlane.xlu0 %1659
      %v1661 = vsel %vm1633, %v1610, inf
      %1662 = vmin.xlane.f32.xlu0 %v1661
      %v1663 = vpop.xlane.xlu0 %1662
      %v1664 = vsel %vm1633, %v1611, inf
      %1665 = vmin.xlane.f32.xlu0 %v1664
      %v1666 = vpop.xlane.xlu0 %1665
      %v1667 = vsel %vm1633, %v1612, inf
      %1668 = vmin.xlane.f32.xlu0 %v1667
      %v1669 = vpop.xlane.xlu0 %1668
      %v1670 = vsel %vm1633, %v1613, inf
      %1671 = vmin.xlane.f32.xlu0 %v1670
      %v1672 = vpop.xlane.xlu0 %1671
      %v1673 = vsel %vm1633, %v1614, inf
      %1674 = vmin.xlane.f32.xlu0 %v1673
      %v1675 = vpop.xlane.xlu0 %1674
      %v1676 = vsel %vm1633, %v1615, inf
      %1677 = vmin.xlane.f32.xlu0 %v1676
      %v1678 = vpop.xlane.xlu0 %1677
      %v1679 = vsel %vm1633, %v1616, inf
      %1680 = vmin.xlane.f32.xlu0 %v1679
      %v1681 = vpop.xlane.xlu0 %1680
      %v1682 = vsel %vm1633, %v1617, inf
      %1683 = vmin.xlane.f32.xlu0 %v1682
      %v1684 = vpop.xlane.xlu0 %1683
      %v1685 = vsel %vm1633, %v1618, inf
      %1686 = vmin.xlane.f32.xlu0 %v1685
      %v1687 = vpop.xlane.xlu0 %1686
      %v1688 = vsel %vm1633, %v1619, inf
      %1689 = vmin.xlane.f32.xlu0 %v1688
      %v1690 = vpop.xlane.xlu0 %1689
      %v1691 = vsel %vm1633, %v1620, inf
      %1692 = vmin.xlane.f32.xlu0 %v1691
      %v1693 = vpop.xlane.xlu0 %1692
      %v1694 = vsel %vm1633, %v1621, inf
      %1695 = vmin.xlane.f32.xlu0 %v1694
      %v1696 = vpop.xlane.xlu0 %1695
      %v1697 = vsel %vm1633, %v1622, inf
      %1698 = vmin.xlane.f32.xlu0 %v1697
      %v1699 = vpop.xlane.xlu0 %1698
      %v1700 = vsel %vm1633, %v1623, inf
      %1701 = vmin.xlane.f32.xlu0 %v1700
      %v1702 = vpop.xlane.xlu0 %1701
      %v1703 = vsel %vm1633, %v1624, inf
      %1704 = vmin.xlane.f32.xlu0 %v1703
      %v1705 = vpop.xlane.xlu0 %1704
      %v1706 = vsel %vm1633, %v1625, inf
      %1707 = vmin.xlane.f32.xlu0 %v1706
      %v1708 = vpop.xlane.xlu0 %1707
      %v1709 = vsel %vm1633, %v1626, inf
      %1710 = vmin.xlane.f32.xlu0 %v1709
      %v1711 = vpop.xlane.xlu0 %1710
      %v1712 = vsel %vm1633, %v1627, inf
      %1713 = vmin.xlane.f32.xlu0 %v1712
      %v1714 = vpop.xlane.xlu0 %1713
      %v1715 = vsel %vm1633, %v1628, inf
      %1716 = vmin.xlane.f32.xlu0 %v1715
      %v1717 = vpop.xlane.xlu0 %1716
      %v1718 = vsel %vm1633, %v1629, inf
      %1719 = vmin.xlane.f32.xlu0 %v1718
      %v1720 = vpop.xlane.xlu0 %1719
      %v1721 = vsel %vm1633, %v1630, inf
      %1722 = vmin.xlane.f32.xlu0 %v1721
      %v1723 = vpop.xlane.xlu0 %1722
      %v1724 = vsel %vm1633, %v1631, inf
      %1725 = vmin.xlane.f32.xlu0 %v1724
      %v1726 = vpop.xlane.xlu0 %1725
      %v1727 = vsel %vm1633, %v1632, inf
      %1728 = vmin.xlane.f32.xlu0 %v1727
      %v1729 = vpop.xlane.xlu0 %1728
      %v1730 = vlaneseq
      %v1731 = vand.u32 %v1730, 127
      %vm1732 = vcmp.le.f32.partialorder %v1601, %v1636
      %vm1733 = vcmp.le.f32.partialorder %v1602, %v1639
      %vm1734 = vcmp.le.f32.partialorder %v1603, %v1642
      %vm1735 = vcmp.le.f32.partialorder %v1604, %v1645
      %vm1736 = vcmp.le.f32.partialorder %v1605, %v1648
      %vm1737 = vcmp.le.f32.partialorder %v1606, %v1651
      %vm1738 = vcmp.le.f32.partialorder %v1607, %v1654
      %vm1739 = vcmp.le.f32.partialorder %v1608, %v1657
      %vm1740 = vcmp.le.f32.partialorder %v1609, %v1660
      %vm1741 = vcmp.le.f32.partialorder %v1610, %v1663
      %vm1742 = vcmp.le.f32.partialorder %v1611, %v1666
      %vm1743 = vcmp.le.f32.partialorder %v1612, %v1669
      %vm1744 = vcmp.le.f32.partialorder %v1613, %v1672
      %vm1745 = vcmp.le.f32.partialorder %v1614, %v1675
      %vm1746 = vcmp.le.f32.partialorder %v1615, %v1678
      %vm1747 = vcmp.le.f32.partialorder %v1616, %v1681
      %vm1748 = vcmp.le.f32.partialorder %v1617, %v1684
      %vm1749 = vcmp.le.f32.partialorder %v1618, %v1687
      %vm1750 = vcmp.le.f32.partialorder %v1619, %v1690
      %vm1751 = vcmp.le.f32.partialorder %v1620, %v1693
      %vm1752 = vcmp.le.f32.partialorder %v1621, %v1696
      %vm1753 = vcmp.le.f32.partialorder %v1622, %v1699
      %vm1754 = vcmp.le.f32.partialorder %v1623, %v1702
      %vm1755 = vcmp.le.f32.partialorder %v1624, %v1705
      %vm1756 = vcmp.le.f32.partialorder %v1625, %v1708
      %vm1757 = vcmp.le.f32.partialorder %v1626, %v1711
      %vm1758 = vcmp.le.f32.partialorder %v1627, %v1714
      %vm1759 = vcmp.le.f32.partialorder %v1628, %v1717
      %vm1760 = vcmp.le.f32.partialorder %v1629, %v1720
      %vm1761 = vcmp.le.f32.partialorder %v1630, %v1723
      %vm1762 = vcmp.le.f32.partialorder %v1631, %v1726
      %vm1763 = vcmp.le.f32.partialorder %v1632, %v1729
      %v1764 = vsel %vm1732, %v1731, 16
      %v1765 = vsel %vm1733, %v1731, 16
      %v1766 = vsel %vm1734, %v1731, 16
      %v1767 = vsel %vm1735, %v1731, 16
      %v1768 = vsel %vm1736, %v1731, 16
      %v1769 = vsel %vm1737, %v1731, 16
      %v1770 = vsel %vm1738, %v1731, 16
      %v1771 = vsel %vm1739, %v1731, 16
      %v1772 = vsel %vm1740, %v1731, 16
      %v1773 = vsel %vm1741, %v1731, 16
      %v1774 = vsel %vm1742, %v1731, 16
      %v1775 = vsel %vm1743, %v1731, 16
      %v1776 = vsel %vm1744, %v1731, 16
      %v1777 = vsel %vm1745, %v1731, 16
      %v1778 = vsel %vm1746, %v1731, 16
      %v1779 = vsel %vm1747, %v1731, 16
      %v1780 = vsel %vm1748, %v1731, 16
      %v1781 = vsel %vm1749, %v1731, 16
      %v1782 = vsel %vm1750, %v1731, 16
      %v1783 = vsel %vm1751, %v1731, 16
      %v1784 = vsel %vm1752, %v1731, 16
      %v1785 = vsel %vm1753, %v1731, 16
      %v1786 = vsel %vm1754, %v1731, 16
      %v1787 = vsel %vm1755, %v1731, 16
      %v1788 = vsel %vm1756, %v1731, 16
      %v1789 = vsel %vm1757, %v1731, 16
      %v1790 = vsel %vm1758, %v1731, 16
      %v1791 = vsel %vm1759, %v1731, 16
      %v1792 = vsel %vm1760, %v1731, 16
      %v1793 = vsel %vm1761, %v1731, 16
      %v1794 = vsel %vm1762, %v1731, 16
      %v1795 = vsel %vm1763, %v1731, 16
      %v1796 = vsel %vm1633, %v1764, 2147483647
      %v1797 = vand.u32 %v1796, 65535
      %v1798 = vshra.s32 %v1796, 16
      %v1799 = vcvt.s32.f32 %v1797
      %v1800 = vcvt.s32.f32 %v1798
      %1801 = vmin.xlane.f32.xlu0 %v1800
      %v1802 = vpop.xlane.xlu0 %1801
      %vm1803 = vcmp.eq.f32.partialorder %v1800, %v1802
      %v1804 = vsel %vm1803, %v1799, inf
      %1805 = vmin.xlane.f32.xlu0 %v1804
      %v1806 = vpop.xlane.xlu0 %1805
      %v1807 = vcvt.f32.s32 %v1806
      %v1808 = vcvt.f32.s32 %v1802
      %v1809 = vshll.u32 %v1808, 16
      %v1810 = vadd.s32 %v1809, %v1807
      %v1811 = vsel %vm1633, %v1765, 2147483647
      %v1812 = vand.u32 %v1811, 65535
      %v1813 = vshra.s32 %v1811, 16
      %v1814 = vcvt.s32.f32 %v1812
      %v1815 = vcvt.s32.f32 %v1813
      %1816 = vmin.xlane.f32.xlu0 %v1815
      %v1817 = vpop.xlane.xlu0 %1816
      %vm1818 = vcmp.eq.f32.partialorder %v1815, %v1817
      %v1819 = vsel %vm1818, %v1814, inf
      %1820 = vmin.xlane.f32.xlu0 %v1819
      %v1821 = vpop.xlane.xlu0 %1820
      %v1822 = vcvt.f32.s32 %v1821
      %v1823 = vcvt.f32.s32 %v1817
      %v1824 = vshll.u32 %v1823, 16
      %v1825 = vadd.s32 %v1824, %v1822
      %v1826 = vsel %vm1633, %v1766, 2147483647
      %v1827 = vand.u32 %v1826, 65535
      %v1828 = vshra.s32 %v1826, 16
      %v1829 = vcvt.s32.f32 %v1827
      %v1830 = vcvt.s32.f32 %v1828
      %1831 = vmin.xlane.f32.xlu0 %v1830
      %v1832 = vpop.xlane.xlu0 %1831
      %vm1833 = vcmp.eq.f32.partialorder %v1830, %v1832
      %v1834 = vsel %vm1833, %v1829, inf
      %1835 = vmin.xlane.f32.xlu0 %v1834
      %v1836 = vpop.xlane.xlu0 %1835
      %v1837 = vcvt.f32.s32 %v1836
      %v1838 = vcvt.f32.s32 %v1832
      %v1839 = vshll.u32 %v1838, 16
      %v1840 = vadd.s32 %v1839, %v1837
      %v1841 = vsel %vm1633, %v1767, 2147483647
      %v1842 = vand.u32 %v1841, 65535
      %v1843 = vshra.s32 %v1841, 16
      %v1844 = vcvt.s32.f32 %v1842
      %v1845 = vcvt.s32.f32 %v1843
      %1846 = vmin.xlane.f32.xlu0 %v1845
      %v1847 = vpop.xlane.xlu0 %1846
      %vm1848 = vcmp.eq.f32.partialorder %v1845, %v1847
      %v1849 = vsel %vm1848, %v1844, inf
      %1850 = vmin.xlane.f32.xlu0 %v1849
      %v1851 = vpop.xlane.xlu0 %1850
      %v1852 = vcvt.f32.s32 %v1851
      %v1853 = vcvt.f32.s32 %v1847
      %v1854 = vshll.u32 %v1853, 16
      %v1855 = vadd.s32 %v1854, %v1852
      %v1856 = vsel %vm1633, %v1768, 2147483647
      %v1857 = vand.u32 %v1856, 65535
      %v1858 = vshra.s32 %v1856, 16
      %v1859 = vcvt.s32.f32 %v1857
      %v1860 = vcvt.s32.f32 %v1858
      %1861 = vmin.xlane.f32.xlu0 %v1860
      %v1862 = vpop.xlane.xlu0 %1861
      %vm1863 = vcmp.eq.f32.partialorder %v1860, %v1862
      %v1864 = vsel %vm1863, %v1859, inf
      %1865 = vmin.xlane.f32.xlu0 %v1864
      %v1866 = vpop.xlane.xlu0 %1865
      %v1867 = vcvt.f32.s32 %v1866
      %v1868 = vcvt.f32.s32 %v1862
      %v1869 = vshll.u32 %v1868, 16
      %v1870 = vadd.s32 %v1869, %v1867
      %v1871 = vsel %vm1633, %v1769, 2147483647
      %v1872 = vand.u32 %v1871, 65535
      %v1873 = vshra.s32 %v1871, 16
      %v1874 = vcvt.s32.f32 %v1872
      %v1875 = vcvt.s32.f32 %v1873
      %1876 = vmin.xlane.f32.xlu0 %v1875
      %v1877 = vpop.xlane.xlu0 %1876
      %vm1878 = vcmp.eq.f32.partialorder %v1875, %v1877
      %v1879 = vsel %vm1878, %v1874, inf
      %1880 = vmin.xlane.f32.xlu0 %v1879
      %v1881 = vpop.xlane.xlu0 %1880
      %v1882 = vcvt.f32.s32 %v1881
      %v1883 = vcvt.f32.s32 %v1877
      %v1884 = vshll.u32 %v1883, 16
      %v1885 = vadd.s32 %v1884, %v1882
      %v1886 = vsel %vm1633, %v1770, 2147483647
      %v1887 = vand.u32 %v1886, 65535
      %v1888 = vshra.s32 %v1886, 16
      %v1889 = vcvt.s32.f32 %v1887
      %v1890 = vcvt.s32.f32 %v1888
      %1891 = vmin.xlane.f32.xlu0 %v1890
      %v1892 = vpop.xlane.xlu0 %1891
      %vm1893 = vcmp.eq.f32.partialorder %v1890, %v1892
      %v1894 = vsel %vm1893, %v1889, inf
      %1895 = vmin.xlane.f32.xlu0 %v1894
      %v1896 = vpop.xlane.xlu0 %1895
      %v1897 = vcvt.f32.s32 %v1896
      %v1898 = vcvt.f32.s32 %v1892
      %v1899 = vshll.u32 %v1898, 16
      %v1900 = vadd.s32 %v1899, %v1897
      %v1901 = vsel %vm1633, %v1771, 2147483647
      %v1902 = vand.u32 %v1901, 65535
      %v1903 = vshra.s32 %v1901, 16
      %v1904 = vcvt.s32.f32 %v1902
      %v1905 = vcvt.s32.f32 %v1903
      %1906 = vmin.xlane.f32.xlu0 %v1905
      %v1907 = vpop.xlane.xlu0 %1906
      %vm1908 = vcmp.eq.f32.partialorder %v1905, %v1907
      %v1909 = vsel %vm1908, %v1904, inf
      %1910 = vmin.xlane.f32.xlu0 %v1909
      %v1911 = vpop.xlane.xlu0 %1910
      %v1912 = vcvt.f32.s32 %v1911
      %v1913 = vcvt.f32.s32 %v1907
      %v1914 = vshll.u32 %v1913, 16
      %v1915 = vadd.s32 %v1914, %v1912
      %v1916 = vsel %vm1633, %v1772, 2147483647
      %v1917 = vand.u32 %v1916, 65535
      %v1918 = vshra.s32 %v1916, 16
      %v1919 = vcvt.s32.f32 %v1917
      %v1920 = vcvt.s32.f32 %v1918
      %1921 = vmin.xlane.f32.xlu0 %v1920
      %v1922 = vpop.xlane.xlu0 %1921
      %vm1923 = vcmp.eq.f32.partialorder %v1920, %v1922
      %v1924 = vsel %vm1923, %v1919, inf
      %1925 = vmin.xlane.f32.xlu0 %v1924
      %v1926 = vpop.xlane.xlu0 %1925
      %v1927 = vcvt.f32.s32 %v1926
      %v1928 = vcvt.f32.s32 %v1922
      %v1929 = vshll.u32 %v1928, 16
      %v1930 = vadd.s32 %v1929, %v1927
      %v1931 = vsel %vm1633, %v1773, 2147483647
      %v1932 = vand.u32 %v1931, 65535
      %v1933 = vshra.s32 %v1931, 16
      %v1934 = vcvt.s32.f32 %v1932
      %v1935 = vcvt.s32.f32 %v1933
      %1936 = vmin.xlane.f32.xlu0 %v1935
      %v1937 = vpop.xlane.xlu0 %1936
      %vm1938 = vcmp.eq.f32.partialorder %v1935, %v1937
      %v1939 = vsel %vm1938, %v1934, inf
      %1940 = vmin.xlane.f32.xlu0 %v1939
      %v1941 = vpop.xlane.xlu0 %1940
      %v1942 = vcvt.f32.s32 %v1941
      %v1943 = vcvt.f32.s32 %v1937
      %v1944 = vshll.u32 %v1943, 16
      %v1945 = vadd.s32 %v1944, %v1942
      %v1946 = vsel %vm1633, %v1774, 2147483647
      %v1947 = vand.u32 %v1946, 65535
      %v1948 = vshra.s32 %v1946, 16
      %v1949 = vcvt.s32.f32 %v1947
      %v1950 = vcvt.s32.f32 %v1948
      %1951 = vmin.xlane.f32.xlu0 %v1950
      %v1952 = vpop.xlane.xlu0 %1951
      %vm1953 = vcmp.eq.f32.partialorder %v1950, %v1952
      %v1954 = vsel %vm1953, %v1949, inf
      %1955 = vmin.xlane.f32.xlu0 %v1954
      %v1956 = vpop.xlane.xlu0 %1955
      %v1957 = vcvt.f32.s32 %v1956
      %v1958 = vcvt.f32.s32 %v1952
      %v1959 = vshll.u32 %v1958, 16
      %v1960 = vadd.s32 %v1959, %v1957
      %v1961 = vsel %vm1633, %v1775, 2147483647
      %v1962 = vand.u32 %v1961, 65535
      %v1963 = vshra.s32 %v1961, 16
      %v1964 = vcvt.s32.f32 %v1962
      %v1965 = vcvt.s32.f32 %v1963
      %1966 = vmin.xlane.f32.xlu0 %v1965
      %v1967 = vpop.xlane.xlu0 %1966
      %vm1968 = vcmp.eq.f32.partialorder %v1965, %v1967
      %v1969 = vsel %vm1968, %v1964, inf
      %1970 = vmin.xlane.f32.xlu0 %v1969
      %v1971 = vpop.xlane.xlu0 %1970
      %v1972 = vcvt.f32.s32 %v1971
      %v1973 = vcvt.f32.s32 %v1967
      %v1974 = vshll.u32 %v1973, 16
      %v1975 = vadd.s32 %v1974, %v1972
      %v1976 = vsel %vm1633, %v1776, 2147483647
      %v1977 = vand.u32 %v1976, 65535
      %v1978 = vshra.s32 %v1976, 16
      %v1979 = vcvt.s32.f32 %v1977
      %v1980 = vcvt.s32.f32 %v1978
      %1981 = vmin.xlane.f32.xlu0 %v1980
      %v1982 = vpop.xlane.xlu0 %1981
      %vm1983 = vcmp.eq.f32.partialorder %v1980, %v1982
      %v1984 = vsel %vm1983, %v1979, inf
      %1985 = vmin.xlane.f32.xlu0 %v1984
      %v1986 = vpop.xlane.xlu0 %1985
      %v1987 = vcvt.f32.s32 %v1986
      %v1988 = vcvt.f32.s32 %v1982
      %v1989 = vshll.u32 %v1988, 16
      %v1990 = vadd.s32 %v1989, %v1987
      %v1991 = vsel %vm1633, %v1777, 2147483647
      %v1992 = vand.u32 %v1991, 65535
      %v1993 = vshra.s32 %v1991, 16
      %v1994 = vcvt.s32.f32 %v1992
      %v1995 = vcvt.s32.f32 %v1993
      %1996 = vmin.xlane.f32.xlu0 %v1995
      %v1997 = vpop.xlane.xlu0 %1996
      %vm1998 = vcmp.eq.f32.partialorder %v1995, %v1997
      %v1999 = vsel %vm1998, %v1994, inf
      %2000 = vmin.xlane.f32.xlu0 %v1999
      %v2001 = vpop.xlane.xlu0 %2000
      %v2002 = vcvt.f32.s32 %v2001
      %v2003 = vcvt.f32.s32 %v1997
      %v2004 = vshll.u32 %v2003, 16
      %v2005 = vadd.s32 %v2004, %v2002
      %v2006 = vsel %vm1633, %v1778, 2147483647
      %v2007 = vand.u32 %v2006, 65535
      %v2008 = vshra.s32 %v2006, 16
      %v2009 = vcvt.s32.f32 %v2007
      %v2010 = vcvt.s32.f32 %v2008
      %2011 = vmin.xlane.f32.xlu0 %v2010
      %v2012 = vpop.xlane.xlu0 %2011
      %vm2013 = vcmp.eq.f32.partialorder %v2010, %v2012
      %v2014 = vsel %vm2013, %v2009, inf
      %2015 = vmin.xlane.f32.xlu0 %v2014
      %v2016 = vpop.xlane.xlu0 %2015
      %v2017 = vcvt.f32.s32 %v2016
      %v2018 = vcvt.f32.s32 %v2012
      %v2019 = vshll.u32 %v2018, 16
      %v2020 = vadd.s32 %v2019, %v2017
      %v2021 = vsel %vm1633, %v1779, 2147483647
      %v2022 = vand.u32 %v2021, 65535
      %v2023 = vshra.s32 %v2021, 16
      %v2024 = vcvt.s32.f32 %v2022
      %v2025 = vcvt.s32.f32 %v2023
      %2026 = vmin.xlane.f32.xlu0 %v2025
      %v2027 = vpop.xlane.xlu0 %2026
      %vm2028 = vcmp.eq.f32.partialorder %v2025, %v2027
      %v2029 = vsel %vm2028, %v2024, inf
      %2030 = vmin.xlane.f32.xlu0 %v2029
      %v2031 = vpop.xlane.xlu0 %2030
      %v2032 = vcvt.f32.s32 %v2031
      %v2033 = vcvt.f32.s32 %v2027
      %v2034 = vshll.u32 %v2033, 16
      %v2035 = vadd.s32 %v2034, %v2032
      %v2036 = vsel %vm1633, %v1780, 2147483647
      %v2037 = vand.u32 %v2036, 65535
      %v2038 = vshra.s32 %v2036, 16
      %v2039 = vcvt.s32.f32 %v2037
      %v2040 = vcvt.s32.f32 %v2038
      %2041 = vmin.xlane.f32.xlu0 %v2040
      %v2042 = vpop.xlane.xlu0 %2041
      %vm2043 = vcmp.eq.f32.partialorder %v2040, %v2042
      %v2044 = vsel %vm2043, %v2039, inf
      %2045 = vmin.xlane.f32.xlu0 %v2044
      %v2046 = vpop.xlane.xlu0 %2045
      %v2047 = vcvt.f32.s32 %v2046
      %v2048 = vcvt.f32.s32 %v2042
      %v2049 = vshll.u32 %v2048, 16
      %v2050 = vadd.s32 %v2049, %v2047
      %v2051 = vsel %vm1633, %v1781, 2147483647
      %v2052 = vand.u32 %v2051, 65535
      %v2053 = vshra.s32 %v2051, 16
      %v2054 = vcvt.s32.f32 %v2052
      %v2055 = vcvt.s32.f32 %v2053
      %2056 = vmin.xlane.f32.xlu0 %v2055
      %v2057 = vpop.xlane.xlu0 %2056
      %vm2058 = vcmp.eq.f32.partialorder %v2055, %v2057
      %v2059 = vsel %vm2058, %v2054, inf
      %2060 = vmin.xlane.f32.xlu0 %v2059
      %v2061 = vpop.xlane.xlu0 %2060
      %v2062 = vcvt.f32.s32 %v2061
      %v2063 = vcvt.f32.s32 %v2057
      %v2064 = vshll.u32 %v2063, 16
      %v2065 = vadd.s32 %v2064, %v2062
      %v2066 = vsel %vm1633, %v1782, 2147483647
      %v2067 = vand.u32 %v2066, 65535
      %v2068 = vshra.s32 %v2066, 16
      %v2069 = vcvt.s32.f32 %v2067
      %v2070 = vcvt.s32.f32 %v2068
      %2071 = vmin.xlane.f32.xlu0 %v2070
      %v2072 = vpop.xlane.xlu0 %2071
      %vm2073 = vcmp.eq.f32.partialorder %v2070, %v2072
      %v2074 = vsel %vm2073, %v2069, inf
      %2075 = vmin.xlane.f32.xlu0 %v2074
      %v2076 = vpop.xlane.xlu0 %2075
      %v2077 = vcvt.f32.s32 %v2076
      %v2078 = vcvt.f32.s32 %v2072
      %v2079 = vshll.u32 %v2078, 16
      %v2080 = vadd.s32 %v2079, %v2077
      %v2081 = vsel %vm1633, %v1783, 2147483647
      %v2082 = vand.u32 %v2081, 65535
      %v2083 = vshra.s32 %v2081, 16
      %v2084 = vcvt.s32.f32 %v2082
      %v2085 = vcvt.s32.f32 %v2083
      %2086 = vmin.xlane.f32.xlu0 %v2085
      %v2087 = vpop.xlane.xlu0 %2086
      %vm2088 = vcmp.eq.f32.partialorder %v2085, %v2087
      %v2089 = vsel %vm2088, %v2084, inf
      %2090 = vmin.xlane.f32.xlu0 %v2089
      %v2091 = vpop.xlane.xlu0 %2090
      %v2092 = vcvt.f32.s32 %v2091
      %v2093 = vcvt.f32.s32 %v2087
      %v2094 = vshll.u32 %v2093, 16
      %v2095 = vadd.s32 %v2094, %v2092
      %v2096 = vsel %vm1633, %v1784, 2147483647
      %v2097 = vand.u32 %v2096, 65535
      %v2098 = vshra.s32 %v2096, 16
      %v2099 = vcvt.s32.f32 %v2097
      %v2100 = vcvt.s32.f32 %v2098
      %2101 = vmin.xlane.f32.xlu0 %v2100
      %v2102 = vpop.xlane.xlu0 %2101
      %vm2103 = vcmp.eq.f32.partialorder %v2100, %v2102
      %v2104 = vsel %vm2103, %v2099, inf
      %2105 = vmin.xlane.f32.xlu0 %v2104
      %v2106 = vpop.xlane.xlu0 %2105
      %v2107 = vcvt.f32.s32 %v2106
      %v2108 = vcvt.f32.s32 %v2102
      %v2109 = vshll.u32 %v2108, 16
      %v2110 = vadd.s32 %v2109, %v2107
      %v2111 = vsel %vm1633, %v1785, 2147483647
      %v2112 = vand.u32 %v2111, 65535
      %v2113 = vshra.s32 %v2111, 16
      %v2114 = vcvt.s32.f32 %v2112
      %v2115 = vcvt.s32.f32 %v2113
      %2116 = vmin.xlane.f32.xlu0 %v2115
      %v2117 = vpop.xlane.xlu0 %2116
      %vm2118 = vcmp.eq.f32.partialorder %v2115, %v2117
      %v2119 = vsel %vm2118, %v2114, inf
      %2120 = vmin.xlane.f32.xlu0 %v2119
      %v2121 = vpop.xlane.xlu0 %2120
      %v2122 = vcvt.f32.s32 %v2121
      %v2123 = vcvt.f32.s32 %v2117
      %v2124 = vshll.u32 %v2123, 16
      %v2125 = vadd.s32 %v2124, %v2122
      %v2126 = vsel %vm1633, %v1786, 2147483647
      %v2127 = vand.u32 %v2126, 65535
      %v2128 = vshra.s32 %v2126, 16
      %v2129 = vcvt.s32.f32 %v2127
      %v2130 = vcvt.s32.f32 %v2128
      %2131 = vmin.xlane.f32.xlu0 %v2130
      %v2132 = vpop.xlane.xlu0 %2131
      %vm2133 = vcmp.eq.f32.partialorder %v2130, %v2132
      %v2134 = vsel %vm2133, %v2129, inf
      %2135 = vmin.xlane.f32.xlu0 %v2134
      %v2136 = vpop.xlane.xlu0 %2135
      %v2137 = vcvt.f32.s32 %v2136
      %v2138 = vcvt.f32.s32 %v2132
      %v2139 = vshll.u32 %v2138, 16
      %v2140 = vadd.s32 %v2139, %v2137
      %v2141 = vsel %vm1633, %v1787, 2147483647
      %v2142 = vand.u32 %v2141, 65535
      %v2143 = vshra.s32 %v2141, 16
      %v2144 = vcvt.s32.f32 %v2142
      %v2145 = vcvt.s32.f32 %v2143
      %2146 = vmin.xlane.f32.xlu0 %v2145
      %v2147 = vpop.xlane.xlu0 %2146
      %vm2148 = vcmp.eq.f32.partialorder %v2145, %v2147
      %v2149 = vsel %vm2148, %v2144, inf
      %2150 = vmin.xlane.f32.xlu0 %v2149
      %v2151 = vpop.xlane.xlu0 %2150
      %v2152 = vcvt.f32.s32 %v2151
      %v2153 = vcvt.f32.s32 %v2147
      %v2154 = vshll.u32 %v2153, 16
      %v2155 = vadd.s32 %v2154, %v2152
      %v2156 = vsel %vm1633, %v1788, 2147483647
      %v2157 = vand.u32 %v2156, 65535
      %v2158 = vshra.s32 %v2156, 16
      %v2159 = vcvt.s32.f32 %v2157
      %v2160 = vcvt.s32.f32 %v2158
      %2161 = vmin.xlane.f32.xlu0 %v2160
      %v2162 = vpop.xlane.xlu0 %2161
      %vm2163 = vcmp.eq.f32.partialorder %v2160, %v2162
      %v2164 = vsel %vm2163, %v2159, inf
      %2165 = vmin.xlane.f32.xlu0 %v2164
      %v2166 = vpop.xlane.xlu0 %2165
      %v2167 = vcvt.f32.s32 %v2166
      %v2168 = vcvt.f32.s32 %v2162
      %v2169 = vshll.u32 %v2168, 16
      %v2170 = vadd.s32 %v2169, %v2167
      %v2171 = vsel %vm1633, %v1789, 2147483647
      %v2172 = vand.u32 %v2171, 65535
      %v2173 = vshra.s32 %v2171, 16
      %v2174 = vcvt.s32.f32 %v2172
      %v2175 = vcvt.s32.f32 %v2173
      %2176 = vmin.xlane.f32.xlu0 %v2175
      %v2177 = vpop.xlane.xlu0 %2176
      %vm2178 = vcmp.eq.f32.partialorder %v2175, %v2177
      %v2179 = vsel %vm2178, %v2174, inf
      %2180 = vmin.xlane.f32.xlu0 %v2179
      %v2181 = vpop.xlane.xlu0 %2180
      %v2182 = vcvt.f32.s32 %v2181
      %v2183 = vcvt.f32.s32 %v2177
      %v2184 = vshll.u32 %v2183, 16
      %v2185 = vadd.s32 %v2184, %v2182
      %v2186 = vsel %vm1633, %v1790, 2147483647
      %v2187 = vand.u32 %v2186, 65535
      %v2188 = vshra.s32 %v2186, 16
      %v2189 = vcvt.s32.f32 %v2187
      %v2190 = vcvt.s32.f32 %v2188
      %2191 = vmin.xlane.f32.xlu0 %v2190
      %v2192 = vpop.xlane.xlu0 %2191
      %vm2193 = vcmp.eq.f32.partialorder %v2190, %v2192
      %v2194 = vsel %vm2193, %v2189, inf
      %2195 = vmin.xlane.f32.xlu0 %v2194
      %v2196 = vpop.xlane.xlu0 %2195
      %v2197 = vcvt.f32.s32 %v2196
      %v2198 = vcvt.f32.s32 %v2192
      %v2199 = vshll.u32 %v2198, 16
      %v2200 = vadd.s32 %v2199, %v2197
      %v2201 = vsel %vm1633, %v1791, 2147483647
      %v2202 = vand.u32 %v2201, 65535
      %v2203 = vshra.s32 %v2201, 16
      %v2204 = vcvt.s32.f32 %v2202
      %v2205 = vcvt.s32.f32 %v2203
      %2206 = vmin.xlane.f32.xlu0 %v2205
      %v2207 = vpop.xlane.xlu0 %2206
      %vm2208 = vcmp.eq.f32.partialorder %v2205, %v2207
      %v2209 = vsel %vm2208, %v2204, inf
      %2210 = vmin.xlane.f32.xlu0 %v2209
      %v2211 = vpop.xlane.xlu0 %2210
      %v2212 = vcvt.f32.s32 %v2211
      %v2213 = vcvt.f32.s32 %v2207
      %v2214 = vshll.u32 %v2213, 16
      %v2215 = vadd.s32 %v2214, %v2212
      %v2216 = vsel %vm1633, %v1792, 2147483647
      %v2217 = vand.u32 %v2216, 65535
      %v2218 = vshra.s32 %v2216, 16
      %v2219 = vcvt.s32.f32 %v2217
      %v2220 = vcvt.s32.f32 %v2218
      %2221 = vmin.xlane.f32.xlu0 %v2220
      %v2222 = vpop.xlane.xlu0 %2221
      %vm2223 = vcmp.eq.f32.partialorder %v2220, %v2222
      %v2224 = vsel %vm2223, %v2219, inf
      %2225 = vmin.xlane.f32.xlu0 %v2224
      %v2226 = vpop.xlane.xlu0 %2225
      %v2227 = vcvt.f32.s32 %v2226
      %v2228 = vcvt.f32.s32 %v2222
      %v2229 = vshll.u32 %v2228, 16
      %v2230 = vadd.s32 %v2229, %v2227
      %v2231 = vsel %vm1633, %v1793, 2147483647
      %v2232 = vand.u32 %v2231, 65535
      %v2233 = vshra.s32 %v2231, 16
      %v2234 = vcvt.s32.f32 %v2232
      %v2235 = vcvt.s32.f32 %v2233
      %2236 = vmin.xlane.f32.xlu0 %v2235
      %v2237 = vpop.xlane.xlu0 %2236
      %vm2238 = vcmp.eq.f32.partialorder %v2235, %v2237
      %v2239 = vsel %vm2238, %v2234, inf
      %2240 = vmin.xlane.f32.xlu0 %v2239
      %v2241 = vpop.xlane.xlu0 %2240
      %v2242 = vcvt.f32.s32 %v2241
      %v2243 = vcvt.f32.s32 %v2237
      %v2244 = vshll.u32 %v2243, 16
      %v2245 = vadd.s32 %v2244, %v2242
      %v2246 = vsel %vm1633, %v1794, 2147483647
      %v2247 = vand.u32 %v2246, 65535
      %v2248 = vshra.s32 %v2246, 16
      %v2249 = vcvt.s32.f32 %v2247
      %v2250 = vcvt.s32.f32 %v2248
      %2251 = vmin.xlane.f32.xlu0 %v2250
      %v2252 = vpop.xlane.xlu0 %2251
      %vm2253 = vcmp.eq.f32.partialorder %v2250, %v2252
      %v2254 = vsel %vm2253, %v2249, inf
      %2255 = vmin.xlane.f32.xlu0 %v2254
      %v2256 = vpop.xlane.xlu0 %2255
      %v2257 = vcvt.f32.s32 %v2256
      %v2258 = vcvt.f32.s32 %v2252
      %v2259 = vshll.u32 %v2258, 16
      %v2260 = vadd.s32 %v2259, %v2257
      %v2261 = vsel %vm1633, %v1795, 2147483647
      %v2262 = vand.u32 %v2261, 65535
      %v2263 = vshra.s32 %v2261, 16
      %v2264 = vcvt.s32.f32 %v2262
      %v2265 = vcvt.s32.f32 %v2263
      %2266 = vmin.xlane.f32.xlu0 %v2265
      %v2267 = vpop.xlane.xlu0 %2266
      %vm2268 = vcmp.eq.f32.partialorder %v2265, %v2267
      %v2269 = vsel %vm2268, %v2264, inf
      %2270 = vmin.xlane.f32.xlu0 %v2269
      %v2271 = vpop.xlane.xlu0 %2270
      %v2272 = vcvt.f32.s32 %v2271
      %v2273 = vcvt.f32.s32 %v2267
      %v2274 = vshll.u32 %v2273, 16
      %v2275 = vadd.s32 %v2274, %v2272
      %vm2276 = vcmp.eq.s32.totalorder %v1731, %v1810
      %vm2277 = vcmp.eq.s32.totalorder %v1731, %v1825
      %vm2278 = vcmp.eq.s32.totalorder %v1731, %v1840
      %vm2279 = vcmp.eq.s32.totalorder %v1731, %v1855
      %vm2280 = vcmp.eq.s32.totalorder %v1731, %v1870
      %vm2281 = vcmp.eq.s32.totalorder %v1731, %v1885
      %vm2282 = vcmp.eq.s32.totalorder %v1731, %v1900
      %vm2283 = vcmp.eq.s32.totalorder %v1731, %v1915
      %vm2284 = vcmp.eq.s32.totalorder %v1731, %v1930
      %vm2285 = vcmp.eq.s32.totalorder %v1731, %v1945
      %vm2286 = vcmp.eq.s32.totalorder %v1731, %v1960
      %vm2287 = vcmp.eq.s32.totalorder %v1731, %v1975
      %vm2288 = vcmp.eq.s32.totalorder %v1731, %v1990
      %vm2289 = vcmp.eq.s32.totalorder %v1731, %v2005
      %vm2290 = vcmp.eq.s32.totalorder %v1731, %v2020
      %vm2291 = vcmp.eq.s32.totalorder %v1731, %v2035
      %vm2292 = vcmp.eq.s32.totalorder %v1731, %v2050
      %vm2293 = vcmp.eq.s32.totalorder %v1731, %v2065
      %vm2294 = vcmp.eq.s32.totalorder %v1731, %v2080
      %vm2295 = vcmp.eq.s32.totalorder %v1731, %v2095
      %vm2296 = vcmp.eq.s32.totalorder %v1731, %v2110
      %vm2297 = vcmp.eq.s32.totalorder %v1731, %v2125
      %vm2298 = vcmp.eq.s32.totalorder %v1731, %v2140
      %vm2299 = vcmp.eq.s32.totalorder %v1731, %v2155
      %vm2300 = vcmp.eq.s32.totalorder %v1731, %v2170
      %vm2301 = vcmp.eq.s32.totalorder %v1731, %v2185
      %vm2302 = vcmp.eq.s32.totalorder %v1731, %v2200
      %vm2303 = vcmp.eq.s32.totalorder %v1731, %v2215
      %vm2304 = vcmp.eq.s32.totalorder %v1731, %v2230
      %vm2305 = vcmp.eq.s32.totalorder %v1731, %v2245
      %vm2306 = vcmp.eq.s32.totalorder %v1731, %v2260
      %vm2307 = vcmp.eq.s32.totalorder %v1731, %v2275
      %v2308 = vsel %vm2276, 1, 0
      %v2309 = vsel %vm2277, 1, 0
      %v2310 = vsel %vm2278, 1, 0
      %v2311 = vsel %vm2279, 1, 0
      %v2312 = vsel %vm2280, 1, 0
      %v2313 = vsel %vm2281, 1, 0
      %v2314 = vsel %vm2282, 1, 0
      %v2315 = vsel %vm2283, 1, 0
      %v2316 = vsel %vm2284, 1, 0
      %v2317 = vsel %vm2285, 1, 0
      %v2318 = vsel %vm2286, 1, 0
      %v2319 = vsel %vm2287, 1, 0
      %v2320 = vsel %vm2288, 1, 0
      %v2321 = vsel %vm2289, 1, 0
      %v2322 = vsel %vm2290, 1, 0
      %v2323 = vsel %vm2291, 1, 0
      %v2324 = vsel %vm2292, 1, 0
      %v2325 = vsel %vm2293, 1, 0
      %v2326 = vsel %vm2294, 1, 0
      %v2327 = vsel %vm2295, 1, 0
      %v2328 = vsel %vm2296, 1, 0
      %v2329 = vsel %vm2297, 1, 0
      %v2330 = vsel %vm2298, 1, 0
      %v2331 = vsel %vm2299, 1, 0
      %v2332 = vsel %vm2300, 1, 0
      %v2333 = vsel %vm2301, 1, 0
      %v2334 = vsel %vm2302, 1, 0
      %v2335 = vsel %vm2303, 1, 0
      %v2336 = vsel %vm2304, 1, 0
      %v2337 = vsel %vm2305, 1, 0
      %v2338 = vsel %vm2306, 1, 0
      %v2339 = vsel %vm2307, 1, 0
      %v2340 = vcvt.s32.f32 %v2308
      %v2341 = vcvt.s32.f32 %v2309
      %v2342 = vcvt.s32.f32 %v2310
      %v2343 = vcvt.s32.f32 %v2311
      %v2344 = vcvt.s32.f32 %v2312
      %v2345 = vcvt.s32.f32 %v2313
      %v2346 = vcvt.s32.f32 %v2314
      %v2347 = vcvt.s32.f32 %v2315
      %v2348 = vcvt.s32.f32 %v2316
      %v2349 = vcvt.s32.f32 %v2317
      %v2350 = vcvt.s32.f32 %v2318
      %v2351 = vcvt.s32.f32 %v2319
      %v2352 = vcvt.s32.f32 %v2320
      %v2353 = vcvt.s32.f32 %v2321
      %v2354 = vcvt.s32.f32 %v2322
      %v2355 = vcvt.s32.f32 %v2323
      %v2356 = vcvt.s32.f32 %v2324
      %v2357 = vcvt.s32.f32 %v2325
      %v2358 = vcvt.s32.f32 %v2326
      %v2359 = vcvt.s32.f32 %v2327
      %v2360 = vcvt.s32.f32 %v2328
      %v2361 = vcvt.s32.f32 %v2329
      %v2362 = vcvt.s32.f32 %v2330
      %v2363 = vcvt.s32.f32 %v2331
      %v2364 = vcvt.s32.f32 %v2332
      %v2365 = vcvt.s32.f32 %v2333
      %v2366 = vcvt.s32.f32 %v2334
      %v2367 = vcvt.s32.f32 %v2335
      %v2368 = vcvt.s32.f32 %v2336
      %v2369 = vcvt.s32.f32 %v2337
      %v2370 = vcvt.s32.f32 %v2338
      %v2371 = vcvt.s32.f32 %v2339
      %v2373 = vsel %vm1633, %v2340, 0
      %v2376 = vsel %vm1633, %v2341, 0
      %v2379 = vsel %vm1633, %v2342, 0
      %v2382 = vsel %vm1633, %v2343, 0
      %v2385 = vsel %vm1633, %v2344, 0
      %v2388 = vsel %vm1633, %v2345, 0
      %v2391 = vsel %vm1633, %v2346, 0
      %v2394 = vsel %vm1633, %v2347, 0
      %v2397 = vsel %vm1633, %v2348, 0
      %v2400 = vsel %vm1633, %v2349, 0
      %v2403 = vsel %vm1633, %v2350, 0
      %v2406 = vsel %vm1633, %v2351, 0
      %v2409 = vsel %vm1633, %v2352, 0
      %v2412 = vsel %vm1633, %v2353, 0
      %v2415 = vsel %vm1633, %v2354, 0
      %v2418 = vsel %vm1633, %v2355, 0
      %v2421 = vsel %vm1633, %v2356, 0
      %v2424 = vsel %vm1633, %v2357, 0
      %v2427 = vsel %vm1633, %v2358, 0
      %v2430 = vsel %vm1633, %v2359, 0
      %v2433 = vsel %vm1633, %v2360, 0
      %v2436 = vsel %vm1633, %v2361, 0
      %v2439 = vsel %vm1633, %v2362, 0
      %v2442 = vsel %vm1633, %v2363, 0
      %v2445 = vsel %vm1633, %v2364, 0
      %v2448 = vsel %vm1633, %v2365, 0
      %v2451 = vsel %vm1633, %v2366, 0
      %v2454 = vsel %vm1633, %v2367, 0
      %v2457 = vsel %vm1633, %v2368, 0
      %v2460 = vsel %vm1633, %v2369, 0
      %v2463 = vsel %vm1633, %v2370, 0
      %v2466 = vsel %vm1633, %v2371, 0
      %2468 = vmatpush.msra.mxu0 0.0
      %2469 = vmatpush.msra.mxu0 0.0
      %2470 = vmatpush.msra.mxu0 0.0
      %2471 = vmatpush.msra.mxu0 0.0
      %2472 = vmatpush.msra.mxu0 0.0
      %2473 = vmatpush.msra.mxu0 0.0
      %2474 = vmatpush.msra.mxu0 0.0
      %2475 = vmatpush.msra.mxu0 0.0
      %2476 = vmatpush.msra.mxu0 0.0
      %2477 = vmatpush.msra.mxu0 0.0
      %2478 = vmatpush.msra.mxu0 0.0
      %2479 = vmatpush.msra.mxu0 0.0
      %2480 = vmatpush.msra.mxu0 0.0
      %2481 = vmatpush.msra.mxu0 0.0
      %2482 = vmatpush.msra.mxu0 %v1188
      %2483 = vmatpush.msra.mxu0 %v1187
      %2484 = vmatmul.f32.gmra.mxu0 %v2373
      %v2485 = vpop.f32.mrf.mxu0
      %v2486 = vadd.f32 0.0, %v2485
      %2487 = vmatmul.f32.gmra.mxu0 %v2376
      %v2488 = vpop.f32.mrf.mxu0
      %v2489 = vadd.f32 0.0, %v2488
      %2490 = vmatmul.f32.gmra.mxu0 %v2379
      %v2491 = vpop.f32.mrf.mxu0
      %v2492 = vadd.f32 0.0, %v2491
      %2493 = vmatmul.f32.gmra.mxu0 %v2382
      %v2494 = vpop.f32.mrf.mxu0
      %v2495 = vadd.f32 0.0, %v2494
      %2496 = vmatmul.f32.gmra.mxu0 %v2385
      %v2497 = vpop.f32.mrf.mxu0
      %v2498 = vadd.f32 0.0, %v2497
      %2499 = vmatmul.f32.gmra.mxu0 %v2388
      %v2500 = vpop.f32.mrf.mxu0
      %v2501 = vadd.f32 0.0, %v2500
      %2502 = vmatmul.f32.gmra.mxu0 %v2391
      %v2503 = vpop.f32.mrf.mxu0
      %v2504 = vadd.f32 0.0, %v2503
      %2505 = vmatmul.f32.gmra.mxu0 %v2394
      %v2506 = vpop.f32.mrf.mxu0
      %v2507 = vadd.f32 0.0, %v2506
      %2508 = vmatmul.f32.gmra.mxu0 %v2397
      %v2509 = vpop.f32.mrf.mxu0
      %v2510 = vadd.f32 0.0, %v2509
      %2511 = vmatmul.f32.gmra.mxu0 %v2400
      %v2512 = vpop.f32.mrf.mxu0
      %v2513 = vadd.f32 0.0, %v2512
      %2514 = vmatmul.f32.gmra.mxu0 %v2403
      %v2515 = vpop.f32.mrf.mxu0
      %v2516 = vadd.f32 0.0, %v2515
      %2517 = vmatmul.f32.gmra.mxu0 %v2406
      %v2518 = vpop.f32.mrf.mxu0
      %v2519 = vadd.f32 0.0, %v2518
      %2520 = vmatmul.f32.gmra.mxu0 %v2409
      %v2521 = vpop.f32.mrf.mxu0
      %v2522 = vadd.f32 0.0, %v2521
      %2523 = vmatmul.f32.gmra.mxu0 %v2412
      %v2524 = vpop.f32.mrf.mxu0
      %v2525 = vadd.f32 0.0, %v2524
      %2526 = vmatmul.f32.gmra.mxu0 %v2415
      %v2527 = vpop.f32.mrf.mxu0
      %v2528 = vadd.f32 0.0, %v2527
      %2529 = vmatmul.f32.gmra.mxu0 %v2418
      %v2530 = vpop.f32.mrf.mxu0
      %v2531 = vadd.f32 0.0, %v2530
      %2532 = vmatmul.f32.gmra.mxu0 %v2421
      %v2533 = vpop.f32.mrf.mxu0
      %v2534 = vadd.f32 0.0, %v2533
      %2535 = vmatmul.f32.gmra.mxu0 %v2424
      %v2536 = vpop.f32.mrf.mxu0
      %v2537 = vadd.f32 0.0, %v2536
      %2538 = vmatmul.f32.gmra.mxu0 %v2427
      %v2539 = vpop.f32.mrf.mxu0
      %v2540 = vadd.f32 0.0, %v2539
      %2541 = vmatmul.f32.gmra.mxu0 %v2430
      %v2542 = vpop.f32.mrf.mxu0
      %v2543 = vadd.f32 0.0, %v2542
      %2544 = vmatmul.f32.gmra.mxu0 %v2433
      %v2545 = vpop.f32.mrf.mxu0
      %v2546 = vadd.f32 0.0, %v2545
      %2547 = vmatmul.f32.gmra.mxu0 %v2436
      %v2548 = vpop.f32.mrf.mxu0
      %v2549 = vadd.f32 0.0, %v2548
      %2550 = vmatmul.f32.gmra.mxu0 %v2439
      %v2551 = vpop.f32.mrf.mxu0
      %v2552 = vadd.f32 0.0, %v2551
      %2553 = vmatmul.f32.gmra.mxu0 %v2442
      %v2554 = vpop.f32.mrf.mxu0
      %v2555 = vadd.f32 0.0, %v2554
      %2556 = vmatmul.f32.gmra.mxu0 %v2445
      %v2557 = vpop.f32.mrf.mxu0
      %v2558 = vadd.f32 0.0, %v2557
      %2559 = vmatmul.f32.gmra.mxu0 %v2448
      %v2560 = vpop.f32.mrf.mxu0
      %v2561 = vadd.f32 0.0, %v2560
      %2562 = vmatmul.f32.gmra.mxu0 %v2451
      %v2563 = vpop.f32.mrf.mxu0
      %v2564 = vadd.f32 0.0, %v2563
      %2565 = vmatmul.f32.gmra.mxu0 %v2454
      %v2566 = vpop.f32.mrf.mxu0
      %v2567 = vadd.f32 0.0, %v2566
      %2568 = vmatmul.f32.gmra.mxu0 %v2457
      %v2569 = vpop.f32.mrf.mxu0
      %v2570 = vadd.f32 0.0, %v2569
      %2571 = vmatmul.f32.gmra.mxu0 %v2460
      %v2572 = vpop.f32.mrf.mxu0
      %v2573 = vadd.f32 0.0, %v2572
      %2574 = vmatmul.f32.gmra.mxu0 %v2463
      %v2575 = vpop.f32.mrf.mxu0
      %v2576 = vadd.f32 0.0, %v2575
      %2577 = vmatmul.f32.gmra.mxu0 %v2466
      %v2578 = vpop.f32.mrf.mxu0
      %v2579 = vadd.f32 0.0, %v2578
      %2580 = vdwg.mxu0
      %v2581 = vmul.f32 %v1155, %v1155
      %v2582 = vmul.f32 %v1156, %v1156
      %v2583 = vmul.f32 %v1157, %v1157
      %v2584 = vmul.f32 %v1158, %v1158
      %v2585 = vmul.f32 %v1159, %v1159
      %v2586 = vmul.f32 %v1160, %v1160
      %v2587 = vmul.f32 %v1161, %v1161
      %v2588 = vmul.f32 %v1162, %v1162
      %v2589 = vmul.f32 %v1163, %v1163
      %v2590 = vmul.f32 %v1164, %v1164
      %v2591 = vmul.f32 %v1165, %v1165
      %v2592 = vmul.f32 %v1166, %v1166
      %v2593 = vmul.f32 %v1167, %v1167
      %v2594 = vmul.f32 %v1168, %v1168
      %v2595 = vmul.f32 %v1169, %v1169
      %v2596 = vmul.f32 %v1170, %v1170
      %v2597 = vmul.f32 %v1171, %v1171
      %v2598 = vmul.f32 %v1172, %v1172
      %v2599 = vmul.f32 %v1173, %v1173
      %v2600 = vmul.f32 %v1174, %v1174
      %v2601 = vmul.f32 %v1175, %v1175
      %v2602 = vmul.f32 %v1176, %v1176
      %v2603 = vmul.f32 %v1177, %v1177
      %v2604 = vmul.f32 %v1178, %v1178
      %v2605 = vmul.f32 %v1179, %v1179
      %v2606 = vmul.f32 %v1180, %v1180
      %v2607 = vmul.f32 %v1181, %v1181
      %v2608 = vmul.f32 %v1182, %v1182
      %v2609 = vmul.f32 %v1183, %v1183
      %v2610 = vmul.f32 %v1184, %v1184
      %v2611 = vmul.f32 %v1185, %v1185
      %v2612 = vmul.f32 %v1186, %v1186
      %v2613 = vsel %vm1222, %v2581, 0.0
      %2614 = vadd.xlane.f32.xlu0 %v2613
      %v2615 = vpop.xlane.xlu0 %2614
      %v2616 = vsel %vm1222, %v2582, 0.0
      %2617 = vadd.xlane.f32.xlu0 %v2616
      %v2618 = vpop.xlane.xlu0 %2617
      %v2619 = vsel %vm1222, %v2583, 0.0
      %2620 = vadd.xlane.f32.xlu0 %v2619
      %v2621 = vpop.xlane.xlu0 %2620
      %v2622 = vsel %vm1222, %v2584, 0.0
      %2623 = vadd.xlane.f32.xlu0 %v2622
      %v2624 = vpop.xlane.xlu0 %2623
      %v2625 = vsel %vm1222, %v2585, 0.0
      %2626 = vadd.xlane.f32.xlu0 %v2625
      %v2627 = vpop.xlane.xlu0 %2626
      %v2628 = vsel %vm1222, %v2586, 0.0
      %2629 = vadd.xlane.f32.xlu0 %v2628
      %v2630 = vpop.xlane.xlu0 %2629
      %v2631 = vsel %vm1222, %v2587, 0.0
      %2632 = vadd.xlane.f32.xlu0 %v2631
      %v2633 = vpop.xlane.xlu0 %2632
      %v2634 = vsel %vm1222, %v2588, 0.0
      %2635 = vadd.xlane.f32.xlu0 %v2634
      %v2636 = vpop.xlane.xlu0 %2635
      %v2637 = vsel %vm1222, %v2589, 0.0
      %2638 = vadd.xlane.f32.xlu0 %v2637
      %v2639 = vpop.xlane.xlu0 %2638
      %v2640 = vsel %vm1222, %v2590, 0.0
      %2641 = vadd.xlane.f32.xlu0 %v2640
      %v2642 = vpop.xlane.xlu0 %2641
      %v2643 = vsel %vm1222, %v2591, 0.0
      %2644 = vadd.xlane.f32.xlu0 %v2643
      %v2645 = vpop.xlane.xlu0 %2644
      %v2646 = vsel %vm1222, %v2592, 0.0
      %2647 = vadd.xlane.f32.xlu0 %v2646
      %v2648 = vpop.xlane.xlu0 %2647
      %v2649 = vsel %vm1222, %v2593, 0.0
      %2650 = vadd.xlane.f32.xlu0 %v2649
      %v2651 = vpop.xlane.xlu0 %2650
      %v2652 = vsel %vm1222, %v2594, 0.0
      %2653 = vadd.xlane.f32.xlu0 %v2652
      %v2654 = vpop.xlane.xlu0 %2653
      %v2655 = vsel %vm1222, %v2595, 0.0
      %2656 = vadd.xlane.f32.xlu0 %v2655
      %v2657 = vpop.xlane.xlu0 %2656
      %v2658 = vsel %vm1222, %v2596, 0.0
      %2659 = vadd.xlane.f32.xlu0 %v2658
      %v2660 = vpop.xlane.xlu0 %2659
      %v2661 = vsel %vm1222, %v2597, 0.0
      %2662 = vadd.xlane.f32.xlu0 %v2661
      %v2663 = vpop.xlane.xlu0 %2662
      %v2664 = vsel %vm1222, %v2598, 0.0
      %2665 = vadd.xlane.f32.xlu0 %v2664
      %v2666 = vpop.xlane.xlu0 %2665
      %v2667 = vsel %vm1222, %v2599, 0.0
      %2668 = vadd.xlane.f32.xlu0 %v2667
      %v2669 = vpop.xlane.xlu0 %2668
      %v2670 = vsel %vm1222, %v2600, 0.0
      %2671 = vadd.xlane.f32.xlu0 %v2670
      %v2672 = vpop.xlane.xlu0 %2671
      %v2673 = vsel %vm1222, %v2601, 0.0
      %2674 = vadd.xlane.f32.xlu0 %v2673
      %v2675 = vpop.xlane.xlu0 %2674
      %v2676 = vsel %vm1222, %v2602, 0.0
      %2677 = vadd.xlane.f32.xlu0 %v2676
      %v2678 = vpop.xlane.xlu0 %2677
      %v2679 = vsel %vm1222, %v2603, 0.0
      %2680 = vadd.xlane.f32.xlu0 %v2679
      %v2681 = vpop.xlane.xlu0 %2680
      %v2682 = vsel %vm1222, %v2604, 0.0
      %2683 = vadd.xlane.f32.xlu0 %v2682
      %v2684 = vpop.xlane.xlu0 %2683
      %v2685 = vsel %vm1222, %v2605, 0.0
      %2686 = vadd.xlane.f32.xlu0 %v2685
      %v2687 = vpop.xlane.xlu0 %2686
      %v2688 = vsel %vm1222, %v2606, 0.0
      %2689 = vadd.xlane.f32.xlu0 %v2688
      %v2690 = vpop.xlane.xlu0 %2689
      %v2691 = vsel %vm1222, %v2607, 0.0
      %2692 = vadd.xlane.f32.xlu0 %v2691
      %v2693 = vpop.xlane.xlu0 %2692
      %v2694 = vsel %vm1222, %v2608, 0.0
      %2695 = vadd.xlane.f32.xlu0 %v2694
      %v2696 = vpop.xlane.xlu0 %2695
      %v2697 = vsel %vm1222, %v2609, 0.0
      %2698 = vadd.xlane.f32.xlu0 %v2697
      %v2699 = vpop.xlane.xlu0 %2698
      %v2700 = vsel %vm1222, %v2610, 0.0
      %2701 = vadd.xlane.f32.xlu0 %v2700
      %v2702 = vpop.xlane.xlu0 %2701
      %v2703 = vsel %vm1222, %v2611, 0.0
      %2704 = vadd.xlane.f32.xlu0 %v2703
      %v2705 = vpop.xlane.xlu0 %2704
      %v2706 = vsel %vm1222, %v2612, 0.0
      %2707 = vadd.xlane.f32.xlu0 %v2706
      %v2708 = vpop.xlane.xlu0 %2707
      %v2710 = vsel %vm1222, %v1155, 0
      %v2713 = vsel %vm1222, %v1156, 0
      %v2716 = vsel %vm1222, %v1157, 0
      %v2719 = vsel %vm1222, %v1158, 0
      %v2722 = vsel %vm1222, %v1159, 0
      %v2725 = vsel %vm1222, %v1160, 0
      %v2728 = vsel %vm1222, %v1161, 0
      %v2731 = vsel %vm1222, %v1162, 0
      %v2734 = vsel %vm1222, %v1163, 0
      %v2737 = vsel %vm1222, %v1164, 0
      %v2740 = vsel %vm1222, %v1165, 0
      %v2743 = vsel %vm1222, %v1166, 0
      %v2746 = vsel %vm1222, %v1167, 0
      %v2749 = vsel %vm1222, %v1168, 0
      %v2752 = vsel %vm1222, %v1169, 0
      %v2755 = vsel %vm1222, %v1170, 0
      %v2758 = vsel %vm1222, %v1171, 0
      %v2761 = vsel %vm1222, %v1172, 0
      %v2764 = vsel %vm1222, %v1173, 0
      %v2767 = vsel %vm1222, %v1174, 0
      %v2770 = vsel %vm1222, %v1175, 0
      %v2773 = vsel %vm1222, %v1176, 0
      %v2776 = vsel %vm1222, %v1177, 0
      %v2779 = vsel %vm1222, %v1178, 0
      %v2782 = vsel %vm1222, %v1179, 0
      %v2785 = vsel %vm1222, %v1180, 0
      %v2788 = vsel %vm1222, %v1181, 0
      %v2791 = vsel %vm1222, %v1182, 0
      %v2794 = vsel %vm1222, %v1183, 0
      %v2797 = vsel %vm1222, %v1184, 0
      %v2800 = vsel %vm1222, %v1185, 0
      %v2803 = vsel %vm1222, %v1186, 0
      %2805 = vmatpush.xpose.msra.mxu0 0.0
      %2806 = vmatpush.xpose.msra.mxu0 0.0
      %2807 = vmatpush.xpose.msra.mxu0 0.0
      %2808 = vmatpush.xpose.msra.mxu0 0.0
      %2809 = vmatpush.xpose.msra.mxu0 0.0
      %2810 = vmatpush.xpose.msra.mxu0 0.0
      %2811 = vmatpush.xpose.msra.mxu0 0.0
      %2812 = vmatpush.xpose.msra.mxu0 0.0
      %2813 = vmatpush.xpose.msra.mxu0 0.0
      %2814 = vmatpush.xpose.msra.mxu0 0.0
      %2815 = vmatpush.xpose.msra.mxu0 0.0
      %2816 = vmatpush.xpose.msra.mxu0 0.0
      %2817 = vmatpush.xpose.msra.mxu0 0.0
      %2818 = vmatpush.xpose.msra.mxu0 0.0
      %2819 = vmatpush.xpose.msra.mxu0 %v1419
      %2820 = vmatpush.xpose.msra.mxu0 %v1416
      %2821 = vmatmul.f32.gmra.mxu0 %v2710
      %v2822 = vpop.f32.mrf.mxu0
      %v2823 = vadd.f32 0.0, %v2822
      %2824 = vmatmul.f32.gmra.mxu0 %v2713
      %v2825 = vpop.f32.mrf.mxu0
      %v2826 = vadd.f32 0.0, %v2825
      %2827 = vmatmul.f32.gmra.mxu0 %v2716
      %v2828 = vpop.f32.mrf.mxu0
      %v2829 = vadd.f32 0.0, %v2828
      %2830 = vmatmul.f32.gmra.mxu0 %v2719
      %v2831 = vpop.f32.mrf.mxu0
      %v2832 = vadd.f32 0.0, %v2831
      %2833 = vmatmul.f32.gmra.mxu0 %v2722
      %v2834 = vpop.f32.mrf.mxu0
      %v2835 = vadd.f32 0.0, %v2834
      %2836 = vmatmul.f32.gmra.mxu0 %v2725
      %v2837 = vpop.f32.mrf.mxu0
      %v2838 = vadd.f32 0.0, %v2837
      %2839 = vmatmul.f32.gmra.mxu0 %v2728
      %v2840 = vpop.f32.mrf.mxu0
      %v2841 = vadd.f32 0.0, %v2840
      %2842 = vmatmul.f32.gmra.mxu0 %v2731
      %v2843 = vpop.f32.mrf.mxu0
      %v2844 = vadd.f32 0.0, %v2843
      %2845 = vmatmul.f32.gmra.mxu0 %v2734
      %v2846 = vpop.f32.mrf.mxu0
      %v2847 = vadd.f32 0.0, %v2846
      %2848 = vmatmul.f32.gmra.mxu0 %v2737
      %v2849 = vpop.f32.mrf.mxu0
      %v2850 = vadd.f32 0.0, %v2849
      %2851 = vmatmul.f32.gmra.mxu0 %v2740
      %v2852 = vpop.f32.mrf.mxu0
      %v2853 = vadd.f32 0.0, %v2852
      %2854 = vmatmul.f32.gmra.mxu0 %v2743
      %v2855 = vpop.f32.mrf.mxu0
      %v2856 = vadd.f32 0.0, %v2855
      %2857 = vmatmul.f32.gmra.mxu0 %v2746
      %v2858 = vpop.f32.mrf.mxu0
      %v2859 = vadd.f32 0.0, %v2858
      %2860 = vmatmul.f32.gmra.mxu0 %v2749
      %v2861 = vpop.f32.mrf.mxu0
      %v2862 = vadd.f32 0.0, %v2861
      %2863 = vmatmul.f32.gmra.mxu0 %v2752
      %v2864 = vpop.f32.mrf.mxu0
      %v2865 = vadd.f32 0.0, %v2864
      %2866 = vmatmul.f32.gmra.mxu0 %v2755
      %v2867 = vpop.f32.mrf.mxu0
      %v2868 = vadd.f32 0.0, %v2867
      %2869 = vmatmul.f32.gmra.mxu0 %v2758
      %v2870 = vpop.f32.mrf.mxu0
      %v2871 = vadd.f32 0.0, %v2870
      %2872 = vmatmul.f32.gmra.mxu0 %v2761
      %v2873 = vpop.f32.mrf.mxu0
      %v2874 = vadd.f32 0.0, %v2873
      %2875 = vmatmul.f32.gmra.mxu0 %v2764
      %v2876 = vpop.f32.mrf.mxu0
      %v2877 = vadd.f32 0.0, %v2876
      %2878 = vmatmul.f32.gmra.mxu0 %v2767
      %v2879 = vpop.f32.mrf.mxu0
      %v2880 = vadd.f32 0.0, %v2879
      %2881 = vmatmul.f32.gmra.mxu0 %v2770
      %v2882 = vpop.f32.mrf.mxu0
      %v2883 = vadd.f32 0.0, %v2882
      %2884 = vmatmul.f32.gmra.mxu0 %v2773
      %v2885 = vpop.f32.mrf.mxu0
      %v2886 = vadd.f32 0.0, %v2885
      %2887 = vmatmul.f32.gmra.mxu0 %v2776
      %v2888 = vpop.f32.mrf.mxu0
      %v2889 = vadd.f32 0.0, %v2888
      %2890 = vmatmul.f32.gmra.mxu0 %v2779
      %v2891 = vpop.f32.mrf.mxu0
      %v2892 = vadd.f32 0.0, %v2891
      %2893 = vmatmul.f32.gmra.mxu0 %v2782
      %v2894 = vpop.f32.mrf.mxu0
      %v2895 = vadd.f32 0.0, %v2894
      %2896 = vmatmul.f32.gmra.mxu0 %v2785
      %v2897 = vpop.f32.mrf.mxu0
      %v2898 = vadd.f32 0.0, %v2897
      %2899 = vmatmul.f32.gmra.mxu0 %v2788
      %v2900 = vpop.f32.mrf.mxu0
      %v2901 = vadd.f32 0.0, %v2900
      %2902 = vmatmul.f32.gmra.mxu0 %v2791
      %v2903 = vpop.f32.mrf.mxu0
      %v2904 = vadd.f32 0.0, %v2903
      %2905 = vmatmul.f32.gmra.mxu0 %v2794
      %v2906 = vpop.f32.mrf.mxu0
      %v2907 = vadd.f32 0.0, %v2906
      %2908 = vmatmul.f32.gmra.mxu0 %v2797
      %v2909 = vpop.f32.mrf.mxu0
      %v2910 = vadd.f32 0.0, %v2909
      %2911 = vmatmul.f32.gmra.mxu0 %v2800
      %v2912 = vpop.f32.mrf.mxu0
      %v2913 = vadd.f32 0.0, %v2912
      %2914 = vmatmul.f32.gmra.mxu0 %v2803
      %v2915 = vpop.f32.mrf.mxu0
      %v2916 = vadd.f32 0.0, %v2915
      %2917 = vdwg.mxu0
      %v2918 = vadd.f32 %v2615, %v1535
      %v2919 = vadd.f32 %v2618, %v1535
      %v2920 = vadd.f32 %v2621, %v1535
      %v2921 = vadd.f32 %v2624, %v1535
      %v2922 = vadd.f32 %v2627, %v1535
      %v2923 = vadd.f32 %v2630, %v1535
      %v2924 = vadd.f32 %v2633, %v1535
      %v2925 = vadd.f32 %v2636, %v1535
      %v2926 = vadd.f32 %v2639, %v1535
      %v2927 = vadd.f32 %v2642, %v1535
      %v2928 = vadd.f32 %v2645, %v1535
      %v2929 = vadd.f32 %v2648, %v1535
      %v2930 = vadd.f32 %v2651, %v1535
      %v2931 = vadd.f32 %v2654, %v1535
      %v2932 = vadd.f32 %v2657, %v1535
      %v2933 = vadd.f32 %v2660, %v1535
      %v2934 = vadd.f32 %v2663, %v1535
      %v2935 = vadd.f32 %v2666, %v1535
      %v2936 = vadd.f32 %v2669, %v1535
      %v2937 = vadd.f32 %v2672, %v1535
      %v2938 = vadd.f32 %v2675, %v1535
      %v2939 = vadd.f32 %v2678, %v1535
      %v2940 = vadd.f32 %v2681, %v1535
      %v2941 = vadd.f32 %v2684, %v1535
      %v2942 = vadd.f32 %v2687, %v1535
      %v2943 = vadd.f32 %v2690, %v1535
      %v2944 = vadd.f32 %v2693, %v1535
      %v2945 = vadd.f32 %v2696, %v1535
      %v2946 = vadd.f32 %v2699, %v1535
      %v2947 = vadd.f32 %v2702, %v1535
      %v2948 = vadd.f32 %v2705, %v1535
      %v2949 = vadd.f32 %v2708, %v1535
      %v2950 = vmul.f32 %v2823, 2.0
      %v2951 = vmul.f32 %v2826, 2.0
      %v2952 = vmul.f32 %v2829, 2.0
      %v2953 = vmul.f32 %v2832, 2.0
      %v2954 = vmul.f32 %v2835, 2.0
      %v2955 = vmul.f32 %v2838, 2.0
      %v2956 = vmul.f32 %v2841, 2.0
      %v2957 = vmul.f32 %v2844, 2.0
      %v2958 = vmul.f32 %v2847, 2.0
      %v2959 = vmul.f32 %v2850, 2.0
      %v2960 = vmul.f32 %v2853, 2.0
      %v2961 = vmul.f32 %v2856, 2.0
      %v2962 = vmul.f32 %v2859, 2.0
      %v2963 = vmul.f32 %v2862, 2.0
      %v2964 = vmul.f32 %v2865, 2.0
      %v2965 = vmul.f32 %v2868, 2.0
      %v2966 = vmul.f32 %v2871, 2.0
      %v2967 = vmul.f32 %v2874, 2.0
      %v2968 = vmul.f32 %v2877, 2.0
      %v2969 = vmul.f32 %v2880, 2.0
      %v2970 = vmul.f32 %v2883, 2.0
      %v2971 = vmul.f32 %v2886, 2.0
      %v2972 = vmul.f32 %v2889, 2.0
      %v2973 = vmul.f32 %v2892, 2.0
      %v2974 = vmul.f32 %v2895, 2.0
      %v2975 = vmul.f32 %v2898, 2.0
      %v2976 = vmul.f32 %v2901, 2.0
      %v2977 = vmul.f32 %v2904, 2.0
      %v2978 = vmul.f32 %v2907, 2.0
      %v2979 = vmul.f32 %v2910, 2.0
      %v2980 = vmul.f32 %v2913, 2.0
      %v2981 = vmul.f32 %v2916, 2.0
      %v2982 = vsub.f32 %v2918, %v2950
      %v2983 = vsub.f32 %v2919, %v2951
      %v2984 = vsub.f32 %v2920, %v2952
      %v2985 = vsub.f32 %v2921, %v2953
      %v2986 = vsub.f32 %v2922, %v2954
      %v2987 = vsub.f32 %v2923, %v2955
      %v2988 = vsub.f32 %v2924, %v2956
      %v2989 = vsub.f32 %v2925, %v2957
      %v2990 = vsub.f32 %v2926, %v2958
      %v2991 = vsub.f32 %v2927, %v2959
      %v2992 = vsub.f32 %v2928, %v2960
      %v2993 = vsub.f32 %v2929, %v2961
      %v2994 = vsub.f32 %v2930, %v2962
      %v2995 = vsub.f32 %v2931, %v2963
      %v2996 = vsub.f32 %v2932, %v2964
      %v2997 = vsub.f32 %v2933, %v2965
      %v2998 = vsub.f32 %v2934, %v2966
      %v2999 = vsub.f32 %v2935, %v2967
      %v3000 = vsub.f32 %v2936, %v2968
      %v3001 = vsub.f32 %v2937, %v2969
      %v3002 = vsub.f32 %v2938, %v2970
      %v3003 = vsub.f32 %v2939, %v2971
      %v3004 = vsub.f32 %v2940, %v2972
      %v3005 = vsub.f32 %v2941, %v2973
      %v3006 = vsub.f32 %v2942, %v2974
      %v3007 = vsub.f32 %v2943, %v2975
      %v3008 = vsub.f32 %v2944, %v2976
      %v3009 = vsub.f32 %v2945, %v2977
      %v3010 = vsub.f32 %v2946, %v2978
      %v3011 = vsub.f32 %v2947, %v2979
      %v3012 = vsub.f32 %v2948, %v2980
      %v3013 = vsub.f32 %v2949, %v2981
      %v3014 = vsel %vm1633, %v2982, inf
      %3015 = vmin.xlane.f32.xlu0 %v3014
      %v3016 = vpop.xlane.xlu0 %3015
      %v3017 = vsel %vm1633, %v2983, inf
      %3018 = vmin.xlane.f32.xlu0 %v3017
      %v3019 = vpop.xlane.xlu0 %3018
      %v3020 = vsel %vm1633, %v2984, inf
      %3021 = vmin.xlane.f32.xlu0 %v3020
      %v3022 = vpop.xlane.xlu0 %3021
      %v3023 = vsel %vm1633, %v2985, inf
      %3024 = vmin.xlane.f32.xlu0 %v3023
      %v3025 = vpop.xlane.xlu0 %3024
      %v3026 = vsel %vm1633, %v2986, inf
      %3027 = vmin.xlane.f32.xlu0 %v3026
      %v3028 = vpop.xlane.xlu0 %3027
      %v3029 = vsel %vm1633, %v2987, inf
      %3030 = vmin.xlane.f32.xlu0 %v3029
      %v3031 = vpop.xlane.xlu0 %3030
      %v3032 = vsel %vm1633, %v2988, inf
      %3033 = vmin.xlane.f32.xlu0 %v3032
      %v3034 = vpop.xlane.xlu0 %3033
      %v3035 = vsel %vm1633, %v2989, inf
      %3036 = vmin.xlane.f32.xlu0 %v3035
      %v3037 = vpop.xlane.xlu0 %3036
      %v3038 = vsel %vm1633, %v2990, inf
      %3039 = vmin.xlane.f32.xlu0 %v3038
      %v3040 = vpop.xlane.xlu0 %3039
      %v3041 = vsel %vm1633, %v2991, inf
      %3042 = vmin.xlane.f32.xlu0 %v3041
      %v3043 = vpop.xlane.xlu0 %3042
      %v3044 = vsel %vm1633, %v2992, inf
      %3045 = vmin.xlane.f32.xlu0 %v3044
      %v3046 = vpop.xlane.xlu0 %3045
      %v3047 = vsel %vm1633, %v2993, inf
      %3048 = vmin.xlane.f32.xlu0 %v3047
      %v3049 = vpop.xlane.xlu0 %3048
      %v3050 = vsel %vm1633, %v2994, inf
      %3051 = vmin.xlane.f32.xlu0 %v3050
      %v3052 = vpop.xlane.xlu0 %3051
      %v3053 = vsel %vm1633, %v2995, inf
      %3054 = vmin.xlane.f32.xlu0 %v3053
      %v3055 = vpop.xlane.xlu0 %3054
      %v3056 = vsel %vm1633, %v2996, inf
      %3057 = vmin.xlane.f32.xlu0 %v3056
      %v3058 = vpop.xlane.xlu0 %3057
      %v3059 = vsel %vm1633, %v2997, inf
      %3060 = vmin.xlane.f32.xlu0 %v3059
      %v3061 = vpop.xlane.xlu0 %3060
      %v3062 = vsel %vm1633, %v2998, inf
      %3063 = vmin.xlane.f32.xlu0 %v3062
      %v3064 = vpop.xlane.xlu0 %3063
      %v3065 = vsel %vm1633, %v2999, inf
      %3066 = vmin.xlane.f32.xlu0 %v3065
      %v3067 = vpop.xlane.xlu0 %3066
      %v3068 = vsel %vm1633, %v3000, inf
      %3069 = vmin.xlane.f32.xlu0 %v3068
      %v3070 = vpop.xlane.xlu0 %3069
      %v3071 = vsel %vm1633, %v3001, inf
      %3072 = vmin.xlane.f32.xlu0 %v3071
      %v3073 = vpop.xlane.xlu0 %3072
      %v3074 = vsel %vm1633, %v3002, inf
      %3075 = vmin.xlane.f32.xlu0 %v3074
      %v3076 = vpop.xlane.xlu0 %3075
      %v3077 = vsel %vm1633, %v3003, inf
      %3078 = vmin.xlane.f32.xlu0 %v3077
      %v3079 = vpop.xlane.xlu0 %3078
      %v3080 = vsel %vm1633, %v3004, inf
      %3081 = vmin.xlane.f32.xlu0 %v3080
      %v3082 = vpop.xlane.xlu0 %3081
      %v3083 = vsel %vm1633, %v3005, inf
      %3084 = vmin.xlane.f32.xlu0 %v3083
      %v3085 = vpop.xlane.xlu0 %3084
      %v3086 = vsel %vm1633, %v3006, inf
      %3087 = vmin.xlane.f32.xlu0 %v3086
      %v3088 = vpop.xlane.xlu0 %3087
      %v3089 = vsel %vm1633, %v3007, inf
      %3090 = vmin.xlane.f32.xlu0 %v3089
      %v3091 = vpop.xlane.xlu0 %3090
      %v3092 = vsel %vm1633, %v3008, inf
      %3093 = vmin.xlane.f32.xlu0 %v3092
      %v3094 = vpop.xlane.xlu0 %3093
      %v3095 = vsel %vm1633, %v3009, inf
      %3096 = vmin.xlane.f32.xlu0 %v3095
      %v3097 = vpop.xlane.xlu0 %3096
      %v3098 = vsel %vm1633, %v3010, inf
      %3099 = vmin.xlane.f32.xlu0 %v3098
      %v3100 = vpop.xlane.xlu0 %3099
      %v3101 = vsel %vm1633, %v3011, inf
      %3102 = vmin.xlane.f32.xlu0 %v3101
      %v3103 = vpop.xlane.xlu0 %3102
      %v3104 = vsel %vm1633, %v3012, inf
      %3105 = vmin.xlane.f32.xlu0 %v3104
      %v3106 = vpop.xlane.xlu0 %3105
      %v3107 = vsel %vm1633, %v3013, inf
      %3108 = vmin.xlane.f32.xlu0 %v3107
      %v3109 = vpop.xlane.xlu0 %3108
      %vm3110 = vcmp.le.f32.partialorder %v2982, %v3016
      %vm3111 = vcmp.le.f32.partialorder %v2983, %v3019
      %vm3112 = vcmp.le.f32.partialorder %v2984, %v3022
      %vm3113 = vcmp.le.f32.partialorder %v2985, %v3025
      %vm3114 = vcmp.le.f32.partialorder %v2986, %v3028
      %vm3115 = vcmp.le.f32.partialorder %v2987, %v3031
      %vm3116 = vcmp.le.f32.partialorder %v2988, %v3034
      %vm3117 = vcmp.le.f32.partialorder %v2989, %v3037
      %vm3118 = vcmp.le.f32.partialorder %v2990, %v3040
      %vm3119 = vcmp.le.f32.partialorder %v2991, %v3043
      %vm3120 = vcmp.le.f32.partialorder %v2992, %v3046
      %vm3121 = vcmp.le.f32.partialorder %v2993, %v3049
      %vm3122 = vcmp.le.f32.partialorder %v2994, %v3052
      %vm3123 = vcmp.le.f32.partialorder %v2995, %v3055
      %vm3124 = vcmp.le.f32.partialorder %v2996, %v3058
      %vm3125 = vcmp.le.f32.partialorder %v2997, %v3061
      %vm3126 = vcmp.le.f32.partialorder %v2998, %v3064
      %vm3127 = vcmp.le.f32.partialorder %v2999, %v3067
      %vm3128 = vcmp.le.f32.partialorder %v3000, %v3070
      %vm3129 = vcmp.le.f32.partialorder %v3001, %v3073
      %vm3130 = vcmp.le.f32.partialorder %v3002, %v3076
      %vm3131 = vcmp.le.f32.partialorder %v3003, %v3079
      %vm3132 = vcmp.le.f32.partialorder %v3004, %v3082
      %vm3133 = vcmp.le.f32.partialorder %v3005, %v3085
      %vm3134 = vcmp.le.f32.partialorder %v3006, %v3088
      %vm3135 = vcmp.le.f32.partialorder %v3007, %v3091
      %vm3136 = vcmp.le.f32.partialorder %v3008, %v3094
      %vm3137 = vcmp.le.f32.partialorder %v3009, %v3097
      %vm3138 = vcmp.le.f32.partialorder %v3010, %v3100
      %vm3139 = vcmp.le.f32.partialorder %v3011, %v3103
      %vm3140 = vcmp.le.f32.partialorder %v3012, %v3106
      %vm3141 = vcmp.le.f32.partialorder %v3013, %v3109
      %v3142 = vsel %vm3110, %v1731, 16
      %v3143 = vsel %vm3111, %v1731, 16
      %v3144 = vsel %vm3112, %v1731, 16
      %v3145 = vsel %vm3113, %v1731, 16
      %v3146 = vsel %vm3114, %v1731, 16
      %v3147 = vsel %vm3115, %v1731, 16
      %v3148 = vsel %vm3116, %v1731, 16
      %v3149 = vsel %vm3117, %v1731, 16
      %v3150 = vsel %vm3118, %v1731, 16
      %v3151 = vsel %vm3119, %v1731, 16
      %v3152 = vsel %vm3120, %v1731, 16
      %v3153 = vsel %vm3121, %v1731, 16
      %v3154 = vsel %vm3122, %v1731, 16
      %v3155 = vsel %vm3123, %v1731, 16
      %v3156 = vsel %vm3124, %v1731, 16
      %v3157 = vsel %vm3125, %v1731, 16
      %v3158 = vsel %vm3126, %v1731, 16
      %v3159 = vsel %vm3127, %v1731, 16
      %v3160 = vsel %vm3128, %v1731, 16
      %v3161 = vsel %vm3129, %v1731, 16
      %v3162 = vsel %vm3130, %v1731, 16
      %v3163 = vsel %vm3131, %v1731, 16
      %v3164 = vsel %vm3132, %v1731, 16
      %v3165 = vsel %vm3133, %v1731, 16
      %v3166 = vsel %vm3134, %v1731, 16
      %v3167 = vsel %vm3135, %v1731, 16
      %v3168 = vsel %vm3136, %v1731, 16
      %v3169 = vsel %vm3137, %v1731, 16
      %v3170 = vsel %vm3138, %v1731, 16
      %v3171 = vsel %vm3139, %v1731, 16
      %v3172 = vsel %vm3140, %v1731, 16
      %v3173 = vsel %vm3141, %v1731, 16
      %v3174 = vsel %vm1633, %v3142, 2147483647
      %v3175 = vand.u32 %v3174, 65535
      %v3176 = vshra.s32 %v3174, 16
      %v3177 = vcvt.s32.f32 %v3175
      %v3178 = vcvt.s32.f32 %v3176
      %3179 = vmin.xlane.f32.xlu0 %v3178
      %v3180 = vpop.xlane.xlu0 %3179
      %vm3181 = vcmp.eq.f32.partialorder %v3178, %v3180
      %v3182 = vsel %vm3181, %v3177, inf
      %3183 = vmin.xlane.f32.xlu0 %v3182
      %v3184 = vpop.xlane.xlu0 %3183
      %v3185 = vcvt.f32.s32 %v3184
      %v3186 = vcvt.f32.s32 %v3180
      %v3187 = vshll.u32 %v3186, 16
      %v3188 = vadd.s32 %v3187, %v3185
      %v3189 = vsel %vm1633, %v3143, 2147483647
      %v3190 = vand.u32 %v3189, 65535
      %v3191 = vshra.s32 %v3189, 16
      %v3192 = vcvt.s32.f32 %v3190
      %v3193 = vcvt.s32.f32 %v3191
      %3194 = vmin.xlane.f32.xlu0 %v3193
      %v3195 = vpop.xlane.xlu0 %3194
      %vm3196 = vcmp.eq.f32.partialorder %v3193, %v3195
      %v3197 = vsel %vm3196, %v3192, inf
      %3198 = vmin.xlane.f32.xlu0 %v3197
      %v3199 = vpop.xlane.xlu0 %3198
      %v3200 = vcvt.f32.s32 %v3199
      %v3201 = vcvt.f32.s32 %v3195
      %v3202 = vshll.u32 %v3201, 16
      %v3203 = vadd.s32 %v3202, %v3200
      %v3204 = vsel %vm1633, %v3144, 2147483647
      %v3205 = vand.u32 %v3204, 65535
      %v3206 = vshra.s32 %v3204, 16
      %v3207 = vcvt.s32.f32 %v3205
      %v3208 = vcvt.s32.f32 %v3206
      %3209 = vmin.xlane.f32.xlu0 %v3208
      %v3210 = vpop.xlane.xlu0 %3209
      %vm3211 = vcmp.eq.f32.partialorder %v3208, %v3210
      %v3212 = vsel %vm3211, %v3207, inf
      %3213 = vmin.xlane.f32.xlu0 %v3212
      %v3214 = vpop.xlane.xlu0 %3213
      %v3215 = vcvt.f32.s32 %v3214
      %v3216 = vcvt.f32.s32 %v3210
      %v3217 = vshll.u32 %v3216, 16
      %v3218 = vadd.s32 %v3217, %v3215
      %v3219 = vsel %vm1633, %v3145, 2147483647
      %v3220 = vand.u32 %v3219, 65535
      %v3221 = vshra.s32 %v3219, 16
      %v3222 = vcvt.s32.f32 %v3220
      %v3223 = vcvt.s32.f32 %v3221
      %3224 = vmin.xlane.f32.xlu0 %v3223
      %v3225 = vpop.xlane.xlu0 %3224
      %vm3226 = vcmp.eq.f32.partialorder %v3223, %v3225
      %v3227 = vsel %vm3226, %v3222, inf
      %3228 = vmin.xlane.f32.xlu0 %v3227
      %v3229 = vpop.xlane.xlu0 %3228
      %v3230 = vcvt.f32.s32 %v3229
      %v3231 = vcvt.f32.s32 %v3225
      %v3232 = vshll.u32 %v3231, 16
      %v3233 = vadd.s32 %v3232, %v3230
      %v3234 = vsel %vm1633, %v3146, 2147483647
      %v3235 = vand.u32 %v3234, 65535
      %v3236 = vshra.s32 %v3234, 16
      %v3237 = vcvt.s32.f32 %v3235
      %v3238 = vcvt.s32.f32 %v3236
      %3239 = vmin.xlane.f32.xlu0 %v3238
      %v3240 = vpop.xlane.xlu0 %3239
      %vm3241 = vcmp.eq.f32.partialorder %v3238, %v3240
      %v3242 = vsel %vm3241, %v3237, inf
      %3243 = vmin.xlane.f32.xlu0 %v3242
      %v3244 = vpop.xlane.xlu0 %3243
      %v3245 = vcvt.f32.s32 %v3244
      %v3246 = vcvt.f32.s32 %v3240
      %v3247 = vshll.u32 %v3246, 16
      %v3248 = vadd.s32 %v3247, %v3245
      %v3249 = vsel %vm1633, %v3147, 2147483647
      %v3250 = vand.u32 %v3249, 65535
      %v3251 = vshra.s32 %v3249, 16
      %v3252 = vcvt.s32.f32 %v3250
      %v3253 = vcvt.s32.f32 %v3251
      %3254 = vmin.xlane.f32.xlu0 %v3253
      %v3255 = vpop.xlane.xlu0 %3254
      %vm3256 = vcmp.eq.f32.partialorder %v3253, %v3255
      %v3257 = vsel %vm3256, %v3252, inf
      %3258 = vmin.xlane.f32.xlu0 %v3257
      %v3259 = vpop.xlane.xlu0 %3258
      %v3260 = vcvt.f32.s32 %v3259
      %v3261 = vcvt.f32.s32 %v3255
      %v3262 = vshll.u32 %v3261, 16
      %v3263 = vadd.s32 %v3262, %v3260
      %v3264 = vsel %vm1633, %v3148, 2147483647
      %v3265 = vand.u32 %v3264, 65535
      %v3266 = vshra.s32 %v3264, 16
      %v3267 = vcvt.s32.f32 %v3265
      %v3268 = vcvt.s32.f32 %v3266
      %3269 = vmin.xlane.f32.xlu0 %v3268
      %v3270 = vpop.xlane.xlu0 %3269
      %vm3271 = vcmp.eq.f32.partialorder %v3268, %v3270
      %v3272 = vsel %vm3271, %v3267, inf
      %3273 = vmin.xlane.f32.xlu0 %v3272
      %v3274 = vpop.xlane.xlu0 %3273
      %v3275 = vcvt.f32.s32 %v3274
      %v3276 = vcvt.f32.s32 %v3270
      %v3277 = vshll.u32 %v3276, 16
      %v3278 = vadd.s32 %v3277, %v3275
      %v3279 = vsel %vm1633, %v3149, 2147483647
      %v3280 = vand.u32 %v3279, 65535
      %v3281 = vshra.s32 %v3279, 16
      %v3282 = vcvt.s32.f32 %v3280
      %v3283 = vcvt.s32.f32 %v3281
      %3284 = vmin.xlane.f32.xlu0 %v3283
      %v3285 = vpop.xlane.xlu0 %3284
      %vm3286 = vcmp.eq.f32.partialorder %v3283, %v3285
      %v3287 = vsel %vm3286, %v3282, inf
      %3288 = vmin.xlane.f32.xlu0 %v3287
      %v3289 = vpop.xlane.xlu0 %3288
      %v3290 = vcvt.f32.s32 %v3289
      %v3291 = vcvt.f32.s32 %v3285
      %v3292 = vshll.u32 %v3291, 16
      %v3293 = vadd.s32 %v3292, %v3290
      %v3294 = vsel %vm1633, %v3150, 2147483647
      %v3295 = vand.u32 %v3294, 65535
      %v3296 = vshra.s32 %v3294, 16
      %v3297 = vcvt.s32.f32 %v3295
      %v3298 = vcvt.s32.f32 %v3296
      %3299 = vmin.xlane.f32.xlu0 %v3298
      %v3300 = vpop.xlane.xlu0 %3299
      %vm3301 = vcmp.eq.f32.partialorder %v3298, %v3300
      %v3302 = vsel %vm3301, %v3297, inf
      %3303 = vmin.xlane.f32.xlu0 %v3302
      %v3304 = vpop.xlane.xlu0 %3303
      %v3305 = vcvt.f32.s32 %v3304
      %v3306 = vcvt.f32.s32 %v3300
      %v3307 = vshll.u32 %v3306, 16
      %v3308 = vadd.s32 %v3307, %v3305
      %v3309 = vsel %vm1633, %v3151, 2147483647
      %v3310 = vand.u32 %v3309, 65535
      %v3311 = vshra.s32 %v3309, 16
      %v3312 = vcvt.s32.f32 %v3310
      %v3313 = vcvt.s32.f32 %v3311
      %3314 = vmin.xlane.f32.xlu0 %v3313
      %v3315 = vpop.xlane.xlu0 %3314
      %vm3316 = vcmp.eq.f32.partialorder %v3313, %v3315
      %v3317 = vsel %vm3316, %v3312, inf
      %3318 = vmin.xlane.f32.xlu0 %v3317
      %v3319 = vpop.xlane.xlu0 %3318
      %v3320 = vcvt.f32.s32 %v3319
      %v3321 = vcvt.f32.s32 %v3315
      %v3322 = vshll.u32 %v3321, 16
      %v3323 = vadd.s32 %v3322, %v3320
      %v3324 = vsel %vm1633, %v3152, 2147483647
      %v3325 = vand.u32 %v3324, 65535
      %v3326 = vshra.s32 %v3324, 16
      %v3327 = vcvt.s32.f32 %v3325
      %v3328 = vcvt.s32.f32 %v3326
      %3329 = vmin.xlane.f32.xlu0 %v3328
      %v3330 = vpop.xlane.xlu0 %3329
      %vm3331 = vcmp.eq.f32.partialorder %v3328, %v3330
      %v3332 = vsel %vm3331, %v3327, inf
      %3333 = vmin.xlane.f32.xlu0 %v3332
      %v3334 = vpop.xlane.xlu0 %3333
      %v3335 = vcvt.f32.s32 %v3334
      %v3336 = vcvt.f32.s32 %v3330
      %v3337 = vshll.u32 %v3336, 16
      %v3338 = vadd.s32 %v3337, %v3335
      %v3339 = vsel %vm1633, %v3153, 2147483647
      %v3340 = vand.u32 %v3339, 65535
      %v3341 = vshra.s32 %v3339, 16
      %v3342 = vcvt.s32.f32 %v3340
      %v3343 = vcvt.s32.f32 %v3341
      %3344 = vmin.xlane.f32.xlu0 %v3343
      %v3345 = vpop.xlane.xlu0 %3344
      %vm3346 = vcmp.eq.f32.partialorder %v3343, %v3345
      %v3347 = vsel %vm3346, %v3342, inf
      %3348 = vmin.xlane.f32.xlu0 %v3347
      %v3349 = vpop.xlane.xlu0 %3348
      %v3350 = vcvt.f32.s32 %v3349
      %v3351 = vcvt.f32.s32 %v3345
      %v3352 = vshll.u32 %v3351, 16
      %v3353 = vadd.s32 %v3352, %v3350
      %v3354 = vsel %vm1633, %v3154, 2147483647
      %v3355 = vand.u32 %v3354, 65535
      %v3356 = vshra.s32 %v3354, 16
      %v3357 = vcvt.s32.f32 %v3355
      %v3358 = vcvt.s32.f32 %v3356
      %3359 = vmin.xlane.f32.xlu0 %v3358
      %v3360 = vpop.xlane.xlu0 %3359
      %vm3361 = vcmp.eq.f32.partialorder %v3358, %v3360
      %v3362 = vsel %vm3361, %v3357, inf
      %3363 = vmin.xlane.f32.xlu0 %v3362
      %v3364 = vpop.xlane.xlu0 %3363
      %v3365 = vcvt.f32.s32 %v3364
      %v3366 = vcvt.f32.s32 %v3360
      %v3367 = vshll.u32 %v3366, 16
      %v3368 = vadd.s32 %v3367, %v3365
      %v3369 = vsel %vm1633, %v3155, 2147483647
      %v3370 = vand.u32 %v3369, 65535
      %v3371 = vshra.s32 %v3369, 16
      %v3372 = vcvt.s32.f32 %v3370
      %v3373 = vcvt.s32.f32 %v3371
      %3374 = vmin.xlane.f32.xlu0 %v3373
      %v3375 = vpop.xlane.xlu0 %3374
      %vm3376 = vcmp.eq.f32.partialorder %v3373, %v3375
      %v3377 = vsel %vm3376, %v3372, inf
      %3378 = vmin.xlane.f32.xlu0 %v3377
      %v3379 = vpop.xlane.xlu0 %3378
      %v3380 = vcvt.f32.s32 %v3379
      %v3381 = vcvt.f32.s32 %v3375
      %v3382 = vshll.u32 %v3381, 16
      %v3383 = vadd.s32 %v3382, %v3380
      %v3384 = vsel %vm1633, %v3156, 2147483647
      %v3385 = vand.u32 %v3384, 65535
      %v3386 = vshra.s32 %v3384, 16
      %v3387 = vcvt.s32.f32 %v3385
      %v3388 = vcvt.s32.f32 %v3386
      %3389 = vmin.xlane.f32.xlu0 %v3388
      %v3390 = vpop.xlane.xlu0 %3389
      %vm3391 = vcmp.eq.f32.partialorder %v3388, %v3390
      %v3392 = vsel %vm3391, %v3387, inf
      %3393 = vmin.xlane.f32.xlu0 %v3392
      %v3394 = vpop.xlane.xlu0 %3393
      %v3395 = vcvt.f32.s32 %v3394
      %v3396 = vcvt.f32.s32 %v3390
      %v3397 = vshll.u32 %v3396, 16
      %v3398 = vadd.s32 %v3397, %v3395
      %v3399 = vsel %vm1633, %v3157, 2147483647
      %v3400 = vand.u32 %v3399, 65535
      %v3401 = vshra.s32 %v3399, 16
      %v3402 = vcvt.s32.f32 %v3400
      %v3403 = vcvt.s32.f32 %v3401
      %3404 = vmin.xlane.f32.xlu0 %v3403
      %v3405 = vpop.xlane.xlu0 %3404
      %vm3406 = vcmp.eq.f32.partialorder %v3403, %v3405
      %v3407 = vsel %vm3406, %v3402, inf
      %3408 = vmin.xlane.f32.xlu0 %v3407
      %v3409 = vpop.xlane.xlu0 %3408
      %v3410 = vcvt.f32.s32 %v3409
      %v3411 = vcvt.f32.s32 %v3405
      %v3412 = vshll.u32 %v3411, 16
      %v3413 = vadd.s32 %v3412, %v3410
      %v3414 = vsel %vm1633, %v3158, 2147483647
      %v3415 = vand.u32 %v3414, 65535
      %v3416 = vshra.s32 %v3414, 16
      %v3417 = vcvt.s32.f32 %v3415
      %v3418 = vcvt.s32.f32 %v3416
      %3419 = vmin.xlane.f32.xlu0 %v3418
      %v3420 = vpop.xlane.xlu0 %3419
      %vm3421 = vcmp.eq.f32.partialorder %v3418, %v3420
      %v3422 = vsel %vm3421, %v3417, inf
      %3423 = vmin.xlane.f32.xlu0 %v3422
      %v3424 = vpop.xlane.xlu0 %3423
      %v3425 = vcvt.f32.s32 %v3424
      %v3426 = vcvt.f32.s32 %v3420
      %v3427 = vshll.u32 %v3426, 16
      %v3428 = vadd.s32 %v3427, %v3425
      %v3429 = vsel %vm1633, %v3159, 2147483647
      %v3430 = vand.u32 %v3429, 65535
      %v3431 = vshra.s32 %v3429, 16
      %v3432 = vcvt.s32.f32 %v3430
      %v3433 = vcvt.s32.f32 %v3431
      %3434 = vmin.xlane.f32.xlu0 %v3433
      %v3435 = vpop.xlane.xlu0 %3434
      %vm3436 = vcmp.eq.f32.partialorder %v3433, %v3435
      %v3437 = vsel %vm3436, %v3432, inf
      %3438 = vmin.xlane.f32.xlu0 %v3437
      %v3439 = vpop.xlane.xlu0 %3438
      %v3440 = vcvt.f32.s32 %v3439
      %v3441 = vcvt.f32.s32 %v3435
      %v3442 = vshll.u32 %v3441, 16
      %v3443 = vadd.s32 %v3442, %v3440
      %v3444 = vsel %vm1633, %v3160, 2147483647
      %v3445 = vand.u32 %v3444, 65535
      %v3446 = vshra.s32 %v3444, 16
      %v3447 = vcvt.s32.f32 %v3445
      %v3448 = vcvt.s32.f32 %v3446
      %3449 = vmin.xlane.f32.xlu0 %v3448
      %v3450 = vpop.xlane.xlu0 %3449
      %vm3451 = vcmp.eq.f32.partialorder %v3448, %v3450
      %v3452 = vsel %vm3451, %v3447, inf
      %3453 = vmin.xlane.f32.xlu0 %v3452
      %v3454 = vpop.xlane.xlu0 %3453
      %v3455 = vcvt.f32.s32 %v3454
      %v3456 = vcvt.f32.s32 %v3450
      %v3457 = vshll.u32 %v3456, 16
      %v3458 = vadd.s32 %v3457, %v3455
      %v3459 = vsel %vm1633, %v3161, 2147483647
      %v3460 = vand.u32 %v3459, 65535
      %v3461 = vshra.s32 %v3459, 16
      %v3462 = vcvt.s32.f32 %v3460
      %v3463 = vcvt.s32.f32 %v3461
      %3464 = vmin.xlane.f32.xlu0 %v3463
      %v3465 = vpop.xlane.xlu0 %3464
      %vm3466 = vcmp.eq.f32.partialorder %v3463, %v3465
      %v3467 = vsel %vm3466, %v3462, inf
      %3468 = vmin.xlane.f32.xlu0 %v3467
      %v3469 = vpop.xlane.xlu0 %3468
      %v3470 = vcvt.f32.s32 %v3469
      %v3471 = vcvt.f32.s32 %v3465
      %v3472 = vshll.u32 %v3471, 16
      %v3473 = vadd.s32 %v3472, %v3470
      %v3474 = vsel %vm1633, %v3162, 2147483647
      %v3475 = vand.u32 %v3474, 65535
      %v3476 = vshra.s32 %v3474, 16
      %v3477 = vcvt.s32.f32 %v3475
      %v3478 = vcvt.s32.f32 %v3476
      %3479 = vmin.xlane.f32.xlu0 %v3478
      %v3480 = vpop.xlane.xlu0 %3479
      %vm3481 = vcmp.eq.f32.partialorder %v3478, %v3480
      %v3482 = vsel %vm3481, %v3477, inf
      %3483 = vmin.xlane.f32.xlu0 %v3482
      %v3484 = vpop.xlane.xlu0 %3483
      %v3485 = vcvt.f32.s32 %v3484
      %v3486 = vcvt.f32.s32 %v3480
      %v3487 = vshll.u32 %v3486, 16
      %v3488 = vadd.s32 %v3487, %v3485
      %v3489 = vsel %vm1633, %v3163, 2147483647
      %v3490 = vand.u32 %v3489, 65535
      %v3491 = vshra.s32 %v3489, 16
      %v3492 = vcvt.s32.f32 %v3490
      %v3493 = vcvt.s32.f32 %v3491
      %3494 = vmin.xlane.f32.xlu0 %v3493
      %v3495 = vpop.xlane.xlu0 %3494
      %vm3496 = vcmp.eq.f32.partialorder %v3493, %v3495
      %v3497 = vsel %vm3496, %v3492, inf
      %3498 = vmin.xlane.f32.xlu0 %v3497
      %v3499 = vpop.xlane.xlu0 %3498
      %v3500 = vcvt.f32.s32 %v3499
      %v3501 = vcvt.f32.s32 %v3495
      %v3502 = vshll.u32 %v3501, 16
      %v3503 = vadd.s32 %v3502, %v3500
      %v3504 = vsel %vm1633, %v3164, 2147483647
      %v3505 = vand.u32 %v3504, 65535
      %v3506 = vshra.s32 %v3504, 16
      %v3507 = vcvt.s32.f32 %v3505
      %v3508 = vcvt.s32.f32 %v3506
      %3509 = vmin.xlane.f32.xlu0 %v3508
      %v3510 = vpop.xlane.xlu0 %3509
      %vm3511 = vcmp.eq.f32.partialorder %v3508, %v3510
      %v3512 = vsel %vm3511, %v3507, inf
      %3513 = vmin.xlane.f32.xlu0 %v3512
      %v3514 = vpop.xlane.xlu0 %3513
      %v3515 = vcvt.f32.s32 %v3514
      %v3516 = vcvt.f32.s32 %v3510
      %v3517 = vshll.u32 %v3516, 16
      %v3518 = vadd.s32 %v3517, %v3515
      %v3519 = vsel %vm1633, %v3165, 2147483647
      %v3520 = vand.u32 %v3519, 65535
      %v3521 = vshra.s32 %v3519, 16
      %v3522 = vcvt.s32.f32 %v3520
      %v3523 = vcvt.s32.f32 %v3521
      %3524 = vmin.xlane.f32.xlu0 %v3523
      %v3525 = vpop.xlane.xlu0 %3524
      %vm3526 = vcmp.eq.f32.partialorder %v3523, %v3525
      %v3527 = vsel %vm3526, %v3522, inf
      %3528 = vmin.xlane.f32.xlu0 %v3527
      %v3529 = vpop.xlane.xlu0 %3528
      %v3530 = vcvt.f32.s32 %v3529
      %v3531 = vcvt.f32.s32 %v3525
      %v3532 = vshll.u32 %v3531, 16
      %v3533 = vadd.s32 %v3532, %v3530
      %v3534 = vsel %vm1633, %v3166, 2147483647
      %v3535 = vand.u32 %v3534, 65535
      %v3536 = vshra.s32 %v3534, 16
      %v3537 = vcvt.s32.f32 %v3535
      %v3538 = vcvt.s32.f32 %v3536
      %3539 = vmin.xlane.f32.xlu0 %v3538
      %v3540 = vpop.xlane.xlu0 %3539
      %vm3541 = vcmp.eq.f32.partialorder %v3538, %v3540
      %v3542 = vsel %vm3541, %v3537, inf
      %3543 = vmin.xlane.f32.xlu0 %v3542
      %v3544 = vpop.xlane.xlu0 %3543
      %v3545 = vcvt.f32.s32 %v3544
      %v3546 = vcvt.f32.s32 %v3540
      %v3547 = vshll.u32 %v3546, 16
      %v3548 = vadd.s32 %v3547, %v3545
      %v3549 = vsel %vm1633, %v3167, 2147483647
      %v3550 = vand.u32 %v3549, 65535
      %v3551 = vshra.s32 %v3549, 16
      %v3552 = vcvt.s32.f32 %v3550
      %v3553 = vcvt.s32.f32 %v3551
      %3554 = vmin.xlane.f32.xlu0 %v3553
      %v3555 = vpop.xlane.xlu0 %3554
      %vm3556 = vcmp.eq.f32.partialorder %v3553, %v3555
      %v3557 = vsel %vm3556, %v3552, inf
      %3558 = vmin.xlane.f32.xlu0 %v3557
      %v3559 = vpop.xlane.xlu0 %3558
      %v3560 = vcvt.f32.s32 %v3559
      %v3561 = vcvt.f32.s32 %v3555
      %v3562 = vshll.u32 %v3561, 16
      %v3563 = vadd.s32 %v3562, %v3560
      %v3564 = vsel %vm1633, %v3168, 2147483647
      %v3565 = vand.u32 %v3564, 65535
      %v3566 = vshra.s32 %v3564, 16
      %v3567 = vcvt.s32.f32 %v3565
      %v3568 = vcvt.s32.f32 %v3566
      %3569 = vmin.xlane.f32.xlu0 %v3568
      %v3570 = vpop.xlane.xlu0 %3569
      %vm3571 = vcmp.eq.f32.partialorder %v3568, %v3570
      %v3572 = vsel %vm3571, %v3567, inf
      %3573 = vmin.xlane.f32.xlu0 %v3572
      %v3574 = vpop.xlane.xlu0 %3573
      %v3575 = vcvt.f32.s32 %v3574
      %v3576 = vcvt.f32.s32 %v3570
      %v3577 = vshll.u32 %v3576, 16
      %v3578 = vadd.s32 %v3577, %v3575
      %v3579 = vsel %vm1633, %v3169, 2147483647
      %v3580 = vand.u32 %v3579, 65535
      %v3581 = vshra.s32 %v3579, 16
      %v3582 = vcvt.s32.f32 %v3580
      %v3583 = vcvt.s32.f32 %v3581
      %3584 = vmin.xlane.f32.xlu0 %v3583
      %v3585 = vpop.xlane.xlu0 %3584
      %vm3586 = vcmp.eq.f32.partialorder %v3583, %v3585
      %v3587 = vsel %vm3586, %v3582, inf
      %3588 = vmin.xlane.f32.xlu0 %v3587
      %v3589 = vpop.xlane.xlu0 %3588
      %v3590 = vcvt.f32.s32 %v3589
      %v3591 = vcvt.f32.s32 %v3585
      %v3592 = vshll.u32 %v3591, 16
      %v3593 = vadd.s32 %v3592, %v3590
      %v3594 = vsel %vm1633, %v3170, 2147483647
      %v3595 = vand.u32 %v3594, 65535
      %v3596 = vshra.s32 %v3594, 16
      %v3597 = vcvt.s32.f32 %v3595
      %v3598 = vcvt.s32.f32 %v3596
      %3599 = vmin.xlane.f32.xlu0 %v3598
      %v3600 = vpop.xlane.xlu0 %3599
      %vm3601 = vcmp.eq.f32.partialorder %v3598, %v3600
      %v3602 = vsel %vm3601, %v3597, inf
      %3603 = vmin.xlane.f32.xlu0 %v3602
      %v3604 = vpop.xlane.xlu0 %3603
      %v3605 = vcvt.f32.s32 %v3604
      %v3606 = vcvt.f32.s32 %v3600
      %v3607 = vshll.u32 %v3606, 16
      %v3608 = vadd.s32 %v3607, %v3605
      %v3609 = vsel %vm1633, %v3171, 2147483647
      %v3610 = vand.u32 %v3609, 65535
      %v3611 = vshra.s32 %v3609, 16
      %v3612 = vcvt.s32.f32 %v3610
      %v3613 = vcvt.s32.f32 %v3611
      %3614 = vmin.xlane.f32.xlu0 %v3613
      %v3615 = vpop.xlane.xlu0 %3614
      %vm3616 = vcmp.eq.f32.partialorder %v3613, %v3615
      %v3617 = vsel %vm3616, %v3612, inf
      %3618 = vmin.xlane.f32.xlu0 %v3617
      %v3619 = vpop.xlane.xlu0 %3618
      %v3620 = vcvt.f32.s32 %v3619
      %v3621 = vcvt.f32.s32 %v3615
      %v3622 = vshll.u32 %v3621, 16
      %v3623 = vadd.s32 %v3622, %v3620
      %v3624 = vsel %vm1633, %v3172, 2147483647
      %v3625 = vand.u32 %v3624, 65535
      %v3626 = vshra.s32 %v3624, 16
      %v3627 = vcvt.s32.f32 %v3625
      %v3628 = vcvt.s32.f32 %v3626
      %3629 = vmin.xlane.f32.xlu0 %v3628
      %v3630 = vpop.xlane.xlu0 %3629
      %vm3631 = vcmp.eq.f32.partialorder %v3628, %v3630
      %v3632 = vsel %vm3631, %v3627, inf
      %3633 = vmin.xlane.f32.xlu0 %v3632
      %v3634 = vpop.xlane.xlu0 %3633
      %v3635 = vcvt.f32.s32 %v3634
      %v3636 = vcvt.f32.s32 %v3630
      %v3637 = vshll.u32 %v3636, 16
      %v3638 = vadd.s32 %v3637, %v3635
      %v3639 = vsel %vm1633, %v3173, 2147483647
      %v3640 = vand.u32 %v3639, 65535
      %v3641 = vshra.s32 %v3639, 16
      %v3642 = vcvt.s32.f32 %v3640
      %v3643 = vcvt.s32.f32 %v3641
      %3644 = vmin.xlane.f32.xlu0 %v3643
      %v3645 = vpop.xlane.xlu0 %3644
      %vm3646 = vcmp.eq.f32.partialorder %v3643, %v3645
      %v3647 = vsel %vm3646, %v3642, inf
      %3648 = vmin.xlane.f32.xlu0 %v3647
      %v3649 = vpop.xlane.xlu0 %3648
      %v3650 = vcvt.f32.s32 %v3649
      %v3651 = vcvt.f32.s32 %v3645
      %v3652 = vshll.u32 %v3651, 16
      %v3653 = vadd.s32 %v3652, %v3650
      %vm3654 = vcmp.eq.s32.totalorder %v1731, %v3188
      %vm3655 = vcmp.eq.s32.totalorder %v1731, %v3203
      %vm3656 = vcmp.eq.s32.totalorder %v1731, %v3218
      %vm3657 = vcmp.eq.s32.totalorder %v1731, %v3233
      %vm3658 = vcmp.eq.s32.totalorder %v1731, %v3248
      %vm3659 = vcmp.eq.s32.totalorder %v1731, %v3263
      %vm3660 = vcmp.eq.s32.totalorder %v1731, %v3278
      %vm3661 = vcmp.eq.s32.totalorder %v1731, %v3293
      %vm3662 = vcmp.eq.s32.totalorder %v1731, %v3308
      %vm3663 = vcmp.eq.s32.totalorder %v1731, %v3323
      %vm3664 = vcmp.eq.s32.totalorder %v1731, %v3338
      %vm3665 = vcmp.eq.s32.totalorder %v1731, %v3353
      %vm3666 = vcmp.eq.s32.totalorder %v1731, %v3368
      %vm3667 = vcmp.eq.s32.totalorder %v1731, %v3383
      %vm3668 = vcmp.eq.s32.totalorder %v1731, %v3398
      %vm3669 = vcmp.eq.s32.totalorder %v1731, %v3413
      %vm3670 = vcmp.eq.s32.totalorder %v1731, %v3428
      %vm3671 = vcmp.eq.s32.totalorder %v1731, %v3443
      %vm3672 = vcmp.eq.s32.totalorder %v1731, %v3458
      %vm3673 = vcmp.eq.s32.totalorder %v1731, %v3473
      %vm3674 = vcmp.eq.s32.totalorder %v1731, %v3488
      %vm3675 = vcmp.eq.s32.totalorder %v1731, %v3503
      %vm3676 = vcmp.eq.s32.totalorder %v1731, %v3518
      %vm3677 = vcmp.eq.s32.totalorder %v1731, %v3533
      %vm3678 = vcmp.eq.s32.totalorder %v1731, %v3548
      %vm3679 = vcmp.eq.s32.totalorder %v1731, %v3563
      %vm3680 = vcmp.eq.s32.totalorder %v1731, %v3578
      %vm3681 = vcmp.eq.s32.totalorder %v1731, %v3593
      %vm3682 = vcmp.eq.s32.totalorder %v1731, %v3608
      %vm3683 = vcmp.eq.s32.totalorder %v1731, %v3623
      %vm3684 = vcmp.eq.s32.totalorder %v1731, %v3638
      %vm3685 = vcmp.eq.s32.totalorder %v1731, %v3653
      %v3686 = vsel %vm3654, 1, 0
      %v3687 = vsel %vm3655, 1, 0
      %v3688 = vsel %vm3656, 1, 0
      %v3689 = vsel %vm3657, 1, 0
      %v3690 = vsel %vm3658, 1, 0
      %v3691 = vsel %vm3659, 1, 0
      %v3692 = vsel %vm3660, 1, 0
      %v3693 = vsel %vm3661, 1, 0
      %v3694 = vsel %vm3662, 1, 0
      %v3695 = vsel %vm3663, 1, 0
      %v3696 = vsel %vm3664, 1, 0
      %v3697 = vsel %vm3665, 1, 0
      %v3698 = vsel %vm3666, 1, 0
      %v3699 = vsel %vm3667, 1, 0
      %v3700 = vsel %vm3668, 1, 0
      %v3701 = vsel %vm3669, 1, 0
      %v3702 = vsel %vm3670, 1, 0
      %v3703 = vsel %vm3671, 1, 0
      %v3704 = vsel %vm3672, 1, 0
      %v3705 = vsel %vm3673, 1, 0
      %v3706 = vsel %vm3674, 1, 0
      %v3707 = vsel %vm3675, 1, 0
      %v3708 = vsel %vm3676, 1, 0
      %v3709 = vsel %vm3677, 1, 0
      %v3710 = vsel %vm3678, 1, 0
      %v3711 = vsel %vm3679, 1, 0
      %v3712 = vsel %vm3680, 1, 0
      %v3713 = vsel %vm3681, 1, 0
      %v3714 = vsel %vm3682, 1, 0
      %v3715 = vsel %vm3683, 1, 0
      %v3716 = vsel %vm3684, 1, 0
      %v3717 = vsel %vm3685, 1, 0
      %v3718 = vcvt.s32.f32 %v3686
      %v3719 = vcvt.s32.f32 %v3687
      %v3720 = vcvt.s32.f32 %v3688
      %v3721 = vcvt.s32.f32 %v3689
      %v3722 = vcvt.s32.f32 %v3690
      %v3723 = vcvt.s32.f32 %v3691
      %v3724 = vcvt.s32.f32 %v3692
      %v3725 = vcvt.s32.f32 %v3693
      %v3726 = vcvt.s32.f32 %v3694
      %v3727 = vcvt.s32.f32 %v3695
      %v3728 = vcvt.s32.f32 %v3696
      %v3729 = vcvt.s32.f32 %v3697
      %v3730 = vcvt.s32.f32 %v3698
      %v3731 = vcvt.s32.f32 %v3699
      %v3732 = vcvt.s32.f32 %v3700
      %v3733 = vcvt.s32.f32 %v3701
      %v3734 = vcvt.s32.f32 %v3702
      %v3735 = vcvt.s32.f32 %v3703
      %v3736 = vcvt.s32.f32 %v3704
      %v3737 = vcvt.s32.f32 %v3705
      %v3738 = vcvt.s32.f32 %v3706
      %v3739 = vcvt.s32.f32 %v3707
      %v3740 = vcvt.s32.f32 %v3708
      %v3741 = vcvt.s32.f32 %v3709
      %v3742 = vcvt.s32.f32 %v3710
      %v3743 = vcvt.s32.f32 %v3711
      %v3744 = vcvt.s32.f32 %v3712
      %v3745 = vcvt.s32.f32 %v3713
      %v3746 = vcvt.s32.f32 %v3714
      %v3747 = vcvt.s32.f32 %v3715
      %v3748 = vcvt.s32.f32 %v3716
      %v3749 = vcvt.s32.f32 %v3717
      %v3751 = vsel %vm1633, %v3718, 0
      %v3754 = vsel %vm1633, %v3719, 0
      %v3757 = vsel %vm1633, %v3720, 0
      %v3760 = vsel %vm1633, %v3721, 0
      %v3763 = vsel %vm1633, %v3722, 0
      %v3766 = vsel %vm1633, %v3723, 0
      %v3769 = vsel %vm1633, %v3724, 0
      %v3772 = vsel %vm1633, %v3725, 0
      %v3775 = vsel %vm1633, %v3726, 0
      %v3778 = vsel %vm1633, %v3727, 0
      %v3781 = vsel %vm1633, %v3728, 0
      %v3784 = vsel %vm1633, %v3729, 0
      %v3787 = vsel %vm1633, %v3730, 0
      %v3790 = vsel %vm1633, %v3731, 0
      %v3793 = vsel %vm1633, %v3732, 0
      %v3796 = vsel %vm1633, %v3733, 0
      %v3799 = vsel %vm1633, %v3734, 0
      %v3802 = vsel %vm1633, %v3735, 0
      %v3805 = vsel %vm1633, %v3736, 0
      %v3808 = vsel %vm1633, %v3737, 0
      %v3811 = vsel %vm1633, %v3738, 0
      %v3814 = vsel %vm1633, %v3739, 0
      %v3817 = vsel %vm1633, %v3740, 0
      %v3820 = vsel %vm1633, %v3741, 0
      %v3823 = vsel %vm1633, %v3742, 0
      %v3826 = vsel %vm1633, %v3743, 0
      %v3829 = vsel %vm1633, %v3744, 0
      %v3832 = vsel %vm1633, %v3745, 0
      %v3835 = vsel %vm1633, %v3746, 0
      %v3838 = vsel %vm1633, %v3747, 0
      %v3841 = vsel %vm1633, %v3748, 0
      %v3844 = vsel %vm1633, %v3749, 0
      %3846 = vmatpush.msra.mxu0 0.0
      %3847 = vmatpush.msra.mxu0 0.0
      %3848 = vmatpush.msra.mxu0 0.0
      %3849 = vmatpush.msra.mxu0 0.0
      %3850 = vmatpush.msra.mxu0 0.0
      %3851 = vmatpush.msra.mxu0 0.0
      %3852 = vmatpush.msra.mxu0 0.0
      %3853 = vmatpush.msra.mxu0 0.0
      %3854 = vmatpush.msra.mxu0 0.0
      %3855 = vmatpush.msra.mxu0 0.0
      %3856 = vmatpush.msra.mxu0 0.0
      %3857 = vmatpush.msra.mxu0 0.0
      %3858 = vmatpush.msra.mxu0 0.0
      %3859 = vmatpush.msra.mxu0 0.0
      %3860 = vmatpush.msra.mxu0 %v1188
      %3861 = vmatpush.msra.mxu0 %v1187
      %3862 = vmatmul.f32.gmra.mxu0 %v3751
      %v3863 = vpop.f32.mrf.mxu0
      %v3864 = vadd.f32 0.0, %v3863
      %3865 = vmatmul.f32.gmra.mxu0 %v3754
      %v3866 = vpop.f32.mrf.mxu0
      %v3867 = vadd.f32 0.0, %v3866
      %3868 = vmatmul.f32.gmra.mxu0 %v3757
      %v3869 = vpop.f32.mrf.mxu0
      %v3870 = vadd.f32 0.0, %v3869
      %3871 = vmatmul.f32.gmra.mxu0 %v3760
      %v3872 = vpop.f32.mrf.mxu0
      %v3873 = vadd.f32 0.0, %v3872
      %3874 = vmatmul.f32.gmra.mxu0 %v3763
      %v3875 = vpop.f32.mrf.mxu0
      %v3876 = vadd.f32 0.0, %v3875
      %3877 = vmatmul.f32.gmra.mxu0 %v3766
      %v3878 = vpop.f32.mrf.mxu0
      %v3879 = vadd.f32 0.0, %v3878
      %3880 = vmatmul.f32.gmra.mxu0 %v3769
      %v3881 = vpop.f32.mrf.mxu0
      %v3882 = vadd.f32 0.0, %v3881
      %3883 = vmatmul.f32.gmra.mxu0 %v3772
      %v3884 = vpop.f32.mrf.mxu0
      %v3885 = vadd.f32 0.0, %v3884
      %3886 = vmatmul.f32.gmra.mxu0 %v3775
      %v3887 = vpop.f32.mrf.mxu0
      %v3888 = vadd.f32 0.0, %v3887
      %3889 = vmatmul.f32.gmra.mxu0 %v3778
      %v3890 = vpop.f32.mrf.mxu0
      %v3891 = vadd.f32 0.0, %v3890
      %3892 = vmatmul.f32.gmra.mxu0 %v3781
      %v3893 = vpop.f32.mrf.mxu0
      %v3894 = vadd.f32 0.0, %v3893
      %3895 = vmatmul.f32.gmra.mxu0 %v3784
      %v3896 = vpop.f32.mrf.mxu0
      %v3897 = vadd.f32 0.0, %v3896
      %3898 = vmatmul.f32.gmra.mxu0 %v3787
      %v3899 = vpop.f32.mrf.mxu0
      %v3900 = vadd.f32 0.0, %v3899
      %3901 = vmatmul.f32.gmra.mxu0 %v3790
      %v3902 = vpop.f32.mrf.mxu0
      %v3903 = vadd.f32 0.0, %v3902
      %3904 = vmatmul.f32.gmra.mxu0 %v3793
      %v3905 = vpop.f32.mrf.mxu0
      %v3906 = vadd.f32 0.0, %v3905
      %3907 = vmatmul.f32.gmra.mxu0 %v3796
      %v3908 = vpop.f32.mrf.mxu0
      %v3909 = vadd.f32 0.0, %v3908
      %3910 = vmatmul.f32.gmra.mxu0 %v3799
      %v3911 = vpop.f32.mrf.mxu0
      %v3912 = vadd.f32 0.0, %v3911
      %3913 = vmatmul.f32.gmra.mxu0 %v3802
      %v3914 = vpop.f32.mrf.mxu0
      %v3915 = vadd.f32 0.0, %v3914
      %3916 = vmatmul.f32.gmra.mxu0 %v3805
      %v3917 = vpop.f32.mrf.mxu0
      %v3918 = vadd.f32 0.0, %v3917
      %3919 = vmatmul.f32.gmra.mxu0 %v3808
      %v3920 = vpop.f32.mrf.mxu0
      %v3921 = vadd.f32 0.0, %v3920
      %3922 = vmatmul.f32.gmra.mxu0 %v3811
      %v3923 = vpop.f32.mrf.mxu0
      %v3924 = vadd.f32 0.0, %v3923
      %3925 = vmatmul.f32.gmra.mxu0 %v3814
      %v3926 = vpop.f32.mrf.mxu0
      %v3927 = vadd.f32 0.0, %v3926
      %3928 = vmatmul.f32.gmra.mxu0 %v3817
      %v3929 = vpop.f32.mrf.mxu0
      %v3930 = vadd.f32 0.0, %v3929
      %3931 = vmatmul.f32.gmra.mxu0 %v3820
      %v3932 = vpop.f32.mrf.mxu0
      %v3933 = vadd.f32 0.0, %v3932
      %3934 = vmatmul.f32.gmra.mxu0 %v3823
      %v3935 = vpop.f32.mrf.mxu0
      %v3936 = vadd.f32 0.0, %v3935
      %3937 = vmatmul.f32.gmra.mxu0 %v3826
      %v3938 = vpop.f32.mrf.mxu0
      %v3939 = vadd.f32 0.0, %v3938
      %3940 = vmatmul.f32.gmra.mxu0 %v3829
      %v3941 = vpop.f32.mrf.mxu0
      %v3942 = vadd.f32 0.0, %v3941
      %3943 = vmatmul.f32.gmra.mxu0 %v3832
      %v3944 = vpop.f32.mrf.mxu0
      %v3945 = vadd.f32 0.0, %v3944
      %3946 = vmatmul.f32.gmra.mxu0 %v3835
      %v3947 = vpop.f32.mrf.mxu0
      %v3948 = vadd.f32 0.0, %v3947
      %3949 = vmatmul.f32.gmra.mxu0 %v3838
      %v3950 = vpop.f32.mrf.mxu0
      %v3951 = vadd.f32 0.0, %v3950
      %3952 = vmatmul.f32.gmra.mxu0 %v3841
      %v3953 = vpop.f32.mrf.mxu0
      %v3954 = vadd.f32 0.0, %v3953
      %3955 = vmatmul.f32.gmra.mxu0 %v3844
      %v3956 = vpop.f32.mrf.mxu0
      %v3957 = vadd.f32 0.0, %v3956
      %3958 = vdwg.mxu0
      %3959 = vst.msk [vmem:[%s372] sm:$0xff] %vm1222, %v2486
      %3960 = vst.msk [vmem:[%s372 + $0x8] sm:$0xff] %vm1222, %v2489
      %3961 = vst.msk [vmem:[%s372 + $0x10] sm:$0xff] %vm1222, %v2492
      %3962 = vst.msk [vmem:[%s372 + $0x18] sm:$0xff] %vm1222, %v2495
      %3963 = vst.msk [vmem:[%s372 + $0x20] sm:$0xff] %vm1222, %v2498
      %3964 = vst.msk [vmem:[%s372 + $0x28] sm:$0xff] %vm1222, %v2501
      %3965 = vst.msk [vmem:[%s372 + $0x30] sm:$0xff] %vm1222, %v2504
      %3966 = vst.msk [vmem:[%s372 + $0x38] sm:$0xff] %vm1222, %v2507
      %3967 = vst.msk [vmem:[%s372 + $0x40] sm:$0xff] %vm1222, %v2510
      %3968 = vst.msk [vmem:[%s372 + $0x48] sm:$0xff] %vm1222, %v2513
      %3969 = vst.msk [vmem:[%s372 + $0x50] sm:$0xff] %vm1222, %v2516
      %3970 = vst.msk [vmem:[%s372 + $0x58] sm:$0xff] %vm1222, %v2519
      %3971 = vst.msk [vmem:[%s372 + $0x60] sm:$0xff] %vm1222, %v2522
      %3972 = vst.msk [vmem:[%s372 + $0x68] sm:$0xff] %vm1222, %v2525
      %3973 = vst.msk [vmem:[%s372 + $0x70] sm:$0xff] %vm1222, %v2528
      %3974 = vst.msk [vmem:[%s372 + $0x78] sm:$0xff] %vm1222, %v2531
      %3975 = vst.msk [vmem:[%s372 + $0x80] sm:$0xff] %vm1222, %v2534
      %3976 = vst.msk [vmem:[%s372 + $0x88] sm:$0xff] %vm1222, %v2537
      %3977 = vst.msk [vmem:[%s372 + $0x90] sm:$0xff] %vm1222, %v2540
      %3978 = vst.msk [vmem:[%s372 + $0x98] sm:$0xff] %vm1222, %v2543
      %3979 = vst.msk [vmem:[%s372 + $0xa0] sm:$0xff] %vm1222, %v2546
      %3980 = vst.msk [vmem:[%s372 + $0xa8] sm:$0xff] %vm1222, %v2549
      %3981 = vst.msk [vmem:[%s372 + $0xb0] sm:$0xff] %vm1222, %v2552
      %3982 = vst.msk [vmem:[%s372 + $0xb8] sm:$0xff] %vm1222, %v2555
      %3983 = vst.msk [vmem:[%s372 + $0xc0] sm:$0xff] %vm1222, %v2558
      %3984 = vst.msk [vmem:[%s372 + $0xc8] sm:$0xff] %vm1222, %v2561
      %3985 = vst.msk [vmem:[%s372 + $0xd0] sm:$0xff] %vm1222, %v2564
      %3986 = vst.msk [vmem:[%s372 + $0xd8] sm:$0xff] %vm1222, %v2567
      %3987 = vst.msk [vmem:[%s372 + $0xe0] sm:$0xff] %vm1222, %v2570
      %3988 = vst.msk [vmem:[%s372 + $0xe8] sm:$0xff] %vm1222, %v2573
      %3989 = vst.msk [vmem:[%s372 + $0xf0] sm:$0xff] %vm1222, %v2576
      %3990 = vst.msk [vmem:[%s372 + $0xf8] sm:$0xff] %vm1222, %v2579
      %3991 = vst.msk [vmem:[%s377] sm:$0xff] %vm1222, %v3864
      %3992 = vst.msk [vmem:[%s377 + $0x8] sm:$0xff] %vm1222, %v3867
      %3993 = vst.msk [vmem:[%s377 + $0x10] sm:$0xff] %vm1222, %v3870
      %3994 = vst.msk [vmem:[%s377 + $0x18] sm:$0xff] %vm1222, %v3873
      %3995 = vst.msk [vmem:[%s377 + $0x20] sm:$0xff] %vm1222, %v3876
      %3996 = vst.msk [vmem:[%s377 + $0x28] sm:$0xff] %vm1222, %v3879
      %3997 = vst.msk [vmem:[%s377 + $0x30] sm:$0xff] %vm1222, %v3882
      %3998 = vst.msk [vmem:[%s377 + $0x38] sm:$0xff] %vm1222, %v3885
      %3999 = vst.msk [vmem:[%s377 + $0x40] sm:$0xff] %vm1222, %v3888
      %4000 = vst.msk [vmem:[%s377 + $0x48] sm:$0xff] %vm1222, %v3891
      %4001 = vst.msk [vmem:[%s377 + $0x50] sm:$0xff] %vm1222, %v3894
      %4002 = vst.msk [vmem:[%s377 + $0x58] sm:$0xff] %vm1222, %v3897
      %4003 = vst.msk [vmem:[%s377 + $0x60] sm:$0xff] %vm1222, %v3900
      %4004 = vst.msk [vmem:[%s377 + $0x68] sm:$0xff] %vm1222, %v3903
      %4005 = vst.msk [vmem:[%s377 + $0x70] sm:$0xff] %vm1222, %v3906
      %4006 = vst.msk [vmem:[%s377 + $0x78] sm:$0xff] %vm1222, %v3909
      %4007 = vst.msk [vmem:[%s377 + $0x80] sm:$0xff] %vm1222, %v3912
      %4008 = vst.msk [vmem:[%s377 + $0x88] sm:$0xff] %vm1222, %v3915
      %4009 = vst.msk [vmem:[%s377 + $0x90] sm:$0xff] %vm1222, %v3918
      %4010 = vst.msk [vmem:[%s377 + $0x98] sm:$0xff] %vm1222, %v3921
      %4011 = vst.msk [vmem:[%s377 + $0xa0] sm:$0xff] %vm1222, %v3924
      %4012 = vst.msk [vmem:[%s377 + $0xa8] sm:$0xff] %vm1222, %v3927
      %4013 = vst.msk [vmem:[%s377 + $0xb0] sm:$0xff] %vm1222, %v3930
      %4014 = vst.msk [vmem:[%s377 + $0xb8] sm:$0xff] %vm1222, %v3933
      %4015 = vst.msk [vmem:[%s377 + $0xc0] sm:$0xff] %vm1222, %v3936
      %4016 = vst.msk [vmem:[%s377 + $0xc8] sm:$0xff] %vm1222, %v3939
      %4017 = vst.msk [vmem:[%s377 + $0xd0] sm:$0xff] %vm1222, %v3942
      %4018 = vst.msk [vmem:[%s377 + $0xd8] sm:$0xff] %vm1222, %v3945
      %4019 = vst.msk [vmem:[%s377 + $0xe0] sm:$0xff] %vm1222, %v3948
      %4020 = vst.msk [vmem:[%s377 + $0xe8] sm:$0xff] %vm1222, %v3951
      %4021 = vst.msk [vmem:[%s377 + $0xf0] sm:$0xff] %vm1222, %v3954
      %4022 = vst.msk [vmem:[%s377 + $0xf8] sm:$0xff] %vm1222, %v3957
      %v4023 = vsub.f32 %v2486, %v1055
      %v4024 = vsub.f32 %v2489, %v1056
      %v4025 = vsub.f32 %v2492, %v1057
      %v4026 = vsub.f32 %v2495, %v1058
      %v4027 = vsub.f32 %v2498, %v1059
      %v4028 = vsub.f32 %v2501, %v1060
      %v4029 = vsub.f32 %v2504, %v1061
      %v4030 = vsub.f32 %v2507, %v1062
      %v4031 = vsub.f32 %v2510, %v1063
      %v4032 = vsub.f32 %v2513, %v1064
      %v4033 = vsub.f32 %v2516, %v1065
      %v4034 = vsub.f32 %v2519, %v1066
      %v4035 = vsub.f32 %v2522, %v1067
      %v4036 = vsub.f32 %v2525, %v1068
      %v4037 = vsub.f32 %v2528, %v1069
      %v4038 = vsub.f32 %v2531, %v1070
      %v4039 = vsub.f32 %v2534, %v1071
      %v4040 = vsub.f32 %v2537, %v1072
      %v4041 = vsub.f32 %v2540, %v1073
      %v4042 = vsub.f32 %v2543, %v1074
      %v4043 = vsub.f32 %v2546, %v1075
      %v4044 = vsub.f32 %v2549, %v1076
      %v4045 = vsub.f32 %v2552, %v1077
      %v4046 = vsub.f32 %v2555, %v1078
      %v4047 = vsub.f32 %v2558, %v1079
      %v4048 = vsub.f32 %v2561, %v1080
      %v4049 = vsub.f32 %v2564, %v1081
      %v4050 = vsub.f32 %v2567, %v1082
      %v4051 = vsub.f32 %v2570, %v1083
      %v4052 = vsub.f32 %v2573, %v1084
      %v4053 = vsub.f32 %v2576, %v1085
      %v4054 = vsub.f32 %v2579, %v1086
      %v4055 = vmul.f32 %v4023, %v4023
      %v4056 = vmul.f32 %v4024, %v4024
      %v4057 = vmul.f32 %v4025, %v4025
      %v4058 = vmul.f32 %v4026, %v4026
      %v4059 = vmul.f32 %v4027, %v4027
      %v4060 = vmul.f32 %v4028, %v4028
      %v4061 = vmul.f32 %v4029, %v4029
      %v4062 = vmul.f32 %v4030, %v4030
      %v4063 = vmul.f32 %v4031, %v4031
      %v4064 = vmul.f32 %v4032, %v4032
      %v4065 = vmul.f32 %v4033, %v4033
      %v4066 = vmul.f32 %v4034, %v4034
      %v4067 = vmul.f32 %v4035, %v4035
      %v4068 = vmul.f32 %v4036, %v4036
      %v4069 = vmul.f32 %v4037, %v4037
      %v4070 = vmul.f32 %v4038, %v4038
      %v4071 = vmul.f32 %v4039, %v4039
      %v4072 = vmul.f32 %v4040, %v4040
      %v4073 = vmul.f32 %v4041, %v4041
      %v4074 = vmul.f32 %v4042, %v4042
      %v4075 = vmul.f32 %v4043, %v4043
      %v4076 = vmul.f32 %v4044, %v4044
      %v4077 = vmul.f32 %v4045, %v4045
      %v4078 = vmul.f32 %v4046, %v4046
      %v4079 = vmul.f32 %v4047, %v4047
      %v4080 = vmul.f32 %v4048, %v4048
      %v4081 = vmul.f32 %v4049, %v4049
      %v4082 = vmul.f32 %v4050, %v4050
      %v4083 = vmul.f32 %v4051, %v4051
      %v4084 = vmul.f32 %v4052, %v4052
      %v4085 = vmul.f32 %v4053, %v4053
      %v4086 = vmul.f32 %v4054, %v4054
      %v4087 = vsel %vm1222, %v4055, 0.0
      %v4088 = vsel %vm1222, %v4056, 0.0
      %v4089 = vadd.f32 %v4087, %v4088
      %v4090 = vsel %vm1222, %v4057, 0.0
      %v4091 = vadd.f32 %v4089, %v4090
      %v4092 = vsel %vm1222, %v4058, 0.0
      %v4093 = vadd.f32 %v4091, %v4092
      %v4094 = vsel %vm1222, %v4059, 0.0
      %v4095 = vadd.f32 %v4093, %v4094
      %v4096 = vsel %vm1222, %v4060, 0.0
      %v4097 = vadd.f32 %v4095, %v4096
      %v4098 = vsel %vm1222, %v4061, 0.0
      %v4099 = vadd.f32 %v4097, %v4098
      %v4100 = vsel %vm1222, %v4062, 0.0
      %v4101 = vadd.f32 %v4099, %v4100
      %v4102 = vsel %vm1222, %v4063, 0.0
      %v4103 = vadd.f32 %v4101, %v4102
      %v4104 = vsel %vm1222, %v4064, 0.0
      %v4105 = vadd.f32 %v4103, %v4104
      %v4106 = vsel %vm1222, %v4065, 0.0
      %v4107 = vadd.f32 %v4105, %v4106
      %v4108 = vsel %vm1222, %v4066, 0.0
      %v4109 = vadd.f32 %v4107, %v4108
      %v4110 = vsel %vm1222, %v4067, 0.0
      %v4111 = vadd.f32 %v4109, %v4110
      %v4112 = vsel %vm1222, %v4068, 0.0
      %v4113 = vadd.f32 %v4111, %v4112
      %v4114 = vsel %vm1222, %v4069, 0.0
      %v4115 = vadd.f32 %v4113, %v4114
      %v4116 = vsel %vm1222, %v4070, 0.0
      %v4117 = vadd.f32 %v4115, %v4116
      %v4118 = vsel %vm1222, %v4071, 0.0
      %v4119 = vadd.f32 %v4117, %v4118
      %v4120 = vsel %vm1222, %v4072, 0.0
      %v4121 = vadd.f32 %v4119, %v4120
      %v4122 = vsel %vm1222, %v4073, 0.0
      %v4123 = vadd.f32 %v4121, %v4122
      %v4124 = vsel %vm1222, %v4074, 0.0
      %v4125 = vadd.f32 %v4123, %v4124
      %v4126 = vsel %vm1222, %v4075, 0.0
      %v4127 = vadd.f32 %v4125, %v4126
      %v4128 = vsel %vm1222, %v4076, 0.0
      %v4129 = vadd.f32 %v4127, %v4128
      %v4130 = vsel %vm1222, %v4077, 0.0
      %v4131 = vadd.f32 %v4129, %v4130
      %v4132 = vsel %vm1222, %v4078, 0.0
      %v4133 = vadd.f32 %v4131, %v4132
      %v4134 = vsel %vm1222, %v4079, 0.0
      %v4135 = vadd.f32 %v4133, %v4134
      %v4136 = vsel %vm1222, %v4080, 0.0
      %v4137 = vadd.f32 %v4135, %v4136
      %v4138 = vsel %vm1222, %v4081, 0.0
      %v4139 = vadd.f32 %v4137, %v4138
      %v4140 = vsel %vm1222, %v4082, 0.0
      %v4141 = vadd.f32 %v4139, %v4140
      %v4142 = vsel %vm1222, %v4083, 0.0
      %v4143 = vadd.f32 %v4141, %v4142
      %v4144 = vsel %vm1222, %v4084, 0.0
      %v4145 = vadd.f32 %v4143, %v4144
      %v4146 = vsel %vm1222, %v4085, 0.0
      %v4147 = vadd.f32 %v4145, %v4146
      %v4148 = vsel %vm1222, %v4086, 0.0
      %v4149 = vadd.f32 %v4147, %v4148
      %4150 = vadd.xlane.f32.xlu0 %v4149
      %v4151 = vpop.xlane.xlu0 %4150
      %v4152 = vrot.slane %v4151, 4
      %v4153 = vadd.f32 %v4151, %v4152
      %v4154 = vrot.slane %v4153, 2
      %v4155 = vadd.f32 %v4153, %v4154
      %v4156 = vrot.slane %v4155, 1
      %v4157 = vadd.f32 %v4155, %v4156
      %s4158 = vtos %v4157
      %v4159 = vsub.f32 %v3864, %v1155
      %v4160 = vsub.f32 %v3867, %v1156
      %v4161 = vsub.f32 %v3870, %v1157
      %v4162 = vsub.f32 %v3873, %v1158
      %v4163 = vsub.f32 %v3876, %v1159
      %v4164 = vsub.f32 %v3879, %v1160
      %v4165 = vsub.f32 %v3882, %v1161
      %v4166 = vsub.f32 %v3885, %v1162
      %v4167 = vsub.f32 %v3888, %v1163
      %v4168 = vsub.f32 %v3891, %v1164
      %v4169 = vsub.f32 %v3894, %v1165
      %v4170 = vsub.f32 %v3897, %v1166
      %v4171 = vsub.f32 %v3900, %v1167
      %v4172 = vsub.f32 %v3903, %v1168
      %v4173 = vsub.f32 %v3906, %v1169
      %v4174 = vsub.f32 %v3909, %v1170
      %v4175 = vsub.f32 %v3912, %v1171
      %v4176 = vsub.f32 %v3915, %v1172
      %v4177 = vsub.f32 %v3918, %v1173
      %v4178 = vsub.f32 %v3921, %v1174
      %v4179 = vsub.f32 %v3924, %v1175
      %v4180 = vsub.f32 %v3927, %v1176
      %v4181 = vsub.f32 %v3930, %v1177
      %v4182 = vsub.f32 %v3933, %v1178
      %v4183 = vsub.f32 %v3936, %v1179
      %v4184 = vsub.f32 %v3939, %v1180
      %v4185 = vsub.f32 %v3942, %v1181
      %v4186 = vsub.f32 %v3945, %v1182
      %v4187 = vsub.f32 %v3948, %v1183
      %v4188 = vsub.f32 %v3951, %v1184
      %v4189 = vsub.f32 %v3954, %v1185
      %v4190 = vsub.f32 %v3957, %v1186
      %v4191 = vmul.f32 %v4159, %v4159
      %v4192 = vmul.f32 %v4160, %v4160
      %v4193 = vmul.f32 %v4161, %v4161
      %v4194 = vmul.f32 %v4162, %v4162
      %v4195 = vmul.f32 %v4163, %v4163
      %v4196 = vmul.f32 %v4164, %v4164
      %v4197 = vmul.f32 %v4165, %v4165
      %v4198 = vmul.f32 %v4166, %v4166
      %v4199 = vmul.f32 %v4167, %v4167
      %v4200 = vmul.f32 %v4168, %v4168
      %v4201 = vmul.f32 %v4169, %v4169
      %v4202 = vmul.f32 %v4170, %v4170
      %v4203 = vmul.f32 %v4171, %v4171
      %v4204 = vmul.f32 %v4172, %v4172
      %v4205 = vmul.f32 %v4173, %v4173
      %v4206 = vmul.f32 %v4174, %v4174
      %v4207 = vmul.f32 %v4175, %v4175
      %v4208 = vmul.f32 %v4176, %v4176
      %v4209 = vmul.f32 %v4177, %v4177
      %v4210 = vmul.f32 %v4178, %v4178
      %v4211 = vmul.f32 %v4179, %v4179
      %v4212 = vmul.f32 %v4180, %v4180
      %v4213 = vmul.f32 %v4181, %v4181
      %v4214 = vmul.f32 %v4182, %v4182
      %v4215 = vmul.f32 %v4183, %v4183
      %v4216 = vmul.f32 %v4184, %v4184
      %v4217 = vmul.f32 %v4185, %v4185
      %v4218 = vmul.f32 %v4186, %v4186
      %v4219 = vmul.f32 %v4187, %v4187
      %v4220 = vmul.f32 %v4188, %v4188
      %v4221 = vmul.f32 %v4189, %v4189
      %v4222 = vmul.f32 %v4190, %v4190
      %v4223 = vsel %vm1222, %v4191, 0.0
      %v4224 = vsel %vm1222, %v4192, 0.0
      %v4225 = vadd.f32 %v4223, %v4224
      %v4226 = vsel %vm1222, %v4193, 0.0
      %v4227 = vadd.f32 %v4225, %v4226
      %v4228 = vsel %vm1222, %v4194, 0.0
      %v4229 = vadd.f32 %v4227, %v4228
      %v4230 = vsel %vm1222, %v4195, 0.0
      %v4231 = vadd.f32 %v4229, %v4230
      %v4232 = vsel %vm1222, %v4196, 0.0
      %v4233 = vadd.f32 %v4231, %v4232
      %v4234 = vsel %vm1222, %v4197, 0.0
      %v4235 = vadd.f32 %v4233, %v4234
      %v4236 = vsel %vm1222, %v4198, 0.0
      %v4237 = vadd.f32 %v4235, %v4236
      %v4238 = vsel %vm1222, %v4199, 0.0
      %v4239 = vadd.f32 %v4237, %v4238
      %v4240 = vsel %vm1222, %v4200, 0.0
      %v4241 = vadd.f32 %v4239, %v4240
      %v4242 = vsel %vm1222, %v4201, 0.0
      %v4243 = vadd.f32 %v4241, %v4242
      %v4244 = vsel %vm1222, %v4202, 0.0
      %v4245 = vadd.f32 %v4243, %v4244
      %v4246 = vsel %vm1222, %v4203, 0.0
      %v4247 = vadd.f32 %v4245, %v4246
      %v4248 = vsel %vm1222, %v4204, 0.0
      %v4249 = vadd.f32 %v4247, %v4248
      %v4250 = vsel %vm1222, %v4205, 0.0
      %v4251 = vadd.f32 %v4249, %v4250
      %v4252 = vsel %vm1222, %v4206, 0.0
      %v4253 = vadd.f32 %v4251, %v4252
      %v4254 = vsel %vm1222, %v4207, 0.0
      %v4255 = vadd.f32 %v4253, %v4254
      %v4256 = vsel %vm1222, %v4208, 0.0
      %v4257 = vadd.f32 %v4255, %v4256
      %v4258 = vsel %vm1222, %v4209, 0.0
      %v4259 = vadd.f32 %v4257, %v4258
      %v4260 = vsel %vm1222, %v4210, 0.0
      %v4261 = vadd.f32 %v4259, %v4260
      %v4262 = vsel %vm1222, %v4211, 0.0
      %v4263 = vadd.f32 %v4261, %v4262
      %v4264 = vsel %vm1222, %v4212, 0.0
      %v4265 = vadd.f32 %v4263, %v4264
      %v4266 = vsel %vm1222, %v4213, 0.0
      %v4267 = vadd.f32 %v4265, %v4266
      %v4268 = vsel %vm1222, %v4214, 0.0
      %v4269 = vadd.f32 %v4267, %v4268
      %v4270 = vsel %vm1222, %v4215, 0.0
      %v4271 = vadd.f32 %v4269, %v4270
      %v4272 = vsel %vm1222, %v4216, 0.0
      %v4273 = vadd.f32 %v4271, %v4272
      %v4274 = vsel %vm1222, %v4217, 0.0
      %v4275 = vadd.f32 %v4273, %v4274
      %v4276 = vsel %vm1222, %v4218, 0.0
      %v4277 = vadd.f32 %v4275, %v4276
      %v4278 = vsel %vm1222, %v4219, 0.0
      %v4279 = vadd.f32 %v4277, %v4278
      %v4280 = vsel %vm1222, %v4220, 0.0
      %v4281 = vadd.f32 %v4279, %v4280
      %v4282 = vsel %vm1222, %v4221, 0.0
      %v4283 = vadd.f32 %v4281, %v4282
      %v4284 = vsel %vm1222, %v4222, 0.0
      %v4285 = vadd.f32 %v4283, %v4284
      %4286 = vadd.xlane.f32.xlu0 %v4285
      %v4287 = vpop.xlane.xlu0 %4286
      %v4288 = vrot.slane %v4287, 4
      %v4289 = vadd.f32 %v4287, %v4288
      %v4290 = vrot.slane %v4289, 2
      %v4291 = vadd.f32 %v4289, %v4290
      %v4292 = vrot.slane %v4291, 1
      %v4293 = vadd.f32 %v4291, %v4292
      %s4294 = vtos %v4293
      %v4295 = vsub.f32 %v2486, %v1155
      %v4296 = vsub.f32 %v2489, %v1156
      %v4297 = vsub.f32 %v2492, %v1157
      %v4298 = vsub.f32 %v2495, %v1158
      %v4299 = vsub.f32 %v2498, %v1159
      %v4300 = vsub.f32 %v2501, %v1160
      %v4301 = vsub.f32 %v2504, %v1161
      %v4302 = vsub.f32 %v2507, %v1162
      %v4303 = vsub.f32 %v2510, %v1163
      %v4304 = vsub.f32 %v2513, %v1164
      %v4305 = vsub.f32 %v2516, %v1165
      %v4306 = vsub.f32 %v2519, %v1166
      %v4307 = vsub.f32 %v2522, %v1167
      %v4308 = vsub.f32 %v2525, %v1168
      %v4309 = vsub.f32 %v2528, %v1169
      %v4310 = vsub.f32 %v2531, %v1170
      %v4311 = vsub.f32 %v2534, %v1171
      %v4312 = vsub.f32 %v2537, %v1172
      %v4313 = vsub.f32 %v2540, %v1173
      %v4314 = vsub.f32 %v2543, %v1174
      %v4315 = vsub.f32 %v2546, %v1175
      %v4316 = vsub.f32 %v2549, %v1176
      %v4317 = vsub.f32 %v2552, %v1177
      %v4318 = vsub.f32 %v2555, %v1178
      %v4319 = vsub.f32 %v2558, %v1179
      %v4320 = vsub.f32 %v2561, %v1180
      %v4321 = vsub.f32 %v2564, %v1181
      %v4322 = vsub.f32 %v2567, %v1182
      %v4323 = vsub.f32 %v2570, %v1183
      %v4324 = vsub.f32 %v2573, %v1184
      %v4325 = vsub.f32 %v2576, %v1185
      %v4326 = vsub.f32 %v2579, %v1186
      %v4327 = vmul.f32 %v4295, %v4295
      %v4328 = vmul.f32 %v4296, %v4296
      %v4329 = vmul.f32 %v4297, %v4297
      %v4330 = vmul.f32 %v4298, %v4298
      %v4331 = vmul.f32 %v4299, %v4299
      %v4332 = vmul.f32 %v4300, %v4300
      %v4333 = vmul.f32 %v4301, %v4301
      %v4334 = vmul.f32 %v4302, %v4302
      %v4335 = vmul.f32 %v4303, %v4303
      %v4336 = vmul.f32 %v4304, %v4304
      %v4337 = vmul.f32 %v4305, %v4305
      %v4338 = vmul.f32 %v4306, %v4306
      %v4339 = vmul.f32 %v4307, %v4307
      %v4340 = vmul.f32 %v4308, %v4308
      %v4341 = vmul.f32 %v4309, %v4309
      %v4342 = vmul.f32 %v4310, %v4310
      %v4343 = vmul.f32 %v4311, %v4311
      %v4344 = vmul.f32 %v4312, %v4312
      %v4345 = vmul.f32 %v4313, %v4313
      %v4346 = vmul.f32 %v4314, %v4314
      %v4347 = vmul.f32 %v4315, %v4315
      %v4348 = vmul.f32 %v4316, %v4316
      %v4349 = vmul.f32 %v4317, %v4317
      %v4350 = vmul.f32 %v4318, %v4318
      %v4351 = vmul.f32 %v4319, %v4319
      %v4352 = vmul.f32 %v4320, %v4320
      %v4353 = vmul.f32 %v4321, %v4321
      %v4354 = vmul.f32 %v4322, %v4322
      %v4355 = vmul.f32 %v4323, %v4323
      %v4356 = vmul.f32 %v4324, %v4324
      %v4357 = vmul.f32 %v4325, %v4325
      %v4358 = vmul.f32 %v4326, %v4326
      %v4359 = vsel %vm1222, %v4327, 0.0
      %v4360 = vsel %vm1222, %v4328, 0.0
      %v4361 = vadd.f32 %v4359, %v4360
      %v4362 = vsel %vm1222, %v4329, 0.0
      %v4363 = vadd.f32 %v4361, %v4362
      %v4364 = vsel %vm1222, %v4330, 0.0
      %v4365 = vadd.f32 %v4363, %v4364
      %v4366 = vsel %vm1222, %v4331, 0.0
      %v4367 = vadd.f32 %v4365, %v4366
      %v4368 = vsel %vm1222, %v4332, 0.0
      %v4369 = vadd.f32 %v4367, %v4368
      %v4370 = vsel %vm1222, %v4333, 0.0
      %v4371 = vadd.f32 %v4369, %v4370
      %v4372 = vsel %vm1222, %v4334, 0.0
      %v4373 = vadd.f32 %v4371, %v4372
      %v4374 = vsel %vm1222, %v4335, 0.0
      %v4375 = vadd.f32 %v4373, %v4374
      %v4376 = vsel %vm1222, %v4336, 0.0
      %v4377 = vadd.f32 %v4375, %v4376
      %v4378 = vsel %vm1222, %v4337, 0.0
      %v4379 = vadd.f32 %v4377, %v4378
      %v4380 = vsel %vm1222, %v4338, 0.0
      %v4381 = vadd.f32 %v4379, %v4380
      %v4382 = vsel %vm1222, %v4339, 0.0
      %v4383 = vadd.f32 %v4381, %v4382
      %v4384 = vsel %vm1222, %v4340, 0.0
      %v4385 = vadd.f32 %v4383, %v4384
      %v4386 = vsel %vm1222, %v4341, 0.0
      %v4387 = vadd.f32 %v4385, %v4386
      %v4388 = vsel %vm1222, %v4342, 0.0
      %v4389 = vadd.f32 %v4387, %v4388
      %v4390 = vsel %vm1222, %v4343, 0.0
      %v4391 = vadd.f32 %v4389, %v4390
      %v4392 = vsel %vm1222, %v4344, 0.0
      %v4393 = vadd.f32 %v4391, %v4392
      %v4394 = vsel %vm1222, %v4345, 0.0
      %v4395 = vadd.f32 %v4393, %v4394
      %v4396 = vsel %vm1222, %v4346, 0.0
      %v4397 = vadd.f32 %v4395, %v4396
      %v4398 = vsel %vm1222, %v4347, 0.0
      %v4399 = vadd.f32 %v4397, %v4398
      %v4400 = vsel %vm1222, %v4348, 0.0
      %v4401 = vadd.f32 %v4399, %v4400
      %v4402 = vsel %vm1222, %v4349, 0.0
      %v4403 = vadd.f32 %v4401, %v4402
      %v4404 = vsel %vm1222, %v4350, 0.0
      %v4405 = vadd.f32 %v4403, %v4404
      %v4406 = vsel %vm1222, %v4351, 0.0
      %v4407 = vadd.f32 %v4405, %v4406
      %v4408 = vsel %vm1222, %v4352, 0.0
      %v4409 = vadd.f32 %v4407, %v4408
      %v4410 = vsel %vm1222, %v4353, 0.0
      %v4411 = vadd.f32 %v4409, %v4410
      %v4412 = vsel %vm1222, %v4354, 0.0
      %v4413 = vadd.f32 %v4411, %v4412
      %v4414 = vsel %vm1222, %v4355, 0.0
      %v4415 = vadd.f32 %v4413, %v4414
      %v4416 = vsel %vm1222, %v4356, 0.0
      %v4417 = vadd.f32 %v4415, %v4416
      %v4418 = vsel %vm1222, %v4357, 0.0
      %v4419 = vadd.f32 %v4417, %v4418
      %v4420 = vsel %vm1222, %v4358, 0.0
      %v4421 = vadd.f32 %v4419, %v4420
      %4422 = vadd.xlane.f32.xlu0 %v4421
      %v4423 = vpop.xlane.xlu0 %4422
      %v4424 = vrot.slane %v4423, 4
      %v4425 = vadd.f32 %v4423, %v4424
      %v4426 = vrot.slane %v4425, 2
      %v4427 = vadd.f32 %v4425, %v4426
      %v4428 = vrot.slane %v4427, 1
      %v4429 = vadd.f32 %v4427, %v4428
      %s4430 = vtos %v4429
      %vm4431 = vcmp.eq.s32.totalorder %v1731, 0
      %v4432 = vsel %vm4431, 1, 0
      %v4433 = vcvt.s32.f32 %v4432
      %v4434 = vstv %s4158
      %v4435 = vmul.f32 %v4434, %v4433
      %vm4436 = vcmp.eq.s32.totalorder %v1731, 1
      %v4437 = vsel %vm4436, 1, 0
      %v4438 = vcvt.s32.f32 %v4437
      %v4439 = vstv %s4294
      %v4440 = vmul.f32 %v4439, %v4438
      %v4441 = vadd.f32 %v4435, %v4440
      %vm4442 = vcmp.eq.s32.totalorder %v1731, 2
      %v4443 = vsel %vm4442, 1, 0
      %v4444 = vcvt.s32.f32 %v4443
      %v4445 = vstv %s4430
      %v4446 = vmul.f32 %v4445, %v4444
      %v4447 = vadd.f32 %v4441, %v4446
      %4448 = vst [vmem:[%s380] sm:$0x1] %v4447
      %p4449 = scmp.lt.s32.totalorder %s20, 1
      %s4450 = scalar_select %p4449, %s20, 1
      %s4451 = smul.addr %s4450, 32
      %s4452 = smul.addr %s4451, 8
      %s4453 = scalar_lea.vmem %s6, %s4452
      %p4454 = scmp.lt.s32.totalorder %s20, 1
      %s4455 = scalar_select %p4454, %s20, 1
      %s4456 = smul.addr %s4455, 32
      %s4457 = smul.addr %s4456, 8
      %s4458 = scalar_lea.vmem %s7, %s4457
      %p4459 = scmp.lt.s32.totalorder %s20, 1
      %s4460 = scalar_select %p4459, %s20, 1
      %s4461 = scalar_lea.vmem %s8, %s4460
      // Predicated region
      $region45: #{image_encoder_forward.11} parent=43 // pred_check
        %p4462 = pneg %p184
      $region46: #{image_encoder_forward.11} parent=43 // pred_check_branch
        %4464 = sbr.rel (%p4462) target = $region48
      $region47: #{image_encoder_forward.11} parent=43 // pred_region
        _
      $region48: #{image_encoder_forward.11} parent=43 // pred_fallthru
        _
      // Predicated region
      $region49: #{image_encoder_forward.11} parent=43 // pred_check
        %p4465 = pneg %p210
      $region50: #{image_encoder_forward.11} parent=43 // pred_check_branch
        %4467 = sbr.rel (%p4465) target = $region52
      $region51: #{image_encoder_forward.11} parent=43 // pred_region
        _
      $region52: #{image_encoder_forward.11} parent=43 // pred_fallthru
        _
      // Predicated region
      $region53: #{image_encoder_forward.11} parent=43 // pred_check
        %p4468 = pneg %p236
      $region54: #{image_encoder_forward.11} parent=43 // pred_check_branch
        %4470 = sbr.rel (%p4468) target = $region56
      $region55: #{image_encoder_forward.11} parent=43 // pred_region
        _
      $region56: #{image_encoder_forward.11} parent=43 // pred_fallthru
        _
    $region44: #{image_encoder_forward.11} parent=5 // pred_fallthru
      _
    %p4471 = scmp.le.s32.totalorder 2, %s15
    // Predicated region
    $region57: #{image_encoder_forward.11} parent=5 // pred_check
      %p4472 = pneg %p4471
    $region58: #{image_encoder_forward.11} parent=5 // pred_check_branch
      %4474 = sbr.rel (%p4472) target = $region60
    $region59: #{image_encoder_forward.11} parent=5 // pred_region
      %s4475 = ssub.s32 %s15, 2
      // Predicated region
      $region61: #{image_encoder_forward.11} parent=59 // pred_check
        %p4476 = pneg %p190
      $region62: #{image_encoder_forward.11} parent=59 // pred_check_branch
        %4478 = sbr.rel (%p4476) target = $region64
      $region63: #{image_encoder_forward.11} parent=59 // pred_region
        %p4479 = scmp.lt.s32.totalorder %s21, 1
        %s4480 = scalar_select %p4479, %s21, 1
        %s4481 = smul.addr %s4480, 32
        %s4482 = smul.addr %s4481, 8
        %s4483 = scalar_lea.vmem %s6, %s4482
      $region64: #{image_encoder_forward.11} parent=59 // pred_fallthru
        _
      // Predicated region
      $region65: #{image_encoder_forward.11} parent=59 // pred_check
        %p4484 = pneg %p216
      $region66: #{image_encoder_forward.11} parent=59 // pred_check_branch
        %4486 = sbr.rel (%p4484) target = $region68
      $region67: #{image_encoder_forward.11} parent=59 // pred_region
        %p4487 = scmp.lt.s32.totalorder %s21, 1
        %s4488 = scalar_select %p4487, %s21, 1
        %s4489 = smul.addr %s4488, 32
        %s4490 = smul.addr %s4489, 8
        %s4491 = scalar_lea.vmem %s7, %s4490
      $region68: #{image_encoder_forward.11} parent=59 // pred_fallthru
        _
      // Predicated region
      $region69: #{image_encoder_forward.11} parent=59 // pred_check
        %p4492 = pneg %p242
      $region70: #{image_encoder_forward.11} parent=59 // pred_check_branch
        %4494 = sbr.rel (%p4492) target = $region72
      $region71: #{image_encoder_forward.11} parent=59 // pred_region
        %p4495 = scmp.lt.s32.totalorder %s21, 1
        %s4496 = scalar_select %p4495, %s21, 1
        %s4497 = scalar_lea.vmem %s8, %s4496
      $region72: #{image_encoder_forward.11} parent=59 // pred_fallthru
        _
    $region60: #{image_encoder_forward.11} parent=5 // pred_fallthru
      _
  $region6: #{image_encoder_forward.11} parent=0 // loop_footer
    %s19 = sadd.s32 1, %s15
  $region7: #{image_encoder_forward.11} parent=0 // loop_footer_branch
    %14 = sbr.rel target = $region3
  $region8: #{image_encoder_forward.11} parent=0 // loop_exit
    _

</llo_original>
